<compile_context>
chip_gen: v5e
topology: v5e:2x2
jax: 0.10.0
libtpu: 0.0.40
codegen_flags: <defaults>
</compile_context>

<pallas_src>
import functools

import jax
import jax.numpy as jnp
from jax import lax
from jax.experimental import pallas as pl
from jax.experimental.pallas import tpu as pltpu

# ---- small hyper-params consistent with the module's forward ----------------
TOP_WORDS = 100   # vocab            (10000 in original)
EMB_DIM   = 32    # embedding dim    (300 in original)
U         = 8     # LSTM hidden/dir  (64 in original)
DA        = 16    # lin1 out         (32 in original)
R         = 4     # attention heads  (16 in original)
B         = 8     # batch            (500 hard-coded in original .view())
T         = 16    # sequence length  (200 in original)


# ------------------------------- Pallas kernel -------------------------------
def self_attentive_kernel(b_real,                        # python int: real batch
                          emb_ref,                       # (E, T*Bp)  bf16
                          wih_ref, bih_ref,              # (8U, E) bf16, (8U, 1) f32
                          whh_ref,                       # (8U, 2U) bf16 block-diag
                          w1_ref, b1_ref,                # (DA, 2U) bf16, (DA, 1) f32
                          w2_ref, b2_ref,                # (R, DA) bf16, (R, 1) f32
                          w3_ref, b3_ref,                # (R, 2U) bf16, (1, 1) f32
                          out_ref,                       # (1, Bp) f32
                          xg_scr,                        # (8U, T*Bp) f32 gate inputs
                          h_scr):                        # (2U, T*Bp) f32 hidden states
    f32 = jnp.float32
    bf16 = jnp.bfloat16

    TBp = emb_ref.shape[1]
    Bp = out_ref.shape[1]
    T_ = TBp // Bp
    U_ = whh_ref.shape[1] // 2
    G_ = 4 * U_

    # ---- hoisted input projections: ONE matmul for both directions, landing
    # directly in the gate-major / batch-on-lanes layout (no transpose).
    xg_scr[...] = (jnp.dot(wih_ref[...], emb_ref[...], preferred_element_type=f32)
                   + bih_ref[...])                                    # (8U, T*Bp)

    whh = whh_ref[...]                                                # (8U, 2U) bf16

    def cell(g, c):
        # g : (4U, Bp) f32 -> gate slices are sublane slices (cheap); f32 VPU/EUP.
        i_g = jax.nn.sigmoid(g[0 * U_:1 * U_])
        f_g = jax.nn.sigmoid(g[1 * U_:2 * U_])
        g_g = jnp.tanh(      g[2 * U_:3 * U_])
        o_g = jax.nn.sigmoid(g[3 * U_:4 * U_])
        c_new = f_g * c + i_g * g_g
        return o_g * jnp.tanh(c_new), c_new

    h_f = jnp.zeros((U_, Bp), f32)
    c_f = jnp.zeros((U_, Bp), f32)
    h_b = jnp.zeros((U_, Bp), f32)
    c_b = jnp.zeros((U_, Bp), f32)

    # ---- fused bidirectional recurrence: one block-diagonal MXU matmul / step.
    # TODO(synk): at production T=200 switch to lax.fori_loop(..., unroll=4..8)
    # with 128-aligned dynamic lane slices to bound compile time / vreg pressure.
    for t in range(T_):
        tb = T_ - 1 - t
        h2 = jnp.concatenate([h_f, h_b], axis=0).astype(bf16)         # (2U, Bp)
        g8 = jnp.dot(whh, h2, preferred_element_type=f32)             # (8U, Bp)
        gf = xg_scr[0:G_,       t * Bp:(t + 1) * Bp] + g8[0:G_]
        gb = xg_scr[G_:2 * G_, tb * Bp:(tb + 1) * Bp] + g8[G_:2 * G_]
        h_f, c_f = cell(gf, c_f)
        h_b, c_b = cell(gb, c_b)
        h_scr[0:U_,        t * Bp:(t + 1) * Bp] = h_f
        h_scr[U_:2 * U_, tb * Bp:(tb + 1) * Bp] = h_b

    # ---- attention head, all feature-major (T*Bp on the lane axis) -----------
    Hcat = h_scr[...].astype(bf16)                                    # (2U, T*Bp)
    a = jnp.tanh(jnp.dot(w1_ref[...], Hcat, preferred_element_type=f32)
                 + b1_ref[...])                                       # (DA, T*Bp)
    s = (jnp.dot(w2_ref[...], a.astype(bf16), preferred_element_type=f32)
         + b2_ref[...])                                               # (R, T*Bp)
    # bmm(A^T, H) + lin3 reassociated: Q[r, (t,b)] = sum_h w3[r,h] * Hcat[h,(t,b)]
    q = jnp.dot(w3_ref[...], Hcat, preferred_element_type=f32)        # (R, T*Bp)

    # softmax over the BATCH axis (torch dim=0, faithful to the module).
    # A single global shift is valid for every softmax group (stable, no relayout).
    smax = jnp.max(jnp.max(s, axis=1, keepdims=True), axis=0, keepdims=True)  # (1,1)
    lane = lax.broadcasted_iota(jnp.int32, (1, Bp), 1)
    valid = (lane < b_real).astype(f32)                               # mask padded batch lanes

    # Per time-step: exp (lane-dense EUP), batch-reduce (cross-lane XLU),
    # approx reciprocal (EUP), weighted reduce against Q -> logits (1, Bp).
    # TODO(synk): at production T=200 vectorize this tail as (R, T, 128) blocks.
    acc = jnp.zeros((1, Bp), f32)
    for t in range(T_):
        sl = slice(t * Bp, (t + 1) * Bp)
        e_t = jnp.exp(s[:, sl] - smax) * valid                        # (R, Bp)
        d_t = jnp.sum(e_t, axis=1, keepdims=True)                     # (R, 1)
        a_t = e_t * pl.reciprocal(d_t, approx=True)                   # softmax weights
        acc = acc + jnp.sum(a_t * q[:, sl], axis=0, keepdims=True)    # (1, Bp)

    out_ref[...] = jax.nn.sigmoid(acc + b3_ref[...])                  # lane-dense (1, Bp)


# --------------------------------- wrapper -----------------------------------
def self_attentive_forward(x_idx, params):
    Bx, Tx = x_idx.shape
    Ux = params["whh_f"].shape[1]
    Rx = params["w2"].shape[0]
    DAx = params["w1"].shape[0]
    Ex = params["embedding"].shape[1]
    Bp = ((Bx + 127) // 128) * 128            # pad batch to a full 128-lane tile

    # Embedding lookup is a data-dependent gather; done as plain-JAX glue.
    # TODO(synk): embedding gather could be a PrefetchScalarGridSpec row-gather kernel.
    emb = jnp.take(params["embedding"], x_idx, axis=0)                # (B, T, E)
    emb = jnp.pad(emb, ((0, Bp - Bx), (0, 0), (0, 0)))                # (Bp, T, E)
    # feature-major / batch-on-lanes: (E, T*Bp) with flat column index t*Bp + b.
    emb_flat = jnp.transpose(emb, (2, 1, 0)).reshape(Ex, Tx * Bp).astype(jnp.bfloat16)

    bf16 = jnp.bfloat16
    # Parameter re-packing (pure layout work, outside the kernel; MXU operands bf16).
    wih_cat = jnp.concatenate([params["wih_f"], params["wih_b"]], axis=0).astype(bf16)  # (8U, E)
    b_cat = jnp.concatenate([params["b_f"], params["b_b"]], axis=1).reshape(8 * Ux, 1)  # (8U, 1)
    z4 = jnp.zeros((4 * Ux, Ux), params["whh_f"].dtype)
    whh_blk = jnp.concatenate(                                                          # (8U, 2U)
        [jnp.concatenate([params["whh_f"], z4], axis=1),
         jnp.concatenate([z4, params["whh_b"]], axis=1)], axis=0).astype(bf16)
    w1 = params["w1"].astype(bf16)                                    # (DA, 2U)
    b1 = params["b1"].reshape(DAx, 1)                                 # (DA, 1)
    w2 = params["w2"].astype(bf16)                                    # (R, DA)
    b2 = params["b2"].reshape(Rx, 1)                                  # (R, 1)
    w3m = params["w3"].reshape(Rx, 2 * Ux).astype(bf16)               # (R, 2U)
    b3 = params["b3"]                                                 # (1, 1)

    kernel = functools.partial(self_attentive_kernel, Bx)
    kernel_inputs = (emb_flat, wih_cat, b_cat, whh_blk, w1, b1, w2, b2, w3m, b3)

    # TODO(synk): at production sizes (T=200, B=500, E=300, U=64) add a grid over
    # batch tiles (Btile=128, "parallel") with BlockSpec pipelining so emb / gate
    # inputs / H are streamed HBM->VMEM per tile; size tiles for v7x's 64 MiB VMEM
    # (bf16 H storage is tile-aligned there since U=64 is a multiple of 16).
    # TODO(synk): on v7x shard the batch grid axis across the two TensorCores
    # (dimension_semantics=PARALLEL) or split fwd/bwd across cores via pl.core_map.
    out_row = pl.pallas_call(
        kernel,
        out_shape=jax.ShapeDtypeStruct((1, Bp), jnp.float32),
        in_specs=[pl.BlockSpec(memory_space=pltpu.MemorySpace.VMEM)
                  for _ in kernel_inputs],
        out_specs=pl.BlockSpec(memory_space=pltpu.MemorySpace.VMEM),
        scratch_shapes=[pltpu.VMEM((8 * Ux, Tx * Bp), jnp.float32),   # gate inputs
                        pltpu.VMEM((2 * Ux, Tx * Bp), jnp.float32)],  # hidden states
        compiler_params=pltpu.CompilerParams(vmem_limit_bytes=64 * 1024 * 1024),
    )(*kernel_inputs)

    return out_row[:, :Bx].reshape(Bx, 1)


# ------------------------------ pure-JAX reference ----------------------------
def _lstm_ref(emb, wih, whh, b, reverse):
    Bx = emb.shape[0]

    def step(carry, x_t):
        h, c = carry
        g = x_t @ wih.T + h @ whh.T + b
        i_g = jax.nn.sigmoid(g[:, 0 * U:1 * U])
        f_g = jax.nn.sigmoid(g[:, 1 * U:2 * U])
        g_g = jnp.tanh(      g[:, 2 * U:3 * U])
        o_g = jax.nn.sigmoid(g[:, 3 * U:4 * U])
        c = f_g * c + i_g * g_g
        h = o_g * jnp.tanh(c)
        return (h, c), h

    xs = jnp.transpose(emb, (1, 0, 2))                           # (T, B, E)
    if reverse:
        xs = xs[::-1]
    (_, _), hs = lax.scan(step, (jnp.zeros((Bx, U)), jnp.zeros((Bx, U))), xs)
    if reverse:
        hs = hs[::-1]
    return jnp.transpose(hs, (1, 0, 2))                          # (B, T, U)


def reference_forward(x_idx, params):
    emb = jnp.take(params["embedding"], x_idx, axis=0)
    hf = _lstm_ref(emb, params["wih_f"], params["whh_f"], params["b_f"], False)
    hb = _lstm_ref(emb, params["wih_b"], params["whh_b"], params["b_b"], True)
    H = jnp.concatenate([hf, hb], axis=-1)                       # (B, T, 2U)
    a = jnp.tanh(H @ params["w1"].T + params["b1"])
    s = a @ params["w2"].T + params["b2"]                        # (B, T, R)
    A = jax.nn.softmax(s, axis=0)                                # softmax over batch (torch dim=0)
    M = jnp.einsum("btr,bth->brh", A, H)                         # bmm(A^T, H)
    M = M.reshape(x_idx.shape[0], R * 2 * U)
    return jax.nn.sigmoid(M @ params["w3"].T + params["b3"])


# ----------------------------------- main -------------------------------------
def make_params(key):
    ks = jax.random.split(key, 12)
    scale = 0.1
    p = {
        "embedding": jax.random.normal(ks[0], (TOP_WORDS, EMB_DIM), jnp.float32),
        "wih_f": scale * jax.random.normal(ks[1], (4 * U, EMB_DIM), jnp.float32),
        "whh_f": scale * jax.random.normal(ks[2], (4 * U, U), jnp.float32),
        "b_f":   scale * jax.random.normal(ks[3], (1, 4 * U), jnp.float32),
        "wih_b": scale * jax.random.normal(ks[4], (4 * U, EMB_DIM), jnp.float32),
        "whh_b": scale * jax.random.normal(ks[5], (4 * U, U), jnp.float32),
        "b_b":   scale * jax.random.normal(ks[6], (1, 4 * U), jnp.float32),
        "w1":    scale * jax.random.normal(ks[7], (DA, 2 * U), jnp.float32),
        "b1":    scale * jax.random.normal(ks[8], (1, DA), jnp.float32),
        "w2":    scale * jax.random.normal(ks[9], (R, DA), jnp.float32),
        "b2":    scale * jax.random.normal(ks[10], (1, R), jnp.float32),
        "w3":    scale * jax.random.normal(ks[11], (1, R * 2 * U), jnp.float32),
        "b3":    jnp.zeros((1, 1), jnp.float32),
    }
    return p


if __name__ == "__main__":
    key = jax.random.PRNGKey(0)
    pkey, xkey = jax.random.split(key)
    params = make_params(pkey)
    x = jax.random.randint(xkey, (B, T), 0, TOP_WORDS, dtype=jnp.int32)

    out = jax.jit(self_attentive_forward)(x, params)
    out = jax.block_until_ready(out)

    ref = jax.block_until_ready(reference_forward(x, params))
    assert out.shape == (B, 1), out.shape
    assert jnp.allclose(out, ref, atol=5e-3, rtol=1e-2), (
        f"max diff {jnp.max(jnp.abs(out - ref))}")

    print("KERNEL_OK")
</pallas_src>

<mosaic_0001>
module attributes {stable_mosaic.version = 11 : i64} {
  func.func @self_attentive_kernel(%arg0: memref<32x2048xbf16, #tpu.memory_space<vmem>>, %arg1: memref<64x32xbf16, #tpu.memory_space<vmem>>, %arg2: memref<64x1xf32, #tpu.memory_space<vmem>>, %arg3: memref<64x16xbf16, #tpu.memory_space<vmem>>, %arg4: memref<16x16xbf16, #tpu.memory_space<vmem>>, %arg5: memref<16x1xf32, #tpu.memory_space<vmem>>, %arg6: memref<4x16xbf16, #tpu.memory_space<vmem>>, %arg7: memref<4x1xf32, #tpu.memory_space<vmem>>, %arg8: memref<4x16xbf16, #tpu.memory_space<vmem>>, %arg9: memref<1x1xf32, #tpu.memory_space<vmem>>, %arg10: memref<1x128xf32, #tpu.memory_space<vmem>>, %arg11: memref<64x2048xf32, #tpu.memory_space<vmem>>, %arg12: memref<16x2048xf32, #tpu.memory_space<vmem>>) attributes {dimension_semantics = [], scalar_prefetch = 0 : i64, scratch_operands = 2 : i64, tpu.core_type = #tpu.core_type<tc>} {
    %c0 = arith.constant 0 : index
    %c0_0 = arith.constant 0 : index
    %0 = vector.load %arg1[%c0, %c0_0] : memref<64x32xbf16, #tpu.memory_space<vmem>>, vector<64x32xbf16>
    %c0_1 = arith.constant 0 : index
    %c0_2 = arith.constant 0 : index
    %1 = vector.load %arg0[%c0_1, %c0_2] : memref<32x2048xbf16, #tpu.memory_space<vmem>>, vector<32x2048xbf16>
    %cst = arith.constant dense<0.000000e+00> : vector<64x2048xf32>
    %2 = tpu.matmul %0, %1, %cst {dimension_numbers = #tpu.dot_dimension_numbers<[1], [0], [0], [1], [0, 0, 1, 1], [], []>} : vector<64x32xbf16>, vector<32x2048xbf16>, vector<64x2048xf32> -> vector<64x2048xf32>
    %c0_3 = arith.constant 0 : index
    %c0_4 = arith.constant 0 : index
    %3 = vector.load %arg2[%c0_3, %c0_4] : memref<64x1xf32, #tpu.memory_space<vmem>>, vector<64x1xf32>
    %4 = vector.broadcast %3 : vector<64x1xf32> to vector<64x2048xf32>
    %5 = arith.addf %2, %4 : vector<64x2048xf32>
    %c0_5 = arith.constant 0 : index
    %c0_6 = arith.constant 0 : index
    %6 = vector.load %arg11[%c0_5, %c0_6] : memref<64x2048xf32, #tpu.memory_space<vmem>>, vector<64x2048xf32>
    tpu.vector_store %arg11[%c0_5, %c0_6], %5 {strides = array<i32>} : memref<64x2048xf32, #tpu.memory_space<vmem>>, vector<64x2048xf32>,
    %c0_7 = arith.constant 0 : index
    %c0_8 = arith.constant 0 : index
    %7 = vector.load %arg3[%c0_7, %c0_8] : memref<64x16xbf16, #tpu.memory_space<vmem>>, vector<64x16xbf16>
    %cst_9 = arith.constant 0.000000e+00 : f32
    %8 = vector.broadcast %cst_9 : f32 to vector<8x128xf32>
    %cst_10 = arith.constant 0.000000e+00 : f32
    %9 = vector.broadcast %cst_10 : f32 to vector<8x128xf32>
    %cst_11 = arith.constant 0.000000e+00 : f32
    %10 = vector.broadcast %cst_11 : f32 to vector<8x128xf32>
    %cst_12 = arith.constant 0.000000e+00 : f32
    %11 = vector.broadcast %cst_12 : f32 to vector<8x128xf32>
    %12 = tpu.concatenate %8, %10 in 0 : vector<8x128xf32>, vector<8x128xf32> -> vector<16x128xf32>
    %13 = arith.truncf %12 : vector<16x128xf32> to vector<16x128xbf16>
    %cst_13 = arith.constant dense<0.000000e+00> : vector<64x128xf32>
    %14 = tpu.matmul %7, %13, %cst_13 {dimension_numbers = #tpu.dot_dimension_numbers<[1], [0], [0], [1], [0, 0, 1, 1], [], []>} : vector<64x16xbf16>, vector<16x128xbf16>, vector<64x128xf32> -> vector<64x128xf32>
    %c0_14 = arith.constant 0 : index
    %c0_15 = arith.constant 0 : index
    %15 = vector.load %arg11[%c0_14, %c0_15] : memref<64x2048xf32, #tpu.memory_space<vmem>>, vector<32x128xf32>
    %16 = vector.extract_strided_slice %14 {offsets = [0, 0], sizes = [32, 128], strides = [1, 1]} : vector<64x128xf32> to vector<32x128xf32>
    %17 = arith.addf %15, %16 : vector<32x128xf32>
    %c32 = arith.constant 32 : index
    %c1920 = arith.constant 1920 : index
    %18 = vector.load %arg11[%c32, %c1920] : memref<64x2048xf32, #tpu.memory_space<vmem>>, vector<32x128xf32>
    %19 = vector.extract_strided_slice %14 {offsets = [32, 0], sizes = [32, 128], strides = [1, 1]} : vector<64x128xf32> to vector<32x128xf32>
    %20 = arith.addf %18, %19 : vector<32x128xf32>
    %21 = vector.extract_strided_slice %17 {offsets = [0, 0], sizes = [8, 128], strides = [1, 1]} : vector<32x128xf32> to vector<8x128xf32>
    %22 = arith.negf %21 : vector<8x128xf32>
    %23 = math.exp %22 : vector<8x128xf32>
    %cst_16 = arith.constant 1.000000e+00 : f32
    %24 = vector.broadcast %cst_16 : f32 to vector<8x128xf32>
    %25 = arith.addf %24, %23 : vector<8x128xf32>
    %26 = arith.divf %24, %25 : vector<8x128xf32>
    %27 = vector.extract_strided_slice %17 {offsets = [8, 0], sizes = [8, 128], strides = [1, 1]} : vector<32x128xf32> to vector<8x128xf32>
    %28 = arith.negf %27 : vector<8x128xf32>
    %29 = math.exp %28 : vector<8x128xf32>
    %cst_17 = arith.constant 1.000000e+00 : f32
    %30 = vector.broadcast %cst_17 : f32 to vector<8x128xf32>
    %31 = arith.addf %30, %29 : vector<8x128xf32>
    %32 = arith.divf %30, %31 : vector<8x128xf32>
    %33 = vector.extract_strided_slice %17 {offsets = [16, 0], sizes = [8, 128], strides = [1, 1]} : vector<32x128xf32> to vector<8x128xf32>
    %34 = math.tanh %33 : vector<8x128xf32>
    %35 = vector.extract_strided_slice %17 {offsets = [24, 0], sizes = [8, 128], strides = [1, 1]} : vector<32x128xf32> to vector<8x128xf32>
    %36 = arith.negf %35 : vector<8x128xf32>
    %37 = math.exp %36 : vector<8x128xf32>
    %cst_18 = arith.constant 1.000000e+00 : f32
    %38 = vector.broadcast %cst_18 : f32 to vector<8x128xf32>
    %39 = arith.addf %38, %37 : vector<8x128xf32>
    %40 = arith.divf %38, %39 : vector<8x128xf32>
    %41 = arith.mulf %32, %9 : vector<8x128xf32>
    %42 = arith.mulf %26, %34 : vector<8x128xf32>
    %43 = arith.addf %41, %42 : vector<8x128xf32>
    %44 = math.tanh %43 : vector<8x128xf32>
    %45 = arith.mulf %40, %44 : vector<8x128xf32>
    %46 = vector.extract_strided_slice %20 {offsets = [0, 0], sizes = [8, 128], strides = [1, 1]} : vector<32x128xf32> to vector<8x128xf32>
    %47 = arith.negf %46 : vector<8x128xf32>
    %48 = math.exp %47 : vector<8x128xf32>
    %cst_19 = arith.constant 1.000000e+00 : f32
    %49 = vector.broadcast %cst_19 : f32 to vector<8x128xf32>
    %50 = arith.addf %49, %48 : vector<8x128xf32>
    %51 = arith.divf %49, %50 : vector<8x128xf32>
    %52 = vector.extract_strided_slice %20 {offsets = [8, 0], sizes = [8, 128], strides = [1, 1]} : vector<32x128xf32> to vector<8x128xf32>
    %53 = arith.negf %52 : vector<8x128xf32>
    %54 = math.exp %53 : vector<8x128xf32>
    %cst_20 = arith.constant 1.000000e+00 : f32
    %55 = vector.broadcast %cst_20 : f32 to vector<8x128xf32>
    %56 = arith.addf %55, %54 : vector<8x128xf32>
    %57 = arith.divf %55, %56 : vector<8x128xf32>
    %58 = vector.extract_strided_slice %20 {offsets = [16, 0], sizes = [8, 128], strides = [1, 1]} : vector<32x128xf32> to vector<8x128xf32>
    %59 = math.tanh %58 : vector<8x128xf32>
    %60 = vector.extract_strided_slice %20 {offsets = [24, 0], sizes = [8, 128], strides = [1, 1]} : vector<32x128xf32> to vector<8x128xf32>
    %61 = arith.negf %60 : vector<8x128xf32>
    %62 = math.exp %61 : vector<8x128xf32>
    %cst_21 = arith.constant 1.000000e+00 : f32
    %63 = vector.broadcast %cst_21 : f32 to vector<8x128xf32>
    %64 = arith.addf %63, %62 : vector<8x128xf32>
    %65 = arith.divf %63, %64 : vector<8x128xf32>
    %66 = arith.mulf %57, %11 : vector<8x128xf32>
    %67 = arith.mulf %51, %59 : vector<8x128xf32>
    %68 = arith.addf %66, %67 : vector<8x128xf32>
    %69 = math.tanh %68 : vector<8x128xf32>
    %70 = arith.mulf %65, %69 : vector<8x128xf32>
    %c0_22 = arith.constant 0 : index
    %c0_23 = arith.constant 0 : index
    %71 = vector.load %arg12[%c0_22, %c0_23] : memref<16x2048xf32, #tpu.memory_space<vmem>>, vector<8x128xf32>
    tpu.vector_store %arg12[%c0_22, %c0_23], %45 {strides = array<i32>} : memref<16x2048xf32, #tpu.memory_space<vmem>>, vector<8x128xf32>,
    %c8 = arith.constant 8 : index
    %c1920_24 = arith.constant 1920 : index
    %72 = vector.load %arg12[%c8, %c1920_24] : memref<16x2048xf32, #tpu.memory_space<vmem>>, vector<8x128xf32>
    tpu.vector_store %arg12[%c8, %c1920_24], %70 {strides = array<i32>} : memref<16x2048xf32, #tpu.memory_space<vmem>>, vector<8x128xf32>,
    %73 = tpu.concatenate %45, %70 in 0 : vector<8x128xf32>, vector<8x128xf32> -> vector<16x128xf32>
    %74 = arith.truncf %73 : vector<16x128xf32> to vector<16x128xbf16>
    %cst_25 = arith.constant dense<0.000000e+00> : vector<64x128xf32>
    %75 = tpu.matmul %7, %74, %cst_25 {dimension_numbers = #tpu.dot_dimension_numbers<[1], [0], [0], [1], [0, 0, 1, 1], [], []>} : vector<64x16xbf16>, vector<16x128xbf16>, vector<64x128xf32> -> vector<64x128xf32>
    %c0_26 = arith.constant 0 : index
    %c128 = arith.constant 128 : index
    %76 = vector.load %arg11[%c0_26, %c128] : memref<64x2048xf32, #tpu.memory_space<vmem>>, vector<32x128xf32>
    %77 = vector.extract_strided_slice %75 {offsets = [0, 0], sizes = [32, 128], strides = [1, 1]} : vector<64x128xf32> to vector<32x128xf32>
    %78 = arith.addf %76, %77 : vector<32x128xf32>
    %c32_27 = arith.constant 32 : index
    %c1792 = arith.constant 1792 : index
    %79 = vector.load %arg11[%c32_27, %c1792] : memref<64x2048xf32, #tpu.memory_space<vmem>>, vector<32x128xf32>
    %80 = vector.extract_strided_slice %75 {offsets = [32, 0], sizes = [32, 128], strides = [1, 1]} : vector<64x128xf32> to vector<32x128xf32>
    %81 = arith.addf %79, %80 : vector<32x128xf32>
    %82 = vector.extract_strided_slice %78 {offsets = [0, 0], sizes = [8, 128], strides = [1, 1]} : vector<32x128xf32> to vector<8x128xf32>
    %83 = arith.negf %82 : vector<8x128xf32>
    %84 = math.exp %83 : vector<8x128xf32>
    %cst_28 = arith.constant 1.000000e+00 : f32
    %85 = vector.broadcast %cst_28 : f32 to vector<8x128xf32>
    %86 = arith.addf %85, %84 : vector<8x128xf32>
    %87 = arith.divf %85, %86 : vector<8x128xf32>
    %88 = vector.extract_strided_slice %78 {offsets = [8, 0], sizes = [8, 128], strides = [1, 1]} : vector<32x128xf32> to vector<8x128xf32>
    %89 = arith.negf %88 : vector<8x128xf32>
    %90 = math.exp %89 : vector<8x128xf32>
    %cst_29 = arith.constant 1.000000e+00 : f32
    %91 = vector.broadcast %cst_29 : f32 to vector<8x128xf32>
    %92 = arith.addf %91, %90 : vector<8x128xf32>
    %93 = arith.divf %91, %92 : vector<8x128xf32>
    %94 = vector.extract_strided_slice %78 {offsets = [16, 0], sizes = [8, 128], strides = [1, 1]} : vector<32x128xf32> to vector<8x128xf32>
    %95 = math.tanh %94 : vector<8x128xf32>
    %96 = vector.extract_strided_slice %78 {offsets = [24, 0], sizes = [8, 128], strides = [1, 1]} : vector<32x128xf32> to vector<8x128xf32>
    %97 = arith.negf %96 : vector<8x128xf32>
    %98 = math.exp %97 : vector<8x128xf32>
    %cst_30 = arith.constant 1.000000e+00 : f32
    %99 = vector.broadcast %cst_30 : f32 to vector<8x128xf32>
    %100 = arith.addf %99, %98 : vector<8x128xf32>
    %101 = arith.divf %99, %100 : vector<8x128xf32>
    %102 = arith.mulf %93, %43 : vector<8x128xf32>
    %103 = arith.mulf %87, %95 : vector<8x128xf32>
    %104 = arith.addf %102, %103 : vector<8x128xf32>
    %105 = math.tanh %104 : vector<8x128xf32>
    %106 = arith.mulf %101, %105 : vector<8x128xf32>
    %107 = vector.extract_strided_slice %81 {offsets = [0, 0], sizes = [8, 128], strides = [1, 1]} : vector<32x128xf32> to vector<8x128xf32>
    %108 = arith.negf %107 : vector<8x128xf32>
    %109 = math.exp %108 : vector<8x128xf32>
    %cst_31 = arith.constant 1.000000e+00 : f32
    %110 = vector.broadcast %cst_31 : f32 to vector<8x128xf32>
    %111 = arith.addf %110, %109 : vector<8x128xf32>
    %112 = arith.divf %110, %111 : vector<8x128xf32>
    %113 = vector.extract_strided_slice %81 {offsets = [8, 0], sizes = [8, 128], strides = [1, 1]} : vector<32x128xf32> to vector<8x128xf32>
    %114 = arith.negf %113 : vector<8x128xf32>
    %115 = math.exp %114 : vector<8x128xf32>
    %cst_32 = arith.constant 1.000000e+00 : f32
    %116 = vector.broadcast %cst_32 : f32 to vector<8x128xf32>
    %117 = arith.addf %116, %115 : vector<8x128xf32>
    %118 = arith.divf %116, %117 : vector<8x128xf32>
    %119 = vector.extract_strided_slice %81 {offsets = [16, 0], sizes = [8, 128], strides = [1, 1]} : vector<32x128xf32> to vector<8x128xf32>
    %120 = math.tanh %119 : vector<8x128xf32>
    %121 = vector.extract_strided_slice %81 {offsets = [24, 0], sizes = [8, 128], strides = [1, 1]} : vector<32x128xf32> to vector<8x128xf32>
    %122 = arith.negf %121 : vector<8x128xf32>
    %123 = math.exp %122 : vector<8x128xf32>
    %cst_33 = arith.constant 1.000000e+00 : f32
    %124 = vector.broadcast %cst_33 : f32 to vector<8x128xf32>
    %125 = arith.addf %124, %123 : vector<8x128xf32>
    %126 = arith.divf %124, %125 : vector<8x128xf32>
    %127 = arith.mulf %118, %68 : vector<8x128xf32>
    %128 = arith.mulf %112, %120 : vector<8x128xf32>
    %129 = arith.addf %127, %128 : vector<8x128xf32>
    %130 = math.tanh %129 : vector<8x128xf32>
    %131 = arith.mulf %126, %130 : vector<8x128xf32>
    %c0_34 = arith.constant 0 : index
    %c128_35 = arith.constant 128 : index
    %132 = vector.load %arg12[%c0_34, %c128_35] : memref<16x2048xf32, #tpu.memory_space<vmem>>, vector<8x128xf32>
    tpu.vector_store %arg12[%c0_34, %c128_35], %106 {strides = array<i32>} : memref<16x2048xf32, #tpu.memory_space<vmem>>, vector<8x128xf32>,
    %c8_36 = arith.constant 8 : index
    %c1792_37 = arith.constant 1792 : index
    %133 = vector.load %arg12[%c8_36, %c1792_37] : memref<16x2048xf32, #tpu.memory_space<vmem>>, vector<8x128xf32>
    tpu.vector_store %arg12[%c8_36, %c1792_37], %131 {strides = array<i32>} : memref<16x2048xf32, #tpu.memory_space<vmem>>, vector<8x128xf32>,
    %134 = tpu.concatenate %106, %131 in 0 : vector<8x128xf32>, vector<8x128xf32> -> vector<16x128xf32>
    %135 = arith.truncf %134 : vector<16x128xf32> to vector<16x128xbf16>
    %cst_38 = arith.constant dense<0.000000e+00> : vector<64x128xf32>
    %136 = tpu.matmul %7, %135, %cst_38 {dimension_numbers = #tpu.dot_dimension_numbers<[1], [0], [0], [1], [0, 0, 1, 1], [], []>} : vector<64x16xbf16>, vector<16x128xbf16>, vector<64x128xf32> -> vector<64x128xf32>
    %c0_39 = arith.constant 0 : index
    %c256 = arith.constant 256 : index
    %137 = vector.load %arg11[%c0_39, %c256] : memref<64x2048xf32, #tpu.memory_space<vmem>>, vector<32x128xf32>
    %138 = vector.extract_strided_slice %136 {offsets = [0, 0], sizes = [32, 128], strides = [1, 1]} : vector<64x128xf32> to vector<32x128xf32>
    %139 = arith.addf %137, %138 : vector<32x128xf32>
    %c32_40 = arith.constant 32 : index
    %c1664 = arith.constant 1664 : index
    %140 = vector.load %arg11[%c32_40, %c1664] : memref<64x2048xf32, #tpu.memory_space<vmem>>, vector<32x128xf32>
    %141 = vector.extract_strided_slice %136 {offsets = [32, 0], sizes = [32, 128], strides = [1, 1]} : vector<64x128xf32> to vector<32x128xf32>
    %142 = arith.addf %140, %141 : vector<32x128xf32>
    %143 = vector.extract_strided_slice %139 {offsets = [0, 0], sizes = [8, 128], strides = [1, 1]} : vector<32x128xf32> to vector<8x128xf32>
    %144 = arith.negf %143 : vector<8x128xf32>
    %145 = math.exp %144 : vector<8x128xf32>
    %cst_41 = arith.constant 1.000000e+00 : f32
    %146 = vector.broadcast %cst_41 : f32 to vector<8x128xf32>
    %147 = arith.addf %146, %145 : vector<8x128xf32>
    %148 = arith.divf %146, %147 : vector<8x128xf32>
    %149 = vector.extract_strided_slice %139 {offsets = [8, 0], sizes = [8, 128], strides = [1, 1]} : vector<32x128xf32> to vector<8x128xf32>
    %150 = arith.negf %149 : vector<8x128xf32>
    %151 = math.exp %150 : vector<8x128xf32>
    %cst_42 = arith.constant 1.000000e+00 : f32
    %152 = vector.broadcast %cst_42 : f32 to vector<8x128xf32>
    %153 = arith.addf %152, %151 : vector<8x128xf32>
    %154 = arith.divf %152, %153 : vector<8x128xf32>
    %155 = vector.extract_strided_slice %139 {offsets = [16, 0], sizes = [8, 128], strides = [1, 1]} : vector<32x128xf32> to vector<8x128xf32>
    %156 = math.tanh %155 : vector<8x128xf32>
    %157 = vector.extract_strided_slice %139 {offsets = [24, 0], sizes = [8, 128], strides = [1, 1]} : vector<32x128xf32> to vector<8x128xf32>
    %158 = arith.negf %157 : vector<8x128xf32>
    %159 = math.exp %158 : vector<8x128xf32>
    %cst_43 = arith.constant 1.000000e+00 : f32
    %160 = vector.broadcast %cst_43 : f32 to vector<8x128xf32>
    %161 = arith.addf %160, %159 : vector<8x128xf32>
    %162 = arith.divf %160, %161 : vector<8x128xf32>
    %163 = arith.mulf %154, %104 : vector<8x128xf32>
    %164 = arith.mulf %148, %156 : vector<8x128xf32>
    %165 = arith.addf %163, %164 : vector<8x128xf32>
    %166 = math.tanh %165 : vector<8x128xf32>
    %167 = arith.mulf %162, %166 : vector<8x128xf32>
    %168 = vector.extract_strided_slice %142 {offsets = [0, 0], sizes = [8, 128], strides = [1, 1]} : vector<32x128xf32> to vector<8x128xf32>
    %169 = arith.negf %168 : vector<8x128xf32>
    %170 = math.exp %169 : vector<8x128xf32>
    %cst_44 = arith.constant 1.000000e+00 : f32
    %171 = vector.broadcast %cst_44 : f32 to vector<8x128xf32>
    %172 = arith.addf %171, %170 : vector<8x128xf32>
    %173 = arith.divf %171, %172 : vector<8x128xf32>
    %174 = vector.extract_strided_slice %142 {offsets = [8, 0], sizes = [8, 128], strides = [1, 1]} : vector<32x128xf32> to vector<8x128xf32>
    %175 = arith.negf %174 : vector<8x128xf32>
    %176 = math.exp %175 : vector<8x128xf32>
    %cst_45 = arith.constant 1.000000e+00 : f32
    %177 = vector.broadcast %cst_45 : f32 to vector<8x128xf32>
    %178 = arith.addf %177, %176 : vector<8x128xf32>
    %179 = arith.divf %177, %178 : vector<8x128xf32>
    %180 = vector.extract_strided_slice %142 {offsets = [16, 0], sizes = [8, 128], strides = [1, 1]} : vector<32x128xf32> to vector<8x128xf32>
    %181 = math.tanh %180 : vector<8x128xf32>
    %182 = vector.extract_strided_slice %142 {offsets = [24, 0], sizes = [8, 128], strides = [1, 1]} : vector<32x128xf32> to vector<8x128xf32>
    %183 = arith.negf %182 : vector<8x128xf32>
    %184 = math.exp %183 : vector<8x128xf32>
    %cst_46 = arith.constant 1.000000e+00 : f32
    %185 = vector.broadcast %cst_46 : f32 to vector<8x128xf32>
    %186 = arith.addf %185, %184 : vector<8x128xf32>
    %187 = arith.divf %185, %186 : vector<8x128xf32>
    %188 = arith.mulf %179, %129 : vector<8x128xf32>
    %189 = arith.mulf %173, %181 : vector<8x128xf32>
    %190 = arith.addf %188, %189 : vector<8x128xf32>
    %191 = math.tanh %190 : vector<8x128xf32>
    %192 = arith.mulf %187, %191 : vector<8x128xf32>
    %c0_47 = arith.constant 0 : index
    %c256_48 = arith.constant 256 : index
    %193 = vector.load %arg12[%c0_47, %c256_48] : memref<16x2048xf32, #tpu.memory_space<vmem>>, vector<8x128xf32>
    tpu.vector_store %arg12[%c0_47, %c256_48], %167 {strides = array<i32>} : memref<16x2048xf32, #tpu.memory_space<vmem>>, vector<8x128xf32>,
    %c8_49 = arith.constant 8 : index
    %c1664_50 = arith.constant 1664 : index
    %194 = vector.load %arg12[%c8_49, %c1664_50] : memref<16x2048xf32, #tpu.memory_space<vmem>>, vector<8x128xf32>
    tpu.vector_store %arg12[%c8_49, %c1664_50], %192 {strides = array<i32>} : memref<16x2048xf32, #tpu.memory_space<vmem>>, vector<8x128xf32>,
    %195 = tpu.concatenate %167, %192 in 0 : vector<8x128xf32>, vector<8x128xf32> -> vector<16x128xf32>
    %196 = arith.truncf %195 : vector<16x128xf32> to vector<16x128xbf16>
    %cst_51 = arith.constant dense<0.000000e+00> : vector<64x128xf32>
    %197 = tpu.matmul %7, %196, %cst_51 {dimension_numbers = #tpu.dot_dimension_numbers<[1], [0], [0], [1], [0, 0, 1, 1], [], []>} : vector<64x16xbf16>, vector<16x128xbf16>, vector<64x128xf32> -> vector<64x128xf32>
    %c0_52 = arith.constant 0 : index
    %c384 = arith.constant 384 : index
    %198 = vector.load %arg11[%c0_52, %c384] : memref<64x2048xf32, #tpu.memory_space<vmem>>, vector<32x128xf32>
    %199 = vector.extract_strided_slice %197 {offsets = [0, 0], sizes = [32, 128], strides = [1, 1]} : vector<64x128xf32> to vector<32x128xf32>
    %200 = arith.addf %198, %199 : vector<32x128xf32>
    %c32_53 = arith.constant 32 : index
    %c1536 = arith.constant 1536 : index
    %201 = vector.load %arg11[%c32_53, %c1536] : memref<64x2048xf32, #tpu.memory_space<vmem>>, vector<32x128xf32>
    %202 = vector.extract_strided_slice %197 {offsets = [32, 0], sizes = [32, 128], strides = [1, 1]} : vector<64x128xf32> to vector<32x128xf32>
    %203 = arith.addf %201, %202 : vector<32x128xf32>
    %204 = vector.extract_strided_slice %200 {offsets = [0, 0], sizes = [8, 128], strides = [1, 1]} : vector<32x128xf32> to vector<8x128xf32>
    %205 = arith.negf %204 : vector<8x128xf32>
    %206 = math.exp %205 : vector<8x128xf32>
    %cst_54 = arith.constant 1.000000e+00 : f32
    %207 = vector.broadcast %cst_54 : f32 to vector<8x128xf32>
    %208 = arith.addf %207, %206 : vector<8x128xf32>
    %209 = arith.divf %207, %208 : vector<8x128xf32>
    %210 = vector.extract_strided_slice %200 {offsets = [8, 0], sizes = [8, 128], strides = [1, 1]} : vector<32x128xf32> to vector<8x128xf32>
    %211 = arith.negf %210 : vector<8x128xf32>
    %212 = math.exp %211 : vector<8x128xf32>
    %cst_55 = arith.constant 1.000000e+00 : f32
    %213 = vector.broadcast %cst_55 : f32 to vector<8x128xf32>
    %214 = arith.addf %213, %212 : vector<8x128xf32>
    %215 = arith.divf %213, %214 : vector<8x128xf32>
    %216 = vector.extract_strided_slice %200 {offsets = [16, 0], sizes = [8, 128], strides = [1, 1]} : vector<32x128xf32> to vector<8x128xf32>
    %217 = math.tanh %216 : vector<8x128xf32>
    %218 = vector.extract_strided_slice %200 {offsets = [24, 0], sizes = [8, 128], strides = [1, 1]} : vector<32x128xf32> to vector<8x128xf32>
    %219 = arith.negf %218 : vector<8x128xf32>
    %220 = math.exp %219 : vector<8x128xf32>
    %cst_56 = arith.constant 1.000000e+00 : f32
    %221 = vector.broadcast %cst_56 : f32 to vector<8x128xf32>
    %222 = arith.addf %221, %220 : vector<8x128xf32>
    %223 = arith.divf %221, %222 : vector<8x128xf32>
    %224 = arith.mulf %215, %165 : vector<8x128xf32>
    %225 = arith.mulf %209, %217 : vector<8x128xf32>
    %226 = arith.addf %224, %225 : vector<8x128xf32>
    %227 = math.tanh %226 : vector<8x128xf32>
    %228 = arith.mulf %223, %227 : vector<8x128xf32>
    %229 = vector.extract_strided_slice %203 {offsets = [0, 0], sizes = [8, 128], strides = [1, 1]} : vector<32x128xf32> to vector<8x128xf32>
    %230 = arith.negf %229 : vector<8x128xf32>
    %231 = math.exp %230 : vector<8x128xf32>
    %cst_57 = arith.constant 1.000000e+00 : f32
    %232 = vector.broadcast %cst_57 : f32 to vector<8x128xf32>
    %233 = arith.addf %232, %231 : vector<8x128xf32>
    %234 = arith.divf %232, %233 : vector<8x128xf32>
    %235 = vector.extract_strided_slice %203 {offsets = [8, 0], sizes = [8, 128], strides = [1, 1]} : vector<32x128xf32> to vector<8x128xf32>
    %236 = arith.negf %235 : vector<8x128xf32>
    %237 = math.exp %236 : vector<8x128xf32>
    %cst_58 = arith.constant 1.000000e+00 : f32
    %238 = vector.broadcast %cst_58 : f32 to vector<8x128xf32>
    %239 = arith.addf %238, %237 : vector<8x128xf32>
    %240 = arith.divf %238, %239 : vector<8x128xf32>
    %241 = vector.extract_strided_slice %203 {offsets = [16, 0], sizes = [8, 128], strides = [1, 1]} : vector<32x128xf32> to vector<8x128xf32>
    %242 = math.tanh %241 : vector<8x128xf32>
    %243 = vector.extract_strided_slice %203 {offsets = [24, 0], sizes = [8, 128], strides = [1, 1]} : vector<32x128xf32> to vector<8x128xf32>
    %244 = arith.negf %243 : vector<8x128xf32>
    %245 = math.exp %244 : vector<8x128xf32>
    %cst_59 = arith.constant 1.000000e+00 : f32
    %246 = vector.broadcast %cst_59 : f32 to vector<8x128xf32>
    %247 = arith.addf %246, %245 : vector<8x128xf32>
    %248 = arith.divf %246, %247 : vector<8x128xf32>
    %249 = arith.mulf %240, %190 : vector<8x128xf32>
    %250 = arith.mulf %234, %242 : vector<8x128xf32>
    %251 = arith.addf %249, %250 : vector<8x128xf32>
    %252 = math.tanh %251 : vector<8x128xf32>
    %253 = arith.mulf %248, %252 : vector<8x128xf32>
    %c0_60 = arith.constant 0 : index
    %c384_61 = arith.constant 384 : index
    %254 = vector.load %arg12[%c0_60, %c384_61] : memref<16x2048xf32, #tpu.memory_space<vmem>>, vector<8x128xf32>
    tpu.vector_store %arg12[%c0_60, %c384_61], %228 {strides = array<i32>} : memref<16x2048xf32, #tpu.memory_space<vmem>>, vector<8x128xf32>,
    %c8_62 = arith.constant 8 : index
    %c1536_63 = arith.constant 1536 : index
    %255 = vector.load %arg12[%c8_62, %c1536_63] : memref<16x2048xf32, #tpu.memory_space<vmem>>, vector<8x128xf32>
    tpu.vector_store %arg12[%c8_62, %c1536_63], %253 {strides = array<i32>} : memref<16x2048xf32, #tpu.memory_space<vmem>>, vector<8x128xf32>,
    %256 = tpu.concatenate %228, %253 in 0 : vector<8x128xf32>, vector<8x128xf32> -> vector<16x128xf32>
    %257 = arith.truncf %256 : vector<16x128xf32> to vector<16x128xbf16>
    %cst_64 = arith.constant dense<0.000000e+00> : vector<64x128xf32>
    %258 = tpu.matmul %7, %257, %cst_64 {dimension_numbers = #tpu.dot_dimension_numbers<[1], [0], [0], [1], [0, 0, 1, 1], [], []>} : vector<64x16xbf16>, vector<16x128xbf16>, vector<64x128xf32> -> vector<64x128xf32>
    %c0_65 = arith.constant 0 : index
    %c512 = arith.constant 512 : index
    %259 = vector.load %arg11[%c0_65, %c512] : memref<64x2048xf32, #tpu.memory_space<vmem>>, vector<32x128xf32>
    %260 = vector.extract_strided_slice %258 {offsets = [0, 0], sizes = [32, 128], strides = [1, 1]} : vector<64x128xf32> to vector<32x128xf32>
    %261 = arith.addf %259, %260 : vector<32x128xf32>
    %c32_66 = arith.constant 32 : index
    %c1408 = arith.constant 1408 : index
    %262 = vector.load %arg11[%c32_66, %c1408] : memref<64x2048xf32, #tpu.memory_space<vmem>>, vector<32x128xf32>
    %263 = vector.extract_strided_slice %258 {offsets = [32, 0], sizes = [32, 128], strides = [1, 1]} : vector<64x128xf32> to vector<32x128xf32>
    %264 = arith.addf %262, %263 : vector<32x128xf32>
    %265 = vector.extract_strided_slice %261 {offsets = [0, 0], sizes = [8, 128], strides = [1, 1]} : vector<32x128xf32> to vector<8x128xf32>
    %266 = arith.negf %265 : vector<8x128xf32>
    %267 = math.exp %266 : vector<8x128xf32>
    %cst_67 = arith.constant 1.000000e+00 : f32
    %268 = vector.broadcast %cst_67 : f32 to vector<8x128xf32>
    %269 = arith.addf %268, %267 : vector<8x128xf32>
    %270 = arith.divf %268, %269 : vector<8x128xf32>
    %271 = vector.extract_strided_slice %261 {offsets = [8, 0], sizes = [8, 128], strides = [1, 1]} : vector<32x128xf32> to vector<8x128xf32>
    %272 = arith.negf %271 : vector<8x128xf32>
    %273 = math.exp %272 : vector<8x128xf32>
    %cst_68 = arith.constant 1.000000e+00 : f32
    %274 = vector.broadcast %cst_68 : f32 to vector<8x128xf32>
    %275 = arith.addf %274, %273 : vector<8x128xf32>
    %276 = arith.divf %274, %275 : vector<8x128xf32>
    %277 = vector.extract_strided_slice %261 {offsets = [16, 0], sizes = [8, 128], strides = [1, 1]} : vector<32x128xf32> to vector<8x128xf32>
    %278 = math.tanh %277 : vector<8x128xf32>
    %279 = vector.extract_strided_slice %261 {offsets = [24, 0], sizes = [8, 128], strides = [1, 1]} : vector<32x128xf32> to vector<8x128xf32>
    %280 = arith.negf %279 : vector<8x128xf32>
    %281 = math.exp %280 : vector<8x128xf32>
    %cst_69 = arith.constant 1.000000e+00 : f32
    %282 = vector.broadcast %cst_69 : f32 to vector<8x128xf32>
    %283 = arith.addf %282, %281 : vector<8x128xf32>
    %284 = arith.divf %282, %283 : vector<8x128xf32>
    %285 = arith.mulf %276, %226 : vector<8x128xf32>
    %286 = arith.mulf %270, %278 : vector<8x128xf32>
    %287 = arith.addf %285, %286 : vector<8x128xf32>
    %288 = math.tanh %287 : vector<8x128xf32>
    %289 = arith.mulf %284, %288 : vector<8x128xf32>
    %290 = vector.extract_strided_slice %264 {offsets = [0, 0], sizes = [8, 128], strides = [1, 1]} : vector<32x128xf32> to vector<8x128xf32>
    %291 = arith.negf %290 : vector<8x128xf32>
    %292 = math.exp %291 : vector<8x128xf32>
    %cst_70 = arith.constant 1.000000e+00 : f32
    %293 = vector.broadcast %cst_70 : f32 to vector<8x128xf32>
    %294 = arith.addf %293, %292 : vector<8x128xf32>
    %295 = arith.divf %293, %294 : vector<8x128xf32>
    %296 = vector.extract_strided_slice %264 {offsets = [8, 0], sizes = [8, 128], strides = [1, 1]} : vector<32x128xf32> to vector<8x128xf32>
    %297 = arith.negf %296 : vector<8x128xf32>
    %298 = math.exp %297 : vector<8x128xf32>
    %cst_71 = arith.constant 1.000000e+00 : f32
    %299 = vector.broadcast %cst_71 : f32 to vector<8x128xf32>
    %300 = arith.addf %299, %298 : vector<8x128xf32>
    %301 = arith.divf %299, %300 : vector<8x128xf32>
    %302 = vector.extract_strided_slice %264 {offsets = [16, 0], sizes = [8, 128], strides = [1, 1]} : vector<32x128xf32> to vector<8x128xf32>
    %303 = math.tanh %302 : vector<8x128xf32>
    %304 = vector.extract_strided_slice %264 {offsets = [24, 0], sizes = [8, 128], strides = [1, 1]} : vector<32x128xf32> to vector<8x128xf32>
    %305 = arith.negf %304 : vector<8x128xf32>
    %306 = math.exp %305 : vector<8x128xf32>
    %cst_72 = arith.constant 1.000000e+00 : f32
    %307 = vector.broadcast %cst_72 : f32 to vector<8x128xf32>
    %308 = arith.addf %307, %306 : vector<8x128xf32>
    %309 = arith.divf %307, %308 : vector<8x128xf32>
    %310 = arith.mulf %301, %251 : vector<8x128xf32>
    %311 = arith.mulf %295, %303 : vector<8x128xf32>
    %312 = arith.addf %310, %311 : vector<8x128xf32>
    %313 = math.tanh %312 : vector<8x128xf32>
    %314 = arith.mulf %309, %313 : vector<8x128xf32>
    %c0_73 = arith.constant 0 : index
    %c512_74 = arith.constant 512 : index
    %315 = vector.load %arg12[%c0_73, %c512_74] : memref<16x2048xf32, #tpu.memory_space<vmem>>, vector<8x128xf32>
    tpu.vector_store %arg12[%c0_73, %c512_74], %289 {strides = array<i32>} : memref<16x2048xf32, #tpu.memory_space<vmem>>, vector<8x128xf32>,
    %c8_75 = arith.constant 8 : index
    %c1408_76 = arith.constant 1408 : index
    %316 = vector.load %arg12[%c8_75, %c1408_76] : memref<16x2048xf32, #tpu.memory_space<vmem>>, vector<8x128xf32>
    tpu.vector_store %arg12[%c8_75, %c1408_76], %314 {strides = array<i32>} : memref<16x2048xf32, #tpu.memory_space<vmem>>, vector<8x128xf32>,
    %317 = tpu.concatenate %289, %314 in 0 : vector<8x128xf32>, vector<8x128xf32> -> vector<16x128xf32>
    %318 = arith.truncf %317 : vector<16x128xf32> to vector<16x128xbf16>
    %cst_77 = arith.constant dense<0.000000e+00> : vector<64x128xf32>
    %319 = tpu.matmul %7, %318, %cst_77 {dimension_numbers = #tpu.dot_dimension_numbers<[1], [0], [0], [1], [0, 0, 1, 1], [], []>} : vector<64x16xbf16>, vector<16x128xbf16>, vector<64x128xf32> -> vector<64x128xf32>
    %c0_78 = arith.constant 0 : index
    %c640 = arith.constant 640 : index
    %320 = vector.load %arg11[%c0_78, %c640] : memref<64x2048xf32, #tpu.memory_space<vmem>>, vector<32x128xf32>
    %321 = vector.extract_strided_slice %319 {offsets = [0, 0], sizes = [32, 128], strides = [1, 1]} : vector<64x128xf32> to vector<32x128xf32>
    %322 = arith.addf %320, %321 : vector<32x128xf32>
    %c32_79 = arith.constant 32 : index
    %c1280 = arith.constant 1280 : index
    %323 = vector.load %arg11[%c32_79, %c1280] : memref<64x2048xf32, #tpu.memory_space<vmem>>, vector<32x128xf32>
    %324 = vector.extract_strided_slice %319 {offsets = [32, 0], sizes = [32, 128], strides = [1, 1]} : vector<64x128xf32> to vector<32x128xf32>
    %325 = arith.addf %323, %324 : vector<32x128xf32>
    %326 = vector.extract_strided_slice %322 {offsets = [0, 0], sizes = [8, 128], strides = [1, 1]} : vector<32x128xf32> to vector<8x128xf32>
    %327 = arith.negf %326 : vector<8x128xf32>
    %328 = math.exp %327 : vector<8x128xf32>
    %cst_80 = arith.constant 1.000000e+00 : f32
    %329 = vector.broadcast %cst_80 : f32 to vector<8x128xf32>
    %330 = arith.addf %329, %328 : vector<8x128xf32>
    %331 = arith.divf %329, %330 : vector<8x128xf32>
    %332 = vector.extract_strided_slice %322 {offsets = [8, 0], sizes = [8, 128], strides = [1, 1]} : vector<32x128xf32> to vector<8x128xf32>
    %333 = arith.negf %332 : vector<8x128xf32>
    %334 = math.exp %333 : vector<8x128xf32>
    %cst_81 = arith.constant 1.000000e+00 : f32
    %335 = vector.broadcast %cst_81 : f32 to vector<8x128xf32>
    %336 = arith.addf %335, %334 : vector<8x128xf32>
    %337 = arith.divf %335, %336 : vector<8x128xf32>
    %338 = vector.extract_strided_slice %322 {offsets = [16, 0], sizes = [8, 128], strides = [1, 1]} : vector<32x128xf32> to vector<8x128xf32>
    %339 = math.tanh %338 : vector<8x128xf32>
    %340 = vector.extract_strided_slice %322 {offsets = [24, 0], sizes = [8, 128], strides = [1, 1]} : vector<32x128xf32> to vector<8x128xf32>
    %341 = arith.negf %340 : vector<8x128xf32>
    %342 = math.exp %341 : vector<8x128xf32>
    %cst_82 = arith.constant 1.000000e+00 : f32
    %343 = vector.broadcast %cst_82 : f32 to vector<8x128xf32>
    %344 = arith.addf %343, %342 : vector<8x128xf32>
    %345 = arith.divf %343, %344 : vector<8x128xf32>
    %346 = arith.mulf %337, %287 : vector<8x128xf32>
    %347 = arith.mulf %331, %339 : vector<8x128xf32>
    %348 = arith.addf %346, %347 : vector<8x128xf32>
    %349 = math.tanh %348 : vector<8x128xf32>
    %350 = arith.mulf %345, %349 : vector<8x128xf32>
    %351 = vector.extract_strided_slice %325 {offsets = [0, 0], sizes = [8, 128], strides = [1, 1]} : vector<32x128xf32> to vector<8x128xf32>
    %352 = arith.negf %351 : vector<8x128xf32>
    %353 = math.exp %352 : vector<8x128xf32>
    %cst_83 = arith.constant 1.000000e+00 : f32
    %354 = vector.broadcast %cst_83 : f32 to vector<8x128xf32>
    %355 = arith.addf %354, %353 : vector<8x128xf32>
    %356 = arith.divf %354, %355 : vector<8x128xf32>
    %357 = vector.extract_strided_slice %325 {offsets = [8, 0], sizes = [8, 128], strides = [1, 1]} : vector<32x128xf32> to vector<8x128xf32>
    %358 = arith.negf %357 : vector<8x128xf32>
    %359 = math.exp %358 : vector<8x128xf32>
    %cst_84 = arith.constant 1.000000e+00 : f32
    %360 = vector.broadcast %cst_84 : f32 to vector<8x128xf32>
    %361 = arith.addf %360, %359 : vector<8x128xf32>
    %362 = arith.divf %360, %361 : vector<8x128xf32>
    %363 = vector.extract_strided_slice %325 {offsets = [16, 0], sizes = [8, 128], strides = [1, 1]} : vector<32x128xf32> to vector<8x128xf32>
    %364 = math.tanh %363 : vector<8x128xf32>
    %365 = vector.extract_strided_slice %325 {offsets = [24, 0], sizes = [8, 128], strides = [1, 1]} : vector<32x128xf32> to vector<8x128xf32>
    %366 = arith.negf %365 : vector<8x128xf32>
    %367 = math.exp %366 : vector<8x128xf32>
    %cst_85 = arith.constant 1.000000e+00 : f32
    %368 = vector.broadcast %cst_85 : f32 to vector<8x128xf32>
    %369 = arith.addf %368, %367 : vector<8x128xf32>
    %370 = arith.divf %368, %369 : vector<8x128xf32>
    %371 = arith.mulf %362, %312 : vector<8x128xf32>
    %372 = arith.mulf %356, %364 : vector<8x128xf32>
    %373 = arith.addf %371, %372 : vector<8x128xf32>
    %374 = math.tanh %373 : vector<8x128xf32>
    %375 = arith.mulf %370, %374 : vector<8x128xf32>
    %c0_86 = arith.constant 0 : index
    %c640_87 = arith.constant 640 : index
    %376 = vector.load %arg12[%c0_86, %c640_87] : memref<16x2048xf32, #tpu.memory_space<vmem>>, vector<8x128xf32>
    tpu.vector_store %arg12[%c0_86, %c640_87], %350 {strides = array<i32>} : memref<16x2048xf32, #tpu.memory_space<vmem>>, vector<8x128xf32>,
    %c8_88 = arith.constant 8 : index
    %c1280_89 = arith.constant 1280 : index
    %377 = vector.load %arg12[%c8_88, %c1280_89] : memref<16x2048xf32, #tpu.memory_space<vmem>>, vector<8x128xf32>
    tpu.vector_store %arg12[%c8_88, %c1280_89], %375 {strides = array<i32>} : memref<16x2048xf32, #tpu.memory_space<vmem>>, vector<8x128xf32>,
    %378 = tpu.concatenate %350, %375 in 0 : vector<8x128xf32>, vector<8x128xf32> -> vector<16x128xf32>
    %379 = arith.truncf %378 : vector<16x128xf32> to vector<16x128xbf16>
    %cst_90 = arith.constant dense<0.000000e+00> : vector<64x128xf32>
    %380 = tpu.matmul %7, %379, %cst_90 {dimension_numbers = #tpu.dot_dimension_numbers<[1], [0], [0], [1], [0, 0, 1, 1], [], []>} : vector<64x16xbf16>, vector<16x128xbf16>, vector<64x128xf32> -> vector<64x128xf32>
    %c0_91 = arith.constant 0 : index
    %c768 = arith.constant 768 : index
    %381 = vector.load %arg11[%c0_91, %c768] : memref<64x2048xf32, #tpu.memory_space<vmem>>, vector<32x128xf32>
    %382 = vector.extract_strided_slice %380 {offsets = [0, 0], sizes = [32, 128], strides = [1, 1]} : vector<64x128xf32> to vector<32x128xf32>
    %383 = arith.addf %381, %382 : vector<32x128xf32>
    %c32_92 = arith.constant 32 : index
    %c1152 = arith.constant 1152 : index
    %384 = vector.load %arg11[%c32_92, %c1152] : memref<64x2048xf32, #tpu.memory_space<vmem>>, vector<32x128xf32>
    %385 = vector.extract_strided_slice %380 {offsets = [32, 0], sizes = [32, 128], strides = [1, 1]} : vector<64x128xf32> to vector<32x128xf32>
    %386 = arith.addf %384, %385 : vector<32x128xf32>
    %387 = vector.extract_strided_slice %383 {offsets = [0, 0], sizes = [8, 128], strides = [1, 1]} : vector<32x128xf32> to vector<8x128xf32>
    %388 = arith.negf %387 : vector<8x128xf32>
    %389 = math.exp %388 : vector<8x128xf32>
    %cst_93 = arith.constant 1.000000e+00 : f32
    %390 = vector.broadcast %cst_93 : f32 to vector<8x128xf32>
    %391 = arith.addf %390, %389 : vector<8x128xf32>
    %392 = arith.divf %390, %391 : vector<8x128xf32>
    %393 = vector.extract_strided_slice %383 {offsets = [8, 0], sizes = [8, 128], strides = [1, 1]} : vector<32x128xf32> to vector<8x128xf32>
    %394 = arith.negf %393 : vector<8x128xf32>
    %395 = math.exp %394 : vector<8x128xf32>
    %cst_94 = arith.constant 1.000000e+00 : f32
    %396 = vector.broadcast %cst_94 : f32 to vector<8x128xf32>
    %397 = arith.addf %396, %395 : vector<8x128xf32>
    %398 = arith.divf %396, %397 : vector<8x128xf32>
    %399 = vector.extract_strided_slice %383 {offsets = [16, 0], sizes = [8, 128], strides = [1, 1]} : vector<32x128xf32> to vector<8x128xf32>
    %400 = math.tanh %399 : vector<8x128xf32>
    %401 = vector.extract_strided_slice %383 {offsets = [24, 0], sizes = [8, 128], strides = [1, 1]} : vector<32x128xf32> to vector<8x128xf32>
    %402 = arith.negf %401 : vector<8x128xf32>
    %403 = math.exp %402 : vector<8x128xf32>
    %cst_95 = arith.constant 1.000000e+00 : f32
    %404 = vector.broadcast %cst_95 : f32 to vector<8x128xf32>
    %405 = arith.addf %404, %403 : vector<8x128xf32>
    %406 = arith.divf %404, %405 : vector<8x128xf32>
    %407 = arith.mulf %398, %348 : vector<8x128xf32>
    %408 = arith.mulf %392, %400 : vector<8x128xf32>
    %409 = arith.addf %407, %408 : vector<8x128xf32>
    %410 = math.tanh %409 : vector<8x128xf32>
    %411 = arith.mulf %406, %410 : vector<8x128xf32>
    %412 = vector.extract_strided_slice %386 {offsets = [0, 0], sizes = [8, 128], strides = [1, 1]} : vector<32x128xf32> to vector<8x128xf32>
    %413 = arith.negf %412 : vector<8x128xf32>
    %414 = math.exp %413 : vector<8x128xf32>
    %cst_96 = arith.constant 1.000000e+00 : f32
    %415 = vector.broadcast %cst_96 : f32 to vector<8x128xf32>
    %416 = arith.addf %415, %414 : vector<8x128xf32>
    %417 = arith.divf %415, %416 : vector<8x128xf32>
    %418 = vector.extract_strided_slice %386 {offsets = [8, 0], sizes = [8, 128], strides = [1, 1]} : vector<32x128xf32> to vector<8x128xf32>
    %419 = arith.negf %418 : vector<8x128xf32>
    %420 = math.exp %419 : vector<8x128xf32>
    %cst_97 = arith.constant 1.000000e+00 : f32
    %421 = vector.broadcast %cst_97 : f32 to vector<8x128xf32>
    %422 = arith.addf %421, %420 : vector<8x128xf32>
    %423 = arith.divf %421, %422 : vector<8x128xf32>
    %424 = vector.extract_strided_slice %386 {offsets = [16, 0], sizes = [8, 128], strides = [1, 1]} : vector<32x128xf32> to vector<8x128xf32>
    %425 = math.tanh %424 : vector<8x128xf32>
    %426 = vector.extract_strided_slice %386 {offsets = [24, 0], sizes = [8, 128], strides = [1, 1]} : vector<32x128xf32> to vector<8x128xf32>
    %427 = arith.negf %426 : vector<8x128xf32>
    %428 = math.exp %427 : vector<8x128xf32>
    %cst_98 = arith.constant 1.000000e+00 : f32
    %429 = vector.broadcast %cst_98 : f32 to vector<8x128xf32>
    %430 = arith.addf %429, %428 : vector<8x128xf32>
    %431 = arith.divf %429, %430 : vector<8x128xf32>
    %432 = arith.mulf %423, %373 : vector<8x128xf32>
    %433 = arith.mulf %417, %425 : vector<8x128xf32>
    %434 = arith.addf %432, %433 : vector<8x128xf32>
    %435 = math.tanh %434 : vector<8x128xf32>
    %436 = arith.mulf %431, %435 : vector<8x128xf32>
    %c0_99 = arith.constant 0 : index
    %c768_100 = arith.constant 768 : index
    %437 = vector.load %arg12[%c0_99, %c768_100] : memref<16x2048xf32, #tpu.memory_space<vmem>>, vector<8x128xf32>
    tpu.vector_store %arg12[%c0_99, %c768_100], %411 {strides = array<i32>} : memref<16x2048xf32, #tpu.memory_space<vmem>>, vector<8x128xf32>,
    %c8_101 = arith.constant 8 : index
    %c1152_102 = arith.constant 1152 : index
    %438 = vector.load %arg12[%c8_101, %c1152_102] : memref<16x2048xf32, #tpu.memory_space<vmem>>, vector<8x128xf32>
    tpu.vector_store %arg12[%c8_101, %c1152_102], %436 {strides = array<i32>} : memref<16x2048xf32, #tpu.memory_space<vmem>>, vector<8x128xf32>,
    %439 = tpu.concatenate %411, %436 in 0 : vector<8x128xf32>, vector<8x128xf32> -> vector<16x128xf32>
    %440 = arith.truncf %439 : vector<16x128xf32> to vector<16x128xbf16>
    %cst_103 = arith.constant dense<0.000000e+00> : vector<64x128xf32>
    %441 = tpu.matmul %7, %440, %cst_103 {dimension_numbers = #tpu.dot_dimension_numbers<[1], [0], [0], [1], [0, 0, 1, 1], [], []>} : vector<64x16xbf16>, vector<16x128xbf16>, vector<64x128xf32> -> vector<64x128xf32>
    %c0_104 = arith.constant 0 : index
    %c896 = arith.constant 896 : index
    %442 = vector.load %arg11[%c0_104, %c896] : memref<64x2048xf32, #tpu.memory_space<vmem>>, vector<32x128xf32>
    %443 = vector.extract_strided_slice %441 {offsets = [0, 0], sizes = [32, 128], strides = [1, 1]} : vector<64x128xf32> to vector<32x128xf32>
    %444 = arith.addf %442, %443 : vector<32x128xf32>
    %c32_105 = arith.constant 32 : index
    %c1024 = arith.constant 1024 : index
    %445 = vector.load %arg11[%c32_105, %c1024] : memref<64x2048xf32, #tpu.memory_space<vmem>>, vector<32x128xf32>
    %446 = vector.extract_strided_slice %441 {offsets = [32, 0], sizes = [32, 128], strides = [1, 1]} : vector<64x128xf32> to vector<32x128xf32>
    %447 = arith.addf %445, %446 : vector<32x128xf32>
    %448 = vector.extract_strided_slice %444 {offsets = [0, 0], sizes = [8, 128], strides = [1, 1]} : vector<32x128xf32> to vector<8x128xf32>
    %449 = arith.negf %448 : vector<8x128xf32>
    %450 = math.exp %449 : vector<8x128xf32>
    %cst_106 = arith.constant 1.000000e+00 : f32
    %451 = vector.broadcast %cst_106 : f32 to vector<8x128xf32>
    %452 = arith.addf %451, %450 : vector<8x128xf32>
    %453 = arith.divf %451, %452 : vector<8x128xf32>
    %454 = vector.extract_strided_slice %444 {offsets = [8, 0], sizes = [8, 128], strides = [1, 1]} : vector<32x128xf32> to vector<8x128xf32>
    %455 = arith.negf %454 : vector<8x128xf32>
    %456 = math.exp %455 : vector<8x128xf32>
    %cst_107 = arith.constant 1.000000e+00 : f32
    %457 = vector.broadcast %cst_107 : f32 to vector<8x128xf32>
    %458 = arith.addf %457, %456 : vector<8x128xf32>
    %459 = arith.divf %457, %458 : vector<8x128xf32>
    %460 = vector.extract_strided_slice %444 {offsets = [16, 0], sizes = [8, 128], strides = [1, 1]} : vector<32x128xf32> to vector<8x128xf32>
    %461 = math.tanh %460 : vector<8x128xf32>
    %462 = vector.extract_strided_slice %444 {offsets = [24, 0], sizes = [8, 128], strides = [1, 1]} : vector<32x128xf32> to vector<8x128xf32>
    %463 = arith.negf %462 : vector<8x128xf32>
    %464 = math.exp %463 : vector<8x128xf32>
    %cst_108 = arith.constant 1.000000e+00 : f32
    %465 = vector.broadcast %cst_108 : f32 to vector<8x128xf32>
    %466 = arith.addf %465, %464 : vector<8x128xf32>
    %467 = arith.divf %465, %466 : vector<8x128xf32>
    %468 = arith.mulf %459, %409 : vector<8x128xf32>
    %469 = arith.mulf %453, %461 : vector<8x128xf32>
    %470 = arith.addf %468, %469 : vector<8x128xf32>
    %471 = math.tanh %470 : vector<8x128xf32>
    %472 = arith.mulf %467, %471 : vector<8x128xf32>
    %473 = vector.extract_strided_slice %447 {offsets = [0, 0], sizes = [8, 128], strides = [1, 1]} : vector<32x128xf32> to vector<8x128xf32>
    %474 = arith.negf %473 : vector<8x128xf32>
    %475 = math.exp %474 : vector<8x128xf32>
    %cst_109 = arith.constant 1.000000e+00 : f32
    %476 = vector.broadcast %cst_109 : f32 to vector<8x128xf32>
    %477 = arith.addf %476, %475 : vector<8x128xf32>
    %478 = arith.divf %476, %477 : vector<8x128xf32>
    %479 = vector.extract_strided_slice %447 {offsets = [8, 0], sizes = [8, 128], strides = [1, 1]} : vector<32x128xf32> to vector<8x128xf32>
    %480 = arith.negf %479 : vector<8x128xf32>
    %481 = math.exp %480 : vector<8x128xf32>
    %cst_110 = arith.constant 1.000000e+00 : f32
    %482 = vector.broadcast %cst_110 : f32 to vector<8x128xf32>
    %483 = arith.addf %482, %481 : vector<8x128xf32>
    %484 = arith.divf %482, %483 : vector<8x128xf32>
    %485 = vector.extract_strided_slice %447 {offsets = [16, 0], sizes = [8, 128], strides = [1, 1]} : vector<32x128xf32> to vector<8x128xf32>
    %486 = math.tanh %485 : vector<8x128xf32>
    %487 = vector.extract_strided_slice %447 {offsets = [24, 0], sizes = [8, 128], strides = [1, 1]} : vector<32x128xf32> to vector<8x128xf32>
    %488 = arith.negf %487 : vector<8x128xf32>
    %489 = math.exp %488 : vector<8x128xf32>
    %cst_111 = arith.constant 1.000000e+00 : f32
    %490 = vector.broadcast %cst_111 : f32 to vector<8x128xf32>
    %491 = arith.addf %490, %489 : vector<8x128xf32>
    %492 = arith.divf %490, %491 : vector<8x128xf32>
    %493 = arith.mulf %484, %434 : vector<8x128xf32>
    %494 = arith.mulf %478, %486 : vector<8x128xf32>
    %495 = arith.addf %493, %494 : vector<8x128xf32>
    %496 = math.tanh %495 : vector<8x128xf32>
    %497 = arith.mulf %492, %496 : vector<8x128xf32>
    %c0_112 = arith.constant 0 : index
    %c896_113 = arith.constant 896 : index
    %498 = vector.load %arg12[%c0_112, %c896_113] : memref<16x2048xf32, #tpu.memory_space<vmem>>, vector<8x128xf32>
    tpu.vector_store %arg12[%c0_112, %c896_113], %472 {strides = array<i32>} : memref<16x2048xf32, #tpu.memory_space<vmem>>, vector<8x128xf32>,
    %c8_114 = arith.constant 8 : index
    %c1024_115 = arith.constant 1024 : index
    %499 = vector.load %arg12[%c8_114, %c1024_115] : memref<16x2048xf32, #tpu.memory_space<vmem>>, vector<8x128xf32>
    tpu.vector_store %arg12[%c8_114, %c1024_115], %497 {strides = array<i32>} : memref<16x2048xf32, #tpu.memory_space<vmem>>, vector<8x128xf32>,
    %500 = tpu.concatenate %472, %497 in 0 : vector<8x128xf32>, vector<8x128xf32> -> vector<16x128xf32>
    %501 = arith.truncf %500 : vector<16x128xf32> to vector<16x128xbf16>
    %cst_116 = arith.constant dense<0.000000e+00> : vector<64x128xf32>
    %502 = tpu.matmul %7, %501, %cst_116 {dimension_numbers = #tpu.dot_dimension_numbers<[1], [0], [0], [1], [0, 0, 1, 1], [], []>} : vector<64x16xbf16>, vector<16x128xbf16>, vector<64x128xf32> -> vector<64x128xf32>
    %c0_117 = arith.constant 0 : index
    %c1024_118 = arith.constant 1024 : index
    %503 = vector.load %arg11[%c0_117, %c1024_118] : memref<64x2048xf32, #tpu.memory_space<vmem>>, vector<32x128xf32>
    %504 = vector.extract_strided_slice %502 {offsets = [0, 0], sizes = [32, 128], strides = [1, 1]} : vector<64x128xf32> to vector<32x128xf32>
    %505 = arith.addf %503, %504 : vector<32x128xf32>
    %c32_119 = arith.constant 32 : index
    %c896_120 = arith.constant 896 : index
    %506 = vector.load %arg11[%c32_119, %c896_120] : memref<64x2048xf32, #tpu.memory_space<vmem>>, vector<32x128xf32>
    %507 = vector.extract_strided_slice %502 {offsets = [32, 0], sizes = [32, 128], strides = [1, 1]} : vector<64x128xf32> to vector<32x128xf32>
    %508 = arith.addf %506, %507 : vector<32x128xf32>
    %509 = vector.extract_strided_slice %505 {offsets = [0, 0], sizes = [8, 128], strides = [1, 1]} : vector<32x128xf32> to vector<8x128xf32>
    %510 = arith.negf %509 : vector<8x128xf32>
    %511 = math.exp %510 : vector<8x128xf32>
    %cst_121 = arith.constant 1.000000e+00 : f32
    %512 = vector.broadcast %cst_121 : f32 to vector<8x128xf32>
    %513 = arith.addf %512, %511 : vector<8x128xf32>
    %514 = arith.divf %512, %513 : vector<8x128xf32>
    %515 = vector.extract_strided_slice %505 {offsets = [8, 0], sizes = [8, 128], strides = [1, 1]} : vector<32x128xf32> to vector<8x128xf32>
    %516 = arith.negf %515 : vector<8x128xf32>
    %517 = math.exp %516 : vector<8x128xf32>
    %cst_122 = arith.constant 1.000000e+00 : f32
    %518 = vector.broadcast %cst_122 : f32 to vector<8x128xf32>
    %519 = arith.addf %518, %517 : vector<8x128xf32>
    %520 = arith.divf %518, %519 : vector<8x128xf32>
    %521 = vector.extract_strided_slice %505 {offsets = [16, 0], sizes = [8, 128], strides = [1, 1]} : vector<32x128xf32> to vector<8x128xf32>
    %522 = math.tanh %521 : vector<8x128xf32>
    %523 = vector.extract_strided_slice %505 {offsets = [24, 0], sizes = [8, 128], strides = [1, 1]} : vector<32x128xf32> to vector<8x128xf32>
    %524 = arith.negf %523 : vector<8x128xf32>
    %525 = math.exp %524 : vector<8x128xf32>
    %cst_123 = arith.constant 1.000000e+00 : f32
    %526 = vector.broadcast %cst_123 : f32 to vector<8x128xf32>
    %527 = arith.addf %526, %525 : vector<8x128xf32>
    %528 = arith.divf %526, %527 : vector<8x128xf32>
    %529 = arith.mulf %520, %470 : vector<8x128xf32>
    %530 = arith.mulf %514, %522 : vector<8x128xf32>
    %531 = arith.addf %529, %530 : vector<8x128xf32>
    %532 = math.tanh %531 : vector<8x128xf32>
    %533 = arith.mulf %528, %532 : vector<8x128xf32>
    %534 = vector.extract_strided_slice %508 {offsets = [0, 0], sizes = [8, 128], strides = [1, 1]} : vector<32x128xf32> to vector<8x128xf32>
    %535 = arith.negf %534 : vector<8x128xf32>
    %536 = math.exp %535 : vector<8x128xf32>
    %cst_124 = arith.constant 1.000000e+00 : f32
    %537 = vector.broadcast %cst_124 : f32 to vector<8x128xf32>
    %538 = arith.addf %537, %536 : vector<8x128xf32>
    %539 = arith.divf %537, %538 : vector<8x128xf32>
    %540 = vector.extract_strided_slice %508 {offsets = [8, 0], sizes = [8, 128], strides = [1, 1]} : vector<32x128xf32> to vector<8x128xf32>
    %541 = arith.negf %540 : vector<8x128xf32>
    %542 = math.exp %541 : vector<8x128xf32>
    %cst_125 = arith.constant 1.000000e+00 : f32
    %543 = vector.broadcast %cst_125 : f32 to vector<8x128xf32>
    %544 = arith.addf %543, %542 : vector<8x128xf32>
    %545 = arith.divf %543, %544 : vector<8x128xf32>
    %546 = vector.extract_strided_slice %508 {offsets = [16, 0], sizes = [8, 128], strides = [1, 1]} : vector<32x128xf32> to vector<8x128xf32>
    %547 = math.tanh %546 : vector<8x128xf32>
    %548 = vector.extract_strided_slice %508 {offsets = [24, 0], sizes = [8, 128], strides = [1, 1]} : vector<32x128xf32> to vector<8x128xf32>
    %549 = arith.negf %548 : vector<8x128xf32>
    %550 = math.exp %549 : vector<8x128xf32>
    %cst_126 = arith.constant 1.000000e+00 : f32
    %551 = vector.broadcast %cst_126 : f32 to vector<8x128xf32>
    %552 = arith.addf %551, %550 : vector<8x128xf32>
    %553 = arith.divf %551, %552 : vector<8x128xf32>
    %554 = arith.mulf %545, %495 : vector<8x128xf32>
    %555 = arith.mulf %539, %547 : vector<8x128xf32>
    %556 = arith.addf %554, %555 : vector<8x128xf32>
    %557 = math.tanh %556 : vector<8x128xf32>
    %558 = arith.mulf %553, %557 : vector<8x128xf32>
    %c0_127 = arith.constant 0 : index
    %c1024_128 = arith.constant 1024 : index
    %559 = vector.load %arg12[%c0_127, %c1024_128] : memref<16x2048xf32, #tpu.memory_space<vmem>>, vector<8x128xf32>
    tpu.vector_store %arg12[%c0_127, %c1024_128], %533 {strides = array<i32>} : memref<16x2048xf32, #tpu.memory_space<vmem>>, vector<8x128xf32>,
    %c8_129 = arith.constant 8 : index
    %c896_130 = arith.constant 896 : index
    %560 = vector.load %arg12[%c8_129, %c896_130] : memref<16x2048xf32, #tpu.memory_space<vmem>>, vector<8x128xf32>
    tpu.vector_store %arg12[%c8_129, %c896_130], %558 {strides = array<i32>} : memref<16x2048xf32, #tpu.memory_space<vmem>>, vector<8x128xf32>,
    %561 = tpu.concatenate %533, %558 in 0 : vector<8x128xf32>, vector<8x128xf32> -> vector<16x128xf32>
    %562 = arith.truncf %561 : vector<16x128xf32> to vector<16x128xbf16>
    %cst_131 = arith.constant dense<0.000000e+00> : vector<64x128xf32>
    %563 = tpu.matmul %7, %562, %cst_131 {dimension_numbers = #tpu.dot_dimension_numbers<[1], [0], [0], [1], [0, 0, 1, 1], [], []>} : vector<64x16xbf16>, vector<16x128xbf16>, vector<64x128xf32> -> vector<64x128xf32>
    %c0_132 = arith.constant 0 : index
    %c1152_133 = arith.constant 1152 : index
    %564 = vector.load %arg11[%c0_132, %c1152_133] : memref<64x2048xf32, #tpu.memory_space<vmem>>, vector<32x128xf32>
    %565 = vector.extract_strided_slice %563 {offsets = [0, 0], sizes = [32, 128], strides = [1, 1]} : vector<64x128xf32> to vector<32x128xf32>
    %566 = arith.addf %564, %565 : vector<32x128xf32>
    %c32_134 = arith.constant 32 : index
    %c768_135 = arith.constant 768 : index
    %567 = vector.load %arg11[%c32_134, %c768_135] : memref<64x2048xf32, #tpu.memory_space<vmem>>, vector<32x128xf32>
    %568 = vector.extract_strided_slice %563 {offsets = [32, 0], sizes = [32, 128], strides = [1, 1]} : vector<64x128xf32> to vector<32x128xf32>
    %569 = arith.addf %567, %568 : vector<32x128xf32>
    %570 = vector.extract_strided_slice %566 {offsets = [0, 0], sizes = [8, 128], strides = [1, 1]} : vector<32x128xf32> to vector<8x128xf32>
    %571 = arith.negf %570 : vector<8x128xf32>
    %572 = math.exp %571 : vector<8x128xf32>
    %cst_136 = arith.constant 1.000000e+00 : f32
    %573 = vector.broadcast %cst_136 : f32 to vector<8x128xf32>
    %574 = arith.addf %573, %572 : vector<8x128xf32>
    %575 = arith.divf %573, %574 : vector<8x128xf32>
    %576 = vector.extract_strided_slice %566 {offsets = [8, 0], sizes = [8, 128], strides = [1, 1]} : vector<32x128xf32> to vector<8x128xf32>
    %577 = arith.negf %576 : vector<8x128xf32>
    %578 = math.exp %577 : vector<8x128xf32>
    %cst_137 = arith.constant 1.000000e+00 : f32
    %579 = vector.broadcast %cst_137 : f32 to vector<8x128xf32>
    %580 = arith.addf %579, %578 : vector<8x128xf32>
    %581 = arith.divf %579, %580 : vector<8x128xf32>
    %582 = vector.extract_strided_slice %566 {offsets = [16, 0], sizes = [8, 128], strides = [1, 1]} : vector<32x128xf32> to vector<8x128xf32>
    %583 = math.tanh %582 : vector<8x128xf32>
    %584 = vector.extract_strided_slice %566 {offsets = [24, 0], sizes = [8, 128], strides = [1, 1]} : vector<32x128xf32> to vector<8x128xf32>
    %585 = arith.negf %584 : vector<8x128xf32>
    %586 = math.exp %585 : vector<8x128xf32>
    %cst_138 = arith.constant 1.000000e+00 : f32
    %587 = vector.broadcast %cst_138 : f32 to vector<8x128xf32>
    %588 = arith.addf %587, %586 : vector<8x128xf32>
    %589 = arith.divf %587, %588 : vector<8x128xf32>
    %590 = arith.mulf %581, %531 : vector<8x128xf32>
    %591 = arith.mulf %575, %583 : vector<8x128xf32>
    %592 = arith.addf %590, %591 : vector<8x128xf32>
    %593 = math.tanh %592 : vector<8x128xf32>
    %594 = arith.mulf %589, %593 : vector<8x128xf32>
    %595 = vector.extract_strided_slice %569 {offsets = [0, 0], sizes = [8, 128], strides = [1, 1]} : vector<32x128xf32> to vector<8x128xf32>
    %596 = arith.negf %595 : vector<8x128xf32>
    %597 = math.exp %596 : vector<8x128xf32>
    %cst_139 = arith.constant 1.000000e+00 : f32
    %598 = vector.broadcast %cst_139 : f32 to vector<8x128xf32>
    %599 = arith.addf %598, %597 : vector<8x128xf32>
    %600 = arith.divf %598, %599 : vector<8x128xf32>
    %601 = vector.extract_strided_slice %569 {offsets = [8, 0], sizes = [8, 128], strides = [1, 1]} : vector<32x128xf32> to vector<8x128xf32>
    %602 = arith.negf %601 : vector<8x128xf32>
    %603 = math.exp %602 : vector<8x128xf32>
    %cst_140 = arith.constant 1.000000e+00 : f32
    %604 = vector.broadcast %cst_140 : f32 to vector<8x128xf32>
    %605 = arith.addf %604, %603 : vector<8x128xf32>
    %606 = arith.divf %604, %605 : vector<8x128xf32>
    %607 = vector.extract_strided_slice %569 {offsets = [16, 0], sizes = [8, 128], strides = [1, 1]} : vector<32x128xf32> to vector<8x128xf32>
    %608 = math.tanh %607 : vector<8x128xf32>
    %609 = vector.extract_strided_slice %569 {offsets = [24, 0], sizes = [8, 128], strides = [1, 1]} : vector<32x128xf32> to vector<8x128xf32>
    %610 = arith.negf %609 : vector<8x128xf32>
    %611 = math.exp %610 : vector<8x128xf32>
    %cst_141 = arith.constant 1.000000e+00 : f32
    %612 = vector.broadcast %cst_141 : f32 to vector<8x128xf32>
    %613 = arith.addf %612, %611 : vector<8x128xf32>
    %614 = arith.divf %612, %613 : vector<8x128xf32>
    %615 = arith.mulf %606, %556 : vector<8x128xf32>
    %616 = arith.mulf %600, %608 : vector<8x128xf32>
    %617 = arith.addf %615, %616 : vector<8x128xf32>
    %618 = math.tanh %617 : vector<8x128xf32>
    %619 = arith.mulf %614, %618 : vector<8x128xf32>
    %c0_142 = arith.constant 0 : index
    %c1152_143 = arith.constant 1152 : index
    %620 = vector.load %arg12[%c0_142, %c1152_143] : memref<16x2048xf32, #tpu.memory_space<vmem>>, vector<8x128xf32>
    tpu.vector_store %arg12[%c0_142, %c1152_143], %594 {strides = array<i32>} : memref<16x2048xf32, #tpu.memory_space<vmem>>, vector<8x128xf32>,
    %c8_144 = arith.constant 8 : index
    %c768_145 = arith.constant 768 : index
    %621 = vector.load %arg12[%c8_144, %c768_145] : memref<16x2048xf32, #tpu.memory_space<vmem>>, vector<8x128xf32>
    tpu.vector_store %arg12[%c8_144, %c768_145], %619 {strides = array<i32>} : memref<16x2048xf32, #tpu.memory_space<vmem>>, vector<8x128xf32>,
    %622 = tpu.concatenate %594, %619 in 0 : vector<8x128xf32>, vector<8x128xf32> -> vector<16x128xf32>
    %623 = arith.truncf %622 : vector<16x128xf32> to vector<16x128xbf16>
    %cst_146 = arith.constant dense<0.000000e+00> : vector<64x128xf32>
    %624 = tpu.matmul %7, %623, %cst_146 {dimension_numbers = #tpu.dot_dimension_numbers<[1], [0], [0], [1], [0, 0, 1, 1], [], []>} : vector<64x16xbf16>, vector<16x128xbf16>, vector<64x128xf32> -> vector<64x128xf32>
    %c0_147 = arith.constant 0 : index
    %c1280_148 = arith.constant 1280 : index
    %625 = vector.load %arg11[%c0_147, %c1280_148] : memref<64x2048xf32, #tpu.memory_space<vmem>>, vector<32x128xf32>
    %626 = vector.extract_strided_slice %624 {offsets = [0, 0], sizes = [32, 128], strides = [1, 1]} : vector<64x128xf32> to vector<32x128xf32>
    %627 = arith.addf %625, %626 : vector<32x128xf32>
    %c32_149 = arith.constant 32 : index
    %c640_150 = arith.constant 640 : index
    %628 = vector.load %arg11[%c32_149, %c640_150] : memref<64x2048xf32, #tpu.memory_space<vmem>>, vector<32x128xf32>
    %629 = vector.extract_strided_slice %624 {offsets = [32, 0], sizes = [32, 128], strides = [1, 1]} : vector<64x128xf32> to vector<32x128xf32>
    %630 = arith.addf %628, %629 : vector<32x128xf32>
    %631 = vector.extract_strided_slice %627 {offsets = [0, 0], sizes = [8, 128], strides = [1, 1]} : vector<32x128xf32> to vector<8x128xf32>
    %632 = arith.negf %631 : vector<8x128xf32>
    %633 = math.exp %632 : vector<8x128xf32>
    %cst_151 = arith.constant 1.000000e+00 : f32
    %634 = vector.broadcast %cst_151 : f32 to vector<8x128xf32>
    %635 = arith.addf %634, %633 : vector<8x128xf32>
    %636 = arith.divf %634, %635 : vector<8x128xf32>
    %637 = vector.extract_strided_slice %627 {offsets = [8, 0], sizes = [8, 128], strides = [1, 1]} : vector<32x128xf32> to vector<8x128xf32>
    %638 = arith.negf %637 : vector<8x128xf32>
    %639 = math.exp %638 : vector<8x128xf32>
    %cst_152 = arith.constant 1.000000e+00 : f32
    %640 = vector.broadcast %cst_152 : f32 to vector<8x128xf32>
    %641 = arith.addf %640, %639 : vector<8x128xf32>
    %642 = arith.divf %640, %641 : vector<8x128xf32>
    %643 = vector.extract_strided_slice %627 {offsets = [16, 0], sizes = [8, 128], strides = [1, 1]} : vector<32x128xf32> to vector<8x128xf32>
    %644 = math.tanh %643 : vector<8x128xf32>
    %645 = vector.extract_strided_slice %627 {offsets = [24, 0], sizes = [8, 128], strides = [1, 1]} : vector<32x128xf32> to vector<8x128xf32>
    %646 = arith.negf %645 : vector<8x128xf32>
    %647 = math.exp %646 : vector<8x128xf32>
    %cst_153 = arith.constant 1.000000e+00 : f32
    %648 = vector.broadcast %cst_153 : f32 to vector<8x128xf32>
    %649 = arith.addf %648, %647 : vector<8x128xf32>
    %650 = arith.divf %648, %649 : vector<8x128xf32>
    %651 = arith.mulf %642, %592 : vector<8x128xf32>
    %652 = arith.mulf %636, %644 : vector<8x128xf32>
    %653 = arith.addf %651, %652 : vector<8x128xf32>
    %654 = math.tanh %653 : vector<8x128xf32>
    %655 = arith.mulf %650, %654 : vector<8x128xf32>
    %656 = vector.extract_strided_slice %630 {offsets = [0, 0], sizes = [8, 128], strides = [1, 1]} : vector<32x128xf32> to vector<8x128xf32>
    %657 = arith.negf %656 : vector<8x128xf32>
    %658 = math.exp %657 : vector<8x128xf32>
    %cst_154 = arith.constant 1.000000e+00 : f32
    %659 = vector.broadcast %cst_154 : f32 to vector<8x128xf32>
    %660 = arith.addf %659, %658 : vector<8x128xf32>
    %661 = arith.divf %659, %660 : vector<8x128xf32>
    %662 = vector.extract_strided_slice %630 {offsets = [8, 0], sizes = [8, 128], strides = [1, 1]} : vector<32x128xf32> to vector<8x128xf32>
    %663 = arith.negf %662 : vector<8x128xf32>
    %664 = math.exp %663 : vector<8x128xf32>
    %cst_155 = arith.constant 1.000000e+00 : f32
    %665 = vector.broadcast %cst_155 : f32 to vector<8x128xf32>
    %666 = arith.addf %665, %664 : vector<8x128xf32>
    %667 = arith.divf %665, %666 : vector<8x128xf32>
    %668 = vector.extract_strided_slice %630 {offsets = [16, 0], sizes = [8, 128], strides = [1, 1]} : vector<32x128xf32> to vector<8x128xf32>
    %669 = math.tanh %668 : vector<8x128xf32>
    %670 = vector.extract_strided_slice %630 {offsets = [24, 0], sizes = [8, 128], strides = [1, 1]} : vector<32x128xf32> to vector<8x128xf32>
    %671 = arith.negf %670 : vector<8x128xf32>
    %672 = math.exp %671 : vector<8x128xf32>
    %cst_156 = arith.constant 1.000000e+00 : f32
    %673 = vector.broadcast %cst_156 : f32 to vector<8x128xf32>
    %674 = arith.addf %673, %672 : vector<8x128xf32>
    %675 = arith.divf %673, %674 : vector<8x128xf32>
    %676 = arith.mulf %667, %617 : vector<8x128xf32>
    %677 = arith.mulf %661, %669 : vector<8x128xf32>
    %678 = arith.addf %676, %677 : vector<8x128xf32>
    %679 = math.tanh %678 : vector<8x128xf32>
    %680 = arith.mulf %675, %679 : vector<8x128xf32>
    %c0_157 = arith.constant 0 : index
    %c1280_158 = arith.constant 1280 : index
    %681 = vector.load %arg12[%c0_157, %c1280_158] : memref<16x2048xf32, #tpu.memory_space<vmem>>, vector<8x128xf32>
    tpu.vector_store %arg12[%c0_157, %c1280_158], %655 {strides = array<i32>} : memref<16x2048xf32, #tpu.memory_space<vmem>>, vector<8x128xf32>,
    %c8_159 = arith.constant 8 : index
    %c640_160 = arith.constant 640 : index
    %682 = vector.load %arg12[%c8_159, %c640_160] : memref<16x2048xf32, #tpu.memory_space<vmem>>, vector<8x128xf32>
    tpu.vector_store %arg12[%c8_159, %c640_160], %680 {strides = array<i32>} : memref<16x2048xf32, #tpu.memory_space<vmem>>, vector<8x128xf32>,
    %683 = tpu.concatenate %655, %680 in 0 : vector<8x128xf32>, vector<8x128xf32> -> vector<16x128xf32>
    %684 = arith.truncf %683 : vector<16x128xf32> to vector<16x128xbf16>
    %cst_161 = arith.constant dense<0.000000e+00> : vector<64x128xf32>
    %685 = tpu.matmul %7, %684, %cst_161 {dimension_numbers = #tpu.dot_dimension_numbers<[1], [0], [0], [1], [0, 0, 1, 1], [], []>} : vector<64x16xbf16>, vector<16x128xbf16>, vector<64x128xf32> -> vector<64x128xf32>
    %c0_162 = arith.constant 0 : index
    %c1408_163 = arith.constant 1408 : index
    %686 = vector.load %arg11[%c0_162, %c1408_163] : memref<64x2048xf32, #tpu.memory_space<vmem>>, vector<32x128xf32>
    %687 = vector.extract_strided_slice %685 {offsets = [0, 0], sizes = [32, 128], strides = [1, 1]} : vector<64x128xf32> to vector<32x128xf32>
    %688 = arith.addf %686, %687 : vector<32x128xf32>
    %c32_164 = arith.constant 32 : index
    %c512_165 = arith.constant 512 : index
    %689 = vector.load %arg11[%c32_164, %c512_165] : memref<64x2048xf32, #tpu.memory_space<vmem>>, vector<32x128xf32>
    %690 = vector.extract_strided_slice %685 {offsets = [32, 0], sizes = [32, 128], strides = [1, 1]} : vector<64x128xf32> to vector<32x128xf32>
    %691 = arith.addf %689, %690 : vector<32x128xf32>
    %692 = vector.extract_strided_slice %688 {offsets = [0, 0], sizes = [8, 128], strides = [1, 1]} : vector<32x128xf32> to vector<8x128xf32>
    %693 = arith.negf %692 : vector<8x128xf32>
    %694 = math.exp %693 : vector<8x128xf32>
    %cst_166 = arith.constant 1.000000e+00 : f32
    %695 = vector.broadcast %cst_166 : f32 to vector<8x128xf32>
    %696 = arith.addf %695, %694 : vector<8x128xf32>
    %697 = arith.divf %695, %696 : vector<8x128xf32>
    %698 = vector.extract_strided_slice %688 {offsets = [8, 0], sizes = [8, 128], strides = [1, 1]} : vector<32x128xf32> to vector<8x128xf32>
    %699 = arith.negf %698 : vector<8x128xf32>
    %700 = math.exp %699 : vector<8x128xf32>
    %cst_167 = arith.constant 1.000000e+00 : f32
    %701 = vector.broadcast %cst_167 : f32 to vector<8x128xf32>
    %702 = arith.addf %701, %700 : vector<8x128xf32>
    %703 = arith.divf %701, %702 : vector<8x128xf32>
    %704 = vector.extract_strided_slice %688 {offsets = [16, 0], sizes = [8, 128], strides = [1, 1]} : vector<32x128xf32> to vector<8x128xf32>
    %705 = math.tanh %704 : vector<8x128xf32>
    %706 = vector.extract_strided_slice %688 {offsets = [24, 0], sizes = [8, 128], strides = [1, 1]} : vector<32x128xf32> to vector<8x128xf32>
    %707 = arith.negf %706 : vector<8x128xf32>
    %708 = math.exp %707 : vector<8x128xf32>
    %cst_168 = arith.constant 1.000000e+00 : f32
    %709 = vector.broadcast %cst_168 : f32 to vector<8x128xf32>
    %710 = arith.addf %709, %708 : vector<8x128xf32>
    %711 = arith.divf %709, %710 : vector<8x128xf32>
    %712 = arith.mulf %703, %653 : vector<8x128xf32>
    %713 = arith.mulf %697, %705 : vector<8x128xf32>
    %714 = arith.addf %712, %713 : vector<8x128xf32>
    %715 = math.tanh %714 : vector<8x128xf32>
    %716 = arith.mulf %711, %715 : vector<8x128xf32>
    %717 = vector.extract_strided_slice %691 {offsets = [0, 0], sizes = [8, 128], strides = [1, 1]} : vector<32x128xf32> to vector<8x128xf32>
    %718 = arith.negf %717 : vector<8x128xf32>
    %719 = math.exp %718 : vector<8x128xf32>
    %cst_169 = arith.constant 1.000000e+00 : f32
    %720 = vector.broadcast %cst_169 : f32 to vector<8x128xf32>
    %721 = arith.addf %720, %719 : vector<8x128xf32>
    %722 = arith.divf %720, %721 : vector<8x128xf32>
    %723 = vector.extract_strided_slice %691 {offsets = [8, 0], sizes = [8, 128], strides = [1, 1]} : vector<32x128xf32> to vector<8x128xf32>
    %724 = arith.negf %723 : vector<8x128xf32>
    %725 = math.exp %724 : vector<8x128xf32>
    %cst_170 = arith.constant 1.000000e+00 : f32
    %726 = vector.broadcast %cst_170 : f32 to vector<8x128xf32>
    %727 = arith.addf %726, %725 : vector<8x128xf32>
    %728 = arith.divf %726, %727 : vector<8x128xf32>
    %729 = vector.extract_strided_slice %691 {offsets = [16, 0], sizes = [8, 128], strides = [1, 1]} : vector<32x128xf32> to vector<8x128xf32>
    %730 = math.tanh %729 : vector<8x128xf32>
    %731 = vector.extract_strided_slice %691 {offsets = [24, 0], sizes = [8, 128], strides = [1, 1]} : vector<32x128xf32> to vector<8x128xf32>
    %732 = arith.negf %731 : vector<8x128xf32>
    %733 = math.exp %732 : vector<8x128xf32>
    %cst_171 = arith.constant 1.000000e+00 : f32
    %734 = vector.broadcast %cst_171 : f32 to vector<8x128xf32>
    %735 = arith.addf %734, %733 : vector<8x128xf32>
    %736 = arith.divf %734, %735 : vector<8x128xf32>
    %737 = arith.mulf %728, %678 : vector<8x128xf32>
    %738 = arith.mulf %722, %730 : vector<8x128xf32>
    %739 = arith.addf %737, %738 : vector<8x128xf32>
    %740 = math.tanh %739 : vector<8x128xf32>
    %741 = arith.mulf %736, %740 : vector<8x128xf32>
    %c0_172 = arith.constant 0 : index
    %c1408_173 = arith.constant 1408 : index
    %742 = vector.load %arg12[%c0_172, %c1408_173] : memref<16x2048xf32, #tpu.memory_space<vmem>>, vector<8x128xf32>
    tpu.vector_store %arg12[%c0_172, %c1408_173], %716 {strides = array<i32>} : memref<16x2048xf32, #tpu.memory_space<vmem>>, vector<8x128xf32>,
    %c8_174 = arith.constant 8 : index
    %c512_175 = arith.constant 512 : index
    %743 = vector.load %arg12[%c8_174, %c512_175] : memref<16x2048xf32, #tpu.memory_space<vmem>>, vector<8x128xf32>
    tpu.vector_store %arg12[%c8_174, %c512_175], %741 {strides = array<i32>} : memref<16x2048xf32, #tpu.memory_space<vmem>>, vector<8x128xf32>,
    %744 = tpu.concatenate %716, %741 in 0 : vector<8x128xf32>, vector<8x128xf32> -> vector<16x128xf32>
    %745 = arith.truncf %744 : vector<16x128xf32> to vector<16x128xbf16>
    %cst_176 = arith.constant dense<0.000000e+00> : vector<64x128xf32>
    %746 = tpu.matmul %7, %745, %cst_176 {dimension_numbers = #tpu.dot_dimension_numbers<[1], [0], [0], [1], [0, 0, 1, 1], [], []>} : vector<64x16xbf16>, vector<16x128xbf16>, vector<64x128xf32> -> vector<64x128xf32>
    %c0_177 = arith.constant 0 : index
    %c1536_178 = arith.constant 1536 : index
    %747 = vector.load %arg11[%c0_177, %c1536_178] : memref<64x2048xf32, #tpu.memory_space<vmem>>, vector<32x128xf32>
    %748 = vector.extract_strided_slice %746 {offsets = [0, 0], sizes = [32, 128], strides = [1, 1]} : vector<64x128xf32> to vector<32x128xf32>
    %749 = arith.addf %747, %748 : vector<32x128xf32>
    %c32_179 = arith.constant 32 : index
    %c384_180 = arith.constant 384 : index
    %750 = vector.load %arg11[%c32_179, %c384_180] : memref<64x2048xf32, #tpu.memory_space<vmem>>, vector<32x128xf32>
    %751 = vector.extract_strided_slice %746 {offsets = [32, 0], sizes = [32, 128], strides = [1, 1]} : vector<64x128xf32> to vector<32x128xf32>
    %752 = arith.addf %750, %751 : vector<32x128xf32>
    %753 = vector.extract_strided_slice %749 {offsets = [0, 0], sizes = [8, 128], strides = [1, 1]} : vector<32x128xf32> to vector<8x128xf32>
    %754 = arith.negf %753 : vector<8x128xf32>
    %755 = math.exp %754 : vector<8x128xf32>
    %cst_181 = arith.constant 1.000000e+00 : f32
    %756 = vector.broadcast %cst_181 : f32 to vector<8x128xf32>
    %757 = arith.addf %756, %755 : vector<8x128xf32>
    %758 = arith.divf %756, %757 : vector<8x128xf32>
    %759 = vector.extract_strided_slice %749 {offsets = [8, 0], sizes = [8, 128], strides = [1, 1]} : vector<32x128xf32> to vector<8x128xf32>
    %760 = arith.negf %759 : vector<8x128xf32>
    %761 = math.exp %760 : vector<8x128xf32>
    %cst_182 = arith.constant 1.000000e+00 : f32
    %762 = vector.broadcast %cst_182 : f32 to vector<8x128xf32>
    %763 = arith.addf %762, %761 : vector<8x128xf32>
    %764 = arith.divf %762, %763 : vector<8x128xf32>
    %765 = vector.extract_strided_slice %749 {offsets = [16, 0], sizes = [8, 128], strides = [1, 1]} : vector<32x128xf32> to vector<8x128xf32>
    %766 = math.tanh %765 : vector<8x128xf32>
    %767 = vector.extract_strided_slice %749 {offsets = [24, 0], sizes = [8, 128], strides = [1, 1]} : vector<32x128xf32> to vector<8x128xf32>
    %768 = arith.negf %767 : vector<8x128xf32>
    %769 = math.exp %768 : vector<8x128xf32>
    %cst_183 = arith.constant 1.000000e+00 : f32
    %770 = vector.broadcast %cst_183 : f32 to vector<8x128xf32>
    %771 = arith.addf %770, %769 : vector<8x128xf32>
    %772 = arith.divf %770, %771 : vector<8x128xf32>
    %773 = arith.mulf %764, %714 : vector<8x128xf32>
    %774 = arith.mulf %758, %766 : vector<8x128xf32>
    %775 = arith.addf %773, %774 : vector<8x128xf32>
    %776 = math.tanh %775 : vector<8x128xf32>
    %777 = arith.mulf %772, %776 : vector<8x128xf32>
    %778 = vector.extract_strided_slice %752 {offsets = [0, 0], sizes = [8, 128], strides = [1, 1]} : vector<32x128xf32> to vector<8x128xf32>
    %779 = arith.negf %778 : vector<8x128xf32>
    %780 = math.exp %779 : vector<8x128xf32>
    %cst_184 = arith.constant 1.000000e+00 : f32
    %781 = vector.broadcast %cst_184 : f32 to vector<8x128xf32>
    %782 = arith.addf %781, %780 : vector<8x128xf32>
    %783 = arith.divf %781, %782 : vector<8x128xf32>
    %784 = vector.extract_strided_slice %752 {offsets = [8, 0], sizes = [8, 128], strides = [1, 1]} : vector<32x128xf32> to vector<8x128xf32>
    %785 = arith.negf %784 : vector<8x128xf32>
    %786 = math.exp %785 : vector<8x128xf32>
    %cst_185 = arith.constant 1.000000e+00 : f32
    %787 = vector.broadcast %cst_185 : f32 to vector<8x128xf32>
    %788 = arith.addf %787, %786 : vector<8x128xf32>
    %789 = arith.divf %787, %788 : vector<8x128xf32>
    %790 = vector.extract_strided_slice %752 {offsets = [16, 0], sizes = [8, 128], strides = [1, 1]} : vector<32x128xf32> to vector<8x128xf32>
    %791 = math.tanh %790 : vector<8x128xf32>
    %792 = vector.extract_strided_slice %752 {offsets = [24, 0], sizes = [8, 128], strides = [1, 1]} : vector<32x128xf32> to vector<8x128xf32>
    %793 = arith.negf %792 : vector<8x128xf32>
    %794 = math.exp %793 : vector<8x128xf32>
    %cst_186 = arith.constant 1.000000e+00 : f32
    %795 = vector.broadcast %cst_186 : f32 to vector<8x128xf32>
    %796 = arith.addf %795, %794 : vector<8x128xf32>
    %797 = arith.divf %795, %796 : vector<8x128xf32>
    %798 = arith.mulf %789, %739 : vector<8x128xf32>
    %799 = arith.mulf %783, %791 : vector<8x128xf32>
    %800 = arith.addf %798, %799 : vector<8x128xf32>
    %801 = math.tanh %800 : vector<8x128xf32>
    %802 = arith.mulf %797, %801 : vector<8x128xf32>
    %c0_187 = arith.constant 0 : index
    %c1536_188 = arith.constant 1536 : index
    %803 = vector.load %arg12[%c0_187, %c1536_188] : memref<16x2048xf32, #tpu.memory_space<vmem>>, vector<8x128xf32>
    tpu.vector_store %arg12[%c0_187, %c1536_188], %777 {strides = array<i32>} : memref<16x2048xf32, #tpu.memory_space<vmem>>, vector<8x128xf32>,
    %c8_189 = arith.constant 8 : index
    %c384_190 = arith.constant 384 : index
    %804 = vector.load %arg12[%c8_189, %c384_190] : memref<16x2048xf32, #tpu.memory_space<vmem>>, vector<8x128xf32>
    tpu.vector_store %arg12[%c8_189, %c384_190], %802 {strides = array<i32>} : memref<16x2048xf32, #tpu.memory_space<vmem>>, vector<8x128xf32>,
    %805 = tpu.concatenate %777, %802 in 0 : vector<8x128xf32>, vector<8x128xf32> -> vector<16x128xf32>
    %806 = arith.truncf %805 : vector<16x128xf32> to vector<16x128xbf16>
    %cst_191 = arith.constant dense<0.000000e+00> : vector<64x128xf32>
    %807 = tpu.matmul %7, %806, %cst_191 {dimension_numbers = #tpu.dot_dimension_numbers<[1], [0], [0], [1], [0, 0, 1, 1], [], []>} : vector<64x16xbf16>, vector<16x128xbf16>, vector<64x128xf32> -> vector<64x128xf32>
    %c0_192 = arith.constant 0 : index
    %c1664_193 = arith.constant 1664 : index
    %808 = vector.load %arg11[%c0_192, %c1664_193] : memref<64x2048xf32, #tpu.memory_space<vmem>>, vector<32x128xf32>
    %809 = vector.extract_strided_slice %807 {offsets = [0, 0], sizes = [32, 128], strides = [1, 1]} : vector<64x128xf32> to vector<32x128xf32>
    %810 = arith.addf %808, %809 : vector<32x128xf32>
    %c32_194 = arith.constant 32 : index
    %c256_195 = arith.constant 256 : index
    %811 = vector.load %arg11[%c32_194, %c256_195] : memref<64x2048xf32, #tpu.memory_space<vmem>>, vector<32x128xf32>
    %812 = vector.extract_strided_slice %807 {offsets = [32, 0], sizes = [32, 128], strides = [1, 1]} : vector<64x128xf32> to vector<32x128xf32>
    %813 = arith.addf %811, %812 : vector<32x128xf32>
    %814 = vector.extract_strided_slice %810 {offsets = [0, 0], sizes = [8, 128], strides = [1, 1]} : vector<32x128xf32> to vector<8x128xf32>
    %815 = arith.negf %814 : vector<8x128xf32>
    %816 = math.exp %815 : vector<8x128xf32>
    %cst_196 = arith.constant 1.000000e+00 : f32
    %817 = vector.broadcast %cst_196 : f32 to vector<8x128xf32>
    %818 = arith.addf %817, %816 : vector<8x128xf32>
    %819 = arith.divf %817, %818 : vector<8x128xf32>
    %820 = vector.extract_strided_slice %810 {offsets = [8, 0], sizes = [8, 128], strides = [1, 1]} : vector<32x128xf32> to vector<8x128xf32>
    %821 = arith.negf %820 : vector<8x128xf32>
    %822 = math.exp %821 : vector<8x128xf32>
    %cst_197 = arith.constant 1.000000e+00 : f32
    %823 = vector.broadcast %cst_197 : f32 to vector<8x128xf32>
    %824 = arith.addf %823, %822 : vector<8x128xf32>
    %825 = arith.divf %823, %824 : vector<8x128xf32>
    %826 = vector.extract_strided_slice %810 {offsets = [16, 0], sizes = [8, 128], strides = [1, 1]} : vector<32x128xf32> to vector<8x128xf32>
    %827 = math.tanh %826 : vector<8x128xf32>
    %828 = vector.extract_strided_slice %810 {offsets = [24, 0], sizes = [8, 128], strides = [1, 1]} : vector<32x128xf32> to vector<8x128xf32>
    %829 = arith.negf %828 : vector<8x128xf32>
    %830 = math.exp %829 : vector<8x128xf32>
    %cst_198 = arith.constant 1.000000e+00 : f32
    %831 = vector.broadcast %cst_198 : f32 to vector<8x128xf32>
    %832 = arith.addf %831, %830 : vector<8x128xf32>
    %833 = arith.divf %831, %832 : vector<8x128xf32>
    %834 = arith.mulf %825, %775 : vector<8x128xf32>
    %835 = arith.mulf %819, %827 : vector<8x128xf32>
    %836 = arith.addf %834, %835 : vector<8x128xf32>
    %837 = math.tanh %836 : vector<8x128xf32>
    %838 = arith.mulf %833, %837 : vector<8x128xf32>
    %839 = vector.extract_strided_slice %813 {offsets = [0, 0], sizes = [8, 128], strides = [1, 1]} : vector<32x128xf32> to vector<8x128xf32>
    %840 = arith.negf %839 : vector<8x128xf32>
    %841 = math.exp %840 : vector<8x128xf32>
    %cst_199 = arith.constant 1.000000e+00 : f32
    %842 = vector.broadcast %cst_199 : f32 to vector<8x128xf32>
    %843 = arith.addf %842, %841 : vector<8x128xf32>
    %844 = arith.divf %842, %843 : vector<8x128xf32>
    %845 = vector.extract_strided_slice %813 {offsets = [8, 0], sizes = [8, 128], strides = [1, 1]} : vector<32x128xf32> to vector<8x128xf32>
    %846 = arith.negf %845 : vector<8x128xf32>
    %847 = math.exp %846 : vector<8x128xf32>
    %cst_200 = arith.constant 1.000000e+00 : f32
    %848 = vector.broadcast %cst_200 : f32 to vector<8x128xf32>
    %849 = arith.addf %848, %847 : vector<8x128xf32>
    %850 = arith.divf %848, %849 : vector<8x128xf32>
    %851 = vector.extract_strided_slice %813 {offsets = [16, 0], sizes = [8, 128], strides = [1, 1]} : vector<32x128xf32> to vector<8x128xf32>
    %852 = math.tanh %851 : vector<8x128xf32>
    %853 = vector.extract_strided_slice %813 {offsets = [24, 0], sizes = [8, 128], strides = [1, 1]} : vector<32x128xf32> to vector<8x128xf32>
    %854 = arith.negf %853 : vector<8x128xf32>
    %855 = math.exp %854 : vector<8x128xf32>
    %cst_201 = arith.constant 1.000000e+00 : f32
    %856 = vector.broadcast %cst_201 : f32 to vector<8x128xf32>
    %857 = arith.addf %856, %855 : vector<8x128xf32>
    %858 = arith.divf %856, %857 : vector<8x128xf32>
    %859 = arith.mulf %850, %800 : vector<8x128xf32>
    %860 = arith.mulf %844, %852 : vector<8x128xf32>
    %861 = arith.addf %859, %860 : vector<8x128xf32>
    %862 = math.tanh %861 : vector<8x128xf32>
    %863 = arith.mulf %858, %862 : vector<8x128xf32>
    %c0_202 = arith.constant 0 : index
    %c1664_203 = arith.constant 1664 : index
    %864 = vector.load %arg12[%c0_202, %c1664_203] : memref<16x2048xf32, #tpu.memory_space<vmem>>, vector<8x128xf32>
    tpu.vector_store %arg12[%c0_202, %c1664_203], %838 {strides = array<i32>} : memref<16x2048xf32, #tpu.memory_space<vmem>>, vector<8x128xf32>,
    %c8_204 = arith.constant 8 : index
    %c256_205 = arith.constant 256 : index
    %865 = vector.load %arg12[%c8_204, %c256_205] : memref<16x2048xf32, #tpu.memory_space<vmem>>, vector<8x128xf32>
    tpu.vector_store %arg12[%c8_204, %c256_205], %863 {strides = array<i32>} : memref<16x2048xf32, #tpu.memory_space<vmem>>, vector<8x128xf32>,
    %866 = tpu.concatenate %838, %863 in 0 : vector<8x128xf32>, vector<8x128xf32> -> vector<16x128xf32>
    %867 = arith.truncf %866 : vector<16x128xf32> to vector<16x128xbf16>
    %cst_206 = arith.constant dense<0.000000e+00> : vector<64x128xf32>
    %868 = tpu.matmul %7, %867, %cst_206 {dimension_numbers = #tpu.dot_dimension_numbers<[1], [0], [0], [1], [0, 0, 1, 1], [], []>} : vector<64x16xbf16>, vector<16x128xbf16>, vector<64x128xf32> -> vector<64x128xf32>
    %c0_207 = arith.constant 0 : index
    %c1792_208 = arith.constant 1792 : index
    %869 = vector.load %arg11[%c0_207, %c1792_208] : memref<64x2048xf32, #tpu.memory_space<vmem>>, vector<32x128xf32>
    %870 = vector.extract_strided_slice %868 {offsets = [0, 0], sizes = [32, 128], strides = [1, 1]} : vector<64x128xf32> to vector<32x128xf32>
    %871 = arith.addf %869, %870 : vector<32x128xf32>
    %c32_209 = arith.constant 32 : index
    %c128_210 = arith.constant 128 : index
    %872 = vector.load %arg11[%c32_209, %c128_210] : memref<64x2048xf32, #tpu.memory_space<vmem>>, vector<32x128xf32>
    %873 = vector.extract_strided_slice %868 {offsets = [32, 0], sizes = [32, 128], strides = [1, 1]} : vector<64x128xf32> to vector<32x128xf32>
    %874 = arith.addf %872, %873 : vector<32x128xf32>
    %875 = vector.extract_strided_slice %871 {offsets = [0, 0], sizes = [8, 128], strides = [1, 1]} : vector<32x128xf32> to vector<8x128xf32>
    %876 = arith.negf %875 : vector<8x128xf32>
    %877 = math.exp %876 : vector<8x128xf32>
    %cst_211 = arith.constant 1.000000e+00 : f32
    %878 = vector.broadcast %cst_211 : f32 to vector<8x128xf32>
    %879 = arith.addf %878, %877 : vector<8x128xf32>
    %880 = arith.divf %878, %879 : vector<8x128xf32>
    %881 = vector.extract_strided_slice %871 {offsets = [8, 0], sizes = [8, 128], strides = [1, 1]} : vector<32x128xf32> to vector<8x128xf32>
    %882 = arith.negf %881 : vector<8x128xf32>
    %883 = math.exp %882 : vector<8x128xf32>
    %cst_212 = arith.constant 1.000000e+00 : f32
    %884 = vector.broadcast %cst_212 : f32 to vector<8x128xf32>
    %885 = arith.addf %884, %883 : vector<8x128xf32>
    %886 = arith.divf %884, %885 : vector<8x128xf32>
    %887 = vector.extract_strided_slice %871 {offsets = [16, 0], sizes = [8, 128], strides = [1, 1]} : vector<32x128xf32> to vector<8x128xf32>
    %888 = math.tanh %887 : vector<8x128xf32>
    %889 = vector.extract_strided_slice %871 {offsets = [24, 0], sizes = [8, 128], strides = [1, 1]} : vector<32x128xf32> to vector<8x128xf32>
    %890 = arith.negf %889 : vector<8x128xf32>
    %891 = math.exp %890 : vector<8x128xf32>
    %cst_213 = arith.constant 1.000000e+00 : f32
    %892 = vector.broadcast %cst_213 : f32 to vector<8x128xf32>
    %893 = arith.addf %892, %891 : vector<8x128xf32>
    %894 = arith.divf %892, %893 : vector<8x128xf32>
    %895 = arith.mulf %886, %836 : vector<8x128xf32>
    %896 = arith.mulf %880, %888 : vector<8x128xf32>
    %897 = arith.addf %895, %896 : vector<8x128xf32>
    %898 = math.tanh %897 : vector<8x128xf32>
    %899 = arith.mulf %894, %898 : vector<8x128xf32>
    %900 = vector.extract_strided_slice %874 {offsets = [0, 0], sizes = [8, 128], strides = [1, 1]} : vector<32x128xf32> to vector<8x128xf32>
    %901 = arith.negf %900 : vector<8x128xf32>
    %902 = math.exp %901 : vector<8x128xf32>
    %cst_214 = arith.constant 1.000000e+00 : f32
    %903 = vector.broadcast %cst_214 : f32 to vector<8x128xf32>
    %904 = arith.addf %903, %902 : vector<8x128xf32>
    %905 = arith.divf %903, %904 : vector<8x128xf32>
    %906 = vector.extract_strided_slice %874 {offsets = [8, 0], sizes = [8, 128], strides = [1, 1]} : vector<32x128xf32> to vector<8x128xf32>
    %907 = arith.negf %906 : vector<8x128xf32>
    %908 = math.exp %907 : vector<8x128xf32>
    %cst_215 = arith.constant 1.000000e+00 : f32
    %909 = vector.broadcast %cst_215 : f32 to vector<8x128xf32>
    %910 = arith.addf %909, %908 : vector<8x128xf32>
    %911 = arith.divf %909, %910 : vector<8x128xf32>
    %912 = vector.extract_strided_slice %874 {offsets = [16, 0], sizes = [8, 128], strides = [1, 1]} : vector<32x128xf32> to vector<8x128xf32>
    %913 = math.tanh %912 : vector<8x128xf32>
    %914 = vector.extract_strided_slice %874 {offsets = [24, 0], sizes = [8, 128], strides = [1, 1]} : vector<32x128xf32> to vector<8x128xf32>
    %915 = arith.negf %914 : vector<8x128xf32>
    %916 = math.exp %915 : vector<8x128xf32>
    %cst_216 = arith.constant 1.000000e+00 : f32
    %917 = vector.broadcast %cst_216 : f32 to vector<8x128xf32>
    %918 = arith.addf %917, %916 : vector<8x128xf32>
    %919 = arith.divf %917, %918 : vector<8x128xf32>
    %920 = arith.mulf %911, %861 : vector<8x128xf32>
    %921 = arith.mulf %905, %913 : vector<8x128xf32>
    %922 = arith.addf %920, %921 : vector<8x128xf32>
    %923 = math.tanh %922 : vector<8x128xf32>
    %924 = arith.mulf %919, %923 : vector<8x128xf32>
    %c0_217 = arith.constant 0 : index
    %c1792_218 = arith.constant 1792 : index
    %925 = vector.load %arg12[%c0_217, %c1792_218] : memref<16x2048xf32, #tpu.memory_space<vmem>>, vector<8x128xf32>
    tpu.vector_store %arg12[%c0_217, %c1792_218], %899 {strides = array<i32>} : memref<16x2048xf32, #tpu.memory_space<vmem>>, vector<8x128xf32>,
    %c8_219 = arith.constant 8 : index
    %c128_220 = arith.constant 128 : index
    %926 = vector.load %arg12[%c8_219, %c128_220] : memref<16x2048xf32, #tpu.memory_space<vmem>>, vector<8x128xf32>
    tpu.vector_store %arg12[%c8_219, %c128_220], %924 {strides = array<i32>} : memref<16x2048xf32, #tpu.memory_space<vmem>>, vector<8x128xf32>,
    %927 = tpu.concatenate %899, %924 in 0 : vector<8x128xf32>, vector<8x128xf32> -> vector<16x128xf32>
    %928 = arith.truncf %927 : vector<16x128xf32> to vector<16x128xbf16>
    %cst_221 = arith.constant dense<0.000000e+00> : vector<64x128xf32>
    %929 = tpu.matmul %7, %928, %cst_221 {dimension_numbers = #tpu.dot_dimension_numbers<[1], [0], [0], [1], [0, 0, 1, 1], [], []>} : vector<64x16xbf16>, vector<16x128xbf16>, vector<64x128xf32> -> vector<64x128xf32>
    %c0_222 = arith.constant 0 : index
    %c1920_223 = arith.constant 1920 : index
    %930 = vector.load %arg11[%c0_222, %c1920_223] : memref<64x2048xf32, #tpu.memory_space<vmem>>, vector<32x128xf32>
    %931 = vector.extract_strided_slice %929 {offsets = [0, 0], sizes = [32, 128], strides = [1, 1]} : vector<64x128xf32> to vector<32x128xf32>
    %932 = arith.addf %930, %931 : vector<32x128xf32>
    %c32_224 = arith.constant 32 : index
    %c0_225 = arith.constant 0 : index
    %933 = vector.load %arg11[%c32_224, %c0_225] : memref<64x2048xf32, #tpu.memory_space<vmem>>, vector<32x128xf32>
    %934 = vector.extract_strided_slice %929 {offsets = [32, 0], sizes = [32, 128], strides = [1, 1]} : vector<64x128xf32> to vector<32x128xf32>
    %935 = arith.addf %933, %934 : vector<32x128xf32>
    %936 = vector.extract_strided_slice %932 {offsets = [0, 0], sizes = [8, 128], strides = [1, 1]} : vector<32x128xf32> to vector<8x128xf32>
    %937 = arith.negf %936 : vector<8x128xf32>
    %938 = math.exp %937 : vector<8x128xf32>
    %cst_226 = arith.constant 1.000000e+00 : f32
    %939 = vector.broadcast %cst_226 : f32 to vector<8x128xf32>
    %940 = arith.addf %939, %938 : vector<8x128xf32>
    %941 = arith.divf %939, %940 : vector<8x128xf32>
    %942 = vector.extract_strided_slice %932 {offsets = [8, 0], sizes = [8, 128], strides = [1, 1]} : vector<32x128xf32> to vector<8x128xf32>
    %943 = arith.negf %942 : vector<8x128xf32>
    %944 = math.exp %943 : vector<8x128xf32>
    %cst_227 = arith.constant 1.000000e+00 : f32
    %945 = vector.broadcast %cst_227 : f32 to vector<8x128xf32>
    %946 = arith.addf %945, %944 : vector<8x128xf32>
    %947 = arith.divf %945, %946 : vector<8x128xf32>
    %948 = vector.extract_strided_slice %932 {offsets = [16, 0], sizes = [8, 128], strides = [1, 1]} : vector<32x128xf32> to vector<8x128xf32>
    %949 = math.tanh %948 : vector<8x128xf32>
    %950 = vector.extract_strided_slice %932 {offsets = [24, 0], sizes = [8, 128], strides = [1, 1]} : vector<32x128xf32> to vector<8x128xf32>
    %951 = arith.negf %950 : vector<8x128xf32>
    %952 = math.exp %951 : vector<8x128xf32>
    %cst_228 = arith.constant 1.000000e+00 : f32
    %953 = vector.broadcast %cst_228 : f32 to vector<8x128xf32>
    %954 = arith.addf %953, %952 : vector<8x128xf32>
    %955 = arith.divf %953, %954 : vector<8x128xf32>
    %956 = arith.mulf %947, %897 : vector<8x128xf32>
    %957 = arith.mulf %941, %949 : vector<8x128xf32>
    %958 = arith.addf %956, %957 : vector<8x128xf32>
    %959 = math.tanh %958 : vector<8x128xf32>
    %960 = arith.mulf %955, %959 : vector<8x128xf32>
    %961 = vector.extract_strided_slice %935 {offsets = [0, 0], sizes = [8, 128], strides = [1, 1]} : vector<32x128xf32> to vector<8x128xf32>
    %962 = arith.negf %961 : vector<8x128xf32>
    %963 = math.exp %962 : vector<8x128xf32>
    %cst_229 = arith.constant 1.000000e+00 : f32
    %964 = vector.broadcast %cst_229 : f32 to vector<8x128xf32>
    %965 = arith.addf %964, %963 : vector<8x128xf32>
    %966 = arith.divf %964, %965 : vector<8x128xf32>
    %967 = vector.extract_strided_slice %935 {offsets = [8, 0], sizes = [8, 128], strides = [1, 1]} : vector<32x128xf32> to vector<8x128xf32>
    %968 = arith.negf %967 : vector<8x128xf32>
    %969 = math.exp %968 : vector<8x128xf32>
    %cst_230 = arith.constant 1.000000e+00 : f32
    %970 = vector.broadcast %cst_230 : f32 to vector<8x128xf32>
    %971 = arith.addf %970, %969 : vector<8x128xf32>
    %972 = arith.divf %970, %971 : vector<8x128xf32>
    %973 = vector.extract_strided_slice %935 {offsets = [16, 0], sizes = [8, 128], strides = [1, 1]} : vector<32x128xf32> to vector<8x128xf32>
    %974 = math.tanh %973 : vector<8x128xf32>
    %975 = vector.extract_strided_slice %935 {offsets = [24, 0], sizes = [8, 128], strides = [1, 1]} : vector<32x128xf32> to vector<8x128xf32>
    %976 = arith.negf %975 : vector<8x128xf32>
    %977 = math.exp %976 : vector<8x128xf32>
    %cst_231 = arith.constant 1.000000e+00 : f32
    %978 = vector.broadcast %cst_231 : f32 to vector<8x128xf32>
    %979 = arith.addf %978, %977 : vector<8x128xf32>
    %980 = arith.divf %978, %979 : vector<8x128xf32>
    %981 = arith.mulf %972, %922 : vector<8x128xf32>
    %982 = arith.mulf %966, %974 : vector<8x128xf32>
    %983 = arith.addf %981, %982 : vector<8x128xf32>
    %984 = math.tanh %983 : vector<8x128xf32>
    %985 = arith.mulf %980, %984 : vector<8x128xf32>
    %c0_232 = arith.constant 0 : index
    %c1920_233 = arith.constant 1920 : index
    %986 = vector.load %arg12[%c0_232, %c1920_233] : memref<16x2048xf32, #tpu.memory_space<vmem>>, vector<8x128xf32>
    tpu.vector_store %arg12[%c0_232, %c1920_233], %960 {strides = array<i32>} : memref<16x2048xf32, #tpu.memory_space<vmem>>, vector<8x128xf32>,
    %c8_234 = arith.constant 8 : index
    %c0_235 = arith.constant 0 : index
    %987 = vector.load %arg12[%c8_234, %c0_235] : memref<16x2048xf32, #tpu.memory_space<vmem>>, vector<8x128xf32>
    tpu.vector_store %arg12[%c8_234, %c0_235], %985 {strides = array<i32>} : memref<16x2048xf32, #tpu.memory_space<vmem>>, vector<8x128xf32>,
    %c0_236 = arith.constant 0 : index
    %c0_237 = arith.constant 0 : index
    %988 = vector.load %arg12[%c0_236, %c0_237] : memref<16x2048xf32, #tpu.memory_space<vmem>>, vector<16x2048xf32>
    %989 = arith.truncf %988 : vector<16x2048xf32> to vector<16x2048xbf16>
    %c0_238 = arith.constant 0 : index
    %c0_239 = arith.constant 0 : index
    %990 = vector.load %arg4[%c0_238, %c0_239] : memref<16x16xbf16, #tpu.memory_space<vmem>>, vector<16x16xbf16>
    %cst_240 = arith.constant dense<0.000000e+00> : vector<16x2048xf32>
    %991 = tpu.matmul %990, %989, %cst_240 {dimension_numbers = #tpu.dot_dimension_numbers<[1], [0], [0], [1], [0, 0, 1, 1], [], []>} : vector<16x16xbf16>, vector<16x2048xbf16>, vector<16x2048xf32> -> vector<16x2048xf32>
    %c0_241 = arith.constant 0 : index
    %c0_242 = arith.constant 0 : index
    %992 = vector.load %arg5[%c0_241, %c0_242] : memref<16x1xf32, #tpu.memory_space<vmem>>, vector<16x1xf32>
    %993 = vector.broadcast %992 : vector<16x1xf32> to vector<16x2048xf32>
    %994 = arith.addf %991, %993 : vector<16x2048xf32>
    %995 = math.tanh %994 : vector<16x2048xf32>
    %c0_243 = arith.constant 0 : index
    %c0_244 = arith.constant 0 : index
    %996 = vector.load %arg6[%c0_243, %c0_244] : memref<4x16xbf16, #tpu.memory_space<vmem>>, vector<4x16xbf16>
    %997 = arith.truncf %995 : vector<16x2048xf32> to vector<16x2048xbf16>
    %cst_245 = arith.constant dense<0.000000e+00> : vector<4x2048xf32>
    %998 = tpu.matmul %996, %997, %cst_245 {dimension_numbers = #tpu.dot_dimension_numbers<[1], [0], [0], [1], [0, 0, 1, 1], [], []>} : vector<4x16xbf16>, vector<16x2048xbf16>, vector<4x2048xf32> -> vector<4x2048xf32>
    %c0_246 = arith.constant 0 : index
    %c0_247 = arith.constant 0 : index
    %999 = vector.load %arg7[%c0_246, %c0_247] : memref<4x1xf32, #tpu.memory_space<vmem>>, vector<4x1xf32>
    %1000 = vector.broadcast %999 : vector<4x1xf32> to vector<4x2048xf32>
    %1001 = arith.addf %998, %1000 : vector<4x2048xf32>
    %c0_248 = arith.constant 0 : index
    %c0_249 = arith.constant 0 : index
    %1002 = vector.load %arg8[%c0_248, %c0_249] : memref<4x16xbf16, #tpu.memory_space<vmem>>, vector<4x16xbf16>
    %cst_250 = arith.constant dense<0.000000e+00> : vector<4x2048xf32>
    %1003 = tpu.matmul %1002, %989, %cst_250 {dimension_numbers = #tpu.dot_dimension_numbers<[1], [0], [0], [1], [0, 0, 1, 1], [], []>} : vector<4x16xbf16>, vector<16x2048xbf16>, vector<4x2048xf32> -> vector<4x2048xf32>
    %cst_251 = arith.constant dense<0xFF800000> : vector<4xf32>
    %1004 = vector.multi_reduction <maximumf>, %1001, %cst_251 [1] : vector<4x2048xf32> to vector<4xf32>
    %1005 = vector.shape_cast %1004 : vector<4xf32> to vector<4x1xf32>
    %cst_252 = arith.constant dense<0xFF800000> : vector<1xf32>
    %1006 = vector.multi_reduction <maximumf>, %1005, %cst_252 [0] : vector<4x1xf32> to vector<1xf32>
    %1007 = vector.shape_cast %1006 : vector<1xf32> to vector<1x1xf32>
    %1008 = tpu.iota {dimensions = array<i32: 1>} : vector<1x128xi32>
    %c8_i32 = arith.constant 8 : i32
    %1009 = vector.broadcast %c8_i32 : i32 to vector<1x128xi32>
    %1010 = arith.cmpi slt, %1008, %1009 : vector<1x128xi32>
    %1011 = arith.extui %1010 : vector<1x128xi1> to vector<1x128xi32>
    %1012 = arith.sitofp %1011 : vector<1x128xi32> to vector<1x128xf32>
    %cst_253 = arith.constant 0.000000e+00 : f32
    %1013 = vector.broadcast %cst_253 : f32 to vector<1x128xf32>
    %1014 = vector.extract_strided_slice %1001 {offsets = [0, 0], sizes = [4, 128], strides = [1, 1]} : vector<4x2048xf32> to vector<4x128xf32>
    %1015 = vector.broadcast %1007 : vector<1x1xf32> to vector<4x128xf32>
    %1016 = arith.subf %1014, %1015 : vector<4x128xf32>
    %1017 = math.exp %1016 : vector<4x128xf32>
    %1018 = vector.broadcast %1012 : vector<1x128xf32> to vector<4x128xf32>
    %1019 = arith.mulf %1017, %1018 : vector<4x128xf32>
    %cst_254 = arith.constant dense<0.000000e+00> : vector<4xf32>
    %1020 = vector.multi_reduction <add>, %1019, %cst_254 [1] : vector<4x128xf32> to vector<4xf32>
    %1021 = vector.shape_cast %1020 : vector<4xf32> to vector<4x1xf32>
    %1022 = tpu.reciprocal %1021 {approx = true} : vector<4x1xf32> -> vector<4x1xf32>
    %1023 = vector.broadcast %1022 : vector<4x1xf32> to vector<4x128xf32>
    %1024 = arith.mulf %1019, %1023 : vector<4x128xf32>
    %1025 = vector.extract_strided_slice %1003 {offsets = [0, 0], sizes = [4, 128], strides = [1, 1]} : vector<4x2048xf32> to vector<4x128xf32>
    %1026 = arith.mulf %1024, %1025 : vector<4x128xf32>
    %cst_255 = arith.constant dense<0.000000e+00> : vector<128xf32>
    %1027 = vector.multi_reduction <add>, %1026, %cst_255 [0] : vector<4x128xf32> to vector<128xf32>
    %1028 = vector.shape_cast %1027 : vector<128xf32> to vector<1x128xf32>
    %1029 = arith.addf %1013, %1028 : vector<1x128xf32>
    %1030 = vector.extract_strided_slice %1001 {offsets = [0, 128], sizes = [4, 128], strides = [1, 1]} : vector<4x2048xf32> to vector<4x128xf32>
    %1031 = vector.broadcast %1007 : vector<1x1xf32> to vector<4x128xf32>
    %1032 = arith.subf %1030, %1031 : vector<4x128xf32>
    %1033 = math.exp %1032 : vector<4x128xf32>
    %1034 = vector.broadcast %1012 : vector<1x128xf32> to vector<4x128xf32>
    %1035 = arith.mulf %1033, %1034 : vector<4x128xf32>
    %cst_256 = arith.constant dense<0.000000e+00> : vector<4xf32>
    %1036 = vector.multi_reduction <add>, %1035, %cst_256 [1] : vector<4x128xf32> to vector<4xf32>
    %1037 = vector.shape_cast %1036 : vector<4xf32> to vector<4x1xf32>
    %1038 = tpu.reciprocal %1037 {approx = true} : vector<4x1xf32> -> vector<4x1xf32>
    %1039 = vector.broadcast %1038 : vector<4x1xf32> to vector<4x128xf32>
    %1040 = arith.mulf %1035, %1039 : vector<4x128xf32>
    %1041 = vector.extract_strided_slice %1003 {offsets = [0, 128], sizes = [4, 128], strides = [1, 1]} : vector<4x2048xf32> to vector<4x128xf32>
    %1042 = arith.mulf %1040, %1041 : vector<4x128xf32>
    %cst_257 = arith.constant dense<0.000000e+00> : vector<128xf32>
    %1043 = vector.multi_reduction <add>, %1042, %cst_257 [0] : vector<4x128xf32> to vector<128xf32>
    %1044 = vector.shape_cast %1043 : vector<128xf32> to vector<1x128xf32>
    %1045 = arith.addf %1029, %1044 : vector<1x128xf32>
    %1046 = vector.extract_strided_slice %1001 {offsets = [0, 256], sizes = [4, 128], strides = [1, 1]} : vector<4x2048xf32> to vector<4x128xf32>
    %1047 = vector.broadcast %1007 : vector<1x1xf32> to vector<4x128xf32>
    %1048 = arith.subf %1046, %1047 : vector<4x128xf32>
    %1049 = math.exp %1048 : vector<4x128xf32>
    %1050 = vector.broadcast %1012 : vector<1x128xf32> to vector<4x128xf32>
    %1051 = arith.mulf %1049, %1050 : vector<4x128xf32>
    %cst_258 = arith.constant dense<0.000000e+00> : vector<4xf32>
    %1052 = vector.multi_reduction <add>, %1051, %cst_258 [1] : vector<4x128xf32> to vector<4xf32>
    %1053 = vector.shape_cast %1052 : vector<4xf32> to vector<4x1xf32>
    %1054 = tpu.reciprocal %1053 {approx = true} : vector<4x1xf32> -> vector<4x1xf32>
    %1055 = vector.broadcast %1054 : vector<4x1xf32> to vector<4x128xf32>
    %1056 = arith.mulf %1051, %1055 : vector<4x128xf32>
    %1057 = vector.extract_strided_slice %1003 {offsets = [0, 256], sizes = [4, 128], strides = [1, 1]} : vector<4x2048xf32> to vector<4x128xf32>
    %1058 = arith.mulf %1056, %1057 : vector<4x128xf32>
    %cst_259 = arith.constant dense<0.000000e+00> : vector<128xf32>
    %1059 = vector.multi_reduction <add>, %1058, %cst_259 [0] : vector<4x128xf32> to vector<128xf32>
    %1060 = vector.shape_cast %1059 : vector<128xf32> to vector<1x128xf32>
    %1061 = arith.addf %1045, %1060 : vector<1x128xf32>
    %1062 = vector.extract_strided_slice %1001 {offsets = [0, 384], sizes = [4, 128], strides = [1, 1]} : vector<4x2048xf32> to vector<4x128xf32>
    %1063 = vector.broadcast %1007 : vector<1x1xf32> to vector<4x128xf32>
    %1064 = arith.subf %1062, %1063 : vector<4x128xf32>
    %1065 = math.exp %1064 : vector<4x128xf32>
    %1066 = vector.broadcast %1012 : vector<1x128xf32> to vector<4x128xf32>
    %1067 = arith.mulf %1065, %1066 : vector<4x128xf32>
    %cst_260 = arith.constant dense<0.000000e+00> : vector<4xf32>
    %1068 = vector.multi_reduction <add>, %1067, %cst_260 [1] : vector<4x128xf32> to vector<4xf32>
    %1069 = vector.shape_cast %1068 : vector<4xf32> to vector<4x1xf32>
    %1070 = tpu.reciprocal %1069 {approx = true} : vector<4x1xf32> -> vector<4x1xf32>
    %1071 = vector.broadcast %1070 : vector<4x1xf32> to vector<4x128xf32>
    %1072 = arith.mulf %1067, %1071 : vector<4x128xf32>
    %1073 = vector.extract_strided_slice %1003 {offsets = [0, 384], sizes = [4, 128], strides = [1, 1]} : vector<4x2048xf32> to vector<4x128xf32>
    %1074 = arith.mulf %1072, %1073 : vector<4x128xf32>
    %cst_261 = arith.constant dense<0.000000e+00> : vector<128xf32>
    %1075 = vector.multi_reduction <add>, %1074, %cst_261 [0] : vector<4x128xf32> to vector<128xf32>
    %1076 = vector.shape_cast %1075 : vector<128xf32> to vector<1x128xf32>
    %1077 = arith.addf %1061, %1076 : vector<1x128xf32>
    %1078 = vector.extract_strided_slice %1001 {offsets = [0, 512], sizes = [4, 128], strides = [1, 1]} : vector<4x2048xf32> to vector<4x128xf32>
    %1079 = vector.broadcast %1007 : vector<1x1xf32> to vector<4x128xf32>
    %1080 = arith.subf %1078, %1079 : vector<4x128xf32>
    %1081 = math.exp %1080 : vector<4x128xf32>
    %1082 = vector.broadcast %1012 : vector<1x128xf32> to vector<4x128xf32>
    %1083 = arith.mulf %1081, %1082 : vector<4x128xf32>
    %cst_262 = arith.constant dense<0.000000e+00> : vector<4xf32>
    %1084 = vector.multi_reduction <add>, %1083, %cst_262 [1] : vector<4x128xf32> to vector<4xf32>
    %1085 = vector.shape_cast %1084 : vector<4xf32> to vector<4x1xf32>
    %1086 = tpu.reciprocal %1085 {approx = true} : vector<4x1xf32> -> vector<4x1xf32>
    %1087 = vector.broadcast %1086 : vector<4x1xf32> to vector<4x128xf32>
    %1088 = arith.mulf %1083, %1087 : vector<4x128xf32>
    %1089 = vector.extract_strided_slice %1003 {offsets = [0, 512], sizes = [4, 128], strides = [1, 1]} : vector<4x2048xf32> to vector<4x128xf32>
    %1090 = arith.mulf %1088, %1089 : vector<4x128xf32>
    %cst_263 = arith.constant dense<0.000000e+00> : vector<128xf32>
    %1091 = vector.multi_reduction <add>, %1090, %cst_263 [0] : vector<4x128xf32> to vector<128xf32>
    %1092 = vector.shape_cast %1091 : vector<128xf32> to vector<1x128xf32>
    %1093 = arith.addf %1077, %1092 : vector<1x128xf32>
    %1094 = vector.extract_strided_slice %1001 {offsets = [0, 640], sizes = [4, 128], strides = [1, 1]} : vector<4x2048xf32> to vector<4x128xf32>
    %1095 = vector.broadcast %1007 : vector<1x1xf32> to vector<4x128xf32>
    %1096 = arith.subf %1094, %1095 : vector<4x128xf32>
    %1097 = math.exp %1096 : vector<4x128xf32>
    %1098 = vector.broadcast %1012 : vector<1x128xf32> to vector<4x128xf32>
    %1099 = arith.mulf %1097, %1098 : vector<4x128xf32>
    %cst_264 = arith.constant dense<0.000000e+00> : vector<4xf32>
    %1100 = vector.multi_reduction <add>, %1099, %cst_264 [1] : vector<4x128xf32> to vector<4xf32>
    %1101 = vector.shape_cast %1100 : vector<4xf32> to vector<4x1xf32>
    %1102 = tpu.reciprocal %1101 {approx = true} : vector<4x1xf32> -> vector<4x1xf32>
    %1103 = vector.broadcast %1102 : vector<4x1xf32> to vector<4x128xf32>
    %1104 = arith.mulf %1099, %1103 : vector<4x128xf32>
    %1105 = vector.extract_strided_slice %1003 {offsets = [0, 640], sizes = [4, 128], strides = [1, 1]} : vector<4x2048xf32> to vector<4x128xf32>
    %1106 = arith.mulf %1104, %1105 : vector<4x128xf32>
    %cst_265 = arith.constant dense<0.000000e+00> : vector<128xf32>
    %1107 = vector.multi_reduction <add>, %1106, %cst_265 [0] : vector<4x128xf32> to vector<128xf32>
    %1108 = vector.shape_cast %1107 : vector<128xf32> to vector<1x128xf32>
    %1109 = arith.addf %1093, %1108 : vector<1x128xf32>
    %1110 = vector.extract_strided_slice %1001 {offsets = [0, 768], sizes = [4, 128], strides = [1, 1]} : vector<4x2048xf32> to vector<4x128xf32>
    %1111 = vector.broadcast %1007 : vector<1x1xf32> to vector<4x128xf32>
    %1112 = arith.subf %1110, %1111 : vector<4x128xf32>
    %1113 = math.exp %1112 : vector<4x128xf32>
    %1114 = vector.broadcast %1012 : vector<1x128xf32> to vector<4x128xf32>
    %1115 = arith.mulf %1113, %1114 : vector<4x128xf32>
    %cst_266 = arith.constant dense<0.000000e+00> : vector<4xf32>
    %1116 = vector.multi_reduction <add>, %1115, %cst_266 [1] : vector<4x128xf32> to vector<4xf32>
    %1117 = vector.shape_cast %1116 : vector<4xf32> to vector<4x1xf32>
    %1118 = tpu.reciprocal %1117 {approx = true} : vector<4x1xf32> -> vector<4x1xf32>
    %1119 = vector.broadcast %1118 : vector<4x1xf32> to vector<4x128xf32>
    %1120 = arith.mulf %1115, %1119 : vector<4x128xf32>
    %1121 = vector.extract_strided_slice %1003 {offsets = [0, 768], sizes = [4, 128], strides = [1, 1]} : vector<4x2048xf32> to vector<4x128xf32>
    %1122 = arith.mulf %1120, %1121 : vector<4x128xf32>
    %cst_267 = arith.constant dense<0.000000e+00> : vector<128xf32>
    %1123 = vector.multi_reduction <add>, %1122, %cst_267 [0] : vector<4x128xf32> to vector<128xf32>
    %1124 = vector.shape_cast %1123 : vector<128xf32> to vector<1x128xf32>
    %1125 = arith.addf %1109, %1124 : vector<1x128xf32>
    %1126 = vector.extract_strided_slice %1001 {offsets = [0, 896], sizes = [4, 128], strides = [1, 1]} : vector<4x2048xf32> to vector<4x128xf32>
    %1127 = vector.broadcast %1007 : vector<1x1xf32> to vector<4x128xf32>
    %1128 = arith.subf %1126, %1127 : vector<4x128xf32>
    %1129 = math.exp %1128 : vector<4x128xf32>
    %1130 = vector.broadcast %1012 : vector<1x128xf32> to vector<4x128xf32>
    %1131 = arith.mulf %1129, %1130 : vector<4x128xf32>
    %cst_268 = arith.constant dense<0.000000e+00> : vector<4xf32>
    %1132 = vector.multi_reduction <add>, %1131, %cst_268 [1] : vector<4x128xf32> to vector<4xf32>
    %1133 = vector.shape_cast %1132 : vector<4xf32> to vector<4x1xf32>
    %1134 = tpu.reciprocal %1133 {approx = true} : vector<4x1xf32> -> vector<4x1xf32>
    %1135 = vector.broadcast %1134 : vector<4x1xf32> to vector<4x128xf32>
    %1136 = arith.mulf %1131, %1135 : vector<4x128xf32>
    %1137 = vector.extract_strided_slice %1003 {offsets = [0, 896], sizes = [4, 128], strides = [1, 1]} : vector<4x2048xf32> to vector<4x128xf32>
    %1138 = arith.mulf %1136, %1137 : vector<4x128xf32>
    %cst_269 = arith.constant dense<0.000000e+00> : vector<128xf32>
    %1139 = vector.multi_reduction <add>, %1138, %cst_269 [0] : vector<4x128xf32> to vector<128xf32>
    %1140 = vector.shape_cast %1139 : vector<128xf32> to vector<1x128xf32>
    %1141 = arith.addf %1125, %1140 : vector<1x128xf32>
    %1142 = vector.extract_strided_slice %1001 {offsets = [0, 1024], sizes = [4, 128], strides = [1, 1]} : vector<4x2048xf32> to vector<4x128xf32>
    %1143 = vector.broadcast %1007 : vector<1x1xf32> to vector<4x128xf32>
    %1144 = arith.subf %1142, %1143 : vector<4x128xf32>
    %1145 = math.exp %1144 : vector<4x128xf32>
    %1146 = vector.broadcast %1012 : vector<1x128xf32> to vector<4x128xf32>
    %1147 = arith.mulf %1145, %1146 : vector<4x128xf32>
    %cst_270 = arith.constant dense<0.000000e+00> : vector<4xf32>
    %1148 = vector.multi_reduction <add>, %1147, %cst_270 [1] : vector<4x128xf32> to vector<4xf32>
    %1149 = vector.shape_cast %1148 : vector<4xf32> to vector<4x1xf32>
    %1150 = tpu.reciprocal %1149 {approx = true} : vector<4x1xf32> -> vector<4x1xf32>
    %1151 = vector.broadcast %1150 : vector<4x1xf32> to vector<4x128xf32>
    %1152 = arith.mulf %1147, %1151 : vector<4x128xf32>
    %1153 = vector.extract_strided_slice %1003 {offsets = [0, 1024], sizes = [4, 128], strides = [1, 1]} : vector<4x2048xf32> to vector<4x128xf32>
    %1154 = arith.mulf %1152, %1153 : vector<4x128xf32>
    %cst_271 = arith.constant dense<0.000000e+00> : vector<128xf32>
    %1155 = vector.multi_reduction <add>, %1154, %cst_271 [0] : vector<4x128xf32> to vector<128xf32>
    %1156 = vector.shape_cast %1155 : vector<128xf32> to vector<1x128xf32>
    %1157 = arith.addf %1141, %1156 : vector<1x128xf32>
    %1158 = vector.extract_strided_slice %1001 {offsets = [0, 1152], sizes = [4, 128], strides = [1, 1]} : vector<4x2048xf32> to vector<4x128xf32>
    %1159 = vector.broadcast %1007 : vector<1x1xf32> to vector<4x128xf32>
    %1160 = arith.subf %1158, %1159 : vector<4x128xf32>
    %1161 = math.exp %1160 : vector<4x128xf32>
    %1162 = vector.broadcast %1012 : vector<1x128xf32> to vector<4x128xf32>
    %1163 = arith.mulf %1161, %1162 : vector<4x128xf32>
    %cst_272 = arith.constant dense<0.000000e+00> : vector<4xf32>
    %1164 = vector.multi_reduction <add>, %1163, %cst_272 [1] : vector<4x128xf32> to vector<4xf32>
    %1165 = vector.shape_cast %1164 : vector<4xf32> to vector<4x1xf32>
    %1166 = tpu.reciprocal %1165 {approx = true} : vector<4x1xf32> -> vector<4x1xf32>
    %1167 = vector.broadcast %1166 : vector<4x1xf32> to vector<4x128xf32>
    %1168 = arith.mulf %1163, %1167 : vector<4x128xf32>
    %1169 = vector.extract_strided_slice %1003 {offsets = [0, 1152], sizes = [4, 128], strides = [1, 1]} : vector<4x2048xf32> to vector<4x128xf32>
    %1170 = arith.mulf %1168, %1169 : vector<4x128xf32>
    %cst_273 = arith.constant dense<0.000000e+00> : vector<128xf32>
    %1171 = vector.multi_reduction <add>, %1170, %cst_273 [0] : vector<4x128xf32> to vector<128xf32>
    %1172 = vector.shape_cast %1171 : vector<128xf32> to vector<1x128xf32>
    %1173 = arith.addf %1157, %1172 : vector<1x128xf32>
    %1174 = vector.extract_strided_slice %1001 {offsets = [0, 1280], sizes = [4, 128], strides = [1, 1]} : vector<4x2048xf32> to vector<4x128xf32>
    %1175 = vector.broadcast %1007 : vector<1x1xf32> to vector<4x128xf32>
    %1176 = arith.subf %1174, %1175 : vector<4x128xf32>
    %1177 = math.exp %1176 : vector<4x128xf32>
    %1178 = vector.broadcast %1012 : vector<1x128xf32> to vector<4x128xf32>
    %1179 = arith.mulf %1177, %1178 : vector<4x128xf32>
    %cst_274 = arith.constant dense<0.000000e+00> : vector<4xf32>
    %1180 = vector.multi_reduction <add>, %1179, %cst_274 [1] : vector<4x128xf32> to vector<4xf32>
    %1181 = vector.shape_cast %1180 : vector<4xf32> to vector<4x1xf32>
    %1182 = tpu.reciprocal %1181 {approx = true} : vector<4x1xf32> -> vector<4x1xf32>
    %1183 = vector.broadcast %1182 : vector<4x1xf32> to vector<4x128xf32>
    %1184 = arith.mulf %1179, %1183 : vector<4x128xf32>
    %1185 = vector.extract_strided_slice %1003 {offsets = [0, 1280], sizes = [4, 128], strides = [1, 1]} : vector<4x2048xf32> to vector<4x128xf32>
    %1186 = arith.mulf %1184, %1185 : vector<4x128xf32>
    %cst_275 = arith.constant dense<0.000000e+00> : vector<128xf32>
    %1187 = vector.multi_reduction <add>, %1186, %cst_275 [0] : vector<4x128xf32> to vector<128xf32>
    %1188 = vector.shape_cast %1187 : vector<128xf32> to vector<1x128xf32>
    %1189 = arith.addf %1173, %1188 : vector<1x128xf32>
    %1190 = vector.extract_strided_slice %1001 {offsets = [0, 1408], sizes = [4, 128], strides = [1, 1]} : vector<4x2048xf32> to vector<4x128xf32>
    %1191 = vector.broadcast %1007 : vector<1x1xf32> to vector<4x128xf32>
    %1192 = arith.subf %1190, %1191 : vector<4x128xf32>
    %1193 = math.exp %1192 : vector<4x128xf32>
    %1194 = vector.broadcast %1012 : vector<1x128xf32> to vector<4x128xf32>
    %1195 = arith.mulf %1193, %1194 : vector<4x128xf32>
    %cst_276 = arith.constant dense<0.000000e+00> : vector<4xf32>
    %1196 = vector.multi_reduction <add>, %1195, %cst_276 [1] : vector<4x128xf32> to vector<4xf32>
    %1197 = vector.shape_cast %1196 : vector<4xf32> to vector<4x1xf32>
    %1198 = tpu.reciprocal %1197 {approx = true} : vector<4x1xf32> -> vector<4x1xf32>
    %1199 = vector.broadcast %1198 : vector<4x1xf32> to vector<4x128xf32>
    %1200 = arith.mulf %1195, %1199 : vector<4x128xf32>
    %1201 = vector.extract_strided_slice %1003 {offsets = [0, 1408], sizes = [4, 128], strides = [1, 1]} : vector<4x2048xf32> to vector<4x128xf32>
    %1202 = arith.mulf %1200, %1201 : vector<4x128xf32>
    %cst_277 = arith.constant dense<0.000000e+00> : vector<128xf32>
    %1203 = vector.multi_reduction <add>, %1202, %cst_277 [0] : vector<4x128xf32> to vector<128xf32>
    %1204 = vector.shape_cast %1203 : vector<128xf32> to vector<1x128xf32>
    %1205 = arith.addf %1189, %1204 : vector<1x128xf32>
    %1206 = vector.extract_strided_slice %1001 {offsets = [0, 1536], sizes = [4, 128], strides = [1, 1]} : vector<4x2048xf32> to vector<4x128xf32>
    %1207 = vector.broadcast %1007 : vector<1x1xf32> to vector<4x128xf32>
    %1208 = arith.subf %1206, %1207 : vector<4x128xf32>
    %1209 = math.exp %1208 : vector<4x128xf32>
    %1210 = vector.broadcast %1012 : vector<1x128xf32> to vector<4x128xf32>
    %1211 = arith.mulf %1209, %1210 : vector<4x128xf32>
    %cst_278 = arith.constant dense<0.000000e+00> : vector<4xf32>
    %1212 = vector.multi_reduction <add>, %1211, %cst_278 [1] : vector<4x128xf32> to vector<4xf32>
    %1213 = vector.shape_cast %1212 : vector<4xf32> to vector<4x1xf32>
    %1214 = tpu.reciprocal %1213 {approx = true} : vector<4x1xf32> -> vector<4x1xf32>
    %1215 = vector.broadcast %1214 : vector<4x1xf32> to vector<4x128xf32>
    %1216 = arith.mulf %1211, %1215 : vector<4x128xf32>
    %1217 = vector.extract_strided_slice %1003 {offsets = [0, 1536], sizes = [4, 128], strides = [1, 1]} : vector<4x2048xf32> to vector<4x128xf32>
    %1218 = arith.mulf %1216, %1217 : vector<4x128xf32>
    %cst_279 = arith.constant dense<0.000000e+00> : vector<128xf32>
    %1219 = vector.multi_reduction <add>, %1218, %cst_279 [0] : vector<4x128xf32> to vector<128xf32>
    %1220 = vector.shape_cast %1219 : vector<128xf32> to vector<1x128xf32>
    %1221 = arith.addf %1205, %1220 : vector<1x128xf32>
    %1222 = vector.extract_strided_slice %1001 {offsets = [0, 1664], sizes = [4, 128], strides = [1, 1]} : vector<4x2048xf32> to vector<4x128xf32>
    %1223 = vector.broadcast %1007 : vector<1x1xf32> to vector<4x128xf32>
    %1224 = arith.subf %1222, %1223 : vector<4x128xf32>
    %1225 = math.exp %1224 : vector<4x128xf32>
    %1226 = vector.broadcast %1012 : vector<1x128xf32> to vector<4x128xf32>
    %1227 = arith.mulf %1225, %1226 : vector<4x128xf32>
    %cst_280 = arith.constant dense<0.000000e+00> : vector<4xf32>
    %1228 = vector.multi_reduction <add>, %1227, %cst_280 [1] : vector<4x128xf32> to vector<4xf32>
    %1229 = vector.shape_cast %1228 : vector<4xf32> to vector<4x1xf32>
    %1230 = tpu.reciprocal %1229 {approx = true} : vector<4x1xf32> -> vector<4x1xf32>
    %1231 = vector.broadcast %1230 : vector<4x1xf32> to vector<4x128xf32>
    %1232 = arith.mulf %1227, %1231 : vector<4x128xf32>
    %1233 = vector.extract_strided_slice %1003 {offsets = [0, 1664], sizes = [4, 128], strides = [1, 1]} : vector<4x2048xf32> to vector<4x128xf32>
    %1234 = arith.mulf %1232, %1233 : vector<4x128xf32>
    %cst_281 = arith.constant dense<0.000000e+00> : vector<128xf32>
    %1235 = vector.multi_reduction <add>, %1234, %cst_281 [0] : vector<4x128xf32> to vector<128xf32>
    %1236 = vector.shape_cast %1235 : vector<128xf32> to vector<1x128xf32>
    %1237 = arith.addf %1221, %1236 : vector<1x128xf32>
    %1238 = vector.extract_strided_slice %1001 {offsets = [0, 1792], sizes = [4, 128], strides = [1, 1]} : vector<4x2048xf32> to vector<4x128xf32>
    %1239 = vector.broadcast %1007 : vector<1x1xf32> to vector<4x128xf32>
    %1240 = arith.subf %1238, %1239 : vector<4x128xf32>
    %1241 = math.exp %1240 : vector<4x128xf32>
    %1242 = vector.broadcast %1012 : vector<1x128xf32> to vector<4x128xf32>
    %1243 = arith.mulf %1241, %1242 : vector<4x128xf32>
    %cst_282 = arith.constant dense<0.000000e+00> : vector<4xf32>
    %1244 = vector.multi_reduction <add>, %1243, %cst_282 [1] : vector<4x128xf32> to vector<4xf32>
    %1245 = vector.shape_cast %1244 : vector<4xf32> to vector<4x1xf32>
    %1246 = tpu.reciprocal %1245 {approx = true} : vector<4x1xf32> -> vector<4x1xf32>
    %1247 = vector.broadcast %1246 : vector<4x1xf32> to vector<4x128xf32>
    %1248 = arith.mulf %1243, %1247 : vector<4x128xf32>
    %1249 = vector.extract_strided_slice %1003 {offsets = [0, 1792], sizes = [4, 128], strides = [1, 1]} : vector<4x2048xf32> to vector<4x128xf32>
    %1250 = arith.mulf %1248, %1249 : vector<4x128xf32>
    %cst_283 = arith.constant dense<0.000000e+00> : vector<128xf32>
    %1251 = vector.multi_reduction <add>, %1250, %cst_283 [0] : vector<4x128xf32> to vector<128xf32>
    %1252 = vector.shape_cast %1251 : vector<128xf32> to vector<1x128xf32>
    %1253 = arith.addf %1237, %1252 : vector<1x128xf32>
    %1254 = vector.extract_strided_slice %1001 {offsets = [0, 1920], sizes = [4, 128], strides = [1, 1]} : vector<4x2048xf32> to vector<4x128xf32>
    %1255 = vector.broadcast %1007 : vector<1x1xf32> to vector<4x128xf32>
    %1256 = arith.subf %1254, %1255 : vector<4x128xf32>
    %1257 = math.exp %1256 : vector<4x128xf32>
    %1258 = vector.broadcast %1012 : vector<1x128xf32> to vector<4x128xf32>
    %1259 = arith.mulf %1257, %1258 : vector<4x128xf32>
    %cst_284 = arith.constant dense<0.000000e+00> : vector<4xf32>
    %1260 = vector.multi_reduction <add>, %1259, %cst_284 [1] : vector<4x128xf32> to vector<4xf32>
    %1261 = vector.shape_cast %1260 : vector<4xf32> to vector<4x1xf32>
    %1262 = tpu.reciprocal %1261 {approx = true} : vector<4x1xf32> -> vector<4x1xf32>
    %1263 = vector.broadcast %1262 : vector<4x1xf32> to vector<4x128xf32>
    %1264 = arith.mulf %1259, %1263 : vector<4x128xf32>
    %1265 = vector.extract_strided_slice %1003 {offsets = [0, 1920], sizes = [4, 128], strides = [1, 1]} : vector<4x2048xf32> to vector<4x128xf32>
    %1266 = arith.mulf %1264, %1265 : vector<4x128xf32>
    %cst_285 = arith.constant dense<0.000000e+00> : vector<128xf32>
    %1267 = vector.multi_reduction <add>, %1266, %cst_285 [0] : vector<4x128xf32> to vector<128xf32>
    %1268 = vector.shape_cast %1267 : vector<128xf32> to vector<1x128xf32>
    %1269 = arith.addf %1253, %1268 : vector<1x128xf32>
    %c0_286 = arith.constant 0 : index
    %c0_287 = arith.constant 0 : index
    %1270 = vector.load %arg9[%c0_286, %c0_287] : memref<1x1xf32, #tpu.memory_space<vmem>>, vector<1x1xf32>
    %1271 = vector.broadcast %1270 : vector<1x1xf32> to vector<1x128xf32>
    %1272 = arith.addf %1269, %1271 : vector<1x128xf32>
    %1273 = arith.negf %1272 : vector<1x128xf32>
    %1274 = math.exp %1273 : vector<1x128xf32>
    %cst_288 = arith.constant 1.000000e+00 : f32
    %1275 = vector.broadcast %cst_288 : f32 to vector<1x128xf32>
    %1276 = arith.addf %1275, %1274 : vector<1x128xf32>
    %1277 = arith.divf %1275, %1276 : vector<1x128xf32>
    %c0_289 = arith.constant 0 : index
    %c0_290 = arith.constant 0 : index
    %1278 = vector.load %arg10[%c0_289, %c0_290] : memref<1x128xf32, #tpu.memory_space<vmem>>, vector<1x128xf32>
    tpu.vector_store %arg10[%c0_289, %c0_290], %1277 {strides = array<i32>} : memref<1x128xf32, #tpu.memory_space<vmem>>, vector<1x128xf32>,
    return
  }
}

</mosaic_0001>

<llo_original>
// kernel: self_attentive_forward.1
$region0: #{self_attentive_forward.1}
  #allocation0 [shape = 'u32[]', space=smem, size = 0x4, offset = 0x4, fixed_abs, tag = 'smem constant byte address 0x4 - core index']
  #allocation1 [shape = 'u32[72,128]{1,0:T(1,128)}', space=vmem, size = 0x9000, scoped, tag = 'internal scratch']
  #allocation2 [shape = 'f32[64,2048]{1,0:T(8,128)}', space=vmem, size = 0x80000, scoped, tag = 'scratch operand']
  #allocation3 [shape = 'f32[16,2048]{1,0:T(8,128)}', space=vmem, size = 0x20000, scoped, tag = 'scratch operand']
  #allocation4 [shape = 'f32[1,1]{1,0:T(1,128)S(1)}', space=vmem, size = 0x200, scoped, tag = 'scoped memory for self_attentive_forward.1']
  %s0 = inlined_call_operand.vmem [shape: bf16[32,2048], index: 0, kind: input, shape index: {}]
  %s1 = inlined_call_operand.vmem [shape: bf16[64,32], index: 1, kind: input, shape index: {}]
  %s2 = inlined_call_operand.vmem [shape: f32[64,1], index: 2, kind: input, shape index: {}]
  %s3 = inlined_call_operand.vmem [shape: bf16[64,16], index: 3, kind: input, shape index: {}]
  %s4 = inlined_call_operand.vmem [shape: bf16[16,16], index: 4, kind: input, shape index: {}]
  %s5 = inlined_call_operand.vmem [shape: f32[16,1], index: 5, kind: input, shape index: {}]
  %s6 = inlined_call_operand.vmem [shape: bf16[4,16], index: 6, kind: input, shape index: {}]
  %s7 = inlined_call_operand.vmem [shape: f32[4,1], index: 7, kind: input, shape index: {}]
  %s8 = inlined_call_operand.vmem [shape: bf16[4,16], index: 8, kind: input, shape index: {}]
  %s9 = inlined_call_operand.<no memory space> [shape: f32[1,1], index: 9, kind: input, shape index: {}]
  %s10 = inlined_call_operand.vmem [shape: f32[1,128], index: 10, kind: output, shape index: {}]
  %s11 = sld [smem:[#allocation0]]
  $region50: #{self_attentive_forward.1} parent=0
    _
  %s13 = ssub.s32 1, %s11
  %s14 = scalar_select 0, %s13, %s11
  %v15 = vstv %s9
  %16 = vst [vmem:[#allocation4] sm:$0x1] %v15
  // Predicated region
  $region2: #{self_attentive_forward.1} parent=0 // pred_check
    _
  $region3: #{self_attentive_forward.1} parent=0 // pred_check_branch
    %18 = sbr.rel (0) target = $region5
  $region4: #{self_attentive_forward.1} parent=0 // pred_region
    _
  $region5: #{self_attentive_forward.1} parent=0 // pred_fallthru
    _
  // Predicated region
  $region6: #{self_attentive_forward.1} parent=0 // pred_check
    _
  $region7: #{self_attentive_forward.1} parent=0 // pred_check_branch
    %20 = sbr.rel (0) target = $region9
  $region8: #{self_attentive_forward.1} parent=0 // pred_region
    _
  $region9: #{self_attentive_forward.1} parent=0 // pred_fallthru
    _
  // Predicated region
  $region10: #{self_attentive_forward.1} parent=0 // pred_check
    _
  $region11: #{self_attentive_forward.1} parent=0 // pred_check_branch
    %22 = sbr.rel (0) target = $region13
  $region12: #{self_attentive_forward.1} parent=0 // pred_region
    _
  $region13: #{self_attentive_forward.1} parent=0 // pred_fallthru
    _
  // Predicated region
  $region14: #{self_attentive_forward.1} parent=0 // pred_check
    _
  $region15: #{self_attentive_forward.1} parent=0 // pred_check_branch
    %24 = sbr.rel (0) target = $region17
  $region16: #{self_attentive_forward.1} parent=0 // pred_region
    _
  $region17: #{self_attentive_forward.1} parent=0 // pred_fallthru
    _
  // Predicated region
  $region18: #{self_attentive_forward.1} parent=0 // pred_check
    _
  $region19: #{self_attentive_forward.1} parent=0 // pred_check_branch
    %26 = sbr.rel (0) target = $region21
  $region20: #{self_attentive_forward.1} parent=0 // pred_region
    _
  $region21: #{self_attentive_forward.1} parent=0 // pred_fallthru
    _
  // Predicated region
  $region22: #{self_attentive_forward.1} parent=0 // pred_check
    _
  $region23: #{self_attentive_forward.1} parent=0 // pred_check_branch
    %28 = sbr.rel (0) target = $region25
  $region24: #{self_attentive_forward.1} parent=0 // pred_region
    _
  $region25: #{self_attentive_forward.1} parent=0 // pred_fallthru
    _
  // Predicated region
  $region26: #{self_attentive_forward.1} parent=0 // pred_check
    _
  $region27: #{self_attentive_forward.1} parent=0 // pred_check_branch
    %30 = sbr.rel (0) target = $region29
  $region28: #{self_attentive_forward.1} parent=0 // pred_region
    _
  $region29: #{self_attentive_forward.1} parent=0 // pred_fallthru
    _
  // Predicated region
  $region30: #{self_attentive_forward.1} parent=0 // pred_check
    _
  $region31: #{self_attentive_forward.1} parent=0 // pred_check_branch
    %32 = sbr.rel (0) target = $region33
  $region32: #{self_attentive_forward.1} parent=0 // pred_region
    _
  $region33: #{self_attentive_forward.1} parent=0 // pred_fallthru
    _
  // Predicated region
  $region34: #{self_attentive_forward.1} parent=0 // pred_check
    _
  $region35: #{self_attentive_forward.1} parent=0 // pred_check_branch
    %34 = sbr.rel (0) target = $region37
  $region36: #{self_attentive_forward.1} parent=0 // pred_region
    _
  $region37: #{self_attentive_forward.1} parent=0 // pred_fallthru
    _
  // Predicated region
  $region38: #{self_attentive_forward.1} parent=0 // pred_check
    _
  $region39: #{self_attentive_forward.1} parent=0 // pred_check_branch
    %36 = sbr.rel (0) target = $region41
  $region40: #{self_attentive_forward.1} parent=0 // pred_region
    _
  $region41: #{self_attentive_forward.1} parent=0 // pred_fallthru
    _
  %v38 = vld [vmem:[%s1] sm:$0xf]
  %v39 = vld [vmem:[%s1 + $0x4] sm:$0xf]
  %v40 = vld [vmem:[%s1 + $0x8] sm:$0xf]
  %v41 = vld [vmem:[%s1 + $0xc] sm:$0xf]
  %v42 = vld [vmem:[%s1 + $0x10] sm:$0xf]
  %v43 = vld [vmem:[%s1 + $0x14] sm:$0xf]
  %v44 = vld [vmem:[%s1 + $0x18] sm:$0xf]
  %v45 = vld [vmem:[%s1 + $0x1c] sm:$0xf]
  %v46 = vld [vmem:[%s0] sm:$0xff]
  %v47 = vld [vmem:[%s0 + $0x8] sm:$0xff]
  %v48 = vld [vmem:[%s0 + $0x10] sm:$0xff]
  %v49 = vld [vmem:[%s0 + $0x18] sm:$0xff]
  %v50 = vld [vmem:[%s0 + $0x20] sm:$0xff]
  %v51 = vld [vmem:[%s0 + $0x28] sm:$0xff]
  %v52 = vld [vmem:[%s0 + $0x30] sm:$0xff]
  %v53 = vld [vmem:[%s0 + $0x38] sm:$0xff]
  %v54 = vld [vmem:[%s0 + $0x40] sm:$0xff]
  %v55 = vld [vmem:[%s0 + $0x48] sm:$0xff]
  %v56 = vld [vmem:[%s0 + $0x50] sm:$0xff]
  %v57 = vld [vmem:[%s0 + $0x58] sm:$0xff]
  %v58 = vld [vmem:[%s0 + $0x60] sm:$0xff]
  %v59 = vld [vmem:[%s0 + $0x68] sm:$0xff]
  %v60 = vld [vmem:[%s0 + $0x70] sm:$0xff]
  %v61 = vld [vmem:[%s0 + $0x78] sm:$0xff]
  %v62 = vld [vmem:[%s0 + $0x80] sm:$0xff]
  %v63 = vld [vmem:[%s0 + $0x88] sm:$0xff]
  %v64 = vld [vmem:[%s0 + $0x90] sm:$0xff]
  %v65 = vld [vmem:[%s0 + $0x98] sm:$0xff]
  %v66 = vld [vmem:[%s0 + $0xa0] sm:$0xff]
  %v67 = vld [vmem:[%s0 + $0xa8] sm:$0xff]
  %v68 = vld [vmem:[%s0 + $0xb0] sm:$0xff]
  %v69 = vld [vmem:[%s0 + $0xb8] sm:$0xff]
  %v70 = vld [vmem:[%s0 + $0xc0] sm:$0xff]
  %v71 = vld [vmem:[%s0 + $0xc8] sm:$0xff]
  %v72 = vld [vmem:[%s0 + $0xd0] sm:$0xff]
  %v73 = vld [vmem:[%s0 + $0xd8] sm:$0xff]
  %v74 = vld [vmem:[%s0 + $0xe0] sm:$0xff]
  %v75 = vld [vmem:[%s0 + $0xe8] sm:$0xff]
  %v76 = vld [vmem:[%s0 + $0xf0] sm:$0xff]
  %v77 = vld [vmem:[%s0 + $0xf8] sm:$0xff]
  %v78 = vld [vmem:[%s2] sm:$0xff]
  %v79 = vld [vmem:[%s2 + $0x8] sm:$0xff]
  %v80 = vld [vmem:[%s2 + $0x10] sm:$0xff]
  %v81 = vld [vmem:[%s2 + $0x18] sm:$0xff]
  %v82 = vld [vmem:[%s2 + $0x20] sm:$0xff]
  %v83 = vld [vmem:[%s2 + $0x28] sm:$0xff]
  %v84 = vld [vmem:[%s2 + $0x30] sm:$0xff]
  %v85 = vld [vmem:[%s2 + $0x38] sm:$0xff]
  %87 = vset.pattern.permute.xlu0 0
  %88 = vperm.xlu0 %87, %v78
  %v89 = vpop.permute.xlu0 %88
  %92 = vset.pattern.permute.xlu0 0
  %93 = vperm.xlu0 %92, %v79
  %v94 = vpop.permute.xlu0 %93
  %97 = vset.pattern.permute.xlu0 0
  %98 = vperm.xlu0 %97, %v80
  %v99 = vpop.permute.xlu0 %98
  %102 = vset.pattern.permute.xlu0 0
  %103 = vperm.xlu0 %102, %v81
  %v104 = vpop.permute.xlu0 %103
  %107 = vset.pattern.permute.xlu0 0
  %108 = vperm.xlu0 %107, %v82
  %v109 = vpop.permute.xlu0 %108
  %112 = vset.pattern.permute.xlu0 0
  %113 = vperm.xlu0 %112, %v83
  %v114 = vpop.permute.xlu0 %113
  %117 = vset.pattern.permute.xlu0 0
  %118 = vperm.xlu0 %117, %v84
  %v119 = vpop.permute.xlu0 %118
  %122 = vset.pattern.permute.xlu0 0
  %123 = vperm.xlu0 %122, %v85
  %v124 = vpop.permute.xlu0 %123
  %v134 = vunpack.c.l.b16 %v38
  %v135 = vunpack.c.l.b16 %v39
  %v136 = vunpack.c.l.b16 %v40
  %v137 = vunpack.c.l.b16 %v41
  %v138 = vunpack.c.l.b16 %v42
  %v139 = vunpack.c.l.b16 %v43
  %v140 = vunpack.c.l.b16 %v44
  %v141 = vunpack.c.l.b16 %v45
  %v142 = vpack.c.b16 %v135, %v134
  %v143 = vpack.c.b16 %v137, %v136
  %v144 = vpack.c.b16 %v139, %v138
  %v145 = vpack.c.b16 %v141, %v140
  %v178 = vunpack.c.l.b16 %v46
  %v179 = vunpack.c.h.b16 %v46
  %v180 = vunpack.c.l.b16 %v47
  %v181 = vunpack.c.h.b16 %v47
  %v182 = vunpack.c.l.b16 %v48
  %v183 = vunpack.c.h.b16 %v48
  %v184 = vunpack.c.l.b16 %v49
  %v185 = vunpack.c.h.b16 %v49
  %v186 = vunpack.c.l.b16 %v50
  %v187 = vunpack.c.h.b16 %v50
  %v188 = vunpack.c.l.b16 %v51
  %v189 = vunpack.c.h.b16 %v51
  %v190 = vunpack.c.l.b16 %v52
  %v191 = vunpack.c.h.b16 %v52
  %v192 = vunpack.c.l.b16 %v53
  %v193 = vunpack.c.h.b16 %v53
  %v194 = vunpack.c.l.b16 %v54
  %v195 = vunpack.c.h.b16 %v54
  %v196 = vunpack.c.l.b16 %v55
  %v197 = vunpack.c.h.b16 %v55
  %v198 = vunpack.c.l.b16 %v56
  %v199 = vunpack.c.h.b16 %v56
  %v200 = vunpack.c.l.b16 %v57
  %v201 = vunpack.c.h.b16 %v57
  %v202 = vunpack.c.l.b16 %v58
  %v203 = vunpack.c.h.b16 %v58
  %v204 = vunpack.c.l.b16 %v59
  %v205 = vunpack.c.h.b16 %v59
  %v206 = vunpack.c.l.b16 %v60
  %v207 = vunpack.c.h.b16 %v60
  %v208 = vunpack.c.l.b16 %v61
  %v209 = vunpack.c.h.b16 %v61
  %v210 = vunpack.c.l.b16 %v62
  %v211 = vunpack.c.h.b16 %v62
  %v212 = vunpack.c.l.b16 %v63
  %v213 = vunpack.c.h.b16 %v63
  %v214 = vunpack.c.l.b16 %v64
  %v215 = vunpack.c.h.b16 %v64
  %v216 = vunpack.c.l.b16 %v65
  %v217 = vunpack.c.h.b16 %v65
  %v218 = vunpack.c.l.b16 %v66
  %v219 = vunpack.c.h.b16 %v66
  %v220 = vunpack.c.l.b16 %v67
  %v221 = vunpack.c.h.b16 %v67
  %v222 = vunpack.c.l.b16 %v68
  %v223 = vunpack.c.h.b16 %v68
  %v224 = vunpack.c.l.b16 %v69
  %v225 = vunpack.c.h.b16 %v69
  %v226 = vunpack.c.l.b16 %v70
  %v227 = vunpack.c.h.b16 %v70
  %v228 = vunpack.c.l.b16 %v71
  %v229 = vunpack.c.h.b16 %v71
  %v230 = vunpack.c.l.b16 %v72
  %v231 = vunpack.c.h.b16 %v72
  %v232 = vunpack.c.l.b16 %v73
  %v233 = vunpack.c.h.b16 %v73
  %v234 = vunpack.c.l.b16 %v74
  %v235 = vunpack.c.h.b16 %v74
  %v236 = vunpack.c.l.b16 %v75
  %v237 = vunpack.c.h.b16 %v75
  %v238 = vunpack.c.l.b16 %v76
  %v239 = vunpack.c.h.b16 %v76
  %v240 = vunpack.c.l.b16 %v77
  %v241 = vunpack.c.h.b16 %v77
  %v242 = vpack.c.b16 %v194, %v178
  %v243 = vpack.c.b16 %v195, %v179
  %v244 = vpack.c.b16 %v196, %v180
  %v245 = vpack.c.b16 %v197, %v181
  %v246 = vpack.c.b16 %v198, %v182
  %v247 = vpack.c.b16 %v199, %v183
  %v248 = vpack.c.b16 %v200, %v184
  %v249 = vpack.c.b16 %v201, %v185
  %v250 = vpack.c.b16 %v202, %v186
  %v251 = vpack.c.b16 %v203, %v187
  %v252 = vpack.c.b16 %v204, %v188
  %v253 = vpack.c.b16 %v205, %v189
  %v254 = vpack.c.b16 %v206, %v190
  %v255 = vpack.c.b16 %v207, %v191
  %v256 = vpack.c.b16 %v208, %v192
  %v257 = vpack.c.b16 %v209, %v193
  %v258 = vpack.c.b16 %v226, %v210
  %v259 = vpack.c.b16 %v227, %v211
  %v260 = vpack.c.b16 %v228, %v212
  %v261 = vpack.c.b16 %v229, %v213
  %v262 = vpack.c.b16 %v230, %v214
  %v263 = vpack.c.b16 %v231, %v215
  %v264 = vpack.c.b16 %v232, %v216
  %v265 = vpack.c.b16 %v233, %v217
  %v266 = vpack.c.b16 %v234, %v218
  %v267 = vpack.c.b16 %v235, %v219
  %v268 = vpack.c.b16 %v236, %v220
  %v269 = vpack.c.b16 %v237, %v221
  %v270 = vpack.c.b16 %v238, %v222
  %v271 = vpack.c.b16 %v239, %v223
  %v272 = vpack.c.b16 %v240, %v224
  %v273 = vpack.c.b16 %v241, %v225
  %vm306 = vcmask 261120
  %v308 = vsel %vm306, %v142, 0
  %v311 = vsel %vm306, %v143, 0
  %v314 = vsel %vm306, %v144, 0
  %v317 = vsel %vm306, %v145, 0
  %319 = vmatpush.bf16.msra.mxu0 0
  %320 = vmatpush.bf16.msra.mxu0 0
  %321 = vmatpush.bf16.msra.mxu0 0
  %322 = vmatpush.bf16.msra.mxu0 0
  %323 = vmatpush.bf16.msra.mxu0 0
  %324 = vmatpush.bf16.msra.mxu0 0
  %325 = vmatpush.bf16.msra.mxu0 %v258
  %326 = vmatpush.bf16.msra.mxu0 %v242
  %327 = vmatmul.bf16.gmra.mxu0 %v308
  %v328 = vpop.f32.mrf.mxu0
  %v329 = vadd.f32 %v89, %v328
  %v330 = vpop.f32.mrf.mxu0
  %v331 = vadd.f32 %v94, %v330
  %332 = vmatmul.bf16.gmra.mxu0 %v311
  %v333 = vpop.f32.mrf.mxu0
  %v334 = vadd.f32 %v99, %v333
  %v335 = vpop.f32.mrf.mxu0
  %v336 = vadd.f32 %v104, %v335
  %337 = vmatmul.bf16.gmra.mxu0 %v314
  %v338 = vpop.f32.mrf.mxu0
  %v339 = vadd.f32 %v109, %v338
  %v340 = vpop.f32.mrf.mxu0
  %v341 = vadd.f32 %v114, %v340
  %342 = vmatmul.bf16.gmra.mxu0 %v317
  %v343 = vpop.f32.mrf.mxu0
  %v344 = vadd.f32 %v119, %v343
  %v345 = vpop.f32.mrf.mxu0
  %v346 = vadd.f32 %v124, %v345
  %347 = vdwg.mxu0
  %348 = vmatpush.bf16.msra.mxu0 0
  %349 = vmatpush.bf16.msra.mxu0 0
  %350 = vmatpush.bf16.msra.mxu0 0
  %351 = vmatpush.bf16.msra.mxu0 0
  %352 = vmatpush.bf16.msra.mxu0 0
  %353 = vmatpush.bf16.msra.mxu0 0
  %354 = vmatpush.bf16.msra.mxu0 %v259
  %355 = vmatpush.bf16.msra.mxu0 %v243
  %356 = vmatmul.bf16.gmra.mxu0 %v308
  %v357 = vpop.f32.mrf.mxu0
  %v358 = vadd.f32 %v89, %v357
  %v359 = vpop.f32.mrf.mxu0
  %v360 = vadd.f32 %v94, %v359
  %361 = vmatmul.bf16.gmra.mxu0 %v311
  %v362 = vpop.f32.mrf.mxu0
  %v363 = vadd.f32 %v99, %v362
  %v364 = vpop.f32.mrf.mxu0
  %v365 = vadd.f32 %v104, %v364
  %366 = vmatmul.bf16.gmra.mxu0 %v314
  %v367 = vpop.f32.mrf.mxu0
  %v368 = vadd.f32 %v109, %v367
  %v369 = vpop.f32.mrf.mxu0
  %v370 = vadd.f32 %v114, %v369
  %371 = vmatmul.bf16.gmra.mxu0 %v317
  %v372 = vpop.f32.mrf.mxu0
  %v373 = vadd.f32 %v119, %v372
  %v374 = vpop.f32.mrf.mxu0
  %v375 = vadd.f32 %v124, %v374
  %376 = vdwg.mxu0
  %377 = vmatpush.bf16.msra.mxu0 0
  %378 = vmatpush.bf16.msra.mxu0 0
  %379 = vmatpush.bf16.msra.mxu0 0
  %380 = vmatpush.bf16.msra.mxu0 0
  %381 = vmatpush.bf16.msra.mxu0 0
  %382 = vmatpush.bf16.msra.mxu0 0
  %383 = vmatpush.bf16.msra.mxu0 %v260
  %384 = vmatpush.bf16.msra.mxu0 %v244
  %385 = vmatmul.bf16.gmra.mxu0 %v308
  %v386 = vpop.f32.mrf.mxu0
  %v387 = vadd.f32 %v89, %v386
  %v388 = vpop.f32.mrf.mxu0
  %v389 = vadd.f32 %v94, %v388
  %390 = vmatmul.bf16.gmra.mxu0 %v311
  %v391 = vpop.f32.mrf.mxu0
  %v392 = vadd.f32 %v99, %v391
  %v393 = vpop.f32.mrf.mxu0
  %v394 = vadd.f32 %v104, %v393
  %395 = vmatmul.bf16.gmra.mxu0 %v314
  %v396 = vpop.f32.mrf.mxu0
  %v397 = vadd.f32 %v109, %v396
  %v398 = vpop.f32.mrf.mxu0
  %v399 = vadd.f32 %v114, %v398
  %400 = vmatmul.bf16.gmra.mxu0 %v317
  %v401 = vpop.f32.mrf.mxu0
  %v402 = vadd.f32 %v119, %v401
  %v403 = vpop.f32.mrf.mxu0
  %v404 = vadd.f32 %v124, %v403
  %405 = vdwg.mxu0
  %406 = vmatpush.bf16.msra.mxu0 0
  %407 = vmatpush.bf16.msra.mxu0 0
  %408 = vmatpush.bf16.msra.mxu0 0
  %409 = vmatpush.bf16.msra.mxu0 0
  %410 = vmatpush.bf16.msra.mxu0 0
  %411 = vmatpush.bf16.msra.mxu0 0
  %412 = vmatpush.bf16.msra.mxu0 %v261
  %413 = vmatpush.bf16.msra.mxu0 %v245
  %414 = vmatmul.bf16.gmra.mxu0 %v308
  %v415 = vpop.f32.mrf.mxu0
  %v416 = vadd.f32 %v89, %v415
  %v417 = vpop.f32.mrf.mxu0
  %v418 = vadd.f32 %v94, %v417
  %419 = vmatmul.bf16.gmra.mxu0 %v311
  %v420 = vpop.f32.mrf.mxu0
  %v421 = vadd.f32 %v99, %v420
  %v422 = vpop.f32.mrf.mxu0
  %v423 = vadd.f32 %v104, %v422
  %424 = vmatmul.bf16.gmra.mxu0 %v314
  %v425 = vpop.f32.mrf.mxu0
  %v426 = vadd.f32 %v109, %v425
  %v427 = vpop.f32.mrf.mxu0
  %v428 = vadd.f32 %v114, %v427
  %429 = vmatmul.bf16.gmra.mxu0 %v317
  %v430 = vpop.f32.mrf.mxu0
  %v431 = vadd.f32 %v119, %v430
  %v432 = vpop.f32.mrf.mxu0
  %v433 = vadd.f32 %v124, %v432
  %434 = vdwg.mxu0
  %435 = vmatpush.bf16.msra.mxu0 0
  %436 = vmatpush.bf16.msra.mxu0 0
  %437 = vmatpush.bf16.msra.mxu0 0
  %438 = vmatpush.bf16.msra.mxu0 0
  %439 = vmatpush.bf16.msra.mxu0 0
  %440 = vmatpush.bf16.msra.mxu0 0
  %441 = vmatpush.bf16.msra.mxu0 %v262
  %442 = vmatpush.bf16.msra.mxu0 %v246
  %443 = vmatmul.bf16.gmra.mxu0 %v308
  %v444 = vpop.f32.mrf.mxu0
  %v445 = vadd.f32 %v89, %v444
  %v446 = vpop.f32.mrf.mxu0
  %v447 = vadd.f32 %v94, %v446
  %448 = vmatmul.bf16.gmra.mxu0 %v311
  %v449 = vpop.f32.mrf.mxu0
  %v450 = vadd.f32 %v99, %v449
  %v451 = vpop.f32.mrf.mxu0
  %v452 = vadd.f32 %v104, %v451
  %453 = vmatmul.bf16.gmra.mxu0 %v314
  %v454 = vpop.f32.mrf.mxu0
  %v455 = vadd.f32 %v109, %v454
  %v456 = vpop.f32.mrf.mxu0
  %v457 = vadd.f32 %v114, %v456
  %458 = vmatmul.bf16.gmra.mxu0 %v317
  %v459 = vpop.f32.mrf.mxu0
  %v460 = vadd.f32 %v119, %v459
  %v461 = vpop.f32.mrf.mxu0
  %v462 = vadd.f32 %v124, %v461
  %463 = vdwg.mxu0
  %464 = vmatpush.bf16.msra.mxu0 0
  %465 = vmatpush.bf16.msra.mxu0 0
  %466 = vmatpush.bf16.msra.mxu0 0
  %467 = vmatpush.bf16.msra.mxu0 0
  %468 = vmatpush.bf16.msra.mxu0 0
  %469 = vmatpush.bf16.msra.mxu0 0
  %470 = vmatpush.bf16.msra.mxu0 %v263
  %471 = vmatpush.bf16.msra.mxu0 %v247
  %472 = vmatmul.bf16.gmra.mxu0 %v308
  %v473 = vpop.f32.mrf.mxu0
  %v474 = vadd.f32 %v89, %v473
  %v475 = vpop.f32.mrf.mxu0
  %v476 = vadd.f32 %v94, %v475
  %477 = vmatmul.bf16.gmra.mxu0 %v311
  %v478 = vpop.f32.mrf.mxu0
  %v479 = vadd.f32 %v99, %v478
  %v480 = vpop.f32.mrf.mxu0
  %v481 = vadd.f32 %v104, %v480
  %482 = vmatmul.bf16.gmra.mxu0 %v314
  %v483 = vpop.f32.mrf.mxu0
  %v484 = vadd.f32 %v109, %v483
  %v485 = vpop.f32.mrf.mxu0
  %v486 = vadd.f32 %v114, %v485
  %487 = vmatmul.bf16.gmra.mxu0 %v317
  %v488 = vpop.f32.mrf.mxu0
  %v489 = vadd.f32 %v119, %v488
  %v490 = vpop.f32.mrf.mxu0
  %v491 = vadd.f32 %v124, %v490
  %492 = vdwg.mxu0
  %493 = vmatpush.bf16.msra.mxu0 0
  %494 = vmatpush.bf16.msra.mxu0 0
  %495 = vmatpush.bf16.msra.mxu0 0
  %496 = vmatpush.bf16.msra.mxu0 0
  %497 = vmatpush.bf16.msra.mxu0 0
  %498 = vmatpush.bf16.msra.mxu0 0
  %499 = vmatpush.bf16.msra.mxu0 %v264
  %500 = vmatpush.bf16.msra.mxu0 %v248
  %501 = vmatmul.bf16.gmra.mxu0 %v308
  %v502 = vpop.f32.mrf.mxu0
  %v503 = vadd.f32 %v89, %v502
  %v504 = vpop.f32.mrf.mxu0
  %v505 = vadd.f32 %v94, %v504
  %506 = vmatmul.bf16.gmra.mxu0 %v311
  %v507 = vpop.f32.mrf.mxu0
  %v508 = vadd.f32 %v99, %v507
  %v509 = vpop.f32.mrf.mxu0
  %v510 = vadd.f32 %v104, %v509
  %511 = vmatmul.bf16.gmra.mxu0 %v314
  %v512 = vpop.f32.mrf.mxu0
  %v513 = vadd.f32 %v109, %v512
  %v514 = vpop.f32.mrf.mxu0
  %v515 = vadd.f32 %v114, %v514
  %516 = vmatmul.bf16.gmra.mxu0 %v317
  %v517 = vpop.f32.mrf.mxu0
  %v518 = vadd.f32 %v119, %v517
  %v519 = vpop.f32.mrf.mxu0
  %v520 = vadd.f32 %v124, %v519
  %521 = vdwg.mxu0
  %522 = vmatpush.bf16.msra.mxu0 0
  %523 = vmatpush.bf16.msra.mxu0 0
  %524 = vmatpush.bf16.msra.mxu0 0
  %525 = vmatpush.bf16.msra.mxu0 0
  %526 = vmatpush.bf16.msra.mxu0 0
  %527 = vmatpush.bf16.msra.mxu0 0
  %528 = vmatpush.bf16.msra.mxu0 %v265
  %529 = vmatpush.bf16.msra.mxu0 %v249
  %530 = vmatmul.bf16.gmra.mxu0 %v308
  %v531 = vpop.f32.mrf.mxu0
  %v532 = vadd.f32 %v89, %v531
  %v533 = vpop.f32.mrf.mxu0
  %v534 = vadd.f32 %v94, %v533
  %535 = vmatmul.bf16.gmra.mxu0 %v311
  %v536 = vpop.f32.mrf.mxu0
  %v537 = vadd.f32 %v99, %v536
  %v538 = vpop.f32.mrf.mxu0
  %v539 = vadd.f32 %v104, %v538
  %540 = vmatmul.bf16.gmra.mxu0 %v314
  %v541 = vpop.f32.mrf.mxu0
  %v542 = vadd.f32 %v109, %v541
  %v543 = vpop.f32.mrf.mxu0
  %v544 = vadd.f32 %v114, %v543
  %545 = vmatmul.bf16.gmra.mxu0 %v317
  %v546 = vpop.f32.mrf.mxu0
  %v547 = vadd.f32 %v119, %v546
  %v548 = vpop.f32.mrf.mxu0
  %v549 = vadd.f32 %v124, %v548
  %550 = vdwg.mxu0
  %551 = vmatpush.bf16.msra.mxu0 0
  %552 = vmatpush.bf16.msra.mxu0 0
  %553 = vmatpush.bf16.msra.mxu0 0
  %554 = vmatpush.bf16.msra.mxu0 0
  %555 = vmatpush.bf16.msra.mxu0 0
  %556 = vmatpush.bf16.msra.mxu0 0
  %557 = vmatpush.bf16.msra.mxu0 %v266
  %558 = vmatpush.bf16.msra.mxu0 %v250
  %559 = vmatmul.bf16.gmra.mxu0 %v308
  %v560 = vpop.f32.mrf.mxu0
  %v561 = vadd.f32 %v89, %v560
  %v562 = vpop.f32.mrf.mxu0
  %v563 = vadd.f32 %v94, %v562
  %564 = vmatmul.bf16.gmra.mxu0 %v311
  %v565 = vpop.f32.mrf.mxu0
  %v566 = vadd.f32 %v99, %v565
  %v567 = vpop.f32.mrf.mxu0
  %v568 = vadd.f32 %v104, %v567
  %569 = vmatmul.bf16.gmra.mxu0 %v314
  %v570 = vpop.f32.mrf.mxu0
  %v571 = vadd.f32 %v109, %v570
  %v572 = vpop.f32.mrf.mxu0
  %v573 = vadd.f32 %v114, %v572
  %574 = vmatmul.bf16.gmra.mxu0 %v317
  %v575 = vpop.f32.mrf.mxu0
  %v576 = vadd.f32 %v119, %v575
  %v577 = vpop.f32.mrf.mxu0
  %v578 = vadd.f32 %v124, %v577
  %579 = vdwg.mxu0
  %580 = vmatpush.bf16.msra.mxu0 0
  %581 = vmatpush.bf16.msra.mxu0 0
  %582 = vmatpush.bf16.msra.mxu0 0
  %583 = vmatpush.bf16.msra.mxu0 0
  %584 = vmatpush.bf16.msra.mxu0 0
  %585 = vmatpush.bf16.msra.mxu0 0
  %586 = vmatpush.bf16.msra.mxu0 %v267
  %587 = vmatpush.bf16.msra.mxu0 %v251
  %588 = vmatmul.bf16.gmra.mxu0 %v308
  %v589 = vpop.f32.mrf.mxu0
  %v590 = vadd.f32 %v89, %v589
  %v591 = vpop.f32.mrf.mxu0
  %v592 = vadd.f32 %v94, %v591
  %593 = vmatmul.bf16.gmra.mxu0 %v311
  %v594 = vpop.f32.mrf.mxu0
  %v595 = vadd.f32 %v99, %v594
  %v596 = vpop.f32.mrf.mxu0
  %v597 = vadd.f32 %v104, %v596
  %598 = vmatmul.bf16.gmra.mxu0 %v314
  %v599 = vpop.f32.mrf.mxu0
  %v600 = vadd.f32 %v109, %v599
  %v601 = vpop.f32.mrf.mxu0
  %v602 = vadd.f32 %v114, %v601
  %603 = vmatmul.bf16.gmra.mxu0 %v317
  %v604 = vpop.f32.mrf.mxu0
  %v605 = vadd.f32 %v119, %v604
  %v606 = vpop.f32.mrf.mxu0
  %v607 = vadd.f32 %v124, %v606
  %608 = vdwg.mxu0
  %609 = vmatpush.bf16.msra.mxu0 0
  %610 = vmatpush.bf16.msra.mxu0 0
  %611 = vmatpush.bf16.msra.mxu0 0
  %612 = vmatpush.bf16.msra.mxu0 0
  %613 = vmatpush.bf16.msra.mxu0 0
  %614 = vmatpush.bf16.msra.mxu0 0
  %615 = vmatpush.bf16.msra.mxu0 %v268
  %616 = vmatpush.bf16.msra.mxu0 %v252
  %617 = vmatmul.bf16.gmra.mxu0 %v308
  %v618 = vpop.f32.mrf.mxu0
  %v619 = vadd.f32 %v89, %v618
  %v620 = vpop.f32.mrf.mxu0
  %v621 = vadd.f32 %v94, %v620
  %622 = vmatmul.bf16.gmra.mxu0 %v311
  %v623 = vpop.f32.mrf.mxu0
  %v624 = vadd.f32 %v99, %v623
  %v625 = vpop.f32.mrf.mxu0
  %v626 = vadd.f32 %v104, %v625
  %627 = vmatmul.bf16.gmra.mxu0 %v314
  %v628 = vpop.f32.mrf.mxu0
  %v629 = vadd.f32 %v109, %v628
  %v630 = vpop.f32.mrf.mxu0
  %v631 = vadd.f32 %v114, %v630
  %632 = vmatmul.bf16.gmra.mxu0 %v317
  %v633 = vpop.f32.mrf.mxu0
  %v634 = vadd.f32 %v119, %v633
  %v635 = vpop.f32.mrf.mxu0
  %v636 = vadd.f32 %v124, %v635
  %637 = vdwg.mxu0
  %638 = vmatpush.bf16.msra.mxu0 0
  %639 = vmatpush.bf16.msra.mxu0 0
  %640 = vmatpush.bf16.msra.mxu0 0
  %641 = vmatpush.bf16.msra.mxu0 0
  %642 = vmatpush.bf16.msra.mxu0 0
  %643 = vmatpush.bf16.msra.mxu0 0
  %644 = vmatpush.bf16.msra.mxu0 %v269
  %645 = vmatpush.bf16.msra.mxu0 %v253
  %646 = vmatmul.bf16.gmra.mxu0 %v308
  %v647 = vpop.f32.mrf.mxu0
  %v648 = vadd.f32 %v89, %v647
  %v649 = vpop.f32.mrf.mxu0
  %v650 = vadd.f32 %v94, %v649
  %651 = vmatmul.bf16.gmra.mxu0 %v311
  %v652 = vpop.f32.mrf.mxu0
  %v653 = vadd.f32 %v99, %v652
  %v654 = vpop.f32.mrf.mxu0
  %v655 = vadd.f32 %v104, %v654
  %656 = vmatmul.bf16.gmra.mxu0 %v314
  %v657 = vpop.f32.mrf.mxu0
  %v658 = vadd.f32 %v109, %v657
  %v659 = vpop.f32.mrf.mxu0
  %v660 = vadd.f32 %v114, %v659
  %661 = vmatmul.bf16.gmra.mxu0 %v317
  %v662 = vpop.f32.mrf.mxu0
  %v663 = vadd.f32 %v119, %v662
  %v664 = vpop.f32.mrf.mxu0
  %v665 = vadd.f32 %v124, %v664
  %666 = vdwg.mxu0
  %667 = vmatpush.bf16.msra.mxu0 0
  %668 = vmatpush.bf16.msra.mxu0 0
  %669 = vmatpush.bf16.msra.mxu0 0
  %670 = vmatpush.bf16.msra.mxu0 0
  %671 = vmatpush.bf16.msra.mxu0 0
  %672 = vmatpush.bf16.msra.mxu0 0
  %673 = vmatpush.bf16.msra.mxu0 %v270
  %674 = vmatpush.bf16.msra.mxu0 %v254
  %675 = vmatmul.bf16.gmra.mxu0 %v308
  %v676 = vpop.f32.mrf.mxu0
  %v677 = vadd.f32 %v89, %v676
  %v678 = vpop.f32.mrf.mxu0
  %v679 = vadd.f32 %v94, %v678
  %680 = vmatmul.bf16.gmra.mxu0 %v311
  %v681 = vpop.f32.mrf.mxu0
  %v682 = vadd.f32 %v99, %v681
  %v683 = vpop.f32.mrf.mxu0
  %v684 = vadd.f32 %v104, %v683
  %685 = vmatmul.bf16.gmra.mxu0 %v314
  %v686 = vpop.f32.mrf.mxu0
  %v687 = vadd.f32 %v109, %v686
  %v688 = vpop.f32.mrf.mxu0
  %v689 = vadd.f32 %v114, %v688
  %690 = vmatmul.bf16.gmra.mxu0 %v317
  %v691 = vpop.f32.mrf.mxu0
  %v692 = vadd.f32 %v119, %v691
  %v693 = vpop.f32.mrf.mxu0
  %v694 = vadd.f32 %v124, %v693
  %695 = vdwg.mxu0
  %696 = vmatpush.bf16.msra.mxu0 0
  %697 = vmatpush.bf16.msra.mxu0 0
  %698 = vmatpush.bf16.msra.mxu0 0
  %699 = vmatpush.bf16.msra.mxu0 0
  %700 = vmatpush.bf16.msra.mxu0 0
  %701 = vmatpush.bf16.msra.mxu0 0
  %702 = vmatpush.bf16.msra.mxu0 %v271
  %703 = vmatpush.bf16.msra.mxu0 %v255
  %704 = vmatmul.bf16.gmra.mxu0 %v308
  %v705 = vpop.f32.mrf.mxu0
  %v706 = vadd.f32 %v89, %v705
  %v707 = vpop.f32.mrf.mxu0
  %v708 = vadd.f32 %v94, %v707
  %709 = vmatmul.bf16.gmra.mxu0 %v311
  %v710 = vpop.f32.mrf.mxu0
  %v711 = vadd.f32 %v99, %v710
  %v712 = vpop.f32.mrf.mxu0
  %v713 = vadd.f32 %v104, %v712
  %714 = vmatmul.bf16.gmra.mxu0 %v314
  %v715 = vpop.f32.mrf.mxu0
  %v716 = vadd.f32 %v109, %v715
  %v717 = vpop.f32.mrf.mxu0
  %v718 = vadd.f32 %v114, %v717
  %719 = vmatmul.bf16.gmra.mxu0 %v317
  %v720 = vpop.f32.mrf.mxu0
  %v721 = vadd.f32 %v119, %v720
  %v722 = vpop.f32.mrf.mxu0
  %v723 = vadd.f32 %v124, %v722
  %724 = vdwg.mxu0
  %725 = vmatpush.bf16.msra.mxu0 0
  %726 = vmatpush.bf16.msra.mxu0 0
  %727 = vmatpush.bf16.msra.mxu0 0
  %728 = vmatpush.bf16.msra.mxu0 0
  %729 = vmatpush.bf16.msra.mxu0 0
  %730 = vmatpush.bf16.msra.mxu0 0
  %731 = vmatpush.bf16.msra.mxu0 %v272
  %732 = vmatpush.bf16.msra.mxu0 %v256
  %733 = vmatmul.bf16.gmra.mxu0 %v308
  %v734 = vpop.f32.mrf.mxu0
  %v735 = vadd.f32 %v89, %v734
  %v736 = vpop.f32.mrf.mxu0
  %v737 = vadd.f32 %v94, %v736
  %738 = vmatmul.bf16.gmra.mxu0 %v311
  %v739 = vpop.f32.mrf.mxu0
  %v740 = vadd.f32 %v99, %v739
  %v741 = vpop.f32.mrf.mxu0
  %v742 = vadd.f32 %v104, %v741
  %743 = vmatmul.bf16.gmra.mxu0 %v314
  %v744 = vpop.f32.mrf.mxu0
  %v745 = vadd.f32 %v109, %v744
  %v746 = vpop.f32.mrf.mxu0
  %v747 = vadd.f32 %v114, %v746
  %748 = vmatmul.bf16.gmra.mxu0 %v317
  %v749 = vpop.f32.mrf.mxu0
  %v750 = vadd.f32 %v119, %v749
  %v751 = vpop.f32.mrf.mxu0
  %v752 = vadd.f32 %v124, %v751
  %753 = vdwg.mxu0
  %754 = vmatpush.bf16.msra.mxu0 0
  %755 = vmatpush.bf16.msra.mxu0 0
  %756 = vmatpush.bf16.msra.mxu0 0
  %757 = vmatpush.bf16.msra.mxu0 0
  %758 = vmatpush.bf16.msra.mxu0 0
  %759 = vmatpush.bf16.msra.mxu0 0
  %760 = vmatpush.bf16.msra.mxu0 %v273
  %761 = vmatpush.bf16.msra.mxu0 %v257
  %762 = vmatmul.bf16.gmra.mxu0 %v308
  %v763 = vpop.f32.mrf.mxu0
  %v764 = vadd.f32 %v89, %v763
  %v765 = vpop.f32.mrf.mxu0
  %v766 = vadd.f32 %v94, %v765
  %767 = vmatmul.bf16.gmra.mxu0 %v311
  %v768 = vpop.f32.mrf.mxu0
  %v769 = vadd.f32 %v99, %v768
  %v770 = vpop.f32.mrf.mxu0
  %v771 = vadd.f32 %v104, %v770
  %772 = vmatmul.bf16.gmra.mxu0 %v314
  %v773 = vpop.f32.mrf.mxu0
  %v774 = vadd.f32 %v109, %v773
  %v775 = vpop.f32.mrf.mxu0
  %v776 = vadd.f32 %v114, %v775
  %777 = vmatmul.bf16.gmra.mxu0 %v317
  %v778 = vpop.f32.mrf.mxu0
  %v779 = vadd.f32 %v119, %v778
  %v780 = vpop.f32.mrf.mxu0
  %v781 = vadd.f32 %v124, %v780
  %782 = vdwg.mxu0
  %783 = vst [vmem:[#allocation2] sm:$0xff] %v329
  %784 = vst [vmem:[#allocation2 + $0x8] sm:$0xff] %v358
  %785 = vst [vmem:[#allocation2 + $0x10] sm:$0xff] %v387
  %786 = vst [vmem:[#allocation2 + $0x18] sm:$0xff] %v416
  %787 = vst [vmem:[#allocation2 + $0x20] sm:$0xff] %v445
  %788 = vst [vmem:[#allocation2 + $0x28] sm:$0xff] %v474
  %789 = vst [vmem:[#allocation2 + $0x30] sm:$0xff] %v503
  %790 = vst [vmem:[#allocation2 + $0x38] sm:$0xff] %v532
  %791 = vst [vmem:[#allocation2 + $0x40] sm:$0xff] %v561
  %792 = vst [vmem:[#allocation2 + $0x48] sm:$0xff] %v590
  %793 = vst [vmem:[#allocation2 + $0x50] sm:$0xff] %v619
  %794 = vst [vmem:[#allocation2 + $0x58] sm:$0xff] %v648
  %795 = vst [vmem:[#allocation2 + $0x60] sm:$0xff] %v677
  %796 = vst [vmem:[#allocation2 + $0x68] sm:$0xff] %v706
  %797 = vst [vmem:[#allocation2 + $0x70] sm:$0xff] %v735
  %798 = vst [vmem:[#allocation2 + $0x78] sm:$0xff] %v764
  %799 = vst [vmem:[#allocation2 + $0x80] sm:$0xff] %v331
  %800 = vst [vmem:[#allocation2 + $0x88] sm:$0xff] %v360
  %801 = vst [vmem:[#allocation2 + $0x90] sm:$0xff] %v389
  %802 = vst [vmem:[#allocation2 + $0x98] sm:$0xff] %v418
  %803 = vst [vmem:[#allocation2 + $0xa0] sm:$0xff] %v447
  %804 = vst [vmem:[#allocation2 + $0xa8] sm:$0xff] %v476
  %805 = vst [vmem:[#allocation2 + $0xb0] sm:$0xff] %v505
  %806 = vst [vmem:[#allocation2 + $0xb8] sm:$0xff] %v534
  %807 = vst [vmem:[#allocation2 + $0xc0] sm:$0xff] %v563
  %808 = vst [vmem:[#allocation2 + $0xc8] sm:$0xff] %v592
  %809 = vst [vmem:[#allocation2 + $0xd0] sm:$0xff] %v621
  %810 = vst [vmem:[#allocation2 + $0xd8] sm:$0xff] %v650
  %811 = vst [vmem:[#allocation2 + $0xe0] sm:$0xff] %v679
  %812 = vst [vmem:[#allocation2 + $0xe8] sm:$0xff] %v708
  %813 = vst [vmem:[#allocation2 + $0xf0] sm:$0xff] %v737
  %814 = vst [vmem:[#allocation2 + $0xf8] sm:$0xff] %v766
  %815 = vst [vmem:[#allocation2 + $0x100] sm:$0xff] %v334
  %816 = vst [vmem:[#allocation2 + $0x108] sm:$0xff] %v363
  %817 = vst [vmem:[#allocation2 + $0x110] sm:$0xff] %v392
  %818 = vst [vmem:[#allocation2 + $0x118] sm:$0xff] %v421
  %819 = vst [vmem:[#allocation2 + $0x120] sm:$0xff] %v450
  %820 = vst [vmem:[#allocation2 + $0x128] sm:$0xff] %v479
  %821 = vst [vmem:[#allocation2 + $0x130] sm:$0xff] %v508
  %822 = vst [vmem:[#allocation2 + $0x138] sm:$0xff] %v537
  %823 = vst [vmem:[#allocation2 + $0x140] sm:$0xff] %v566
  %824 = vst [vmem:[#allocation2 + $0x148] sm:$0xff] %v595
  %825 = vst [vmem:[#allocation2 + $0x150] sm:$0xff] %v624
  %826 = vst [vmem:[#allocation2 + $0x158] sm:$0xff] %v653
  %827 = vst [vmem:[#allocation2 + $0x160] sm:$0xff] %v682
  %828 = vst [vmem:[#allocation2 + $0x168] sm:$0xff] %v711
  %829 = vst [vmem:[#allocation2 + $0x170] sm:$0xff] %v740
  %830 = vst [vmem:[#allocation2 + $0x178] sm:$0xff] %v769
  %831 = vst [vmem:[#allocation2 + $0x180] sm:$0xff] %v336
  %832 = vst [vmem:[#allocation2 + $0x188] sm:$0xff] %v365
  %833 = vst [vmem:[#allocation2 + $0x190] sm:$0xff] %v394
  %834 = vst [vmem:[#allocation2 + $0x198] sm:$0xff] %v423
  %835 = vst [vmem:[#allocation2 + $0x1a0] sm:$0xff] %v452
  %836 = vst [vmem:[#allocation2 + $0x1a8] sm:$0xff] %v481
  %837 = vst [vmem:[#allocation2 + $0x1b0] sm:$0xff] %v510
  %838 = vst [vmem:[#allocation2 + $0x1b8] sm:$0xff] %v539
  %839 = vst [vmem:[#allocation2 + $0x1c0] sm:$0xff] %v568
  %840 = vst [vmem:[#allocation2 + $0x1c8] sm:$0xff] %v597
  %841 = vst [vmem:[#allocation2 + $0x1d0] sm:$0xff] %v626
  %842 = vst [vmem:[#allocation2 + $0x1d8] sm:$0xff] %v655
  %843 = vst [vmem:[#allocation2 + $0x1e0] sm:$0xff] %v684
  %844 = vst [vmem:[#allocation2 + $0x1e8] sm:$0xff] %v713
  %845 = vst [vmem:[#allocation2 + $0x1f0] sm:$0xff] %v742
  %846 = vst [vmem:[#allocation2 + $0x1f8] sm:$0xff] %v771
  %847 = vst [vmem:[#allocation2 + $0x200] sm:$0xff] %v339
  %848 = vst [vmem:[#allocation2 + $0x208] sm:$0xff] %v368
  %849 = vst [vmem:[#allocation2 + $0x210] sm:$0xff] %v397
  %850 = vst [vmem:[#allocation2 + $0x218] sm:$0xff] %v426
  %851 = vst [vmem:[#allocation2 + $0x220] sm:$0xff] %v455
  %852 = vst [vmem:[#allocation2 + $0x228] sm:$0xff] %v484
  %853 = vst [vmem:[#allocation2 + $0x230] sm:$0xff] %v513
  %854 = vst [vmem:[#allocation2 + $0x238] sm:$0xff] %v542
  %855 = vst [vmem:[#allocation2 + $0x240] sm:$0xff] %v571
  %856 = vst [vmem:[#allocation2 + $0x248] sm:$0xff] %v600
  %857 = vst [vmem:[#allocation2 + $0x250] sm:$0xff] %v629
  %858 = vst [vmem:[#allocation2 + $0x258] sm:$0xff] %v658
  %859 = vst [vmem:[#allocation2 + $0x260] sm:$0xff] %v687
  %860 = vst [vmem:[#allocation2 + $0x268] sm:$0xff] %v716
  %861 = vst [vmem:[#allocation2 + $0x270] sm:$0xff] %v745
  %862 = vst [vmem:[#allocation2 + $0x278] sm:$0xff] %v774
  %863 = vst [vmem:[#allocation2 + $0x280] sm:$0xff] %v341
  %864 = vst [vmem:[#allocation2 + $0x288] sm:$0xff] %v370
  %865 = vst [vmem:[#allocation2 + $0x290] sm:$0xff] %v399
  %866 = vst [vmem:[#allocation2 + $0x298] sm:$0xff] %v428
  %867 = vst [vmem:[#allocation2 + $0x2a0] sm:$0xff] %v457
  %868 = vst [vmem:[#allocation2 + $0x2a8] sm:$0xff] %v486
  %869 = vst [vmem:[#allocation2 + $0x2b0] sm:$0xff] %v515
  %870 = vst [vmem:[#allocation2 + $0x2b8] sm:$0xff] %v544
  %871 = vst [vmem:[#allocation2 + $0x2c0] sm:$0xff] %v573
  %872 = vst [vmem:[#allocation2 + $0x2c8] sm:$0xff] %v602
  %873 = vst [vmem:[#allocation2 + $0x2d0] sm:$0xff] %v631
  %874 = vst [vmem:[#allocation2 + $0x2d8] sm:$0xff] %v660
  %875 = vst [vmem:[#allocation2 + $0x2e0] sm:$0xff] %v689
  %876 = vst [vmem:[#allocation2 + $0x2e8] sm:$0xff] %v718
  %877 = vst [vmem:[#allocation2 + $0x2f0] sm:$0xff] %v747
  %878 = vst [vmem:[#allocation2 + $0x2f8] sm:$0xff] %v776
  %879 = vst [vmem:[#allocation2 + $0x300] sm:$0xff] %v344
  %880 = vst [vmem:[#allocation2 + $0x308] sm:$0xff] %v373
  %881 = vst [vmem:[#allocation2 + $0x310] sm:$0xff] %v402
  %882 = vst [vmem:[#allocation2 + $0x318] sm:$0xff] %v431
  %883 = vst [vmem:[#allocation2 + $0x320] sm:$0xff] %v460
  %884 = vst [vmem:[#allocation2 + $0x328] sm:$0xff] %v489
  %885 = vst [vmem:[#allocation2 + $0x330] sm:$0xff] %v518
  %886 = vst [vmem:[#allocation2 + $0x338] sm:$0xff] %v547
  %887 = vst [vmem:[#allocation2 + $0x340] sm:$0xff] %v576
  %888 = vst [vmem:[#allocation2 + $0x348] sm:$0xff] %v605
  %889 = vst [vmem:[#allocation2 + $0x350] sm:$0xff] %v634
  %890 = vst [vmem:[#allocation2 + $0x358] sm:$0xff] %v663
  %891 = vst [vmem:[#allocation2 + $0x360] sm:$0xff] %v692
  %892 = vst [vmem:[#allocation2 + $0x368] sm:$0xff] %v721
  %893 = vst [vmem:[#allocation2 + $0x370] sm:$0xff] %v750
  %894 = vst [vmem:[#allocation2 + $0x378] sm:$0xff] %v779
  %895 = vst [vmem:[#allocation2 + $0x380] sm:$0xff] %v346
  %896 = vst [vmem:[#allocation2 + $0x388] sm:$0xff] %v375
  %897 = vst [vmem:[#allocation2 + $0x390] sm:$0xff] %v404
  %898 = vst [vmem:[#allocation2 + $0x398] sm:$0xff] %v433
  %899 = vst [vmem:[#allocation2 + $0x3a0] sm:$0xff] %v462
  %900 = vst [vmem:[#allocation2 + $0x3a8] sm:$0xff] %v491
  %901 = vst [vmem:[#allocation2 + $0x3b0] sm:$0xff] %v520
  %902 = vst [vmem:[#allocation2 + $0x3b8] sm:$0xff] %v549
  %903 = vst [vmem:[#allocation2 + $0x3c0] sm:$0xff] %v578
  %904 = vst [vmem:[#allocation2 + $0x3c8] sm:$0xff] %v607
  %905 = vst [vmem:[#allocation2 + $0x3d0] sm:$0xff] %v636
  %906 = vst [vmem:[#allocation2 + $0x3d8] sm:$0xff] %v665
  %907 = vst [vmem:[#allocation2 + $0x3e0] sm:$0xff] %v694
  %908 = vst [vmem:[#allocation2 + $0x3e8] sm:$0xff] %v723
  %909 = vst [vmem:[#allocation2 + $0x3f0] sm:$0xff] %v752
  %910 = vst [vmem:[#allocation2 + $0x3f8] sm:$0xff] %v781
  %v911 = vld [vmem:[%s3] sm:$0xf]
  %v912 = vld [vmem:[%s3 + $0x4] sm:$0xf]
  %v913 = vld [vmem:[%s3 + $0x8] sm:$0xf]
  %v914 = vld [vmem:[%s3 + $0xc] sm:$0xf]
  %v915 = vld [vmem:[%s3 + $0x10] sm:$0xf]
  %v916 = vld [vmem:[%s3 + $0x14] sm:$0xf]
  %v917 = vld [vmem:[%s3 + $0x18] sm:$0xf]
  %v918 = vld [vmem:[%s3 + $0x1c] sm:$0xf]
  %v919 = vpack.c.bf16 0.0, 0.0
  %v928 = vunpack.c.l.b16 %v911
  %v929 = vunpack.c.l.b16 %v912
  %v930 = vunpack.c.l.b16 %v913
  %v931 = vunpack.c.l.b16 %v914
  %v932 = vunpack.c.l.b16 %v915
  %v933 = vunpack.c.l.b16 %v916
  %v934 = vunpack.c.l.b16 %v917
  %v935 = vunpack.c.l.b16 %v918
  %v936 = vpack.c.b16 %v929, %v928
  %v937 = vpack.c.b16 %v931, %v930
  %v938 = vpack.c.b16 %v933, %v932
  %v939 = vpack.c.b16 %v935, %v934
  %vm940 = vcmask 130048
  %v942 = vsel %vm940, %v936, 0
  %v945 = vsel %vm940, %v937, 0
  %v948 = vsel %vm940, %v938, 0
  %v951 = vsel %vm940, %v939, 0
  %953 = vmatpush.bf16.msra.mxu0 0
  %954 = vmatpush.bf16.msra.mxu0 0
  %955 = vmatpush.bf16.msra.mxu0 0
  %956 = vmatpush.bf16.msra.mxu0 0
  %957 = vmatpush.bf16.msra.mxu0 0
  %958 = vmatpush.bf16.msra.mxu0 0
  %959 = vmatpush.bf16.msra.mxu0 0
  %960 = vmatpush.bf16.msra.mxu0 %v919
  %961 = vmatmul.bf16.gmra.mxu0 %v942
  %v962 = vpop.f32.mrf.mxu0
  %v963 = vadd.f32 0.0, %v962
  %v964 = vpop.f32.mrf.mxu0
  %v965 = vadd.f32 0.0, %v964
  %966 = vmatmul.bf16.gmra.mxu0 %v945
  %v967 = vpop.f32.mrf.mxu0
  %v968 = vadd.f32 0.0, %v967
  %v969 = vpop.f32.mrf.mxu0
  %v970 = vadd.f32 0.0, %v969
  %971 = vmatmul.bf16.gmra.mxu0 %v948
  %v972 = vpop.f32.mrf.mxu0
  %v973 = vadd.f32 0.0, %v972
  %v974 = vpop.f32.mrf.mxu0
  %v975 = vadd.f32 0.0, %v974
  %976 = vmatmul.bf16.gmra.mxu0 %v951
  %v977 = vpop.f32.mrf.mxu0
  %v978 = vadd.f32 0.0, %v977
  %v979 = vpop.f32.mrf.mxu0
  %v980 = vadd.f32 0.0, %v979
  %981 = vdwg.mxu0
  %v982 = vld [vmem:[#allocation2] sm:$0xff]
  %v983 = vld [vmem:[#allocation2 + $0x80] sm:$0xff]
  %v984 = vld [vmem:[#allocation2 + $0x100] sm:$0xff]
  %v985 = vld [vmem:[#allocation2 + $0x180] sm:$0xff]
  %v986 = vadd.f32 %v982, %v963
  %v987 = vadd.f32 %v983, %v965
  %v988 = vadd.f32 %v984, %v968
  %v989 = vadd.f32 %v985, %v970
  %v990 = vld [vmem:[#allocation2 + $0x278] sm:$0xff]
  %v991 = vld [vmem:[#allocation2 + $0x2f8] sm:$0xff]
  %v992 = vld [vmem:[#allocation2 + $0x378] sm:$0xff]
  %v993 = vld [vmem:[#allocation2 + $0x3f8] sm:$0xff]
  %v994 = vadd.f32 %v990, %v973
  %v995 = vadd.f32 %v991, %v975
  %v996 = vadd.f32 %v992, %v978
  %v997 = vadd.f32 %v993, %v980
  %v998 = vxor.u32 %v986, 2147483648
  %v999 = vmul.f32 %v998, 1.442695
  %v1000 = vpow.pop %v999
  %v1001 = vadd.f32 %v1000, 1.0
  %v1002 = vrcp.pop %v1001
  %v1003 = vmul.f32 %v1001, %v1002
  %v1004 = vsub.f32 1.0, %v1003
  %v1005 = vmul.f32 %v1002, %v1004
  %v1006 = vadd.f32 %v1002, %v1005
  %vm1007 = vweird.f32 %v1001
  %vm1008 = vweird.f32 %v1002
  %vm1009 = vmor %vm1007, %vm1008
  %v1010 = vsel %vm1009, %v1002, %v1006
  %v1011 = vand.u32 2147483647, %v1001
  %vm1012 = vcmp.eq.f32.partialorder %v1011, 8.507059e+37
  %v1013 = vand.u32 %v1001, 2147483648
  %v1014 = vor.u32 1.1754944e-38, %v1013
  %v1015 = vsel %vm1012, %v1014, %v1010
  %v1016 = vmul.f32 1.0, %v1015
  %v1017 = vxor.u32 %v987, 2147483648
  %v1018 = vmul.f32 %v1017, 1.442695
  %v1019 = vpow.pop %v1018
  %v1020 = vadd.f32 %v1019, 1.0
  %v1021 = vrcp.pop %v1020
  %v1022 = vmul.f32 %v1020, %v1021
  %v1023 = vsub.f32 1.0, %v1022
  %v1024 = vmul.f32 %v1021, %v1023
  %v1025 = vadd.f32 %v1021, %v1024
  %vm1026 = vweird.f32 %v1020
  %vm1027 = vweird.f32 %v1021
  %vm1028 = vmor %vm1026, %vm1027
  %v1029 = vsel %vm1028, %v1021, %v1025
  %v1030 = vand.u32 2147483647, %v1020
  %vm1031 = vcmp.eq.f32.partialorder %v1030, 8.507059e+37
  %v1032 = vand.u32 %v1020, 2147483648
  %v1033 = vor.u32 1.1754944e-38, %v1032
  %v1034 = vsel %vm1031, %v1033, %v1029
  %v1035 = vmul.f32 1.0, %v1034
  %v1036 = vtanh.pop %v988
  %v1037 = vxor.u32 %v989, 2147483648
  %v1038 = vmul.f32 %v1037, 1.442695
  %v1039 = vpow.pop %v1038
  %v1040 = vadd.f32 %v1039, 1.0
  %v1041 = vrcp.pop %v1040
  %v1042 = vmul.f32 %v1040, %v1041
  %v1043 = vsub.f32 1.0, %v1042
  %v1044 = vmul.f32 %v1041, %v1043
  %v1045 = vadd.f32 %v1041, %v1044
  %vm1046 = vweird.f32 %v1040
  %vm1047 = vweird.f32 %v1041
  %vm1048 = vmor %vm1046, %vm1047
  %v1049 = vsel %vm1048, %v1041, %v1045
  %v1050 = vand.u32 2147483647, %v1040
  %vm1051 = vcmp.eq.f32.partialorder %v1050, 8.507059e+37
  %v1052 = vand.u32 %v1040, 2147483648
  %v1053 = vor.u32 1.1754944e-38, %v1052
  %v1054 = vsel %vm1051, %v1053, %v1049
  %v1055 = vmul.f32 1.0, %v1054
  %v1056 = vmul.f32 %v1035, 0.0
  %v1057 = vmul.f32 %v1016, %v1036
  %v1058 = vadd.f32 %v1056, %v1057
  %v1059 = vtanh.pop %v1058
  %v1060 = vmul.f32 %v1055, %v1059
  %v1061 = vxor.u32 %v994, 2147483648
  %v1062 = vmul.f32 %v1061, 1.442695
  %v1063 = vpow.pop %v1062
  %v1064 = vadd.f32 %v1063, 1.0
  %v1065 = vrcp.pop %v1064
  %v1066 = vmul.f32 %v1064, %v1065
  %v1067 = vsub.f32 1.0, %v1066
  %v1068 = vmul.f32 %v1065, %v1067
  %v1069 = vadd.f32 %v1065, %v1068
  %vm1070 = vweird.f32 %v1064
  %vm1071 = vweird.f32 %v1065
  %vm1072 = vmor %vm1070, %vm1071
  %v1073 = vsel %vm1072, %v1065, %v1069
  %v1074 = vand.u32 2147483647, %v1064
  %vm1075 = vcmp.eq.f32.partialorder %v1074, 8.507059e+37
  %v1076 = vand.u32 %v1064, 2147483648
  %v1077 = vor.u32 1.1754944e-38, %v1076
  %v1078 = vsel %vm1075, %v1077, %v1073
  %v1079 = vmul.f32 1.0, %v1078
  %v1080 = vxor.u32 %v995, 2147483648
  %v1081 = vmul.f32 %v1080, 1.442695
  %v1082 = vpow.pop %v1081
  %v1083 = vadd.f32 %v1082, 1.0
  %v1084 = vrcp.pop %v1083
  %v1085 = vmul.f32 %v1083, %v1084
  %v1086 = vsub.f32 1.0, %v1085
  %v1087 = vmul.f32 %v1084, %v1086
  %v1088 = vadd.f32 %v1084, %v1087
  %vm1089 = vweird.f32 %v1083
  %vm1090 = vweird.f32 %v1084
  %vm1091 = vmor %vm1089, %vm1090
  %v1092 = vsel %vm1091, %v1084, %v1088
  %v1093 = vand.u32 2147483647, %v1083
  %vm1094 = vcmp.eq.f32.partialorder %v1093, 8.507059e+37
  %v1095 = vand.u32 %v1083, 2147483648
  %v1096 = vor.u32 1.1754944e-38, %v1095
  %v1097 = vsel %vm1094, %v1096, %v1092
  %v1098 = vmul.f32 1.0, %v1097
  %v1099 = vtanh.pop %v996
  %v1100 = vxor.u32 %v997, 2147483648
  %v1101 = vmul.f32 %v1100, 1.442695
  %v1102 = vpow.pop %v1101
  %v1103 = vadd.f32 %v1102, 1.0
  %v1104 = vrcp.pop %v1103
  %v1105 = vmul.f32 %v1103, %v1104
  %v1106 = vsub.f32 1.0, %v1105
  %v1107 = vmul.f32 %v1104, %v1106
  %v1108 = vadd.f32 %v1104, %v1107
  %vm1109 = vweird.f32 %v1103
  %vm1110 = vweird.f32 %v1104
  %vm1111 = vmor %vm1109, %vm1110
  %v1112 = vsel %vm1111, %v1104, %v1108
  %v1113 = vand.u32 2147483647, %v1103
  %vm1114 = vcmp.eq.f32.partialorder %v1113, 8.507059e+37
  %v1115 = vand.u32 %v1103, 2147483648
  %v1116 = vor.u32 1.1754944e-38, %v1115
  %v1117 = vsel %vm1114, %v1116, %v1112
  %v1118 = vmul.f32 1.0, %v1117
  %v1119 = vmul.f32 %v1098, 0.0
  %v1120 = vmul.f32 %v1079, %v1099
  %v1121 = vadd.f32 %v1119, %v1120
  %v1122 = vtanh.pop %v1121
  %v1123 = vmul.f32 %v1118, %v1122
  %1124 = vst [vmem:[#allocation3] sm:$0xff] %v1060
  %1125 = vst [vmem:[#allocation3 + $0xf8] sm:$0xff] %v1123
  %v1126 = vpack.c.bf16 %v1123, %v1060
  %1127 = vmatpush.bf16.msra.mxu0 0
  %1128 = vmatpush.bf16.msra.mxu0 0
  %1129 = vmatpush.bf16.msra.mxu0 0
  %1130 = vmatpush.bf16.msra.mxu0 0
  %1131 = vmatpush.bf16.msra.mxu0 0
  %1132 = vmatpush.bf16.msra.mxu0 0
  %1133 = vmatpush.bf16.msra.mxu0 0
  %1134 = vmatpush.bf16.msra.mxu0 %v1126
  %1135 = vmatmul.bf16.gmra.mxu0 %v942
  %v1136 = vpop.f32.mrf.mxu0
  %v1137 = vadd.f32 0.0, %v1136
  %v1138 = vpop.f32.mrf.mxu0
  %v1139 = vadd.f32 0.0, %v1138
  %1140 = vmatmul.bf16.gmra.mxu0 %v945
  %v1141 = vpop.f32.mrf.mxu0
  %v1142 = vadd.f32 0.0, %v1141
  %v1143 = vpop.f32.mrf.mxu0
  %v1144 = vadd.f32 0.0, %v1143
  %1145 = vmatmul.bf16.gmra.mxu0 %v948
  %v1146 = vpop.f32.mrf.mxu0
  %v1147 = vadd.f32 0.0, %v1146
  %v1148 = vpop.f32.mrf.mxu0
  %v1149 = vadd.f32 0.0, %v1148
  %1150 = vmatmul.bf16.gmra.mxu0 %v951
  %v1151 = vpop.f32.mrf.mxu0
  %v1152 = vadd.f32 0.0, %v1151
  %v1153 = vpop.f32.mrf.mxu0
  %v1154 = vadd.f32 0.0, %v1153
  %1155 = vdwg.mxu0
  %v1156 = vld [vmem:[#allocation2 + $0x8] sm:$0xff]
  %v1157 = vld [vmem:[#allocation2 + $0x88] sm:$0xff]
  %v1158 = vld [vmem:[#allocation2 + $0x108] sm:$0xff]
  %v1159 = vld [vmem:[#allocation2 + $0x188] sm:$0xff]
  %v1160 = vadd.f32 %v1156, %v1137
  %v1161 = vadd.f32 %v1157, %v1139
  %v1162 = vadd.f32 %v1158, %v1142
  %v1163 = vadd.f32 %v1159, %v1144
  %v1164 = vld [vmem:[#allocation2 + $0x270] sm:$0xff]
  %v1165 = vld [vmem:[#allocation2 + $0x2f0] sm:$0xff]
  %v1166 = vld [vmem:[#allocation2 + $0x370] sm:$0xff]
  %v1167 = vld [vmem:[#allocation2 + $0x3f0] sm:$0xff]
  %v1168 = vadd.f32 %v1164, %v1147
  %v1169 = vadd.f32 %v1165, %v1149
  %v1170 = vadd.f32 %v1166, %v1152
  %v1171 = vadd.f32 %v1167, %v1154
  %v1172 = vxor.u32 %v1160, 2147483648
  %v1173 = vmul.f32 %v1172, 1.442695
  %v1174 = vpow.pop %v1173
  %v1175 = vadd.f32 %v1174, 1.0
  %v1176 = vrcp.pop %v1175
  %v1177 = vmul.f32 %v1175, %v1176
  %v1178 = vsub.f32 1.0, %v1177
  %v1179 = vmul.f32 %v1176, %v1178
  %v1180 = vadd.f32 %v1176, %v1179
  %vm1181 = vweird.f32 %v1175
  %vm1182 = vweird.f32 %v1176
  %vm1183 = vmor %vm1181, %vm1182
  %v1184 = vsel %vm1183, %v1176, %v1180
  %v1185 = vand.u32 2147483647, %v1175
  %vm1186 = vcmp.eq.f32.partialorder %v1185, 8.507059e+37
  %v1187 = vand.u32 %v1175, 2147483648
  %v1188 = vor.u32 1.1754944e-38, %v1187
  %v1189 = vsel %vm1186, %v1188, %v1184
  %v1190 = vmul.f32 1.0, %v1189
  %v1191 = vxor.u32 %v1161, 2147483648
  %v1192 = vmul.f32 %v1191, 1.442695
  %v1193 = vpow.pop %v1192
  %v1194 = vadd.f32 %v1193, 1.0
  %v1195 = vrcp.pop %v1194
  %v1196 = vmul.f32 %v1194, %v1195
  %v1197 = vsub.f32 1.0, %v1196
  %v1198 = vmul.f32 %v1195, %v1197
  %v1199 = vadd.f32 %v1195, %v1198
  %vm1200 = vweird.f32 %v1194
  %vm1201 = vweird.f32 %v1195
  %vm1202 = vmor %vm1200, %vm1201
  %v1203 = vsel %vm1202, %v1195, %v1199
  %v1204 = vand.u32 2147483647, %v1194
  %vm1205 = vcmp.eq.f32.partialorder %v1204, 8.507059e+37
  %v1206 = vand.u32 %v1194, 2147483648
  %v1207 = vor.u32 1.1754944e-38, %v1206
  %v1208 = vsel %vm1205, %v1207, %v1203
  %v1209 = vmul.f32 1.0, %v1208
  %v1210 = vtanh.pop %v1162
  %v1211 = vxor.u32 %v1163, 2147483648
  %v1212 = vmul.f32 %v1211, 1.442695
  %v1213 = vpow.pop %v1212
  %v1214 = vadd.f32 %v1213, 1.0
  %v1215 = vrcp.pop %v1214
  %v1216 = vmul.f32 %v1214, %v1215
  %v1217 = vsub.f32 1.0, %v1216
  %v1218 = vmul.f32 %v1215, %v1217
  %v1219 = vadd.f32 %v1215, %v1218
  %vm1220 = vweird.f32 %v1214
  %vm1221 = vweird.f32 %v1215
  %vm1222 = vmor %vm1220, %vm1221
  %v1223 = vsel %vm1222, %v1215, %v1219
  %v1224 = vand.u32 2147483647, %v1214
  %vm1225 = vcmp.eq.f32.partialorder %v1224, 8.507059e+37
  %v1226 = vand.u32 %v1214, 2147483648
  %v1227 = vor.u32 1.1754944e-38, %v1226
  %v1228 = vsel %vm1225, %v1227, %v1223
  %v1229 = vmul.f32 1.0, %v1228
  %v1230 = vmul.f32 %v1209, %v1058
  %v1231 = vmul.f32 %v1190, %v1210
  %v1232 = vadd.f32 %v1230, %v1231
  %v1233 = vtanh.pop %v1232
  %v1234 = vmul.f32 %v1229, %v1233
  %v1235 = vxor.u32 %v1168, 2147483648
  %v1236 = vmul.f32 %v1235, 1.442695
  %v1237 = vpow.pop %v1236
  %v1238 = vadd.f32 %v1237, 1.0
  %v1239 = vrcp.pop %v1238
  %v1240 = vmul.f32 %v1238, %v1239
  %v1241 = vsub.f32 1.0, %v1240
  %v1242 = vmul.f32 %v1239, %v1241
  %v1243 = vadd.f32 %v1239, %v1242
  %vm1244 = vweird.f32 %v1238
  %vm1245 = vweird.f32 %v1239
  %vm1246 = vmor %vm1244, %vm1245
  %v1247 = vsel %vm1246, %v1239, %v1243
  %v1248 = vand.u32 2147483647, %v1238
  %vm1249 = vcmp.eq.f32.partialorder %v1248, 8.507059e+37
  %v1250 = vand.u32 %v1238, 2147483648
  %v1251 = vor.u32 1.1754944e-38, %v1250
  %v1252 = vsel %vm1249, %v1251, %v1247
  %v1253 = vmul.f32 1.0, %v1252
  %v1254 = vxor.u32 %v1169, 2147483648
  %v1255 = vmul.f32 %v1254, 1.442695
  %v1256 = vpow.pop %v1255
  %v1257 = vadd.f32 %v1256, 1.0
  %v1258 = vrcp.pop %v1257
  %v1259 = vmul.f32 %v1257, %v1258
  %v1260 = vsub.f32 1.0, %v1259
  %v1261 = vmul.f32 %v1258, %v1260
  %v1262 = vadd.f32 %v1258, %v1261
  %vm1263 = vweird.f32 %v1257
  %vm1264 = vweird.f32 %v1258
  %vm1265 = vmor %vm1263, %vm1264
  %v1266 = vsel %vm1265, %v1258, %v1262
  %v1267 = vand.u32 2147483647, %v1257
  %vm1268 = vcmp.eq.f32.partialorder %v1267, 8.507059e+37
  %v1269 = vand.u32 %v1257, 2147483648
  %v1270 = vor.u32 1.1754944e-38, %v1269
  %v1271 = vsel %vm1268, %v1270, %v1266
  %v1272 = vmul.f32 1.0, %v1271
  %v1273 = vtanh.pop %v1170
  %v1274 = vxor.u32 %v1171, 2147483648
  %v1275 = vmul.f32 %v1274, 1.442695
  %v1276 = vpow.pop %v1275
  %v1277 = vadd.f32 %v1276, 1.0
  %v1278 = vrcp.pop %v1277
  %v1279 = vmul.f32 %v1277, %v1278
  %v1280 = vsub.f32 1.0, %v1279
  %v1281 = vmul.f32 %v1278, %v1280
  %v1282 = vadd.f32 %v1278, %v1281
  %vm1283 = vweird.f32 %v1277
  %vm1284 = vweird.f32 %v1278
  %vm1285 = vmor %vm1283, %vm1284
  %v1286 = vsel %vm1285, %v1278, %v1282
  %v1287 = vand.u32 2147483647, %v1277
  %vm1288 = vcmp.eq.f32.partialorder %v1287, 8.507059e+37
  %v1289 = vand.u32 %v1277, 2147483648
  %v1290 = vor.u32 1.1754944e-38, %v1289
  %v1291 = vsel %vm1288, %v1290, %v1286
  %v1292 = vmul.f32 1.0, %v1291
  %v1293 = vmul.f32 %v1272, %v1121
  %v1294 = vmul.f32 %v1253, %v1273
  %v1295 = vadd.f32 %v1293, %v1294
  %v1296 = vtanh.pop %v1295
  %v1297 = vmul.f32 %v1292, %v1296
  %1298 = vst [vmem:[#allocation3 + $0x8] sm:$0xff] %v1234
  %1299 = vst [vmem:[#allocation3 + $0xf0] sm:$0xff] %v1297
  %v1300 = vpack.c.bf16 %v1297, %v1234
  %1301 = vmatpush.bf16.msra.mxu0 0
  %1302 = vmatpush.bf16.msra.mxu0 0
  %1303 = vmatpush.bf16.msra.mxu0 0
  %1304 = vmatpush.bf16.msra.mxu0 0
  %1305 = vmatpush.bf16.msra.mxu0 0
  %1306 = vmatpush.bf16.msra.mxu0 0
  %1307 = vmatpush.bf16.msra.mxu0 0
  %1308 = vmatpush.bf16.msra.mxu0 %v1300
  %1309 = vmatmul.bf16.gmra.mxu0 %v942
  %v1310 = vpop.f32.mrf.mxu0
  %v1311 = vadd.f32 0.0, %v1310
  %v1312 = vpop.f32.mrf.mxu0
  %v1313 = vadd.f32 0.0, %v1312
  %1314 = vmatmul.bf16.gmra.mxu0 %v945
  %v1315 = vpop.f32.mrf.mxu0
  %v1316 = vadd.f32 0.0, %v1315
  %v1317 = vpop.f32.mrf.mxu0
  %v1318 = vadd.f32 0.0, %v1317
  %1319 = vmatmul.bf16.gmra.mxu0 %v948
  %v1320 = vpop.f32.mrf.mxu0
  %v1321 = vadd.f32 0.0, %v1320
  %v1322 = vpop.f32.mrf.mxu0
  %v1323 = vadd.f32 0.0, %v1322
  %1324 = vmatmul.bf16.gmra.mxu0 %v951
  %v1325 = vpop.f32.mrf.mxu0
  %v1326 = vadd.f32 0.0, %v1325
  %v1327 = vpop.f32.mrf.mxu0
  %v1328 = vadd.f32 0.0, %v1327
  %1329 = vdwg.mxu0
  %v1330 = vld [vmem:[#allocation2 + $0x10] sm:$0xff]
  %v1331 = vld [vmem:[#allocation2 + $0x90] sm:$0xff]
  %v1332 = vld [vmem:[#allocation2 + $0x110] sm:$0xff]
  %v1333 = vld [vmem:[#allocation2 + $0x190] sm:$0xff]
  %v1334 = vadd.f32 %v1330, %v1311
  %v1335 = vadd.f32 %v1331, %v1313
  %v1336 = vadd.f32 %v1332, %v1316
  %v1337 = vadd.f32 %v1333, %v1318
  %v1338 = vld [vmem:[#allocation2 + $0x268] sm:$0xff]
  %v1339 = vld [vmem:[#allocation2 + $0x2e8] sm:$0xff]
  %v1340 = vld [vmem:[#allocation2 + $0x368] sm:$0xff]
  %v1341 = vld [vmem:[#allocation2 + $0x3e8] sm:$0xff]
  %v1342 = vadd.f32 %v1338, %v1321
  %v1343 = vadd.f32 %v1339, %v1323
  %v1344 = vadd.f32 %v1340, %v1326
  %v1345 = vadd.f32 %v1341, %v1328
  %v1346 = vxor.u32 %v1334, 2147483648
  %v1347 = vmul.f32 %v1346, 1.442695
  %v1348 = vpow.pop %v1347
  %v1349 = vadd.f32 %v1348, 1.0
  %v1350 = vrcp.pop %v1349
  %v1351 = vmul.f32 %v1349, %v1350
  %v1352 = vsub.f32 1.0, %v1351
  %v1353 = vmul.f32 %v1350, %v1352
  %v1354 = vadd.f32 %v1350, %v1353
  %vm1355 = vweird.f32 %v1349
  %vm1356 = vweird.f32 %v1350
  %vm1357 = vmor %vm1355, %vm1356
  %v1358 = vsel %vm1357, %v1350, %v1354
  %v1359 = vand.u32 2147483647, %v1349
  %vm1360 = vcmp.eq.f32.partialorder %v1359, 8.507059e+37
  %v1361 = vand.u32 %v1349, 2147483648
  %v1362 = vor.u32 1.1754944e-38, %v1361
  %v1363 = vsel %vm1360, %v1362, %v1358
  %v1364 = vmul.f32 1.0, %v1363
  %v1365 = vxor.u32 %v1335, 2147483648
  %v1366 = vmul.f32 %v1365, 1.442695
  %v1367 = vpow.pop %v1366
  %v1368 = vadd.f32 %v1367, 1.0
  %v1369 = vrcp.pop %v1368
  %v1370 = vmul.f32 %v1368, %v1369
  %v1371 = vsub.f32 1.0, %v1370
  %v1372 = vmul.f32 %v1369, %v1371
  %v1373 = vadd.f32 %v1369, %v1372
  %vm1374 = vweird.f32 %v1368
  %vm1375 = vweird.f32 %v1369
  %vm1376 = vmor %vm1374, %vm1375
  %v1377 = vsel %vm1376, %v1369, %v1373
  %v1378 = vand.u32 2147483647, %v1368
  %vm1379 = vcmp.eq.f32.partialorder %v1378, 8.507059e+37
  %v1380 = vand.u32 %v1368, 2147483648
  %v1381 = vor.u32 1.1754944e-38, %v1380
  %v1382 = vsel %vm1379, %v1381, %v1377
  %v1383 = vmul.f32 1.0, %v1382
  %v1384 = vtanh.pop %v1336
  %v1385 = vxor.u32 %v1337, 2147483648
  %v1386 = vmul.f32 %v1385, 1.442695
  %v1387 = vpow.pop %v1386
  %v1388 = vadd.f32 %v1387, 1.0
  %v1389 = vrcp.pop %v1388
  %v1390 = vmul.f32 %v1388, %v1389
  %v1391 = vsub.f32 1.0, %v1390
  %v1392 = vmul.f32 %v1389, %v1391
  %v1393 = vadd.f32 %v1389, %v1392
  %vm1394 = vweird.f32 %v1388
  %vm1395 = vweird.f32 %v1389
  %vm1396 = vmor %vm1394, %vm1395
  %v1397 = vsel %vm1396, %v1389, %v1393
  %v1398 = vand.u32 2147483647, %v1388
  %vm1399 = vcmp.eq.f32.partialorder %v1398, 8.507059e+37
  %v1400 = vand.u32 %v1388, 2147483648
  %v1401 = vor.u32 1.1754944e-38, %v1400
  %v1402 = vsel %vm1399, %v1401, %v1397
  %v1403 = vmul.f32 1.0, %v1402
  %v1404 = vmul.f32 %v1383, %v1232
  %v1405 = vmul.f32 %v1364, %v1384
  %v1406 = vadd.f32 %v1404, %v1405
  %v1407 = vtanh.pop %v1406
  %v1408 = vmul.f32 %v1403, %v1407
  %v1409 = vxor.u32 %v1342, 2147483648
  %v1410 = vmul.f32 %v1409, 1.442695
  %v1411 = vpow.pop %v1410
  %v1412 = vadd.f32 %v1411, 1.0
  %v1413 = vrcp.pop %v1412
  %v1414 = vmul.f32 %v1412, %v1413
  %v1415 = vsub.f32 1.0, %v1414
  %v1416 = vmul.f32 %v1413, %v1415
  %v1417 = vadd.f32 %v1413, %v1416
  %vm1418 = vweird.f32 %v1412
  %vm1419 = vweird.f32 %v1413
  %vm1420 = vmor %vm1418, %vm1419
  %v1421 = vsel %vm1420, %v1413, %v1417
  %v1422 = vand.u32 2147483647, %v1412
  %vm1423 = vcmp.eq.f32.partialorder %v1422, 8.507059e+37
  %v1424 = vand.u32 %v1412, 2147483648
  %v1425 = vor.u32 1.1754944e-38, %v1424
  %v1426 = vsel %vm1423, %v1425, %v1421
  %v1427 = vmul.f32 1.0, %v1426
  %v1428 = vxor.u32 %v1343, 2147483648
  %v1429 = vmul.f32 %v1428, 1.442695
  %v1430 = vpow.pop %v1429
  %v1431 = vadd.f32 %v1430, 1.0
  %v1432 = vrcp.pop %v1431
  %v1433 = vmul.f32 %v1431, %v1432
  %v1434 = vsub.f32 1.0, %v1433
  %v1435 = vmul.f32 %v1432, %v1434
  %v1436 = vadd.f32 %v1432, %v1435
  %vm1437 = vweird.f32 %v1431
  %vm1438 = vweird.f32 %v1432
  %vm1439 = vmor %vm1437, %vm1438
  %v1440 = vsel %vm1439, %v1432, %v1436
  %v1441 = vand.u32 2147483647, %v1431
  %vm1442 = vcmp.eq.f32.partialorder %v1441, 8.507059e+37
  %v1443 = vand.u32 %v1431, 2147483648
  %v1444 = vor.u32 1.1754944e-38, %v1443
  %v1445 = vsel %vm1442, %v1444, %v1440
  %v1446 = vmul.f32 1.0, %v1445
  %v1447 = vtanh.pop %v1344
  %v1448 = vxor.u32 %v1345, 2147483648
  %v1449 = vmul.f32 %v1448, 1.442695
  %v1450 = vpow.pop %v1449
  %v1451 = vadd.f32 %v1450, 1.0
  %v1452 = vrcp.pop %v1451
  %v1453 = vmul.f32 %v1451, %v1452
  %v1454 = vsub.f32 1.0, %v1453
  %v1455 = vmul.f32 %v1452, %v1454
  %v1456 = vadd.f32 %v1452, %v1455
  %vm1457 = vweird.f32 %v1451
  %vm1458 = vweird.f32 %v1452
  %vm1459 = vmor %vm1457, %vm1458
  %v1460 = vsel %vm1459, %v1452, %v1456
  %v1461 = vand.u32 2147483647, %v1451
  %vm1462 = vcmp.eq.f32.partialorder %v1461, 8.507059e+37
  %v1463 = vand.u32 %v1451, 2147483648
  %v1464 = vor.u32 1.1754944e-38, %v1463
  %v1465 = vsel %vm1462, %v1464, %v1460
  %v1466 = vmul.f32 1.0, %v1465
  %v1467 = vmul.f32 %v1446, %v1295
  %v1468 = vmul.f32 %v1427, %v1447
  %v1469 = vadd.f32 %v1467, %v1468
  %v1470 = vtanh.pop %v1469
  %v1471 = vmul.f32 %v1466, %v1470
  %1472 = vst [vmem:[#allocation3 + $0x10] sm:$0xff] %v1408
  %1473 = vst [vmem:[#allocation3 + $0xe8] sm:$0xff] %v1471
  %v1474 = vpack.c.bf16 %v1471, %v1408
  %1475 = vmatpush.bf16.msra.mxu0 0
  %1476 = vmatpush.bf16.msra.mxu0 0
  %1477 = vmatpush.bf16.msra.mxu0 0
  %1478 = vmatpush.bf16.msra.mxu0 0
  %1479 = vmatpush.bf16.msra.mxu0 0
  %1480 = vmatpush.bf16.msra.mxu0 0
  %1481 = vmatpush.bf16.msra.mxu0 0
  %1482 = vmatpush.bf16.msra.mxu0 %v1474
  %1483 = vmatmul.bf16.gmra.mxu0 %v942
  %v1484 = vpop.f32.mrf.mxu0
  %v1485 = vadd.f32 0.0, %v1484
  %v1486 = vpop.f32.mrf.mxu0
  %v1487 = vadd.f32 0.0, %v1486
  %1488 = vmatmul.bf16.gmra.mxu0 %v945
  %v1489 = vpop.f32.mrf.mxu0
  %v1490 = vadd.f32 0.0, %v1489
  %v1491 = vpop.f32.mrf.mxu0
  %v1492 = vadd.f32 0.0, %v1491
  %1493 = vmatmul.bf16.gmra.mxu0 %v948
  %v1494 = vpop.f32.mrf.mxu0
  %v1495 = vadd.f32 0.0, %v1494
  %v1496 = vpop.f32.mrf.mxu0
  %v1497 = vadd.f32 0.0, %v1496
  %1498 = vmatmul.bf16.gmra.mxu0 %v951
  %v1499 = vpop.f32.mrf.mxu0
  %v1500 = vadd.f32 0.0, %v1499
  %v1501 = vpop.f32.mrf.mxu0
  %v1502 = vadd.f32 0.0, %v1501
  %1503 = vdwg.mxu0
  %v1504 = vld [vmem:[#allocation2 + $0x18] sm:$0xff]
  %v1505 = vld [vmem:[#allocation2 + $0x98] sm:$0xff]
  %v1506 = vld [vmem:[#allocation2 + $0x118] sm:$0xff]
  %v1507 = vld [vmem:[#allocation2 + $0x198] sm:$0xff]
  %v1508 = vadd.f32 %v1504, %v1485
  %v1509 = vadd.f32 %v1505, %v1487
  %v1510 = vadd.f32 %v1506, %v1490
  %v1511 = vadd.f32 %v1507, %v1492
  %v1512 = vld [vmem:[#allocation2 + $0x260] sm:$0xff]
  %v1513 = vld [vmem:[#allocation2 + $0x2e0] sm:$0xff]
  %v1514 = vld [vmem:[#allocation2 + $0x360] sm:$0xff]
  %v1515 = vld [vmem:[#allocation2 + $0x3e0] sm:$0xff]
  %v1516 = vadd.f32 %v1512, %v1495
  %v1517 = vadd.f32 %v1513, %v1497
  %v1518 = vadd.f32 %v1514, %v1500
  %v1519 = vadd.f32 %v1515, %v1502
  %v1520 = vxor.u32 %v1508, 2147483648
  %v1521 = vmul.f32 %v1520, 1.442695
  %v1522 = vpow.pop %v1521
  %v1523 = vadd.f32 %v1522, 1.0
  %v1524 = vrcp.pop %v1523
  %v1525 = vmul.f32 %v1523, %v1524
  %v1526 = vsub.f32 1.0, %v1525
  %v1527 = vmul.f32 %v1524, %v1526
  %v1528 = vadd.f32 %v1524, %v1527
  %vm1529 = vweird.f32 %v1523
  %vm1530 = vweird.f32 %v1524
  %vm1531 = vmor %vm1529, %vm1530
  %v1532 = vsel %vm1531, %v1524, %v1528
  %v1533 = vand.u32 2147483647, %v1523
  %vm1534 = vcmp.eq.f32.partialorder %v1533, 8.507059e+37
  %v1535 = vand.u32 %v1523, 2147483648
  %v1536 = vor.u32 1.1754944e-38, %v1535
  %v1537 = vsel %vm1534, %v1536, %v1532
  %v1538 = vmul.f32 1.0, %v1537
  %v1539 = vxor.u32 %v1509, 2147483648
  %v1540 = vmul.f32 %v1539, 1.442695
  %v1541 = vpow.pop %v1540
  %v1542 = vadd.f32 %v1541, 1.0
  %v1543 = vrcp.pop %v1542
  %v1544 = vmul.f32 %v1542, %v1543
  %v1545 = vsub.f32 1.0, %v1544
  %v1546 = vmul.f32 %v1543, %v1545
  %v1547 = vadd.f32 %v1543, %v1546
  %vm1548 = vweird.f32 %v1542
  %vm1549 = vweird.f32 %v1543
  %vm1550 = vmor %vm1548, %vm1549
  %v1551 = vsel %vm1550, %v1543, %v1547
  %v1552 = vand.u32 2147483647, %v1542
  %vm1553 = vcmp.eq.f32.partialorder %v1552, 8.507059e+37
  %v1554 = vand.u32 %v1542, 2147483648
  %v1555 = vor.u32 1.1754944e-38, %v1554
  %v1556 = vsel %vm1553, %v1555, %v1551
  %v1557 = vmul.f32 1.0, %v1556
  %v1558 = vtanh.pop %v1510
  %v1559 = vxor.u32 %v1511, 2147483648
  %v1560 = vmul.f32 %v1559, 1.442695
  %v1561 = vpow.pop %v1560
  %v1562 = vadd.f32 %v1561, 1.0
  %v1563 = vrcp.pop %v1562
  %v1564 = vmul.f32 %v1562, %v1563
  %v1565 = vsub.f32 1.0, %v1564
  %v1566 = vmul.f32 %v1563, %v1565
  %v1567 = vadd.f32 %v1563, %v1566
  %vm1568 = vweird.f32 %v1562
  %vm1569 = vweird.f32 %v1563
  %vm1570 = vmor %vm1568, %vm1569
  %v1571 = vsel %vm1570, %v1563, %v1567
  %v1572 = vand.u32 2147483647, %v1562
  %vm1573 = vcmp.eq.f32.partialorder %v1572, 8.507059e+37
  %v1574 = vand.u32 %v1562, 2147483648
  %v1575 = vor.u32 1.1754944e-38, %v1574
  %v1576 = vsel %vm1573, %v1575, %v1571
  %v1577 = vmul.f32 1.0, %v1576
  %v1578 = vmul.f32 %v1557, %v1406
  %v1579 = vmul.f32 %v1538, %v1558
  %v1580 = vadd.f32 %v1578, %v1579
  %v1581 = vtanh.pop %v1580
  %v1582 = vmul.f32 %v1577, %v1581
  %v1583 = vxor.u32 %v1516, 2147483648
  %v1584 = vmul.f32 %v1583, 1.442695
  %v1585 = vpow.pop %v1584
  %v1586 = vadd.f32 %v1585, 1.0
  %v1587 = vrcp.pop %v1586
  %v1588 = vmul.f32 %v1586, %v1587
  %v1589 = vsub.f32 1.0, %v1588
  %v1590 = vmul.f32 %v1587, %v1589
  %v1591 = vadd.f32 %v1587, %v1590
  %vm1592 = vweird.f32 %v1586
  %vm1593 = vweird.f32 %v1587
  %vm1594 = vmor %vm1592, %vm1593
  %v1595 = vsel %vm1594, %v1587, %v1591
  %v1596 = vand.u32 2147483647, %v1586
  %vm1597 = vcmp.eq.f32.partialorder %v1596, 8.507059e+37
  %v1598 = vand.u32 %v1586, 2147483648
  %v1599 = vor.u32 1.1754944e-38, %v1598
  %v1600 = vsel %vm1597, %v1599, %v1595
  %v1601 = vmul.f32 1.0, %v1600
  %v1602 = vxor.u32 %v1517, 2147483648
  %v1603 = vmul.f32 %v1602, 1.442695
  %v1604 = vpow.pop %v1603
  %v1605 = vadd.f32 %v1604, 1.0
  %v1606 = vrcp.pop %v1605
  %v1607 = vmul.f32 %v1605, %v1606
  %v1608 = vsub.f32 1.0, %v1607
  %v1609 = vmul.f32 %v1606, %v1608
  %v1610 = vadd.f32 %v1606, %v1609
  %vm1611 = vweird.f32 %v1605
  %vm1612 = vweird.f32 %v1606
  %vm1613 = vmor %vm1611, %vm1612
  %v1614 = vsel %vm1613, %v1606, %v1610
  %v1615 = vand.u32 2147483647, %v1605
  %vm1616 = vcmp.eq.f32.partialorder %v1615, 8.507059e+37
  %v1617 = vand.u32 %v1605, 2147483648
  %v1618 = vor.u32 1.1754944e-38, %v1617
  %v1619 = vsel %vm1616, %v1618, %v1614
  %v1620 = vmul.f32 1.0, %v1619
  %v1621 = vtanh.pop %v1518
  %v1622 = vxor.u32 %v1519, 2147483648
  %v1623 = vmul.f32 %v1622, 1.442695
  %v1624 = vpow.pop %v1623
  %v1625 = vadd.f32 %v1624, 1.0
  %v1626 = vrcp.pop %v1625
  %v1627 = vmul.f32 %v1625, %v1626
  %v1628 = vsub.f32 1.0, %v1627
  %v1629 = vmul.f32 %v1626, %v1628
  %v1630 = vadd.f32 %v1626, %v1629
  %vm1631 = vweird.f32 %v1625
  %vm1632 = vweird.f32 %v1626
  %vm1633 = vmor %vm1631, %vm1632
  %v1634 = vsel %vm1633, %v1626, %v1630
  %v1635 = vand.u32 2147483647, %v1625
  %vm1636 = vcmp.eq.f32.partialorder %v1635, 8.507059e+37
  %v1637 = vand.u32 %v1625, 2147483648
  %v1638 = vor.u32 1.1754944e-38, %v1637
  %v1639 = vsel %vm1636, %v1638, %v1634
  %v1640 = vmul.f32 1.0, %v1639
  %v1641 = vmul.f32 %v1620, %v1469
  %v1642 = vmul.f32 %v1601, %v1621
  %v1643 = vadd.f32 %v1641, %v1642
  %v1644 = vtanh.pop %v1643
  %v1645 = vmul.f32 %v1640, %v1644
  %1646 = vst [vmem:[#allocation3 + $0x18] sm:$0xff] %v1582
  %1647 = vst [vmem:[#allocation3 + $0xe0] sm:$0xff] %v1645
  %v1648 = vpack.c.bf16 %v1645, %v1582
  %1649 = vmatpush.bf16.msra.mxu0 0
  %1650 = vmatpush.bf16.msra.mxu0 0
  %1651 = vmatpush.bf16.msra.mxu0 0
  %1652 = vmatpush.bf16.msra.mxu0 0
  %1653 = vmatpush.bf16.msra.mxu0 0
  %1654 = vmatpush.bf16.msra.mxu0 0
  %1655 = vmatpush.bf16.msra.mxu0 0
  %1656 = vmatpush.bf16.msra.mxu0 %v1648
  %1657 = vmatmul.bf16.gmra.mxu0 %v942
  %v1658 = vpop.f32.mrf.mxu0
  %v1659 = vadd.f32 0.0, %v1658
  %v1660 = vpop.f32.mrf.mxu0
  %v1661 = vadd.f32 0.0, %v1660
  %1662 = vmatmul.bf16.gmra.mxu0 %v945
  %v1663 = vpop.f32.mrf.mxu0
  %v1664 = vadd.f32 0.0, %v1663
  %v1665 = vpop.f32.mrf.mxu0
  %v1666 = vadd.f32 0.0, %v1665
  %1667 = vmatmul.bf16.gmra.mxu0 %v948
  %v1668 = vpop.f32.mrf.mxu0
  %v1669 = vadd.f32 0.0, %v1668
  %v1670 = vpop.f32.mrf.mxu0
  %v1671 = vadd.f32 0.0, %v1670
  %1672 = vmatmul.bf16.gmra.mxu0 %v951
  %v1673 = vpop.f32.mrf.mxu0
  %v1674 = vadd.f32 0.0, %v1673
  %v1675 = vpop.f32.mrf.mxu0
  %v1676 = vadd.f32 0.0, %v1675
  %1677 = vdwg.mxu0
  %v1678 = vld [vmem:[#allocation2 + $0x20] sm:$0xff]
  %v1679 = vld [vmem:[#allocation2 + $0xa0] sm:$0xff]
  %v1680 = vld [vmem:[#allocation2 + $0x120] sm:$0xff]
  %v1681 = vld [vmem:[#allocation2 + $0x1a0] sm:$0xff]
  %v1682 = vadd.f32 %v1678, %v1659
  %v1683 = vadd.f32 %v1679, %v1661
  %v1684 = vadd.f32 %v1680, %v1664
  %v1685 = vadd.f32 %v1681, %v1666
  %v1686 = vld [vmem:[#allocation2 + $0x258] sm:$0xff]
  %v1687 = vld [vmem:[#allocation2 + $0x2d8] sm:$0xff]
  %v1688 = vld [vmem:[#allocation2 + $0x358] sm:$0xff]
  %v1689 = vld [vmem:[#allocation2 + $0x3d8] sm:$0xff]
  %v1690 = vadd.f32 %v1686, %v1669
  %v1691 = vadd.f32 %v1687, %v1671
  %v1692 = vadd.f32 %v1688, %v1674
  %v1693 = vadd.f32 %v1689, %v1676
  %v1694 = vxor.u32 %v1682, 2147483648
  %v1695 = vmul.f32 %v1694, 1.442695
  %v1696 = vpow.pop %v1695
  %v1697 = vadd.f32 %v1696, 1.0
  %v1698 = vrcp.pop %v1697
  %v1699 = vmul.f32 %v1697, %v1698
  %v1700 = vsub.f32 1.0, %v1699
  %v1701 = vmul.f32 %v1698, %v1700
  %v1702 = vadd.f32 %v1698, %v1701
  %vm1703 = vweird.f32 %v1697
  %vm1704 = vweird.f32 %v1698
  %vm1705 = vmor %vm1703, %vm1704
  %v1706 = vsel %vm1705, %v1698, %v1702
  %v1707 = vand.u32 2147483647, %v1697
  %vm1708 = vcmp.eq.f32.partialorder %v1707, 8.507059e+37
  %v1709 = vand.u32 %v1697, 2147483648
  %v1710 = vor.u32 1.1754944e-38, %v1709
  %v1711 = vsel %vm1708, %v1710, %v1706
  %v1712 = vmul.f32 1.0, %v1711
  %v1713 = vxor.u32 %v1683, 2147483648
  %v1714 = vmul.f32 %v1713, 1.442695
  %v1715 = vpow.pop %v1714
  %v1716 = vadd.f32 %v1715, 1.0
  %v1717 = vrcp.pop %v1716
  %v1718 = vmul.f32 %v1716, %v1717
  %v1719 = vsub.f32 1.0, %v1718
  %v1720 = vmul.f32 %v1717, %v1719
  %v1721 = vadd.f32 %v1717, %v1720
  %vm1722 = vweird.f32 %v1716
  %vm1723 = vweird.f32 %v1717
  %vm1724 = vmor %vm1722, %vm1723
  %v1725 = vsel %vm1724, %v1717, %v1721
  %v1726 = vand.u32 2147483647, %v1716
  %vm1727 = vcmp.eq.f32.partialorder %v1726, 8.507059e+37
  %v1728 = vand.u32 %v1716, 2147483648
  %v1729 = vor.u32 1.1754944e-38, %v1728
  %v1730 = vsel %vm1727, %v1729, %v1725
  %v1731 = vmul.f32 1.0, %v1730
  %v1732 = vtanh.pop %v1684
  %v1733 = vxor.u32 %v1685, 2147483648
  %v1734 = vmul.f32 %v1733, 1.442695
  %v1735 = vpow.pop %v1734
  %v1736 = vadd.f32 %v1735, 1.0
  %v1737 = vrcp.pop %v1736
  %v1738 = vmul.f32 %v1736, %v1737
  %v1739 = vsub.f32 1.0, %v1738
  %v1740 = vmul.f32 %v1737, %v1739
  %v1741 = vadd.f32 %v1737, %v1740
  %vm1742 = vweird.f32 %v1736
  %vm1743 = vweird.f32 %v1737
  %vm1744 = vmor %vm1742, %vm1743
  %v1745 = vsel %vm1744, %v1737, %v1741
  %v1746 = vand.u32 2147483647, %v1736
  %vm1747 = vcmp.eq.f32.partialorder %v1746, 8.507059e+37
  %v1748 = vand.u32 %v1736, 2147483648
  %v1749 = vor.u32 1.1754944e-38, %v1748
  %v1750 = vsel %vm1747, %v1749, %v1745
  %v1751 = vmul.f32 1.0, %v1750
  %v1752 = vmul.f32 %v1731, %v1580
  %v1753 = vmul.f32 %v1712, %v1732
  %v1754 = vadd.f32 %v1752, %v1753
  %v1755 = vtanh.pop %v1754
  %v1756 = vmul.f32 %v1751, %v1755
  %v1757 = vxor.u32 %v1690, 2147483648
  %v1758 = vmul.f32 %v1757, 1.442695
  %v1759 = vpow.pop %v1758
  %v1760 = vadd.f32 %v1759, 1.0
  %v1761 = vrcp.pop %v1760
  %v1762 = vmul.f32 %v1760, %v1761
  %v1763 = vsub.f32 1.0, %v1762
  %v1764 = vmul.f32 %v1761, %v1763
  %v1765 = vadd.f32 %v1761, %v1764
  %vm1766 = vweird.f32 %v1760
  %vm1767 = vweird.f32 %v1761
  %vm1768 = vmor %vm1766, %vm1767
  %v1769 = vsel %vm1768, %v1761, %v1765
  %v1770 = vand.u32 2147483647, %v1760
  %vm1771 = vcmp.eq.f32.partialorder %v1770, 8.507059e+37
  %v1772 = vand.u32 %v1760, 2147483648
  %v1773 = vor.u32 1.1754944e-38, %v1772
  %v1774 = vsel %vm1771, %v1773, %v1769
  %v1775 = vmul.f32 1.0, %v1774
  %v1776 = vxor.u32 %v1691, 2147483648
  %v1777 = vmul.f32 %v1776, 1.442695
  %v1778 = vpow.pop %v1777
  %v1779 = vadd.f32 %v1778, 1.0
  %v1780 = vrcp.pop %v1779
  %v1781 = vmul.f32 %v1779, %v1780
  %v1782 = vsub.f32 1.0, %v1781
  %v1783 = vmul.f32 %v1780, %v1782
  %v1784 = vadd.f32 %v1780, %v1783
  %vm1785 = vweird.f32 %v1779
  %vm1786 = vweird.f32 %v1780
  %vm1787 = vmor %vm1785, %vm1786
  %v1788 = vsel %vm1787, %v1780, %v1784
  %v1789 = vand.u32 2147483647, %v1779
  %vm1790 = vcmp.eq.f32.partialorder %v1789, 8.507059e+37
  %v1791 = vand.u32 %v1779, 2147483648
  %v1792 = vor.u32 1.1754944e-38, %v1791
  %v1793 = vsel %vm1790, %v1792, %v1788
  %v1794 = vmul.f32 1.0, %v1793
  %v1795 = vtanh.pop %v1692
  %v1796 = vxor.u32 %v1693, 2147483648
  %v1797 = vmul.f32 %v1796, 1.442695
  %v1798 = vpow.pop %v1797
  %v1799 = vadd.f32 %v1798, 1.0
  %v1800 = vrcp.pop %v1799
  %v1801 = vmul.f32 %v1799, %v1800
  %v1802 = vsub.f32 1.0, %v1801
  %v1803 = vmul.f32 %v1800, %v1802
  %v1804 = vadd.f32 %v1800, %v1803
  %vm1805 = vweird.f32 %v1799
  %vm1806 = vweird.f32 %v1800
  %vm1807 = vmor %vm1805, %vm1806
  %v1808 = vsel %vm1807, %v1800, %v1804
  %v1809 = vand.u32 2147483647, %v1799
  %vm1810 = vcmp.eq.f32.partialorder %v1809, 8.507059e+37
  %v1811 = vand.u32 %v1799, 2147483648
  %v1812 = vor.u32 1.1754944e-38, %v1811
  %v1813 = vsel %vm1810, %v1812, %v1808
  %v1814 = vmul.f32 1.0, %v1813
  %v1815 = vmul.f32 %v1794, %v1643
  %v1816 = vmul.f32 %v1775, %v1795
  %v1817 = vadd.f32 %v1815, %v1816
  %v1818 = vtanh.pop %v1817
  %v1819 = vmul.f32 %v1814, %v1818
  %1820 = vst [vmem:[#allocation3 + $0x20] sm:$0xff] %v1756
  %1821 = vst [vmem:[#allocation3 + $0xd8] sm:$0xff] %v1819
  %v1822 = vpack.c.bf16 %v1819, %v1756
  %1823 = vmatpush.bf16.msra.mxu0 0
  %1824 = vmatpush.bf16.msra.mxu0 0
  %1825 = vmatpush.bf16.msra.mxu0 0
  %1826 = vmatpush.bf16.msra.mxu0 0
  %1827 = vmatpush.bf16.msra.mxu0 0
  %1828 = vmatpush.bf16.msra.mxu0 0
  %1829 = vmatpush.bf16.msra.mxu0 0
  %1830 = vmatpush.bf16.msra.mxu0 %v1822
  %1831 = vmatmul.bf16.gmra.mxu0 %v942
  %v1832 = vpop.f32.mrf.mxu0
  %v1833 = vadd.f32 0.0, %v1832
  %v1834 = vpop.f32.mrf.mxu0
  %v1835 = vadd.f32 0.0, %v1834
  %1836 = vmatmul.bf16.gmra.mxu0 %v945
  %v1837 = vpop.f32.mrf.mxu0
  %v1838 = vadd.f32 0.0, %v1837
  %v1839 = vpop.f32.mrf.mxu0
  %v1840 = vadd.f32 0.0, %v1839
  %1841 = vmatmul.bf16.gmra.mxu0 %v948
  %v1842 = vpop.f32.mrf.mxu0
  %v1843 = vadd.f32 0.0, %v1842
  %v1844 = vpop.f32.mrf.mxu0
  %v1845 = vadd.f32 0.0, %v1844
  %1846 = vmatmul.bf16.gmra.mxu0 %v951
  %v1847 = vpop.f32.mrf.mxu0
  %v1848 = vadd.f32 0.0, %v1847
  %v1849 = vpop.f32.mrf.mxu0
  %v1850 = vadd.f32 0.0, %v1849
  %1851 = vdwg.mxu0
  %v1852 = vld [vmem:[#allocation2 + $0x28] sm:$0xff]
  %v1853 = vld [vmem:[#allocation2 + $0xa8] sm:$0xff]
  %v1854 = vld [vmem:[#allocation2 + $0x128] sm:$0xff]
  %v1855 = vld [vmem:[#allocation2 + $0x1a8] sm:$0xff]
  %v1856 = vadd.f32 %v1852, %v1833
  %v1857 = vadd.f32 %v1853, %v1835
  %v1858 = vadd.f32 %v1854, %v1838
  %v1859 = vadd.f32 %v1855, %v1840
  %v1860 = vld [vmem:[#allocation2 + $0x250] sm:$0xff]
  %v1861 = vld [vmem:[#allocation2 + $0x2d0] sm:$0xff]
  %v1862 = vld [vmem:[#allocation2 + $0x350] sm:$0xff]
  %v1863 = vld [vmem:[#allocation2 + $0x3d0] sm:$0xff]
  %v1864 = vadd.f32 %v1860, %v1843
  %v1865 = vadd.f32 %v1861, %v1845
  %v1866 = vadd.f32 %v1862, %v1848
  %v1867 = vadd.f32 %v1863, %v1850
  %v1868 = vxor.u32 %v1856, 2147483648
  %v1869 = vmul.f32 %v1868, 1.442695
  %v1870 = vpow.pop %v1869
  %v1871 = vadd.f32 %v1870, 1.0
  %v1872 = vrcp.pop %v1871
  %v1873 = vmul.f32 %v1871, %v1872
  %v1874 = vsub.f32 1.0, %v1873
  %v1875 = vmul.f32 %v1872, %v1874
  %v1876 = vadd.f32 %v1872, %v1875
  %vm1877 = vweird.f32 %v1871
  %vm1878 = vweird.f32 %v1872
  %vm1879 = vmor %vm1877, %vm1878
  %v1880 = vsel %vm1879, %v1872, %v1876
  %v1881 = vand.u32 2147483647, %v1871
  %vm1882 = vcmp.eq.f32.partialorder %v1881, 8.507059e+37
  %v1883 = vand.u32 %v1871, 2147483648
  %v1884 = vor.u32 1.1754944e-38, %v1883
  %v1885 = vsel %vm1882, %v1884, %v1880
  %v1886 = vmul.f32 1.0, %v1885
  %v1887 = vxor.u32 %v1857, 2147483648
  %v1888 = vmul.f32 %v1887, 1.442695
  %v1889 = vpow.pop %v1888
  %v1890 = vadd.f32 %v1889, 1.0
  %v1891 = vrcp.pop %v1890
  %v1892 = vmul.f32 %v1890, %v1891
  %v1893 = vsub.f32 1.0, %v1892
  %v1894 = vmul.f32 %v1891, %v1893
  %v1895 = vadd.f32 %v1891, %v1894
  %vm1896 = vweird.f32 %v1890
  %vm1897 = vweird.f32 %v1891
  %vm1898 = vmor %vm1896, %vm1897
  %v1899 = vsel %vm1898, %v1891, %v1895
  %v1900 = vand.u32 2147483647, %v1890
  %vm1901 = vcmp.eq.f32.partialorder %v1900, 8.507059e+37
  %v1902 = vand.u32 %v1890, 2147483648
  %v1903 = vor.u32 1.1754944e-38, %v1902
  %v1904 = vsel %vm1901, %v1903, %v1899
  %v1905 = vmul.f32 1.0, %v1904
  %v1906 = vtanh.pop %v1858
  %v1907 = vxor.u32 %v1859, 2147483648
  %v1908 = vmul.f32 %v1907, 1.442695
  %v1909 = vpow.pop %v1908
  %v1910 = vadd.f32 %v1909, 1.0
  %v1911 = vrcp.pop %v1910
  %v1912 = vmul.f32 %v1910, %v1911
  %v1913 = vsub.f32 1.0, %v1912
  %v1914 = vmul.f32 %v1911, %v1913
  %v1915 = vadd.f32 %v1911, %v1914
  %vm1916 = vweird.f32 %v1910
  %vm1917 = vweird.f32 %v1911
  %vm1918 = vmor %vm1916, %vm1917
  %v1919 = vsel %vm1918, %v1911, %v1915
  %v1920 = vand.u32 2147483647, %v1910
  %vm1921 = vcmp.eq.f32.partialorder %v1920, 8.507059e+37
  %v1922 = vand.u32 %v1910, 2147483648
  %v1923 = vor.u32 1.1754944e-38, %v1922
  %v1924 = vsel %vm1921, %v1923, %v1919
  %v1925 = vmul.f32 1.0, %v1924
  %v1926 = vmul.f32 %v1905, %v1754
  %v1927 = vmul.f32 %v1886, %v1906
  %v1928 = vadd.f32 %v1926, %v1927
  %v1929 = vtanh.pop %v1928
  %v1930 = vmul.f32 %v1925, %v1929
  %v1931 = vxor.u32 %v1864, 2147483648
  %v1932 = vmul.f32 %v1931, 1.442695
  %v1933 = vpow.pop %v1932
  %v1934 = vadd.f32 %v1933, 1.0
  %v1935 = vrcp.pop %v1934
  %v1936 = vmul.f32 %v1934, %v1935
  %v1937 = vsub.f32 1.0, %v1936
  %v1938 = vmul.f32 %v1935, %v1937
  %v1939 = vadd.f32 %v1935, %v1938
  %vm1940 = vweird.f32 %v1934
  %vm1941 = vweird.f32 %v1935
  %vm1942 = vmor %vm1940, %vm1941
  %v1943 = vsel %vm1942, %v1935, %v1939
  %v1944 = vand.u32 2147483647, %v1934
  %vm1945 = vcmp.eq.f32.partialorder %v1944, 8.507059e+37
  %v1946 = vand.u32 %v1934, 2147483648
  %v1947 = vor.u32 1.1754944e-38, %v1946
  %v1948 = vsel %vm1945, %v1947, %v1943
  %v1949 = vmul.f32 1.0, %v1948
  %v1950 = vxor.u32 %v1865, 2147483648
  %v1951 = vmul.f32 %v1950, 1.442695
  %v1952 = vpow.pop %v1951
  %v1953 = vadd.f32 %v1952, 1.0
  %v1954 = vrcp.pop %v1953
  %v1955 = vmul.f32 %v1953, %v1954
  %v1956 = vsub.f32 1.0, %v1955
  %v1957 = vmul.f32 %v1954, %v1956
  %v1958 = vadd.f32 %v1954, %v1957
  %vm1959 = vweird.f32 %v1953
  %vm1960 = vweird.f32 %v1954
  %vm1961 = vmor %vm1959, %vm1960
  %v1962 = vsel %vm1961, %v1954, %v1958
  %v1963 = vand.u32 2147483647, %v1953
  %vm1964 = vcmp.eq.f32.partialorder %v1963, 8.507059e+37
  %v1965 = vand.u32 %v1953, 2147483648
  %v1966 = vor.u32 1.1754944e-38, %v1965
  %v1967 = vsel %vm1964, %v1966, %v1962
  %v1968 = vmul.f32 1.0, %v1967
  %v1969 = vtanh.pop %v1866
  %v1970 = vxor.u32 %v1867, 2147483648
  %v1971 = vmul.f32 %v1970, 1.442695
  %v1972 = vpow.pop %v1971
  %v1973 = vadd.f32 %v1972, 1.0
  %v1974 = vrcp.pop %v1973
  %v1975 = vmul.f32 %v1973, %v1974
  %v1976 = vsub.f32 1.0, %v1975
  %v1977 = vmul.f32 %v1974, %v1976
  %v1978 = vadd.f32 %v1974, %v1977
  %vm1979 = vweird.f32 %v1973
  %vm1980 = vweird.f32 %v1974
  %vm1981 = vmor %vm1979, %vm1980
  %v1982 = vsel %vm1981, %v1974, %v1978
  %v1983 = vand.u32 2147483647, %v1973
  %vm1984 = vcmp.eq.f32.partialorder %v1983, 8.507059e+37
  %v1985 = vand.u32 %v1973, 2147483648
  %v1986 = vor.u32 1.1754944e-38, %v1985
  %v1987 = vsel %vm1984, %v1986, %v1982
  %v1988 = vmul.f32 1.0, %v1987
  %v1989 = vmul.f32 %v1968, %v1817
  %v1990 = vmul.f32 %v1949, %v1969
  %v1991 = vadd.f32 %v1989, %v1990
  %v1992 = vtanh.pop %v1991
  %v1993 = vmul.f32 %v1988, %v1992
  %1994 = vst [vmem:[#allocation3 + $0x28] sm:$0xff] %v1930
  %1995 = vst [vmem:[#allocation3 + $0xd0] sm:$0xff] %v1993
  %v1996 = vpack.c.bf16 %v1993, %v1930
  %1997 = vmatpush.bf16.msra.mxu0 0
  %1998 = vmatpush.bf16.msra.mxu0 0
  %1999 = vmatpush.bf16.msra.mxu0 0
  %2000 = vmatpush.bf16.msra.mxu0 0
  %2001 = vmatpush.bf16.msra.mxu0 0
  %2002 = vmatpush.bf16.msra.mxu0 0
  %2003 = vmatpush.bf16.msra.mxu0 0
  %2004 = vmatpush.bf16.msra.mxu0 %v1996
  %2005 = vmatmul.bf16.gmra.mxu0 %v942
  %v2006 = vpop.f32.mrf.mxu0
  %v2007 = vadd.f32 0.0, %v2006
  %v2008 = vpop.f32.mrf.mxu0
  %v2009 = vadd.f32 0.0, %v2008
  %2010 = vmatmul.bf16.gmra.mxu0 %v945
  %v2011 = vpop.f32.mrf.mxu0
  %v2012 = vadd.f32 0.0, %v2011
  %v2013 = vpop.f32.mrf.mxu0
  %v2014 = vadd.f32 0.0, %v2013
  %2015 = vmatmul.bf16.gmra.mxu0 %v948
  %v2016 = vpop.f32.mrf.mxu0
  %v2017 = vadd.f32 0.0, %v2016
  %v2018 = vpop.f32.mrf.mxu0
  %v2019 = vadd.f32 0.0, %v2018
  %2020 = vmatmul.bf16.gmra.mxu0 %v951
  %v2021 = vpop.f32.mrf.mxu0
  %v2022 = vadd.f32 0.0, %v2021
  %v2023 = vpop.f32.mrf.mxu0
  %v2024 = vadd.f32 0.0, %v2023
  %2025 = vdwg.mxu0
  %v2026 = vld [vmem:[#allocation2 + $0x30] sm:$0xff]
  %v2027 = vld [vmem:[#allocation2 + $0xb0] sm:$0xff]
  %v2028 = vld [vmem:[#allocation2 + $0x130] sm:$0xff]
  %v2029 = vld [vmem:[#allocation2 + $0x1b0] sm:$0xff]
  %v2030 = vadd.f32 %v2026, %v2007
  %v2031 = vadd.f32 %v2027, %v2009
  %v2032 = vadd.f32 %v2028, %v2012
  %v2033 = vadd.f32 %v2029, %v2014
  %v2034 = vld [vmem:[#allocation2 + $0x248] sm:$0xff]
  %v2035 = vld [vmem:[#allocation2 + $0x2c8] sm:$0xff]
  %v2036 = vld [vmem:[#allocation2 + $0x348] sm:$0xff]
  %v2037 = vld [vmem:[#allocation2 + $0x3c8] sm:$0xff]
  %v2038 = vadd.f32 %v2034, %v2017
  %v2039 = vadd.f32 %v2035, %v2019
  %v2040 = vadd.f32 %v2036, %v2022
  %v2041 = vadd.f32 %v2037, %v2024
  %v2042 = vxor.u32 %v2030, 2147483648
  %v2043 = vmul.f32 %v2042, 1.442695
  %v2044 = vpow.pop %v2043
  %v2045 = vadd.f32 %v2044, 1.0
  %v2046 = vrcp.pop %v2045
  %v2047 = vmul.f32 %v2045, %v2046
  %v2048 = vsub.f32 1.0, %v2047
  %v2049 = vmul.f32 %v2046, %v2048
  %v2050 = vadd.f32 %v2046, %v2049
  %vm2051 = vweird.f32 %v2045
  %vm2052 = vweird.f32 %v2046
  %vm2053 = vmor %vm2051, %vm2052
  %v2054 = vsel %vm2053, %v2046, %v2050
  %v2055 = vand.u32 2147483647, %v2045
  %vm2056 = vcmp.eq.f32.partialorder %v2055, 8.507059e+37
  %v2057 = vand.u32 %v2045, 2147483648
  %v2058 = vor.u32 1.1754944e-38, %v2057
  %v2059 = vsel %vm2056, %v2058, %v2054
  %v2060 = vmul.f32 1.0, %v2059
  %v2061 = vxor.u32 %v2031, 2147483648
  %v2062 = vmul.f32 %v2061, 1.442695
  %v2063 = vpow.pop %v2062
  %v2064 = vadd.f32 %v2063, 1.0
  %v2065 = vrcp.pop %v2064
  %v2066 = vmul.f32 %v2064, %v2065
  %v2067 = vsub.f32 1.0, %v2066
  %v2068 = vmul.f32 %v2065, %v2067
  %v2069 = vadd.f32 %v2065, %v2068
  %vm2070 = vweird.f32 %v2064
  %vm2071 = vweird.f32 %v2065
  %vm2072 = vmor %vm2070, %vm2071
  %v2073 = vsel %vm2072, %v2065, %v2069
  %v2074 = vand.u32 2147483647, %v2064
  %vm2075 = vcmp.eq.f32.partialorder %v2074, 8.507059e+37
  %v2076 = vand.u32 %v2064, 2147483648
  %v2077 = vor.u32 1.1754944e-38, %v2076
  %v2078 = vsel %vm2075, %v2077, %v2073
  %v2079 = vmul.f32 1.0, %v2078
  %v2080 = vtanh.pop %v2032
  %v2081 = vxor.u32 %v2033, 2147483648
  %v2082 = vmul.f32 %v2081, 1.442695
  %v2083 = vpow.pop %v2082
  %v2084 = vadd.f32 %v2083, 1.0
  %v2085 = vrcp.pop %v2084
  %v2086 = vmul.f32 %v2084, %v2085
  %v2087 = vsub.f32 1.0, %v2086
  %v2088 = vmul.f32 %v2085, %v2087
  %v2089 = vadd.f32 %v2085, %v2088
  %vm2090 = vweird.f32 %v2084
  %vm2091 = vweird.f32 %v2085
  %vm2092 = vmor %vm2090, %vm2091
  %v2093 = vsel %vm2092, %v2085, %v2089
  %v2094 = vand.u32 2147483647, %v2084
  %vm2095 = vcmp.eq.f32.partialorder %v2094, 8.507059e+37
  %v2096 = vand.u32 %v2084, 2147483648
  %v2097 = vor.u32 1.1754944e-38, %v2096
  %v2098 = vsel %vm2095, %v2097, %v2093
  %v2099 = vmul.f32 1.0, %v2098
  %v2100 = vmul.f32 %v2079, %v1928
  %v2101 = vmul.f32 %v2060, %v2080
  %v2102 = vadd.f32 %v2100, %v2101
  %v2103 = vtanh.pop %v2102
  %v2104 = vmul.f32 %v2099, %v2103
  %v2105 = vxor.u32 %v2038, 2147483648
  %v2106 = vmul.f32 %v2105, 1.442695
  %v2107 = vpow.pop %v2106
  %v2108 = vadd.f32 %v2107, 1.0
  %v2109 = vrcp.pop %v2108
  %v2110 = vmul.f32 %v2108, %v2109
  %v2111 = vsub.f32 1.0, %v2110
  %v2112 = vmul.f32 %v2109, %v2111
  %v2113 = vadd.f32 %v2109, %v2112
  %vm2114 = vweird.f32 %v2108
  %vm2115 = vweird.f32 %v2109
  %vm2116 = vmor %vm2114, %vm2115
  %v2117 = vsel %vm2116, %v2109, %v2113
  %v2118 = vand.u32 2147483647, %v2108
  %vm2119 = vcmp.eq.f32.partialorder %v2118, 8.507059e+37
  %v2120 = vand.u32 %v2108, 2147483648
  %v2121 = vor.u32 1.1754944e-38, %v2120
  %v2122 = vsel %vm2119, %v2121, %v2117
  %v2123 = vmul.f32 1.0, %v2122
  %v2124 = vxor.u32 %v2039, 2147483648
  %v2125 = vmul.f32 %v2124, 1.442695
  %v2126 = vpow.pop %v2125
  %v2127 = vadd.f32 %v2126, 1.0
  %v2128 = vrcp.pop %v2127
  %v2129 = vmul.f32 %v2127, %v2128
  %v2130 = vsub.f32 1.0, %v2129
  %v2131 = vmul.f32 %v2128, %v2130
  %v2132 = vadd.f32 %v2128, %v2131
  %vm2133 = vweird.f32 %v2127
  %vm2134 = vweird.f32 %v2128
  %vm2135 = vmor %vm2133, %vm2134
  %v2136 = vsel %vm2135, %v2128, %v2132
  %v2137 = vand.u32 2147483647, %v2127
  %vm2138 = vcmp.eq.f32.partialorder %v2137, 8.507059e+37
  %v2139 = vand.u32 %v2127, 2147483648
  %v2140 = vor.u32 1.1754944e-38, %v2139
  %v2141 = vsel %vm2138, %v2140, %v2136
  %v2142 = vmul.f32 1.0, %v2141
  %v2143 = vtanh.pop %v2040
  %v2144 = vxor.u32 %v2041, 2147483648
  %v2145 = vmul.f32 %v2144, 1.442695
  %v2146 = vpow.pop %v2145
  %v2147 = vadd.f32 %v2146, 1.0
  %v2148 = vrcp.pop %v2147
  %v2149 = vmul.f32 %v2147, %v2148
  %v2150 = vsub.f32 1.0, %v2149
  %v2151 = vmul.f32 %v2148, %v2150
  %v2152 = vadd.f32 %v2148, %v2151
  %vm2153 = vweird.f32 %v2147
  %vm2154 = vweird.f32 %v2148
  %vm2155 = vmor %vm2153, %vm2154
  %v2156 = vsel %vm2155, %v2148, %v2152
  %v2157 = vand.u32 2147483647, %v2147
  %vm2158 = vcmp.eq.f32.partialorder %v2157, 8.507059e+37
  %v2159 = vand.u32 %v2147, 2147483648
  %v2160 = vor.u32 1.1754944e-38, %v2159
  %v2161 = vsel %vm2158, %v2160, %v2156
  %v2162 = vmul.f32 1.0, %v2161
  %v2163 = vmul.f32 %v2142, %v1991
  %v2164 = vmul.f32 %v2123, %v2143
  %v2165 = vadd.f32 %v2163, %v2164
  %v2166 = vtanh.pop %v2165
  %v2167 = vmul.f32 %v2162, %v2166
  %2168 = vst [vmem:[#allocation3 + $0x30] sm:$0xff] %v2104
  %2169 = vst [vmem:[#allocation3 + $0xc8] sm:$0xff] %v2167
  %v2170 = vpack.c.bf16 %v2167, %v2104
  %2171 = vmatpush.bf16.msra.mxu0 0
  %2172 = vmatpush.bf16.msra.mxu0 0
  %2173 = vmatpush.bf16.msra.mxu0 0
  %2174 = vmatpush.bf16.msra.mxu0 0
  %2175 = vmatpush.bf16.msra.mxu0 0
  %2176 = vmatpush.bf16.msra.mxu0 0
  %2177 = vmatpush.bf16.msra.mxu0 0
  %2178 = vmatpush.bf16.msra.mxu0 %v2170
  %2179 = vmatmul.bf16.gmra.mxu0 %v942
  %v2180 = vpop.f32.mrf.mxu0
  %v2181 = vadd.f32 0.0, %v2180
  %v2182 = vpop.f32.mrf.mxu0
  %v2183 = vadd.f32 0.0, %v2182
  %2184 = vmatmul.bf16.gmra.mxu0 %v945
  %v2185 = vpop.f32.mrf.mxu0
  %v2186 = vadd.f32 0.0, %v2185
  %v2187 = vpop.f32.mrf.mxu0
  %v2188 = vadd.f32 0.0, %v2187
  %2189 = vmatmul.bf16.gmra.mxu0 %v948
  %v2190 = vpop.f32.mrf.mxu0
  %v2191 = vadd.f32 0.0, %v2190
  %v2192 = vpop.f32.mrf.mxu0
  %v2193 = vadd.f32 0.0, %v2192
  %2194 = vmatmul.bf16.gmra.mxu0 %v951
  %v2195 = vpop.f32.mrf.mxu0
  %v2196 = vadd.f32 0.0, %v2195
  %v2197 = vpop.f32.mrf.mxu0
  %v2198 = vadd.f32 0.0, %v2197
  %2199 = vdwg.mxu0
  %v2200 = vld [vmem:[#allocation2 + $0x38] sm:$0xff]
  %v2201 = vld [vmem:[#allocation2 + $0xb8] sm:$0xff]
  %v2202 = vld [vmem:[#allocation2 + $0x138] sm:$0xff]
  %v2203 = vld [vmem:[#allocation2 + $0x1b8] sm:$0xff]
  %v2204 = vadd.f32 %v2200, %v2181
  %v2205 = vadd.f32 %v2201, %v2183
  %v2206 = vadd.f32 %v2202, %v2186
  %v2207 = vadd.f32 %v2203, %v2188
  %v2208 = vld [vmem:[#allocation2 + $0x240] sm:$0xff]
  %v2209 = vld [vmem:[#allocation2 + $0x2c0] sm:$0xff]
  %v2210 = vld [vmem:[#allocation2 + $0x340] sm:$0xff]
  %v2211 = vld [vmem:[#allocation2 + $0x3c0] sm:$0xff]
  %v2212 = vadd.f32 %v2208, %v2191
  %v2213 = vadd.f32 %v2209, %v2193
  %v2214 = vadd.f32 %v2210, %v2196
  %v2215 = vadd.f32 %v2211, %v2198
  %v2216 = vxor.u32 %v2204, 2147483648
  %v2217 = vmul.f32 %v2216, 1.442695
  %v2218 = vpow.pop %v2217
  %v2219 = vadd.f32 %v2218, 1.0
  %v2220 = vrcp.pop %v2219
  %v2221 = vmul.f32 %v2219, %v2220
  %v2222 = vsub.f32 1.0, %v2221
  %v2223 = vmul.f32 %v2220, %v2222
  %v2224 = vadd.f32 %v2220, %v2223
  %vm2225 = vweird.f32 %v2219
  %vm2226 = vweird.f32 %v2220
  %vm2227 = vmor %vm2225, %vm2226
  %v2228 = vsel %vm2227, %v2220, %v2224
  %v2229 = vand.u32 2147483647, %v2219
  %vm2230 = vcmp.eq.f32.partialorder %v2229, 8.507059e+37
  %v2231 = vand.u32 %v2219, 2147483648
  %v2232 = vor.u32 1.1754944e-38, %v2231
  %v2233 = vsel %vm2230, %v2232, %v2228
  %v2234 = vmul.f32 1.0, %v2233
  %v2235 = vxor.u32 %v2205, 2147483648
  %v2236 = vmul.f32 %v2235, 1.442695
  %v2237 = vpow.pop %v2236
  %v2238 = vadd.f32 %v2237, 1.0
  %v2239 = vrcp.pop %v2238
  %v2240 = vmul.f32 %v2238, %v2239
  %v2241 = vsub.f32 1.0, %v2240
  %v2242 = vmul.f32 %v2239, %v2241
  %v2243 = vadd.f32 %v2239, %v2242
  %vm2244 = vweird.f32 %v2238
  %vm2245 = vweird.f32 %v2239
  %vm2246 = vmor %vm2244, %vm2245
  %v2247 = vsel %vm2246, %v2239, %v2243
  %v2248 = vand.u32 2147483647, %v2238
  %vm2249 = vcmp.eq.f32.partialorder %v2248, 8.507059e+37
  %v2250 = vand.u32 %v2238, 2147483648
  %v2251 = vor.u32 1.1754944e-38, %v2250
  %v2252 = vsel %vm2249, %v2251, %v2247
  %v2253 = vmul.f32 1.0, %v2252
  %v2254 = vtanh.pop %v2206
  %v2255 = vxor.u32 %v2207, 2147483648
  %v2256 = vmul.f32 %v2255, 1.442695
  %v2257 = vpow.pop %v2256
  %v2258 = vadd.f32 %v2257, 1.0
  %v2259 = vrcp.pop %v2258
  %v2260 = vmul.f32 %v2258, %v2259
  %v2261 = vsub.f32 1.0, %v2260
  %v2262 = vmul.f32 %v2259, %v2261
  %v2263 = vadd.f32 %v2259, %v2262
  %vm2264 = vweird.f32 %v2258
  %vm2265 = vweird.f32 %v2259
  %vm2266 = vmor %vm2264, %vm2265
  %v2267 = vsel %vm2266, %v2259, %v2263
  %v2268 = vand.u32 2147483647, %v2258
  %vm2269 = vcmp.eq.f32.partialorder %v2268, 8.507059e+37
  %v2270 = vand.u32 %v2258, 2147483648
  %v2271 = vor.u32 1.1754944e-38, %v2270
  %v2272 = vsel %vm2269, %v2271, %v2267
  %v2273 = vmul.f32 1.0, %v2272
  %v2274 = vmul.f32 %v2253, %v2102
  %v2275 = vmul.f32 %v2234, %v2254
  %v2276 = vadd.f32 %v2274, %v2275
  %v2277 = vtanh.pop %v2276
  %v2278 = vmul.f32 %v2273, %v2277
  %v2279 = vxor.u32 %v2212, 2147483648
  %v2280 = vmul.f32 %v2279, 1.442695
  %v2281 = vpow.pop %v2280
  %v2282 = vadd.f32 %v2281, 1.0
  %v2283 = vrcp.pop %v2282
  %v2284 = vmul.f32 %v2282, %v2283
  %v2285 = vsub.f32 1.0, %v2284
  %v2286 = vmul.f32 %v2283, %v2285
  %v2287 = vadd.f32 %v2283, %v2286
  %vm2288 = vweird.f32 %v2282
  %vm2289 = vweird.f32 %v2283
  %vm2290 = vmor %vm2288, %vm2289
  %v2291 = vsel %vm2290, %v2283, %v2287
  %v2292 = vand.u32 2147483647, %v2282
  %vm2293 = vcmp.eq.f32.partialorder %v2292, 8.507059e+37
  %v2294 = vand.u32 %v2282, 2147483648
  %v2295 = vor.u32 1.1754944e-38, %v2294
  %v2296 = vsel %vm2293, %v2295, %v2291
  %v2297 = vmul.f32 1.0, %v2296
  %v2298 = vxor.u32 %v2213, 2147483648
  %v2299 = vmul.f32 %v2298, 1.442695
  %v2300 = vpow.pop %v2299
  %v2301 = vadd.f32 %v2300, 1.0
  %v2302 = vrcp.pop %v2301
  %v2303 = vmul.f32 %v2301, %v2302
  %v2304 = vsub.f32 1.0, %v2303
  %v2305 = vmul.f32 %v2302, %v2304
  %v2306 = vadd.f32 %v2302, %v2305
  %vm2307 = vweird.f32 %v2301
  %vm2308 = vweird.f32 %v2302
  %vm2309 = vmor %vm2307, %vm2308
  %v2310 = vsel %vm2309, %v2302, %v2306
  %v2311 = vand.u32 2147483647, %v2301
  %vm2312 = vcmp.eq.f32.partialorder %v2311, 8.507059e+37
  %v2313 = vand.u32 %v2301, 2147483648
  %v2314 = vor.u32 1.1754944e-38, %v2313
  %v2315 = vsel %vm2312, %v2314, %v2310
  %v2316 = vmul.f32 1.0, %v2315
  %v2317 = vtanh.pop %v2214
  %v2318 = vxor.u32 %v2215, 2147483648
  %v2319 = vmul.f32 %v2318, 1.442695
  %v2320 = vpow.pop %v2319
  %v2321 = vadd.f32 %v2320, 1.0
  %v2322 = vrcp.pop %v2321
  %v2323 = vmul.f32 %v2321, %v2322
  %v2324 = vsub.f32 1.0, %v2323
  %v2325 = vmul.f32 %v2322, %v2324
  %v2326 = vadd.f32 %v2322, %v2325
  %vm2327 = vweird.f32 %v2321
  %vm2328 = vweird.f32 %v2322
  %vm2329 = vmor %vm2327, %vm2328
  %v2330 = vsel %vm2329, %v2322, %v2326
  %v2331 = vand.u32 2147483647, %v2321
  %vm2332 = vcmp.eq.f32.partialorder %v2331, 8.507059e+37
  %v2333 = vand.u32 %v2321, 2147483648
  %v2334 = vor.u32 1.1754944e-38, %v2333
  %v2335 = vsel %vm2332, %v2334, %v2330
  %v2336 = vmul.f32 1.0, %v2335
  %v2337 = vmul.f32 %v2316, %v2165
  %v2338 = vmul.f32 %v2297, %v2317
  %v2339 = vadd.f32 %v2337, %v2338
  %v2340 = vtanh.pop %v2339
  %v2341 = vmul.f32 %v2336, %v2340
  %2342 = vst [vmem:[#allocation3 + $0x38] sm:$0xff] %v2278
  %2343 = vst [vmem:[#allocation3 + $0xc0] sm:$0xff] %v2341
  %v2344 = vpack.c.bf16 %v2341, %v2278
  %2345 = vmatpush.bf16.msra.mxu0 0
  %2346 = vmatpush.bf16.msra.mxu0 0
  %2347 = vmatpush.bf16.msra.mxu0 0
  %2348 = vmatpush.bf16.msra.mxu0 0
  %2349 = vmatpush.bf16.msra.mxu0 0
  %2350 = vmatpush.bf16.msra.mxu0 0
  %2351 = vmatpush.bf16.msra.mxu0 0
  %2352 = vmatpush.bf16.msra.mxu0 %v2344
  %2353 = vmatmul.bf16.gmra.mxu0 %v942
  %v2354 = vpop.f32.mrf.mxu0
  %v2355 = vadd.f32 0.0, %v2354
  %v2356 = vpop.f32.mrf.mxu0
  %v2357 = vadd.f32 0.0, %v2356
  %2358 = vmatmul.bf16.gmra.mxu0 %v945
  %v2359 = vpop.f32.mrf.mxu0
  %v2360 = vadd.f32 0.0, %v2359
  %v2361 = vpop.f32.mrf.mxu0
  %v2362 = vadd.f32 0.0, %v2361
  %2363 = vmatmul.bf16.gmra.mxu0 %v948
  %v2364 = vpop.f32.mrf.mxu0
  %v2365 = vadd.f32 0.0, %v2364
  %v2366 = vpop.f32.mrf.mxu0
  %v2367 = vadd.f32 0.0, %v2366
  %2368 = vmatmul.bf16.gmra.mxu0 %v951
  %v2369 = vpop.f32.mrf.mxu0
  %v2370 = vadd.f32 0.0, %v2369
  %v2371 = vpop.f32.mrf.mxu0
  %v2372 = vadd.f32 0.0, %v2371
  %2373 = vdwg.mxu0
  %v2374 = vld [vmem:[#allocation2 + $0x40] sm:$0xff]
  %v2375 = vld [vmem:[#allocation2 + $0xc0] sm:$0xff]
  %v2376 = vld [vmem:[#allocation2 + $0x140] sm:$0xff]
  %v2377 = vld [vmem:[#allocation2 + $0x1c0] sm:$0xff]
  %v2378 = vadd.f32 %v2374, %v2355
  %v2379 = vadd.f32 %v2375, %v2357
  %v2380 = vadd.f32 %v2376, %v2360
  %v2381 = vadd.f32 %v2377, %v2362
  %v2382 = vld [vmem:[#allocation2 + $0x238] sm:$0xff]
  %v2383 = vld [vmem:[#allocation2 + $0x2b8] sm:$0xff]
  %v2384 = vld [vmem:[#allocation2 + $0x338] sm:$0xff]
  %v2385 = vld [vmem:[#allocation2 + $0x3b8] sm:$0xff]
  %v2386 = vadd.f32 %v2382, %v2365
  %v2387 = vadd.f32 %v2383, %v2367
  %v2388 = vadd.f32 %v2384, %v2370
  %v2389 = vadd.f32 %v2385, %v2372
  %v2390 = vxor.u32 %v2378, 2147483648
  %v2391 = vmul.f32 %v2390, 1.442695
  %v2392 = vpow.pop %v2391
  %v2393 = vadd.f32 %v2392, 1.0
  %v2394 = vrcp.pop %v2393
  %v2395 = vmul.f32 %v2393, %v2394
  %v2396 = vsub.f32 1.0, %v2395
  %v2397 = vmul.f32 %v2394, %v2396
  %v2398 = vadd.f32 %v2394, %v2397
  %vm2399 = vweird.f32 %v2393
  %vm2400 = vweird.f32 %v2394
  %vm2401 = vmor %vm2399, %vm2400
  %v2402 = vsel %vm2401, %v2394, %v2398
  %v2403 = vand.u32 2147483647, %v2393
  %vm2404 = vcmp.eq.f32.partialorder %v2403, 8.507059e+37
  %v2405 = vand.u32 %v2393, 2147483648
  %v2406 = vor.u32 1.1754944e-38, %v2405
  %v2407 = vsel %vm2404, %v2406, %v2402
  %v2408 = vmul.f32 1.0, %v2407
  %v2409 = vxor.u32 %v2379, 2147483648
  %v2410 = vmul.f32 %v2409, 1.442695
  %v2411 = vpow.pop %v2410
  %v2412 = vadd.f32 %v2411, 1.0
  %v2413 = vrcp.pop %v2412
  %v2414 = vmul.f32 %v2412, %v2413
  %v2415 = vsub.f32 1.0, %v2414
  %v2416 = vmul.f32 %v2413, %v2415
  %v2417 = vadd.f32 %v2413, %v2416
  %vm2418 = vweird.f32 %v2412
  %vm2419 = vweird.f32 %v2413
  %vm2420 = vmor %vm2418, %vm2419
  %v2421 = vsel %vm2420, %v2413, %v2417
  %v2422 = vand.u32 2147483647, %v2412
  %vm2423 = vcmp.eq.f32.partialorder %v2422, 8.507059e+37
  %v2424 = vand.u32 %v2412, 2147483648
  %v2425 = vor.u32 1.1754944e-38, %v2424
  %v2426 = vsel %vm2423, %v2425, %v2421
  %v2427 = vmul.f32 1.0, %v2426
  %v2428 = vtanh.pop %v2380
  %v2429 = vxor.u32 %v2381, 2147483648
  %v2430 = vmul.f32 %v2429, 1.442695
  %v2431 = vpow.pop %v2430
  %v2432 = vadd.f32 %v2431, 1.0
  %v2433 = vrcp.pop %v2432
  %v2434 = vmul.f32 %v2432, %v2433
  %v2435 = vsub.f32 1.0, %v2434
  %v2436 = vmul.f32 %v2433, %v2435
  %v2437 = vadd.f32 %v2433, %v2436
  %vm2438 = vweird.f32 %v2432
  %vm2439 = vweird.f32 %v2433
  %vm2440 = vmor %vm2438, %vm2439
  %v2441 = vsel %vm2440, %v2433, %v2437
  %v2442 = vand.u32 2147483647, %v2432
  %vm2443 = vcmp.eq.f32.partialorder %v2442, 8.507059e+37
  %v2444 = vand.u32 %v2432, 2147483648
  %v2445 = vor.u32 1.1754944e-38, %v2444
  %v2446 = vsel %vm2443, %v2445, %v2441
  %v2447 = vmul.f32 1.0, %v2446
  %v2448 = vmul.f32 %v2427, %v2276
  %v2449 = vmul.f32 %v2408, %v2428
  %v2450 = vadd.f32 %v2448, %v2449
  %v2451 = vtanh.pop %v2450
  %v2452 = vmul.f32 %v2447, %v2451
  %v2453 = vxor.u32 %v2386, 2147483648
  %v2454 = vmul.f32 %v2453, 1.442695
  %v2455 = vpow.pop %v2454
  %v2456 = vadd.f32 %v2455, 1.0
  %v2457 = vrcp.pop %v2456
  %v2458 = vmul.f32 %v2456, %v2457
  %v2459 = vsub.f32 1.0, %v2458
  %v2460 = vmul.f32 %v2457, %v2459
  %v2461 = vadd.f32 %v2457, %v2460
  %vm2462 = vweird.f32 %v2456
  %vm2463 = vweird.f32 %v2457
  %vm2464 = vmor %vm2462, %vm2463
  %v2465 = vsel %vm2464, %v2457, %v2461
  %v2466 = vand.u32 2147483647, %v2456
  %vm2467 = vcmp.eq.f32.partialorder %v2466, 8.507059e+37
  %v2468 = vand.u32 %v2456, 2147483648
  %v2469 = vor.u32 1.1754944e-38, %v2468
  %v2470 = vsel %vm2467, %v2469, %v2465
  %v2471 = vmul.f32 1.0, %v2470
  %v2472 = vxor.u32 %v2387, 2147483648
  %v2473 = vmul.f32 %v2472, 1.442695
  %v2474 = vpow.pop %v2473
  %v2475 = vadd.f32 %v2474, 1.0
  %v2476 = vrcp.pop %v2475
  %v2477 = vmul.f32 %v2475, %v2476
  %v2478 = vsub.f32 1.0, %v2477
  %v2479 = vmul.f32 %v2476, %v2478
  %v2480 = vadd.f32 %v2476, %v2479
  %vm2481 = vweird.f32 %v2475
  %vm2482 = vweird.f32 %v2476
  %vm2483 = vmor %vm2481, %vm2482
  %v2484 = vsel %vm2483, %v2476, %v2480
  %v2485 = vand.u32 2147483647, %v2475
  %vm2486 = vcmp.eq.f32.partialorder %v2485, 8.507059e+37
  %v2487 = vand.u32 %v2475, 2147483648
  %v2488 = vor.u32 1.1754944e-38, %v2487
  %v2489 = vsel %vm2486, %v2488, %v2484
  %v2490 = vmul.f32 1.0, %v2489
  %v2491 = vtanh.pop %v2388
  %v2492 = vxor.u32 %v2389, 2147483648
  %v2493 = vmul.f32 %v2492, 1.442695
  %v2494 = vpow.pop %v2493
  %v2495 = vadd.f32 %v2494, 1.0
  %v2496 = vrcp.pop %v2495
  %v2497 = vmul.f32 %v2495, %v2496
  %v2498 = vsub.f32 1.0, %v2497
  %v2499 = vmul.f32 %v2496, %v2498
  %v2500 = vadd.f32 %v2496, %v2499
  %vm2501 = vweird.f32 %v2495
  %vm2502 = vweird.f32 %v2496
  %vm2503 = vmor %vm2501, %vm2502
  %v2504 = vsel %vm2503, %v2496, %v2500
  %v2505 = vand.u32 2147483647, %v2495
  %vm2506 = vcmp.eq.f32.partialorder %v2505, 8.507059e+37
  %v2507 = vand.u32 %v2495, 2147483648
  %v2508 = vor.u32 1.1754944e-38, %v2507
  %v2509 = vsel %vm2506, %v2508, %v2504
  %v2510 = vmul.f32 1.0, %v2509
  %v2511 = vmul.f32 %v2490, %v2339
  %v2512 = vmul.f32 %v2471, %v2491
  %v2513 = vadd.f32 %v2511, %v2512
  %v2514 = vtanh.pop %v2513
  %v2515 = vmul.f32 %v2510, %v2514
  %2516 = vst [vmem:[#allocation3 + $0x40] sm:$0xff] %v2452
  %2517 = vst [vmem:[#allocation3 + $0xb8] sm:$0xff] %v2515
  %v2518 = vpack.c.bf16 %v2515, %v2452
  %2519 = vmatpush.bf16.msra.mxu0 0
  %2520 = vmatpush.bf16.msra.mxu0 0
  %2521 = vmatpush.bf16.msra.mxu0 0
  %2522 = vmatpush.bf16.msra.mxu0 0
  %2523 = vmatpush.bf16.msra.mxu0 0
  %2524 = vmatpush.bf16.msra.mxu0 0
  %2525 = vmatpush.bf16.msra.mxu0 0
  %2526 = vmatpush.bf16.msra.mxu0 %v2518
  %2527 = vmatmul.bf16.gmra.mxu0 %v942
  %v2528 = vpop.f32.mrf.mxu0
  %v2529 = vadd.f32 0.0, %v2528
  %v2530 = vpop.f32.mrf.mxu0
  %v2531 = vadd.f32 0.0, %v2530
  %2532 = vmatmul.bf16.gmra.mxu0 %v945
  %v2533 = vpop.f32.mrf.mxu0
  %v2534 = vadd.f32 0.0, %v2533
  %v2535 = vpop.f32.mrf.mxu0
  %v2536 = vadd.f32 0.0, %v2535
  %2537 = vmatmul.bf16.gmra.mxu0 %v948
  %v2538 = vpop.f32.mrf.mxu0
  %v2539 = vadd.f32 0.0, %v2538
  %v2540 = vpop.f32.mrf.mxu0
  %v2541 = vadd.f32 0.0, %v2540
  %2542 = vmatmul.bf16.gmra.mxu0 %v951
  %v2543 = vpop.f32.mrf.mxu0
  %v2544 = vadd.f32 0.0, %v2543
  %v2545 = vpop.f32.mrf.mxu0
  %v2546 = vadd.f32 0.0, %v2545
  %2547 = vdwg.mxu0
  %v2548 = vld [vmem:[#allocation2 + $0x48] sm:$0xff]
  %v2549 = vld [vmem:[#allocation2 + $0xc8] sm:$0xff]
  %v2550 = vld [vmem:[#allocation2 + $0x148] sm:$0xff]
  %v2551 = vld [vmem:[#allocation2 + $0x1c8] sm:$0xff]
  %v2552 = vadd.f32 %v2548, %v2529
  %v2553 = vadd.f32 %v2549, %v2531
  %v2554 = vadd.f32 %v2550, %v2534
  %v2555 = vadd.f32 %v2551, %v2536
  %v2556 = vld [vmem:[#allocation2 + $0x230] sm:$0xff]
  %v2557 = vld [vmem:[#allocation2 + $0x2b0] sm:$0xff]
  %v2558 = vld [vmem:[#allocation2 + $0x330] sm:$0xff]
  %v2559 = vld [vmem:[#allocation2 + $0x3b0] sm:$0xff]
  %v2560 = vadd.f32 %v2556, %v2539
  %v2561 = vadd.f32 %v2557, %v2541
  %v2562 = vadd.f32 %v2558, %v2544
  %v2563 = vadd.f32 %v2559, %v2546
  %v2564 = vxor.u32 %v2552, 2147483648
  %v2565 = vmul.f32 %v2564, 1.442695
  %v2566 = vpow.pop %v2565
  %v2567 = vadd.f32 %v2566, 1.0
  %v2568 = vrcp.pop %v2567
  %v2569 = vmul.f32 %v2567, %v2568
  %v2570 = vsub.f32 1.0, %v2569
  %v2571 = vmul.f32 %v2568, %v2570
  %v2572 = vadd.f32 %v2568, %v2571
  %vm2573 = vweird.f32 %v2567
  %vm2574 = vweird.f32 %v2568
  %vm2575 = vmor %vm2573, %vm2574
  %v2576 = vsel %vm2575, %v2568, %v2572
  %v2577 = vand.u32 2147483647, %v2567
  %vm2578 = vcmp.eq.f32.partialorder %v2577, 8.507059e+37
  %v2579 = vand.u32 %v2567, 2147483648
  %v2580 = vor.u32 1.1754944e-38, %v2579
  %v2581 = vsel %vm2578, %v2580, %v2576
  %v2582 = vmul.f32 1.0, %v2581
  %v2583 = vxor.u32 %v2553, 2147483648
  %v2584 = vmul.f32 %v2583, 1.442695
  %v2585 = vpow.pop %v2584
  %v2586 = vadd.f32 %v2585, 1.0
  %v2587 = vrcp.pop %v2586
  %v2588 = vmul.f32 %v2586, %v2587
  %v2589 = vsub.f32 1.0, %v2588
  %v2590 = vmul.f32 %v2587, %v2589
  %v2591 = vadd.f32 %v2587, %v2590
  %vm2592 = vweird.f32 %v2586
  %vm2593 = vweird.f32 %v2587
  %vm2594 = vmor %vm2592, %vm2593
  %v2595 = vsel %vm2594, %v2587, %v2591
  %v2596 = vand.u32 2147483647, %v2586
  %vm2597 = vcmp.eq.f32.partialorder %v2596, 8.507059e+37
  %v2598 = vand.u32 %v2586, 2147483648
  %v2599 = vor.u32 1.1754944e-38, %v2598
  %v2600 = vsel %vm2597, %v2599, %v2595
  %v2601 = vmul.f32 1.0, %v2600
  %v2602 = vtanh.pop %v2554
  %v2603 = vxor.u32 %v2555, 2147483648
  %v2604 = vmul.f32 %v2603, 1.442695
  %v2605 = vpow.pop %v2604
  %v2606 = vadd.f32 %v2605, 1.0
  %v2607 = vrcp.pop %v2606
  %v2608 = vmul.f32 %v2606, %v2607
  %v2609 = vsub.f32 1.0, %v2608
  %v2610 = vmul.f32 %v2607, %v2609
  %v2611 = vadd.f32 %v2607, %v2610
  %vm2612 = vweird.f32 %v2606
  %vm2613 = vweird.f32 %v2607
  %vm2614 = vmor %vm2612, %vm2613
  %v2615 = vsel %vm2614, %v2607, %v2611
  %v2616 = vand.u32 2147483647, %v2606
  %vm2617 = vcmp.eq.f32.partialorder %v2616, 8.507059e+37
  %v2618 = vand.u32 %v2606, 2147483648
  %v2619 = vor.u32 1.1754944e-38, %v2618
  %v2620 = vsel %vm2617, %v2619, %v2615
  %v2621 = vmul.f32 1.0, %v2620
  %v2622 = vmul.f32 %v2601, %v2450
  %v2623 = vmul.f32 %v2582, %v2602
  %v2624 = vadd.f32 %v2622, %v2623
  %v2625 = vtanh.pop %v2624
  %v2626 = vmul.f32 %v2621, %v2625
  %v2627 = vxor.u32 %v2560, 2147483648
  %v2628 = vmul.f32 %v2627, 1.442695
  %v2629 = vpow.pop %v2628
  %v2630 = vadd.f32 %v2629, 1.0
  %v2631 = vrcp.pop %v2630
  %v2632 = vmul.f32 %v2630, %v2631
  %v2633 = vsub.f32 1.0, %v2632
  %v2634 = vmul.f32 %v2631, %v2633
  %v2635 = vadd.f32 %v2631, %v2634
  %vm2636 = vweird.f32 %v2630
  %vm2637 = vweird.f32 %v2631
  %vm2638 = vmor %vm2636, %vm2637
  %v2639 = vsel %vm2638, %v2631, %v2635
  %v2640 = vand.u32 2147483647, %v2630
  %vm2641 = vcmp.eq.f32.partialorder %v2640, 8.507059e+37
  %v2642 = vand.u32 %v2630, 2147483648
  %v2643 = vor.u32 1.1754944e-38, %v2642
  %v2644 = vsel %vm2641, %v2643, %v2639
  %v2645 = vmul.f32 1.0, %v2644
  %v2646 = vxor.u32 %v2561, 2147483648
  %v2647 = vmul.f32 %v2646, 1.442695
  %v2648 = vpow.pop %v2647
  %v2649 = vadd.f32 %v2648, 1.0
  %v2650 = vrcp.pop %v2649
  %v2651 = vmul.f32 %v2649, %v2650
  %v2652 = vsub.f32 1.0, %v2651
  %v2653 = vmul.f32 %v2650, %v2652
  %v2654 = vadd.f32 %v2650, %v2653
  %vm2655 = vweird.f32 %v2649
  %vm2656 = vweird.f32 %v2650
  %vm2657 = vmor %vm2655, %vm2656
  %v2658 = vsel %vm2657, %v2650, %v2654
  %v2659 = vand.u32 2147483647, %v2649
  %vm2660 = vcmp.eq.f32.partialorder %v2659, 8.507059e+37
  %v2661 = vand.u32 %v2649, 2147483648
  %v2662 = vor.u32 1.1754944e-38, %v2661
  %v2663 = vsel %vm2660, %v2662, %v2658
  %v2664 = vmul.f32 1.0, %v2663
  %v2665 = vtanh.pop %v2562
  %v2666 = vxor.u32 %v2563, 2147483648
  %v2667 = vmul.f32 %v2666, 1.442695
  %v2668 = vpow.pop %v2667
  %v2669 = vadd.f32 %v2668, 1.0
  %v2670 = vrcp.pop %v2669
  %v2671 = vmul.f32 %v2669, %v2670
  %v2672 = vsub.f32 1.0, %v2671
  %v2673 = vmul.f32 %v2670, %v2672
  %v2674 = vadd.f32 %v2670, %v2673
  %vm2675 = vweird.f32 %v2669
  %vm2676 = vweird.f32 %v2670
  %vm2677 = vmor %vm2675, %vm2676
  %v2678 = vsel %vm2677, %v2670, %v2674
  %v2679 = vand.u32 2147483647, %v2669
  %vm2680 = vcmp.eq.f32.partialorder %v2679, 8.507059e+37
  %v2681 = vand.u32 %v2669, 2147483648
  %v2682 = vor.u32 1.1754944e-38, %v2681
  %v2683 = vsel %vm2680, %v2682, %v2678
  %v2684 = vmul.f32 1.0, %v2683
  %v2685 = vmul.f32 %v2664, %v2513
  %v2686 = vmul.f32 %v2645, %v2665
  %v2687 = vadd.f32 %v2685, %v2686
  %v2688 = vtanh.pop %v2687
  %v2689 = vmul.f32 %v2684, %v2688
  %2690 = vst [vmem:[#allocation3 + $0x48] sm:$0xff] %v2626
  %2691 = vst [vmem:[#allocation3 + $0xb0] sm:$0xff] %v2689
  %v2692 = vpack.c.bf16 %v2689, %v2626
  %2693 = vmatpush.bf16.msra.mxu0 0
  %2694 = vmatpush.bf16.msra.mxu0 0
  %2695 = vmatpush.bf16.msra.mxu0 0
  %2696 = vmatpush.bf16.msra.mxu0 0
  %2697 = vmatpush.bf16.msra.mxu0 0
  %2698 = vmatpush.bf16.msra.mxu0 0
  %2699 = vmatpush.bf16.msra.mxu0 0
  %2700 = vmatpush.bf16.msra.mxu0 %v2692
  %2701 = vmatmul.bf16.gmra.mxu0 %v942
  %v2702 = vpop.f32.mrf.mxu0
  %v2703 = vadd.f32 0.0, %v2702
  %v2704 = vpop.f32.mrf.mxu0
  %v2705 = vadd.f32 0.0, %v2704
  %2706 = vmatmul.bf16.gmra.mxu0 %v945
  %v2707 = vpop.f32.mrf.mxu0
  %v2708 = vadd.f32 0.0, %v2707
  %v2709 = vpop.f32.mrf.mxu0
  %v2710 = vadd.f32 0.0, %v2709
  %2711 = vmatmul.bf16.gmra.mxu0 %v948
  %v2712 = vpop.f32.mrf.mxu0
  %v2713 = vadd.f32 0.0, %v2712
  %v2714 = vpop.f32.mrf.mxu0
  %v2715 = vadd.f32 0.0, %v2714
  %2716 = vmatmul.bf16.gmra.mxu0 %v951
  %v2717 = vpop.f32.mrf.mxu0
  %v2718 = vadd.f32 0.0, %v2717
  %v2719 = vpop.f32.mrf.mxu0
  %v2720 = vadd.f32 0.0, %v2719
  %2721 = vdwg.mxu0
  %v2722 = vld [vmem:[#allocation2 + $0x50] sm:$0xff]
  %v2723 = vld [vmem:[#allocation2 + $0xd0] sm:$0xff]
  %v2724 = vld [vmem:[#allocation2 + $0x150] sm:$0xff]
  %v2725 = vld [vmem:[#allocation2 + $0x1d0] sm:$0xff]
  %v2726 = vadd.f32 %v2722, %v2703
  %v2727 = vadd.f32 %v2723, %v2705
  %v2728 = vadd.f32 %v2724, %v2708
  %v2729 = vadd.f32 %v2725, %v2710
  %v2730 = vld [vmem:[#allocation2 + $0x228] sm:$0xff]
  %v2731 = vld [vmem:[#allocation2 + $0x2a8] sm:$0xff]
  %v2732 = vld [vmem:[#allocation2 + $0x328] sm:$0xff]
  %v2733 = vld [vmem:[#allocation2 + $0x3a8] sm:$0xff]
  %v2734 = vadd.f32 %v2730, %v2713
  %v2735 = vadd.f32 %v2731, %v2715
  %v2736 = vadd.f32 %v2732, %v2718
  %v2737 = vadd.f32 %v2733, %v2720
  %v2738 = vxor.u32 %v2726, 2147483648
  %v2739 = vmul.f32 %v2738, 1.442695
  %v2740 = vpow.pop %v2739
  %v2741 = vadd.f32 %v2740, 1.0
  %v2742 = vrcp.pop %v2741
  %v2743 = vmul.f32 %v2741, %v2742
  %v2744 = vsub.f32 1.0, %v2743
  %v2745 = vmul.f32 %v2742, %v2744
  %v2746 = vadd.f32 %v2742, %v2745
  %vm2747 = vweird.f32 %v2741
  %vm2748 = vweird.f32 %v2742
  %vm2749 = vmor %vm2747, %vm2748
  %v2750 = vsel %vm2749, %v2742, %v2746
  %v2751 = vand.u32 2147483647, %v2741
  %vm2752 = vcmp.eq.f32.partialorder %v2751, 8.507059e+37
  %v2753 = vand.u32 %v2741, 2147483648
  %v2754 = vor.u32 1.1754944e-38, %v2753
  %v2755 = vsel %vm2752, %v2754, %v2750
  %v2756 = vmul.f32 1.0, %v2755
  %v2757 = vxor.u32 %v2727, 2147483648
  %v2758 = vmul.f32 %v2757, 1.442695
  %v2759 = vpow.pop %v2758
  %v2760 = vadd.f32 %v2759, 1.0
  %v2761 = vrcp.pop %v2760
  %v2762 = vmul.f32 %v2760, %v2761
  %v2763 = vsub.f32 1.0, %v2762
  %v2764 = vmul.f32 %v2761, %v2763
  %v2765 = vadd.f32 %v2761, %v2764
  %vm2766 = vweird.f32 %v2760
  %vm2767 = vweird.f32 %v2761
  %vm2768 = vmor %vm2766, %vm2767
  %v2769 = vsel %vm2768, %v2761, %v2765
  %v2770 = vand.u32 2147483647, %v2760
  %vm2771 = vcmp.eq.f32.partialorder %v2770, 8.507059e+37
  %v2772 = vand.u32 %v2760, 2147483648
  %v2773 = vor.u32 1.1754944e-38, %v2772
  %v2774 = vsel %vm2771, %v2773, %v2769
  %v2775 = vmul.f32 1.0, %v2774
  %v2776 = vtanh.pop %v2728
  %v2777 = vxor.u32 %v2729, 2147483648
  %v2778 = vmul.f32 %v2777, 1.442695
  %v2779 = vpow.pop %v2778
  %v2780 = vadd.f32 %v2779, 1.0
  %v2781 = vrcp.pop %v2780
  %v2782 = vmul.f32 %v2780, %v2781
  %v2783 = vsub.f32 1.0, %v2782
  %v2784 = vmul.f32 %v2781, %v2783
  %v2785 = vadd.f32 %v2781, %v2784
  %vm2786 = vweird.f32 %v2780
  %vm2787 = vweird.f32 %v2781
  %vm2788 = vmor %vm2786, %vm2787
  %v2789 = vsel %vm2788, %v2781, %v2785
  %v2790 = vand.u32 2147483647, %v2780
  %vm2791 = vcmp.eq.f32.partialorder %v2790, 8.507059e+37
  %v2792 = vand.u32 %v2780, 2147483648
  %v2793 = vor.u32 1.1754944e-38, %v2792
  %v2794 = vsel %vm2791, %v2793, %v2789
  %v2795 = vmul.f32 1.0, %v2794
  %v2796 = vmul.f32 %v2775, %v2624
  %v2797 = vmul.f32 %v2756, %v2776
  %v2798 = vadd.f32 %v2796, %v2797
  %v2799 = vtanh.pop %v2798
  %v2800 = vmul.f32 %v2795, %v2799
  %v2801 = vxor.u32 %v2734, 2147483648
  %v2802 = vmul.f32 %v2801, 1.442695
  %v2803 = vpow.pop %v2802
  %v2804 = vadd.f32 %v2803, 1.0
  %v2805 = vrcp.pop %v2804
  %v2806 = vmul.f32 %v2804, %v2805
  %v2807 = vsub.f32 1.0, %v2806
  %v2808 = vmul.f32 %v2805, %v2807
  %v2809 = vadd.f32 %v2805, %v2808
  %vm2810 = vweird.f32 %v2804
  %vm2811 = vweird.f32 %v2805
  %vm2812 = vmor %vm2810, %vm2811
  %v2813 = vsel %vm2812, %v2805, %v2809
  %v2814 = vand.u32 2147483647, %v2804
  %vm2815 = vcmp.eq.f32.partialorder %v2814, 8.507059e+37
  %v2816 = vand.u32 %v2804, 2147483648
  %v2817 = vor.u32 1.1754944e-38, %v2816
  %v2818 = vsel %vm2815, %v2817, %v2813
  %v2819 = vmul.f32 1.0, %v2818
  %v2820 = vxor.u32 %v2735, 2147483648
  %v2821 = vmul.f32 %v2820, 1.442695
  %v2822 = vpow.pop %v2821
  %v2823 = vadd.f32 %v2822, 1.0
  %v2824 = vrcp.pop %v2823
  %v2825 = vmul.f32 %v2823, %v2824
  %v2826 = vsub.f32 1.0, %v2825
  %v2827 = vmul.f32 %v2824, %v2826
  %v2828 = vadd.f32 %v2824, %v2827
  %vm2829 = vweird.f32 %v2823
  %vm2830 = vweird.f32 %v2824
  %vm2831 = vmor %vm2829, %vm2830
  %v2832 = vsel %vm2831, %v2824, %v2828
  %v2833 = vand.u32 2147483647, %v2823
  %vm2834 = vcmp.eq.f32.partialorder %v2833, 8.507059e+37
  %v2835 = vand.u32 %v2823, 2147483648
  %v2836 = vor.u32 1.1754944e-38, %v2835
  %v2837 = vsel %vm2834, %v2836, %v2832
  %v2838 = vmul.f32 1.0, %v2837
  %v2839 = vtanh.pop %v2736
  %v2840 = vxor.u32 %v2737, 2147483648
  %v2841 = vmul.f32 %v2840, 1.442695
  %v2842 = vpow.pop %v2841
  %v2843 = vadd.f32 %v2842, 1.0
  %v2844 = vrcp.pop %v2843
  %v2845 = vmul.f32 %v2843, %v2844
  %v2846 = vsub.f32 1.0, %v2845
  %v2847 = vmul.f32 %v2844, %v2846
  %v2848 = vadd.f32 %v2844, %v2847
  %vm2849 = vweird.f32 %v2843
  %vm2850 = vweird.f32 %v2844
  %vm2851 = vmor %vm2849, %vm2850
  %v2852 = vsel %vm2851, %v2844, %v2848
  %v2853 = vand.u32 2147483647, %v2843
  %vm2854 = vcmp.eq.f32.partialorder %v2853, 8.507059e+37
  %v2855 = vand.u32 %v2843, 2147483648
  %v2856 = vor.u32 1.1754944e-38, %v2855
  %v2857 = vsel %vm2854, %v2856, %v2852
  %v2858 = vmul.f32 1.0, %v2857
  %v2859 = vmul.f32 %v2838, %v2687
  %v2860 = vmul.f32 %v2819, %v2839
  %v2861 = vadd.f32 %v2859, %v2860
  %v2862 = vtanh.pop %v2861
  %v2863 = vmul.f32 %v2858, %v2862
  %2864 = vst [vmem:[#allocation3 + $0x50] sm:$0xff] %v2800
  %2865 = vst [vmem:[#allocation3 + $0xa8] sm:$0xff] %v2863
  %v2866 = vpack.c.bf16 %v2863, %v2800
  %2867 = vmatpush.bf16.msra.mxu0 0
  %2868 = vmatpush.bf16.msra.mxu0 0
  %2869 = vmatpush.bf16.msra.mxu0 0
  %2870 = vmatpush.bf16.msra.mxu0 0
  %2871 = vmatpush.bf16.msra.mxu0 0
  %2872 = vmatpush.bf16.msra.mxu0 0
  %2873 = vmatpush.bf16.msra.mxu0 0
  %2874 = vmatpush.bf16.msra.mxu0 %v2866
  %2875 = vmatmul.bf16.gmra.mxu0 %v942
  %v2876 = vpop.f32.mrf.mxu0
  %v2877 = vadd.f32 0.0, %v2876
  %v2878 = vpop.f32.mrf.mxu0
  %v2879 = vadd.f32 0.0, %v2878
  %2880 = vmatmul.bf16.gmra.mxu0 %v945
  %v2881 = vpop.f32.mrf.mxu0
  %v2882 = vadd.f32 0.0, %v2881
  %v2883 = vpop.f32.mrf.mxu0
  %v2884 = vadd.f32 0.0, %v2883
  %2885 = vmatmul.bf16.gmra.mxu0 %v948
  %v2886 = vpop.f32.mrf.mxu0
  %v2887 = vadd.f32 0.0, %v2886
  %v2888 = vpop.f32.mrf.mxu0
  %v2889 = vadd.f32 0.0, %v2888
  %2890 = vmatmul.bf16.gmra.mxu0 %v951
  %v2891 = vpop.f32.mrf.mxu0
  %v2892 = vadd.f32 0.0, %v2891
  %v2893 = vpop.f32.mrf.mxu0
  %v2894 = vadd.f32 0.0, %v2893
  %2895 = vdwg.mxu0
  %v2896 = vld [vmem:[#allocation2 + $0x58] sm:$0xff]
  %v2897 = vld [vmem:[#allocation2 + $0xd8] sm:$0xff]
  %v2898 = vld [vmem:[#allocation2 + $0x158] sm:$0xff]
  %v2899 = vld [vmem:[#allocation2 + $0x1d8] sm:$0xff]
  %v2900 = vadd.f32 %v2896, %v2877
  %v2901 = vadd.f32 %v2897, %v2879
  %v2902 = vadd.f32 %v2898, %v2882
  %v2903 = vadd.f32 %v2899, %v2884
  %v2904 = vld [vmem:[#allocation2 + $0x220] sm:$0xff]
  %v2905 = vld [vmem:[#allocation2 + $0x2a0] sm:$0xff]
  %v2906 = vld [vmem:[#allocation2 + $0x320] sm:$0xff]
  %v2907 = vld [vmem:[#allocation2 + $0x3a0] sm:$0xff]
  %v2908 = vadd.f32 %v2904, %v2887
  %v2909 = vadd.f32 %v2905, %v2889
  %v2910 = vadd.f32 %v2906, %v2892
  %v2911 = vadd.f32 %v2907, %v2894
  %v2912 = vxor.u32 %v2900, 2147483648
  %v2913 = vmul.f32 %v2912, 1.442695
  %v2914 = vpow.pop %v2913
  %v2915 = vadd.f32 %v2914, 1.0
  %v2916 = vrcp.pop %v2915
  %v2917 = vmul.f32 %v2915, %v2916
  %v2918 = vsub.f32 1.0, %v2917
  %v2919 = vmul.f32 %v2916, %v2918
  %v2920 = vadd.f32 %v2916, %v2919
  %vm2921 = vweird.f32 %v2915
  %vm2922 = vweird.f32 %v2916
  %vm2923 = vmor %vm2921, %vm2922
  %v2924 = vsel %vm2923, %v2916, %v2920
  %v2925 = vand.u32 2147483647, %v2915
  %vm2926 = vcmp.eq.f32.partialorder %v2925, 8.507059e+37
  %v2927 = vand.u32 %v2915, 2147483648
  %v2928 = vor.u32 1.1754944e-38, %v2927
  %v2929 = vsel %vm2926, %v2928, %v2924
  %v2930 = vmul.f32 1.0, %v2929
  %v2931 = vxor.u32 %v2901, 2147483648
  %v2932 = vmul.f32 %v2931, 1.442695
  %v2933 = vpow.pop %v2932
  %v2934 = vadd.f32 %v2933, 1.0
  %v2935 = vrcp.pop %v2934
  %v2936 = vmul.f32 %v2934, %v2935
  %v2937 = vsub.f32 1.0, %v2936
  %v2938 = vmul.f32 %v2935, %v2937
  %v2939 = vadd.f32 %v2935, %v2938
  %vm2940 = vweird.f32 %v2934
  %vm2941 = vweird.f32 %v2935
  %vm2942 = vmor %vm2940, %vm2941
  %v2943 = vsel %vm2942, %v2935, %v2939
  %v2944 = vand.u32 2147483647, %v2934
  %vm2945 = vcmp.eq.f32.partialorder %v2944, 8.507059e+37
  %v2946 = vand.u32 %v2934, 2147483648
  %v2947 = vor.u32 1.1754944e-38, %v2946
  %v2948 = vsel %vm2945, %v2947, %v2943
  %v2949 = vmul.f32 1.0, %v2948
  %v2950 = vtanh.pop %v2902
  %v2951 = vxor.u32 %v2903, 2147483648
  %v2952 = vmul.f32 %v2951, 1.442695
  %v2953 = vpow.pop %v2952
  %v2954 = vadd.f32 %v2953, 1.0
  %v2955 = vrcp.pop %v2954
  %v2956 = vmul.f32 %v2954, %v2955
  %v2957 = vsub.f32 1.0, %v2956
  %v2958 = vmul.f32 %v2955, %v2957
  %v2959 = vadd.f32 %v2955, %v2958
  %vm2960 = vweird.f32 %v2954
  %vm2961 = vweird.f32 %v2955
  %vm2962 = vmor %vm2960, %vm2961
  %v2963 = vsel %vm2962, %v2955, %v2959
  %v2964 = vand.u32 2147483647, %v2954
  %vm2965 = vcmp.eq.f32.partialorder %v2964, 8.507059e+37
  %v2966 = vand.u32 %v2954, 2147483648
  %v2967 = vor.u32 1.1754944e-38, %v2966
  %v2968 = vsel %vm2965, %v2967, %v2963
  %v2969 = vmul.f32 1.0, %v2968
  %v2970 = vmul.f32 %v2949, %v2798
  %v2971 = vmul.f32 %v2930, %v2950
  %v2972 = vadd.f32 %v2970, %v2971
  %v2973 = vtanh.pop %v2972
  %v2974 = vmul.f32 %v2969, %v2973
  %v2975 = vxor.u32 %v2908, 2147483648
  %v2976 = vmul.f32 %v2975, 1.442695
  %v2977 = vpow.pop %v2976
  %v2978 = vadd.f32 %v2977, 1.0
  %v2979 = vrcp.pop %v2978
  %v2980 = vmul.f32 %v2978, %v2979
  %v2981 = vsub.f32 1.0, %v2980
  %v2982 = vmul.f32 %v2979, %v2981
  %v2983 = vadd.f32 %v2979, %v2982
  %vm2984 = vweird.f32 %v2978
  %vm2985 = vweird.f32 %v2979
  %vm2986 = vmor %vm2984, %vm2985
  %v2987 = vsel %vm2986, %v2979, %v2983
  %v2988 = vand.u32 2147483647, %v2978
  %vm2989 = vcmp.eq.f32.partialorder %v2988, 8.507059e+37
  %v2990 = vand.u32 %v2978, 2147483648
  %v2991 = vor.u32 1.1754944e-38, %v2990
  %v2992 = vsel %vm2989, %v2991, %v2987
  %v2993 = vmul.f32 1.0, %v2992
  %v2994 = vxor.u32 %v2909, 2147483648
  %v2995 = vmul.f32 %v2994, 1.442695
  %v2996 = vpow.pop %v2995
  %v2997 = vadd.f32 %v2996, 1.0
  %v2998 = vrcp.pop %v2997
  %v2999 = vmul.f32 %v2997, %v2998
  %v3000 = vsub.f32 1.0, %v2999
  %v3001 = vmul.f32 %v2998, %v3000
  %v3002 = vadd.f32 %v2998, %v3001
  %vm3003 = vweird.f32 %v2997
  %vm3004 = vweird.f32 %v2998
  %vm3005 = vmor %vm3003, %vm3004
  %v3006 = vsel %vm3005, %v2998, %v3002
  %v3007 = vand.u32 2147483647, %v2997
  %vm3008 = vcmp.eq.f32.partialorder %v3007, 8.507059e+37
  %v3009 = vand.u32 %v2997, 2147483648
  %v3010 = vor.u32 1.1754944e-38, %v3009
  %v3011 = vsel %vm3008, %v3010, %v3006
  %v3012 = vmul.f32 1.0, %v3011
  %v3013 = vtanh.pop %v2910
  %v3014 = vxor.u32 %v2911, 2147483648
  %v3015 = vmul.f32 %v3014, 1.442695
  %v3016 = vpow.pop %v3015
  %v3017 = vadd.f32 %v3016, 1.0
  %v3018 = vrcp.pop %v3017
  %v3019 = vmul.f32 %v3017, %v3018
  %v3020 = vsub.f32 1.0, %v3019
  %v3021 = vmul.f32 %v3018, %v3020
  %v3022 = vadd.f32 %v3018, %v3021
  %vm3023 = vweird.f32 %v3017
  %vm3024 = vweird.f32 %v3018
  %vm3025 = vmor %vm3023, %vm3024
  %v3026 = vsel %vm3025, %v3018, %v3022
  %v3027 = vand.u32 2147483647, %v3017
  %vm3028 = vcmp.eq.f32.partialorder %v3027, 8.507059e+37
  %v3029 = vand.u32 %v3017, 2147483648
  %v3030 = vor.u32 1.1754944e-38, %v3029
  %v3031 = vsel %vm3028, %v3030, %v3026
  %v3032 = vmul.f32 1.0, %v3031
  %v3033 = vmul.f32 %v3012, %v2861
  %v3034 = vmul.f32 %v2993, %v3013
  %v3035 = vadd.f32 %v3033, %v3034
  %v3036 = vtanh.pop %v3035
  %v3037 = vmul.f32 %v3032, %v3036
  %3038 = vst [vmem:[#allocation3 + $0x58] sm:$0xff] %v2974
  %3039 = vst [vmem:[#allocation3 + $0xa0] sm:$0xff] %v3037
  %v3040 = vpack.c.bf16 %v3037, %v2974
  %3041 = vmatpush.bf16.msra.mxu0 0
  %3042 = vmatpush.bf16.msra.mxu0 0
  %3043 = vmatpush.bf16.msra.mxu0 0
  %3044 = vmatpush.bf16.msra.mxu0 0
  %3045 = vmatpush.bf16.msra.mxu0 0
  %3046 = vmatpush.bf16.msra.mxu0 0
  %3047 = vmatpush.bf16.msra.mxu0 0
  %3048 = vmatpush.bf16.msra.mxu0 %v3040
  %3049 = vmatmul.bf16.gmra.mxu0 %v942
  %v3050 = vpop.f32.mrf.mxu0
  %v3051 = vadd.f32 0.0, %v3050
  %v3052 = vpop.f32.mrf.mxu0
  %v3053 = vadd.f32 0.0, %v3052
  %3054 = vmatmul.bf16.gmra.mxu0 %v945
  %v3055 = vpop.f32.mrf.mxu0
  %v3056 = vadd.f32 0.0, %v3055
  %v3057 = vpop.f32.mrf.mxu0
  %v3058 = vadd.f32 0.0, %v3057
  %3059 = vmatmul.bf16.gmra.mxu0 %v948
  %v3060 = vpop.f32.mrf.mxu0
  %v3061 = vadd.f32 0.0, %v3060
  %v3062 = vpop.f32.mrf.mxu0
  %v3063 = vadd.f32 0.0, %v3062
  %3064 = vmatmul.bf16.gmra.mxu0 %v951
  %v3065 = vpop.f32.mrf.mxu0
  %v3066 = vadd.f32 0.0, %v3065
  %v3067 = vpop.f32.mrf.mxu0
  %v3068 = vadd.f32 0.0, %v3067
  %3069 = vdwg.mxu0
  %v3070 = vld [vmem:[#allocation2 + $0x60] sm:$0xff]
  %v3071 = vld [vmem:[#allocation2 + $0xe0] sm:$0xff]
  %v3072 = vld [vmem:[#allocation2 + $0x160] sm:$0xff]
  %v3073 = vld [vmem:[#allocation2 + $0x1e0] sm:$0xff]
  %v3074 = vadd.f32 %v3070, %v3051
  %v3075 = vadd.f32 %v3071, %v3053
  %v3076 = vadd.f32 %v3072, %v3056
  %v3077 = vadd.f32 %v3073, %v3058
  %v3078 = vld [vmem:[#allocation2 + $0x218] sm:$0xff]
  %v3079 = vld [vmem:[#allocation2 + $0x298] sm:$0xff]
  %v3080 = vld [vmem:[#allocation2 + $0x318] sm:$0xff]
  %v3081 = vld [vmem:[#allocation2 + $0x398] sm:$0xff]
  %v3082 = vadd.f32 %v3078, %v3061
  %v3083 = vadd.f32 %v3079, %v3063
  %v3084 = vadd.f32 %v3080, %v3066
  %v3085 = vadd.f32 %v3081, %v3068
  %v3086 = vxor.u32 %v3074, 2147483648
  %v3087 = vmul.f32 %v3086, 1.442695
  %v3088 = vpow.pop %v3087
  %v3089 = vadd.f32 %v3088, 1.0
  %v3090 = vrcp.pop %v3089
  %v3091 = vmul.f32 %v3089, %v3090
  %v3092 = vsub.f32 1.0, %v3091
  %v3093 = vmul.f32 %v3090, %v3092
  %v3094 = vadd.f32 %v3090, %v3093
  %vm3095 = vweird.f32 %v3089
  %vm3096 = vweird.f32 %v3090
  %vm3097 = vmor %vm3095, %vm3096
  %v3098 = vsel %vm3097, %v3090, %v3094
  %v3099 = vand.u32 2147483647, %v3089
  %vm3100 = vcmp.eq.f32.partialorder %v3099, 8.507059e+37
  %v3101 = vand.u32 %v3089, 2147483648
  %v3102 = vor.u32 1.1754944e-38, %v3101
  %v3103 = vsel %vm3100, %v3102, %v3098
  %v3104 = vmul.f32 1.0, %v3103
  %v3105 = vxor.u32 %v3075, 2147483648
  %v3106 = vmul.f32 %v3105, 1.442695
  %v3107 = vpow.pop %v3106
  %v3108 = vadd.f32 %v3107, 1.0
  %v3109 = vrcp.pop %v3108
  %v3110 = vmul.f32 %v3108, %v3109
  %v3111 = vsub.f32 1.0, %v3110
  %v3112 = vmul.f32 %v3109, %v3111
  %v3113 = vadd.f32 %v3109, %v3112
  %vm3114 = vweird.f32 %v3108
  %vm3115 = vweird.f32 %v3109
  %vm3116 = vmor %vm3114, %vm3115
  %v3117 = vsel %vm3116, %v3109, %v3113
  %v3118 = vand.u32 2147483647, %v3108
  %vm3119 = vcmp.eq.f32.partialorder %v3118, 8.507059e+37
  %v3120 = vand.u32 %v3108, 2147483648
  %v3121 = vor.u32 1.1754944e-38, %v3120
  %v3122 = vsel %vm3119, %v3121, %v3117
  %v3123 = vmul.f32 1.0, %v3122
  %v3124 = vtanh.pop %v3076
  %v3125 = vxor.u32 %v3077, 2147483648
  %v3126 = vmul.f32 %v3125, 1.442695
  %v3127 = vpow.pop %v3126
  %v3128 = vadd.f32 %v3127, 1.0
  %v3129 = vrcp.pop %v3128
  %v3130 = vmul.f32 %v3128, %v3129
  %v3131 = vsub.f32 1.0, %v3130
  %v3132 = vmul.f32 %v3129, %v3131
  %v3133 = vadd.f32 %v3129, %v3132
  %vm3134 = vweird.f32 %v3128
  %vm3135 = vweird.f32 %v3129
  %vm3136 = vmor %vm3134, %vm3135
  %v3137 = vsel %vm3136, %v3129, %v3133
  %v3138 = vand.u32 2147483647, %v3128
  %vm3139 = vcmp.eq.f32.partialorder %v3138, 8.507059e+37
  %v3140 = vand.u32 %v3128, 2147483648
  %v3141 = vor.u32 1.1754944e-38, %v3140
  %v3142 = vsel %vm3139, %v3141, %v3137
  %v3143 = vmul.f32 1.0, %v3142
  %v3144 = vmul.f32 %v3123, %v2972
  %v3145 = vmul.f32 %v3104, %v3124
  %v3146 = vadd.f32 %v3144, %v3145
  %v3147 = vtanh.pop %v3146
  %v3148 = vmul.f32 %v3143, %v3147
  %v3149 = vxor.u32 %v3082, 2147483648
  %v3150 = vmul.f32 %v3149, 1.442695
  %v3151 = vpow.pop %v3150
  %v3152 = vadd.f32 %v3151, 1.0
  %v3153 = vrcp.pop %v3152
  %v3154 = vmul.f32 %v3152, %v3153
  %v3155 = vsub.f32 1.0, %v3154
  %v3156 = vmul.f32 %v3153, %v3155
  %v3157 = vadd.f32 %v3153, %v3156
  %vm3158 = vweird.f32 %v3152
  %vm3159 = vweird.f32 %v3153
  %vm3160 = vmor %vm3158, %vm3159
  %v3161 = vsel %vm3160, %v3153, %v3157
  %v3162 = vand.u32 2147483647, %v3152
  %vm3163 = vcmp.eq.f32.partialorder %v3162, 8.507059e+37
  %v3164 = vand.u32 %v3152, 2147483648
  %v3165 = vor.u32 1.1754944e-38, %v3164
  %v3166 = vsel %vm3163, %v3165, %v3161
  %v3167 = vmul.f32 1.0, %v3166
  %v3168 = vxor.u32 %v3083, 2147483648
  %v3169 = vmul.f32 %v3168, 1.442695
  %v3170 = vpow.pop %v3169
  %v3171 = vadd.f32 %v3170, 1.0
  %v3172 = vrcp.pop %v3171
  %v3173 = vmul.f32 %v3171, %v3172
  %v3174 = vsub.f32 1.0, %v3173
  %v3175 = vmul.f32 %v3172, %v3174
  %v3176 = vadd.f32 %v3172, %v3175
  %vm3177 = vweird.f32 %v3171
  %vm3178 = vweird.f32 %v3172
  %vm3179 = vmor %vm3177, %vm3178
  %v3180 = vsel %vm3179, %v3172, %v3176
  %v3181 = vand.u32 2147483647, %v3171
  %vm3182 = vcmp.eq.f32.partialorder %v3181, 8.507059e+37
  %v3183 = vand.u32 %v3171, 2147483648
  %v3184 = vor.u32 1.1754944e-38, %v3183
  %v3185 = vsel %vm3182, %v3184, %v3180
  %v3186 = vmul.f32 1.0, %v3185
  %v3187 = vtanh.pop %v3084
  %v3188 = vxor.u32 %v3085, 2147483648
  %v3189 = vmul.f32 %v3188, 1.442695
  %v3190 = vpow.pop %v3189
  %v3191 = vadd.f32 %v3190, 1.0
  %v3192 = vrcp.pop %v3191
  %v3193 = vmul.f32 %v3191, %v3192
  %v3194 = vsub.f32 1.0, %v3193
  %v3195 = vmul.f32 %v3192, %v3194
  %v3196 = vadd.f32 %v3192, %v3195
  %vm3197 = vweird.f32 %v3191
  %vm3198 = vweird.f32 %v3192
  %vm3199 = vmor %vm3197, %vm3198
  %v3200 = vsel %vm3199, %v3192, %v3196
  %v3201 = vand.u32 2147483647, %v3191
  %vm3202 = vcmp.eq.f32.partialorder %v3201, 8.507059e+37
  %v3203 = vand.u32 %v3191, 2147483648
  %v3204 = vor.u32 1.1754944e-38, %v3203
  %v3205 = vsel %vm3202, %v3204, %v3200
  %v3206 = vmul.f32 1.0, %v3205
  %v3207 = vmul.f32 %v3186, %v3035
  %v3208 = vmul.f32 %v3167, %v3187
  %v3209 = vadd.f32 %v3207, %v3208
  %v3210 = vtanh.pop %v3209
  %v3211 = vmul.f32 %v3206, %v3210
  %3212 = vst [vmem:[#allocation3 + $0x60] sm:$0xff] %v3148
  %3213 = vst [vmem:[#allocation3 + $0x98] sm:$0xff] %v3211
  %v3214 = vpack.c.bf16 %v3211, %v3148
  %3215 = vmatpush.bf16.msra.mxu0 0
  %3216 = vmatpush.bf16.msra.mxu0 0
  %3217 = vmatpush.bf16.msra.mxu0 0
  %3218 = vmatpush.bf16.msra.mxu0 0
  %3219 = vmatpush.bf16.msra.mxu0 0
  %3220 = vmatpush.bf16.msra.mxu0 0
  %3221 = vmatpush.bf16.msra.mxu0 0
  %3222 = vmatpush.bf16.msra.mxu0 %v3214
  %3223 = vmatmul.bf16.gmra.mxu0 %v942
  %v3224 = vpop.f32.mrf.mxu0
  %v3225 = vadd.f32 0.0, %v3224
  %v3226 = vpop.f32.mrf.mxu0
  %v3227 = vadd.f32 0.0, %v3226
  %3228 = vmatmul.bf16.gmra.mxu0 %v945
  %v3229 = vpop.f32.mrf.mxu0
  %v3230 = vadd.f32 0.0, %v3229
  %v3231 = vpop.f32.mrf.mxu0
  %v3232 = vadd.f32 0.0, %v3231
  %3233 = vmatmul.bf16.gmra.mxu0 %v948
  %v3234 = vpop.f32.mrf.mxu0
  %v3235 = vadd.f32 0.0, %v3234
  %v3236 = vpop.f32.mrf.mxu0
  %v3237 = vadd.f32 0.0, %v3236
  %3238 = vmatmul.bf16.gmra.mxu0 %v951
  %v3239 = vpop.f32.mrf.mxu0
  %v3240 = vadd.f32 0.0, %v3239
  %v3241 = vpop.f32.mrf.mxu0
  %v3242 = vadd.f32 0.0, %v3241
  %3243 = vdwg.mxu0
  %v3244 = vld [vmem:[#allocation2 + $0x68] sm:$0xff]
  %v3245 = vld [vmem:[#allocation2 + $0xe8] sm:$0xff]
  %v3246 = vld [vmem:[#allocation2 + $0x168] sm:$0xff]
  %v3247 = vld [vmem:[#allocation2 + $0x1e8] sm:$0xff]
  %v3248 = vadd.f32 %v3244, %v3225
  %v3249 = vadd.f32 %v3245, %v3227
  %v3250 = vadd.f32 %v3246, %v3230
  %v3251 = vadd.f32 %v3247, %v3232
  %v3252 = vld [vmem:[#allocation2 + $0x210] sm:$0xff]
  %v3253 = vld [vmem:[#allocation2 + $0x290] sm:$0xff]
  %v3254 = vld [vmem:[#allocation2 + $0x310] sm:$0xff]
  %v3255 = vld [vmem:[#allocation2 + $0x390] sm:$0xff]
  %v3256 = vadd.f32 %v3252, %v3235
  %v3257 = vadd.f32 %v3253, %v3237
  %v3258 = vadd.f32 %v3254, %v3240
  %v3259 = vadd.f32 %v3255, %v3242
  %v3260 = vxor.u32 %v3248, 2147483648
  %v3261 = vmul.f32 %v3260, 1.442695
  %v3262 = vpow.pop %v3261
  %v3263 = vadd.f32 %v3262, 1.0
  %v3264 = vrcp.pop %v3263
  %v3265 = vmul.f32 %v3263, %v3264
  %v3266 = vsub.f32 1.0, %v3265
  %v3267 = vmul.f32 %v3264, %v3266
  %v3268 = vadd.f32 %v3264, %v3267
  %vm3269 = vweird.f32 %v3263
  %vm3270 = vweird.f32 %v3264
  %vm3271 = vmor %vm3269, %vm3270
  %v3272 = vsel %vm3271, %v3264, %v3268
  %v3273 = vand.u32 2147483647, %v3263
  %vm3274 = vcmp.eq.f32.partialorder %v3273, 8.507059e+37
  %v3275 = vand.u32 %v3263, 2147483648
  %v3276 = vor.u32 1.1754944e-38, %v3275
  %v3277 = vsel %vm3274, %v3276, %v3272
  %v3278 = vmul.f32 1.0, %v3277
  %v3279 = vxor.u32 %v3249, 2147483648
  %v3280 = vmul.f32 %v3279, 1.442695
  %v3281 = vpow.pop %v3280
  %v3282 = vadd.f32 %v3281, 1.0
  %v3283 = vrcp.pop %v3282
  %v3284 = vmul.f32 %v3282, %v3283
  %v3285 = vsub.f32 1.0, %v3284
  %v3286 = vmul.f32 %v3283, %v3285
  %v3287 = vadd.f32 %v3283, %v3286
  %vm3288 = vweird.f32 %v3282
  %vm3289 = vweird.f32 %v3283
  %vm3290 = vmor %vm3288, %vm3289
  %v3291 = vsel %vm3290, %v3283, %v3287
  %v3292 = vand.u32 2147483647, %v3282
  %vm3293 = vcmp.eq.f32.partialorder %v3292, 8.507059e+37
  %v3294 = vand.u32 %v3282, 2147483648
  %v3295 = vor.u32 1.1754944e-38, %v3294
  %v3296 = vsel %vm3293, %v3295, %v3291
  %v3297 = vmul.f32 1.0, %v3296
  %v3298 = vtanh.pop %v3250
  %v3299 = vxor.u32 %v3251, 2147483648
  %v3300 = vmul.f32 %v3299, 1.442695
  %v3301 = vpow.pop %v3300
  %v3302 = vadd.f32 %v3301, 1.0
  %v3303 = vrcp.pop %v3302
  %v3304 = vmul.f32 %v3302, %v3303
  %v3305 = vsub.f32 1.0, %v3304
  %v3306 = vmul.f32 %v3303, %v3305
  %v3307 = vadd.f32 %v3303, %v3306
  %vm3308 = vweird.f32 %v3302
  %vm3309 = vweird.f32 %v3303
  %vm3310 = vmor %vm3308, %vm3309
  %v3311 = vsel %vm3310, %v3303, %v3307
  %v3312 = vand.u32 2147483647, %v3302
  %vm3313 = vcmp.eq.f32.partialorder %v3312, 8.507059e+37
  %v3314 = vand.u32 %v3302, 2147483648
  %v3315 = vor.u32 1.1754944e-38, %v3314
  %v3316 = vsel %vm3313, %v3315, %v3311
  %v3317 = vmul.f32 1.0, %v3316
  %v3318 = vmul.f32 %v3297, %v3146
  %v3319 = vmul.f32 %v3278, %v3298
  %v3320 = vadd.f32 %v3318, %v3319
  %v3321 = vtanh.pop %v3320
  %v3322 = vmul.f32 %v3317, %v3321
  %v3323 = vxor.u32 %v3256, 2147483648
  %v3324 = vmul.f32 %v3323, 1.442695
  %v3325 = vpow.pop %v3324
  %v3326 = vadd.f32 %v3325, 1.0
  %v3327 = vrcp.pop %v3326
  %v3328 = vmul.f32 %v3326, %v3327
  %v3329 = vsub.f32 1.0, %v3328
  %v3330 = vmul.f32 %v3327, %v3329
  %v3331 = vadd.f32 %v3327, %v3330
  %vm3332 = vweird.f32 %v3326
  %vm3333 = vweird.f32 %v3327
  %vm3334 = vmor %vm3332, %vm3333
  %v3335 = vsel %vm3334, %v3327, %v3331
  %v3336 = vand.u32 2147483647, %v3326
  %vm3337 = vcmp.eq.f32.partialorder %v3336, 8.507059e+37
  %v3338 = vand.u32 %v3326, 2147483648
  %v3339 = vor.u32 1.1754944e-38, %v3338
  %v3340 = vsel %vm3337, %v3339, %v3335
  %v3341 = vmul.f32 1.0, %v3340
  %v3342 = vxor.u32 %v3257, 2147483648
  %v3343 = vmul.f32 %v3342, 1.442695
  %v3344 = vpow.pop %v3343
  %v3345 = vadd.f32 %v3344, 1.0
  %v3346 = vrcp.pop %v3345
  %v3347 = vmul.f32 %v3345, %v3346
  %v3348 = vsub.f32 1.0, %v3347
  %v3349 = vmul.f32 %v3346, %v3348
  %v3350 = vadd.f32 %v3346, %v3349
  %vm3351 = vweird.f32 %v3345
  %vm3352 = vweird.f32 %v3346
  %vm3353 = vmor %vm3351, %vm3352
  %v3354 = vsel %vm3353, %v3346, %v3350
  %v3355 = vand.u32 2147483647, %v3345
  %vm3356 = vcmp.eq.f32.partialorder %v3355, 8.507059e+37
  %v3357 = vand.u32 %v3345, 2147483648
  %v3358 = vor.u32 1.1754944e-38, %v3357
  %v3359 = vsel %vm3356, %v3358, %v3354
  %v3360 = vmul.f32 1.0, %v3359
  %v3361 = vtanh.pop %v3258
  %v3362 = vxor.u32 %v3259, 2147483648
  %v3363 = vmul.f32 %v3362, 1.442695
  %v3364 = vpow.pop %v3363
  %v3365 = vadd.f32 %v3364, 1.0
  %v3366 = vrcp.pop %v3365
  %v3367 = vmul.f32 %v3365, %v3366
  %v3368 = vsub.f32 1.0, %v3367
  %v3369 = vmul.f32 %v3366, %v3368
  %v3370 = vadd.f32 %v3366, %v3369
  %vm3371 = vweird.f32 %v3365
  %vm3372 = vweird.f32 %v3366
  %vm3373 = vmor %vm3371, %vm3372
  %v3374 = vsel %vm3373, %v3366, %v3370
  %v3375 = vand.u32 2147483647, %v3365
  %vm3376 = vcmp.eq.f32.partialorder %v3375, 8.507059e+37
  %v3377 = vand.u32 %v3365, 2147483648
  %v3378 = vor.u32 1.1754944e-38, %v3377
  %v3379 = vsel %vm3376, %v3378, %v3374
  %v3380 = vmul.f32 1.0, %v3379
  %v3381 = vmul.f32 %v3360, %v3209
  %v3382 = vmul.f32 %v3341, %v3361
  %v3383 = vadd.f32 %v3381, %v3382
  %v3384 = vtanh.pop %v3383
  %v3385 = vmul.f32 %v3380, %v3384
  %3386 = vst [vmem:[#allocation3 + $0x68] sm:$0xff] %v3322
  %3387 = vst [vmem:[#allocation3 + $0x90] sm:$0xff] %v3385
  %v3388 = vpack.c.bf16 %v3385, %v3322
  %3389 = vmatpush.bf16.msra.mxu0 0
  %3390 = vmatpush.bf16.msra.mxu0 0
  %3391 = vmatpush.bf16.msra.mxu0 0
  %3392 = vmatpush.bf16.msra.mxu0 0
  %3393 = vmatpush.bf16.msra.mxu0 0
  %3394 = vmatpush.bf16.msra.mxu0 0
  %3395 = vmatpush.bf16.msra.mxu0 0
  %3396 = vmatpush.bf16.msra.mxu0 %v3388
  %3397 = vmatmul.bf16.gmra.mxu0 %v942
  %v3398 = vpop.f32.mrf.mxu0
  %v3399 = vadd.f32 0.0, %v3398
  %v3400 = vpop.f32.mrf.mxu0
  %v3401 = vadd.f32 0.0, %v3400
  %3402 = vmatmul.bf16.gmra.mxu0 %v945
  %v3403 = vpop.f32.mrf.mxu0
  %v3404 = vadd.f32 0.0, %v3403
  %v3405 = vpop.f32.mrf.mxu0
  %v3406 = vadd.f32 0.0, %v3405
  %3407 = vmatmul.bf16.gmra.mxu0 %v948
  %v3408 = vpop.f32.mrf.mxu0
  %v3409 = vadd.f32 0.0, %v3408
  %v3410 = vpop.f32.mrf.mxu0
  %v3411 = vadd.f32 0.0, %v3410
  %3412 = vmatmul.bf16.gmra.mxu0 %v951
  %v3413 = vpop.f32.mrf.mxu0
  %v3414 = vadd.f32 0.0, %v3413
  %v3415 = vpop.f32.mrf.mxu0
  %v3416 = vadd.f32 0.0, %v3415
  %3417 = vdwg.mxu0
  %v3418 = vld [vmem:[#allocation2 + $0x70] sm:$0xff]
  %v3419 = vld [vmem:[#allocation2 + $0xf0] sm:$0xff]
  %v3420 = vld [vmem:[#allocation2 + $0x170] sm:$0xff]
  %v3421 = vld [vmem:[#allocation2 + $0x1f0] sm:$0xff]
  %v3422 = vadd.f32 %v3418, %v3399
  %v3423 = vadd.f32 %v3419, %v3401
  %v3424 = vadd.f32 %v3420, %v3404
  %v3425 = vadd.f32 %v3421, %v3406
  %v3426 = vld [vmem:[#allocation2 + $0x208] sm:$0xff]
  %v3427 = vld [vmem:[#allocation2 + $0x288] sm:$0xff]
  %v3428 = vld [vmem:[#allocation2 + $0x308] sm:$0xff]
  %v3429 = vld [vmem:[#allocation2 + $0x388] sm:$0xff]
  %v3430 = vadd.f32 %v3426, %v3409
  %v3431 = vadd.f32 %v3427, %v3411
  %v3432 = vadd.f32 %v3428, %v3414
  %v3433 = vadd.f32 %v3429, %v3416
  %v3434 = vxor.u32 %v3422, 2147483648
  %v3435 = vmul.f32 %v3434, 1.442695
  %v3436 = vpow.pop %v3435
  %v3437 = vadd.f32 %v3436, 1.0
  %v3438 = vrcp.pop %v3437
  %v3439 = vmul.f32 %v3437, %v3438
  %v3440 = vsub.f32 1.0, %v3439
  %v3441 = vmul.f32 %v3438, %v3440
  %v3442 = vadd.f32 %v3438, %v3441
  %vm3443 = vweird.f32 %v3437
  %vm3444 = vweird.f32 %v3438
  %vm3445 = vmor %vm3443, %vm3444
  %v3446 = vsel %vm3445, %v3438, %v3442
  %v3447 = vand.u32 2147483647, %v3437
  %vm3448 = vcmp.eq.f32.partialorder %v3447, 8.507059e+37
  %v3449 = vand.u32 %v3437, 2147483648
  %v3450 = vor.u32 1.1754944e-38, %v3449
  %v3451 = vsel %vm3448, %v3450, %v3446
  %v3452 = vmul.f32 1.0, %v3451
  %v3453 = vxor.u32 %v3423, 2147483648
  %v3454 = vmul.f32 %v3453, 1.442695
  %v3455 = vpow.pop %v3454
  %v3456 = vadd.f32 %v3455, 1.0
  %v3457 = vrcp.pop %v3456
  %v3458 = vmul.f32 %v3456, %v3457
  %v3459 = vsub.f32 1.0, %v3458
  %v3460 = vmul.f32 %v3457, %v3459
  %v3461 = vadd.f32 %v3457, %v3460
  %vm3462 = vweird.f32 %v3456
  %vm3463 = vweird.f32 %v3457
  %vm3464 = vmor %vm3462, %vm3463
  %v3465 = vsel %vm3464, %v3457, %v3461
  %v3466 = vand.u32 2147483647, %v3456
  %vm3467 = vcmp.eq.f32.partialorder %v3466, 8.507059e+37
  %v3468 = vand.u32 %v3456, 2147483648
  %v3469 = vor.u32 1.1754944e-38, %v3468
  %v3470 = vsel %vm3467, %v3469, %v3465
  %v3471 = vmul.f32 1.0, %v3470
  %v3472 = vtanh.pop %v3424
  %v3473 = vxor.u32 %v3425, 2147483648
  %v3474 = vmul.f32 %v3473, 1.442695
  %v3475 = vpow.pop %v3474
  %v3476 = vadd.f32 %v3475, 1.0
  %v3477 = vrcp.pop %v3476
  %v3478 = vmul.f32 %v3476, %v3477
  %v3479 = vsub.f32 1.0, %v3478
  %v3480 = vmul.f32 %v3477, %v3479
  %v3481 = vadd.f32 %v3477, %v3480
  %vm3482 = vweird.f32 %v3476
  %vm3483 = vweird.f32 %v3477
  %vm3484 = vmor %vm3482, %vm3483
  %v3485 = vsel %vm3484, %v3477, %v3481
  %v3486 = vand.u32 2147483647, %v3476
  %vm3487 = vcmp.eq.f32.partialorder %v3486, 8.507059e+37
  %v3488 = vand.u32 %v3476, 2147483648
  %v3489 = vor.u32 1.1754944e-38, %v3488
  %v3490 = vsel %vm3487, %v3489, %v3485
  %v3491 = vmul.f32 1.0, %v3490
  %v3492 = vmul.f32 %v3471, %v3320
  %v3493 = vmul.f32 %v3452, %v3472
  %v3494 = vadd.f32 %v3492, %v3493
  %v3495 = vtanh.pop %v3494
  %v3496 = vmul.f32 %v3491, %v3495
  %v3497 = vxor.u32 %v3430, 2147483648
  %v3498 = vmul.f32 %v3497, 1.442695
  %v3499 = vpow.pop %v3498
  %v3500 = vadd.f32 %v3499, 1.0
  %v3501 = vrcp.pop %v3500
  %v3502 = vmul.f32 %v3500, %v3501
  %v3503 = vsub.f32 1.0, %v3502
  %v3504 = vmul.f32 %v3501, %v3503
  %v3505 = vadd.f32 %v3501, %v3504
  %vm3506 = vweird.f32 %v3500
  %vm3507 = vweird.f32 %v3501
  %vm3508 = vmor %vm3506, %vm3507
  %v3509 = vsel %vm3508, %v3501, %v3505
  %v3510 = vand.u32 2147483647, %v3500
  %vm3511 = vcmp.eq.f32.partialorder %v3510, 8.507059e+37
  %v3512 = vand.u32 %v3500, 2147483648
  %v3513 = vor.u32 1.1754944e-38, %v3512
  %v3514 = vsel %vm3511, %v3513, %v3509
  %v3515 = vmul.f32 1.0, %v3514
  %v3516 = vxor.u32 %v3431, 2147483648
  %v3517 = vmul.f32 %v3516, 1.442695
  %v3518 = vpow.pop %v3517
  %v3519 = vadd.f32 %v3518, 1.0
  %v3520 = vrcp.pop %v3519
  %v3521 = vmul.f32 %v3519, %v3520
  %v3522 = vsub.f32 1.0, %v3521
  %v3523 = vmul.f32 %v3520, %v3522
  %v3524 = vadd.f32 %v3520, %v3523
  %vm3525 = vweird.f32 %v3519
  %vm3526 = vweird.f32 %v3520
  %vm3527 = vmor %vm3525, %vm3526
  %v3528 = vsel %vm3527, %v3520, %v3524
  %v3529 = vand.u32 2147483647, %v3519
  %vm3530 = vcmp.eq.f32.partialorder %v3529, 8.507059e+37
  %v3531 = vand.u32 %v3519, 2147483648
  %v3532 = vor.u32 1.1754944e-38, %v3531
  %v3533 = vsel %vm3530, %v3532, %v3528
  %v3534 = vmul.f32 1.0, %v3533
  %v3535 = vtanh.pop %v3432
  %v3536 = vxor.u32 %v3433, 2147483648
  %v3537 = vmul.f32 %v3536, 1.442695
  %v3538 = vpow.pop %v3537
  %v3539 = vadd.f32 %v3538, 1.0
  %v3540 = vrcp.pop %v3539
  %v3541 = vmul.f32 %v3539, %v3540
  %v3542 = vsub.f32 1.0, %v3541
  %v3543 = vmul.f32 %v3540, %v3542
  %v3544 = vadd.f32 %v3540, %v3543
  %vm3545 = vweird.f32 %v3539
  %vm3546 = vweird.f32 %v3540
  %vm3547 = vmor %vm3545, %vm3546
  %v3548 = vsel %vm3547, %v3540, %v3544
  %v3549 = vand.u32 2147483647, %v3539
  %vm3550 = vcmp.eq.f32.partialorder %v3549, 8.507059e+37
  %v3551 = vand.u32 %v3539, 2147483648
  %v3552 = vor.u32 1.1754944e-38, %v3551
  %v3553 = vsel %vm3550, %v3552, %v3548
  %v3554 = vmul.f32 1.0, %v3553
  %v3555 = vmul.f32 %v3534, %v3383
  %v3556 = vmul.f32 %v3515, %v3535
  %v3557 = vadd.f32 %v3555, %v3556
  %v3558 = vtanh.pop %v3557
  %v3559 = vmul.f32 %v3554, %v3558
  %3560 = vst [vmem:[#allocation3 + $0x70] sm:$0xff] %v3496
  %3561 = vst [vmem:[#allocation3 + $0x88] sm:$0xff] %v3559
  %v3562 = vpack.c.bf16 %v3559, %v3496
  %3563 = vmatpush.bf16.msra.mxu0 0
  %3564 = vmatpush.bf16.msra.mxu0 0
  %3565 = vmatpush.bf16.msra.mxu0 0
  %3566 = vmatpush.bf16.msra.mxu0 0
  %3567 = vmatpush.bf16.msra.mxu0 0
  %3568 = vmatpush.bf16.msra.mxu0 0
  %3569 = vmatpush.bf16.msra.mxu0 0
  %3570 = vmatpush.bf16.msra.mxu0 %v3562
  %3571 = vmatmul.bf16.gmra.mxu0 %v942
  %v3572 = vpop.f32.mrf.mxu0
  %v3573 = vadd.f32 0.0, %v3572
  %v3574 = vpop.f32.mrf.mxu0
  %v3575 = vadd.f32 0.0, %v3574
  %3576 = vmatmul.bf16.gmra.mxu0 %v945
  %v3577 = vpop.f32.mrf.mxu0
  %v3578 = vadd.f32 0.0, %v3577
  %v3579 = vpop.f32.mrf.mxu0
  %v3580 = vadd.f32 0.0, %v3579
  %3581 = vmatmul.bf16.gmra.mxu0 %v948
  %v3582 = vpop.f32.mrf.mxu0
  %v3583 = vadd.f32 0.0, %v3582
  %v3584 = vpop.f32.mrf.mxu0
  %v3585 = vadd.f32 0.0, %v3584
  %3586 = vmatmul.bf16.gmra.mxu0 %v951
  %v3587 = vpop.f32.mrf.mxu0
  %v3588 = vadd.f32 0.0, %v3587
  %v3589 = vpop.f32.mrf.mxu0
  %v3590 = vadd.f32 0.0, %v3589
  %3591 = vdwg.mxu0
  %v3592 = vld [vmem:[#allocation2 + $0x78] sm:$0xff]
  %v3593 = vld [vmem:[#allocation2 + $0xf8] sm:$0xff]
  %v3594 = vld [vmem:[#allocation2 + $0x178] sm:$0xff]
  %v3595 = vld [vmem:[#allocation2 + $0x1f8] sm:$0xff]
  %v3596 = vadd.f32 %v3592, %v3573
  %v3597 = vadd.f32 %v3593, %v3575
  %v3598 = vadd.f32 %v3594, %v3578
  %v3599 = vadd.f32 %v3595, %v3580
  %v3600 = vld [vmem:[#allocation2 + $0x200] sm:$0xff]
  %v3601 = vld [vmem:[#allocation2 + $0x280] sm:$0xff]
  %v3602 = vld [vmem:[#allocation2 + $0x300] sm:$0xff]
  %v3603 = vld [vmem:[#allocation2 + $0x380] sm:$0xff]
  %v3604 = vadd.f32 %v3600, %v3583
  %v3605 = vadd.f32 %v3601, %v3585
  %v3606 = vadd.f32 %v3602, %v3588
  %v3607 = vadd.f32 %v3603, %v3590
  %v3608 = vxor.u32 %v3596, 2147483648
  %v3609 = vmul.f32 %v3608, 1.442695
  %v3610 = vpow.pop %v3609
  %v3611 = vadd.f32 %v3610, 1.0
  %v3612 = vrcp.pop %v3611
  %v3613 = vmul.f32 %v3611, %v3612
  %v3614 = vsub.f32 1.0, %v3613
  %v3615 = vmul.f32 %v3612, %v3614
  %v3616 = vadd.f32 %v3612, %v3615
  %vm3617 = vweird.f32 %v3611
  %vm3618 = vweird.f32 %v3612
  %vm3619 = vmor %vm3617, %vm3618
  %v3620 = vsel %vm3619, %v3612, %v3616
  %v3621 = vand.u32 2147483647, %v3611
  %vm3622 = vcmp.eq.f32.partialorder %v3621, 8.507059e+37
  %v3623 = vand.u32 %v3611, 2147483648
  %v3624 = vor.u32 1.1754944e-38, %v3623
  %v3625 = vsel %vm3622, %v3624, %v3620
  %v3626 = vmul.f32 1.0, %v3625
  %v3627 = vxor.u32 %v3597, 2147483648
  %v3628 = vmul.f32 %v3627, 1.442695
  %v3629 = vpow.pop %v3628
  %v3630 = vadd.f32 %v3629, 1.0
  %v3631 = vrcp.pop %v3630
  %v3632 = vmul.f32 %v3630, %v3631
  %v3633 = vsub.f32 1.0, %v3632
  %v3634 = vmul.f32 %v3631, %v3633
  %v3635 = vadd.f32 %v3631, %v3634
  %vm3636 = vweird.f32 %v3630
  %vm3637 = vweird.f32 %v3631
  %vm3638 = vmor %vm3636, %vm3637
  %v3639 = vsel %vm3638, %v3631, %v3635
  %v3640 = vand.u32 2147483647, %v3630
  %vm3641 = vcmp.eq.f32.partialorder %v3640, 8.507059e+37
  %v3642 = vand.u32 %v3630, 2147483648
  %v3643 = vor.u32 1.1754944e-38, %v3642
  %v3644 = vsel %vm3641, %v3643, %v3639
  %v3645 = vmul.f32 1.0, %v3644
  %v3646 = vtanh.pop %v3598
  %v3647 = vxor.u32 %v3599, 2147483648
  %v3648 = vmul.f32 %v3647, 1.442695
  %v3649 = vpow.pop %v3648
  %v3650 = vadd.f32 %v3649, 1.0
  %v3651 = vrcp.pop %v3650
  %v3652 = vmul.f32 %v3650, %v3651
  %v3653 = vsub.f32 1.0, %v3652
  %v3654 = vmul.f32 %v3651, %v3653
  %v3655 = vadd.f32 %v3651, %v3654
  %vm3656 = vweird.f32 %v3650
  %vm3657 = vweird.f32 %v3651
  %vm3658 = vmor %vm3656, %vm3657
  %v3659 = vsel %vm3658, %v3651, %v3655
  %v3660 = vand.u32 2147483647, %v3650
  %vm3661 = vcmp.eq.f32.partialorder %v3660, 8.507059e+37
  %v3662 = vand.u32 %v3650, 2147483648
  %v3663 = vor.u32 1.1754944e-38, %v3662
  %v3664 = vsel %vm3661, %v3663, %v3659
  %v3665 = vmul.f32 1.0, %v3664
  %v3666 = vmul.f32 %v3645, %v3494
  %v3667 = vmul.f32 %v3626, %v3646
  %v3668 = vadd.f32 %v3666, %v3667
  %v3669 = vtanh.pop %v3668
  %v3670 = vmul.f32 %v3665, %v3669
  %v3671 = vxor.u32 %v3604, 2147483648
  %v3672 = vmul.f32 %v3671, 1.442695
  %v3673 = vpow.pop %v3672
  %v3674 = vadd.f32 %v3673, 1.0
  %v3675 = vrcp.pop %v3674
  %v3676 = vmul.f32 %v3674, %v3675
  %v3677 = vsub.f32 1.0, %v3676
  %v3678 = vmul.f32 %v3675, %v3677
  %v3679 = vadd.f32 %v3675, %v3678
  %vm3680 = vweird.f32 %v3674
  %vm3681 = vweird.f32 %v3675
  %vm3682 = vmor %vm3680, %vm3681
  %v3683 = vsel %vm3682, %v3675, %v3679
  %v3684 = vand.u32 2147483647, %v3674
  %vm3685 = vcmp.eq.f32.partialorder %v3684, 8.507059e+37
  %v3686 = vand.u32 %v3674, 2147483648
  %v3687 = vor.u32 1.1754944e-38, %v3686
  %v3688 = vsel %vm3685, %v3687, %v3683
  %v3689 = vmul.f32 1.0, %v3688
  %v3690 = vxor.u32 %v3605, 2147483648
  %v3691 = vmul.f32 %v3690, 1.442695
  %v3692 = vpow.pop %v3691
  %v3693 = vadd.f32 %v3692, 1.0
  %v3694 = vrcp.pop %v3693
  %v3695 = vmul.f32 %v3693, %v3694
  %v3696 = vsub.f32 1.0, %v3695
  %v3697 = vmul.f32 %v3694, %v3696
  %v3698 = vadd.f32 %v3694, %v3697
  %vm3699 = vweird.f32 %v3693
  %vm3700 = vweird.f32 %v3694
  %vm3701 = vmor %vm3699, %vm3700
  %v3702 = vsel %vm3701, %v3694, %v3698
  %v3703 = vand.u32 2147483647, %v3693
  %vm3704 = vcmp.eq.f32.partialorder %v3703, 8.507059e+37
  %v3705 = vand.u32 %v3693, 2147483648
  %v3706 = vor.u32 1.1754944e-38, %v3705
  %v3707 = vsel %vm3704, %v3706, %v3702
  %v3708 = vmul.f32 1.0, %v3707
  %v3709 = vtanh.pop %v3606
  %v3710 = vxor.u32 %v3607, 2147483648
  %v3711 = vmul.f32 %v3710, 1.442695
  %v3712 = vpow.pop %v3711
  %v3713 = vadd.f32 %v3712, 1.0
  %v3714 = vrcp.pop %v3713
  %v3715 = vmul.f32 %v3713, %v3714
  %v3716 = vsub.f32 1.0, %v3715
  %v3717 = vmul.f32 %v3714, %v3716
  %v3718 = vadd.f32 %v3714, %v3717
  %vm3719 = vweird.f32 %v3713
  %vm3720 = vweird.f32 %v3714
  %vm3721 = vmor %vm3719, %vm3720
  %v3722 = vsel %vm3721, %v3714, %v3718
  %v3723 = vand.u32 2147483647, %v3713
  %vm3724 = vcmp.eq.f32.partialorder %v3723, 8.507059e+37
  %v3725 = vand.u32 %v3713, 2147483648
  %v3726 = vor.u32 1.1754944e-38, %v3725
  %v3727 = vsel %vm3724, %v3726, %v3722
  %v3728 = vmul.f32 1.0, %v3727
  %v3729 = vmul.f32 %v3708, %v3557
  %v3730 = vmul.f32 %v3689, %v3709
  %v3731 = vadd.f32 %v3729, %v3730
  %v3732 = vtanh.pop %v3731
  %v3733 = vmul.f32 %v3728, %v3732
  %3734 = vst [vmem:[#allocation3 + $0x78] sm:$0xff] %v3670
  %3735 = vst [vmem:[#allocation3 + $0x80] sm:$0xff] %v3733
  %v3736 = vld [vmem:[#allocation3] sm:$0xff]
  %v3737 = vld [vmem:[#allocation3 + $0x8] sm:$0xff]
  %v3738 = vld [vmem:[#allocation3 + $0x10] sm:$0xff]
  %v3739 = vld [vmem:[#allocation3 + $0x18] sm:$0xff]
  %v3740 = vld [vmem:[#allocation3 + $0x20] sm:$0xff]
  %v3741 = vld [vmem:[#allocation3 + $0x28] sm:$0xff]
  %v3742 = vld [vmem:[#allocation3 + $0x30] sm:$0xff]
  %v3743 = vld [vmem:[#allocation3 + $0x38] sm:$0xff]
  %v3744 = vld [vmem:[#allocation3 + $0x40] sm:$0xff]
  %v3745 = vld [vmem:[#allocation3 + $0x48] sm:$0xff]
  %v3746 = vld [vmem:[#allocation3 + $0x50] sm:$0xff]
  %v3747 = vld [vmem:[#allocation3 + $0x58] sm:$0xff]
  %v3748 = vld [vmem:[#allocation3 + $0x60] sm:$0xff]
  %v3749 = vld [vmem:[#allocation3 + $0x68] sm:$0xff]
  %v3750 = vld [vmem:[#allocation3 + $0x70] sm:$0xff]
  %v3751 = vld [vmem:[#allocation3 + $0x78] sm:$0xff]
  %v3752 = vld [vmem:[#allocation3 + $0x80] sm:$0xff]
  %v3753 = vld [vmem:[#allocation3 + $0x88] sm:$0xff]
  %v3754 = vld [vmem:[#allocation3 + $0x90] sm:$0xff]
  %v3755 = vld [vmem:[#allocation3 + $0x98] sm:$0xff]
  %v3756 = vld [vmem:[#allocation3 + $0xa0] sm:$0xff]
  %v3757 = vld [vmem:[#allocation3 + $0xa8] sm:$0xff]
  %v3758 = vld [vmem:[#allocation3 + $0xb0] sm:$0xff]
  %v3759 = vld [vmem:[#allocation3 + $0xb8] sm:$0xff]
  %v3760 = vld [vmem:[#allocation3 + $0xc0] sm:$0xff]
  %v3761 = vld [vmem:[#allocation3 + $0xc8] sm:$0xff]
  %v3762 = vld [vmem:[#allocation3 + $0xd0] sm:$0xff]
  %v3763 = vld [vmem:[#allocation3 + $0xd8] sm:$0xff]
  %v3764 = vld [vmem:[#allocation3 + $0xe0] sm:$0xff]
  %v3765 = vld [vmem:[#allocation3 + $0xe8] sm:$0xff]
  %v3766 = vld [vmem:[#allocation3 + $0xf0] sm:$0xff]
  %v3767 = vld [vmem:[#allocation3 + $0xf8] sm:$0xff]
  %v3768 = vpack.c.bf16 %v3752, %v3736
  %v3769 = vpack.c.bf16 %v3753, %v3737
  %v3770 = vpack.c.bf16 %v3754, %v3738
  %v3771 = vpack.c.bf16 %v3755, %v3739
  %v3772 = vpack.c.bf16 %v3756, %v3740
  %v3773 = vpack.c.bf16 %v3757, %v3741
  %v3774 = vpack.c.bf16 %v3758, %v3742
  %v3775 = vpack.c.bf16 %v3759, %v3743
  %v3776 = vpack.c.bf16 %v3760, %v3744
  %v3777 = vpack.c.bf16 %v3761, %v3745
  %v3778 = vpack.c.bf16 %v3762, %v3746
  %v3779 = vpack.c.bf16 %v3763, %v3747
  %v3780 = vpack.c.bf16 %v3764, %v3748
  %v3781 = vpack.c.bf16 %v3765, %v3749
  %v3782 = vpack.c.bf16 %v3766, %v3750
  %v3783 = vpack.c.bf16 %v3767, %v3751
  %v3784 = vld [vmem:[%s4] sm:$0xf]
  %v3785 = vld [vmem:[%s4 + $0x4] sm:$0xf]
  %v3786 = vld [vmem:[%s5] sm:$0xff]
  %v3787 = vld [vmem:[%s5 + $0x8] sm:$0xff]
  %3789 = vset.pattern.permute.xlu0 0
  %3790 = vperm.xlu0 %3789, %v3786
  %v3791 = vpop.permute.xlu0 %3790
  %3794 = vset.pattern.permute.xlu0 0
  %3795 = vperm.xlu0 %3794, %v3787
  %v3796 = vpop.permute.xlu0 %3795
  %v3800 = vunpack.c.l.b16 %v3784
  %v3801 = vunpack.c.l.b16 %v3785
  %v3802 = vpack.c.b16 %v3801, %v3800
  %v3804 = vsel %vm940, %v3802, 0
  %3806 = vmatpush.bf16.msra.mxu0 0
  %3807 = vmatpush.bf16.msra.mxu0 0
  %3808 = vmatpush.bf16.msra.mxu0 0
  %3809 = vmatpush.bf16.msra.mxu0 0
  %3810 = vmatpush.bf16.msra.mxu0 0
  %3811 = vmatpush.bf16.msra.mxu0 0
  %3812 = vmatpush.bf16.msra.mxu0 0
  %3813 = vmatpush.bf16.msra.mxu0 %v3768
  %3814 = vmatmul.bf16.gmra.mxu0 %v3804
  %v3815 = vpop.f32.mrf.mxu0
  %v3816 = vadd.f32 %v3791, %v3815
  %v3817 = vpop.f32.mrf.mxu0
  %v3818 = vadd.f32 %v3796, %v3817
  %3819 = vdwg.mxu0
  %3820 = vmatpush.bf16.msra.mxu0 0
  %3821 = vmatpush.bf16.msra.mxu0 0
  %3822 = vmatpush.bf16.msra.mxu0 0
  %3823 = vmatpush.bf16.msra.mxu0 0
  %3824 = vmatpush.bf16.msra.mxu0 0
  %3825 = vmatpush.bf16.msra.mxu0 0
  %3826 = vmatpush.bf16.msra.mxu0 0
  %3827 = vmatpush.bf16.msra.mxu0 %v3769
  %3828 = vmatmul.bf16.gmra.mxu0 %v3804
  %v3829 = vpop.f32.mrf.mxu0
  %v3830 = vadd.f32 %v3791, %v3829
  %v3831 = vpop.f32.mrf.mxu0
  %v3832 = vadd.f32 %v3796, %v3831
  %3833 = vdwg.mxu0
  %3834 = vmatpush.bf16.msra.mxu0 0
  %3835 = vmatpush.bf16.msra.mxu0 0
  %3836 = vmatpush.bf16.msra.mxu0 0
  %3837 = vmatpush.bf16.msra.mxu0 0
  %3838 = vmatpush.bf16.msra.mxu0 0
  %3839 = vmatpush.bf16.msra.mxu0 0
  %3840 = vmatpush.bf16.msra.mxu0 0
  %3841 = vmatpush.bf16.msra.mxu0 %v3770
  %3842 = vmatmul.bf16.gmra.mxu0 %v3804
  %v3843 = vpop.f32.mrf.mxu0
  %v3844 = vadd.f32 %v3791, %v3843
  %v3845 = vpop.f32.mrf.mxu0
  %v3846 = vadd.f32 %v3796, %v3845
  %3847 = vdwg.mxu0
  %3848 = vmatpush.bf16.msra.mxu0 0
  %3849 = vmatpush.bf16.msra.mxu0 0
  %3850 = vmatpush.bf16.msra.mxu0 0
  %3851 = vmatpush.bf16.msra.mxu0 0
  %3852 = vmatpush.bf16.msra.mxu0 0
  %3853 = vmatpush.bf16.msra.mxu0 0
  %3854 = vmatpush.bf16.msra.mxu0 0
  %3855 = vmatpush.bf16.msra.mxu0 %v3771
  %3856 = vmatmul.bf16.gmra.mxu0 %v3804
  %v3857 = vpop.f32.mrf.mxu0
  %v3858 = vadd.f32 %v3791, %v3857
  %v3859 = vpop.f32.mrf.mxu0
  %v3860 = vadd.f32 %v3796, %v3859
  %3861 = vdwg.mxu0
  %3862 = vmatpush.bf16.msra.mxu0 0
  %3863 = vmatpush.bf16.msra.mxu0 0
  %3864 = vmatpush.bf16.msra.mxu0 0
  %3865 = vmatpush.bf16.msra.mxu0 0
  %3866 = vmatpush.bf16.msra.mxu0 0
  %3867 = vmatpush.bf16.msra.mxu0 0
  %3868 = vmatpush.bf16.msra.mxu0 0
  %3869 = vmatpush.bf16.msra.mxu0 %v3772
  %3870 = vmatmul.bf16.gmra.mxu0 %v3804
  %v3871 = vpop.f32.mrf.mxu0
  %v3872 = vadd.f32 %v3791, %v3871
  %v3873 = vpop.f32.mrf.mxu0
  %v3874 = vadd.f32 %v3796, %v3873
  %3875 = vdwg.mxu0
  %3876 = vmatpush.bf16.msra.mxu0 0
  %3877 = vmatpush.bf16.msra.mxu0 0
  %3878 = vmatpush.bf16.msra.mxu0 0
  %3879 = vmatpush.bf16.msra.mxu0 0
  %3880 = vmatpush.bf16.msra.mxu0 0
  %3881 = vmatpush.bf16.msra.mxu0 0
  %3882 = vmatpush.bf16.msra.mxu0 0
  %3883 = vmatpush.bf16.msra.mxu0 %v3773
  %3884 = vmatmul.bf16.gmra.mxu0 %v3804
  %v3885 = vpop.f32.mrf.mxu0
  %v3886 = vadd.f32 %v3791, %v3885
  %v3887 = vpop.f32.mrf.mxu0
  %v3888 = vadd.f32 %v3796, %v3887
  %3889 = vdwg.mxu0
  %3890 = vmatpush.bf16.msra.mxu0 0
  %3891 = vmatpush.bf16.msra.mxu0 0
  %3892 = vmatpush.bf16.msra.mxu0 0
  %3893 = vmatpush.bf16.msra.mxu0 0
  %3894 = vmatpush.bf16.msra.mxu0 0
  %3895 = vmatpush.bf16.msra.mxu0 0
  %3896 = vmatpush.bf16.msra.mxu0 0
  %3897 = vmatpush.bf16.msra.mxu0 %v3774
  %3898 = vmatmul.bf16.gmra.mxu0 %v3804
  %v3899 = vpop.f32.mrf.mxu0
  %v3900 = vadd.f32 %v3791, %v3899
  %v3901 = vpop.f32.mrf.mxu0
  %v3902 = vadd.f32 %v3796, %v3901
  %3903 = vdwg.mxu0
  %3904 = vmatpush.bf16.msra.mxu0 0
  %3905 = vmatpush.bf16.msra.mxu0 0
  %3906 = vmatpush.bf16.msra.mxu0 0
  %3907 = vmatpush.bf16.msra.mxu0 0
  %3908 = vmatpush.bf16.msra.mxu0 0
  %3909 = vmatpush.bf16.msra.mxu0 0
  %3910 = vmatpush.bf16.msra.mxu0 0
  %3911 = vmatpush.bf16.msra.mxu0 %v3775
  %3912 = vmatmul.bf16.gmra.mxu0 %v3804
  %v3913 = vpop.f32.mrf.mxu0
  %v3914 = vadd.f32 %v3791, %v3913
  %v3915 = vpop.f32.mrf.mxu0
  %v3916 = vadd.f32 %v3796, %v3915
  %3917 = vdwg.mxu0
  %3918 = vmatpush.bf16.msra.mxu0 0
  %3919 = vmatpush.bf16.msra.mxu0 0
  %3920 = vmatpush.bf16.msra.mxu0 0
  %3921 = vmatpush.bf16.msra.mxu0 0
  %3922 = vmatpush.bf16.msra.mxu0 0
  %3923 = vmatpush.bf16.msra.mxu0 0
  %3924 = vmatpush.bf16.msra.mxu0 0
  %3925 = vmatpush.bf16.msra.mxu0 %v3776
  %3926 = vmatmul.bf16.gmra.mxu0 %v3804
  %v3927 = vpop.f32.mrf.mxu0
  %v3928 = vadd.f32 %v3791, %v3927
  %v3929 = vpop.f32.mrf.mxu0
  %v3930 = vadd.f32 %v3796, %v3929
  %3931 = vdwg.mxu0
  %3932 = vmatpush.bf16.msra.mxu0 0
  %3933 = vmatpush.bf16.msra.mxu0 0
  %3934 = vmatpush.bf16.msra.mxu0 0
  %3935 = vmatpush.bf16.msra.mxu0 0
  %3936 = vmatpush.bf16.msra.mxu0 0
  %3937 = vmatpush.bf16.msra.mxu0 0
  %3938 = vmatpush.bf16.msra.mxu0 0
  %3939 = vmatpush.bf16.msra.mxu0 %v3777
  %3940 = vmatmul.bf16.gmra.mxu0 %v3804
  %v3941 = vpop.f32.mrf.mxu0
  %v3942 = vadd.f32 %v3791, %v3941
  %v3943 = vpop.f32.mrf.mxu0
  %v3944 = vadd.f32 %v3796, %v3943
  %3945 = vdwg.mxu0
  %3946 = vmatpush.bf16.msra.mxu0 0
  %3947 = vmatpush.bf16.msra.mxu0 0
  %3948 = vmatpush.bf16.msra.mxu0 0
  %3949 = vmatpush.bf16.msra.mxu0 0
  %3950 = vmatpush.bf16.msra.mxu0 0
  %3951 = vmatpush.bf16.msra.mxu0 0
  %3952 = vmatpush.bf16.msra.mxu0 0
  %3953 = vmatpush.bf16.msra.mxu0 %v3778
  %3954 = vmatmul.bf16.gmra.mxu0 %v3804
  %v3955 = vpop.f32.mrf.mxu0
  %v3956 = vadd.f32 %v3791, %v3955
  %v3957 = vpop.f32.mrf.mxu0
  %v3958 = vadd.f32 %v3796, %v3957
  %3959 = vdwg.mxu0
  %3960 = vmatpush.bf16.msra.mxu0 0
  %3961 = vmatpush.bf16.msra.mxu0 0
  %3962 = vmatpush.bf16.msra.mxu0 0
  %3963 = vmatpush.bf16.msra.mxu0 0
  %3964 = vmatpush.bf16.msra.mxu0 0
  %3965 = vmatpush.bf16.msra.mxu0 0
  %3966 = vmatpush.bf16.msra.mxu0 0
  %3967 = vmatpush.bf16.msra.mxu0 %v3779
  %3968 = vmatmul.bf16.gmra.mxu0 %v3804
  %v3969 = vpop.f32.mrf.mxu0
  %v3970 = vadd.f32 %v3791, %v3969
  %v3971 = vpop.f32.mrf.mxu0
  %v3972 = vadd.f32 %v3796, %v3971
  %3973 = vdwg.mxu0
  %3974 = vmatpush.bf16.msra.mxu0 0
  %3975 = vmatpush.bf16.msra.mxu0 0
  %3976 = vmatpush.bf16.msra.mxu0 0
  %3977 = vmatpush.bf16.msra.mxu0 0
  %3978 = vmatpush.bf16.msra.mxu0 0
  %3979 = vmatpush.bf16.msra.mxu0 0
  %3980 = vmatpush.bf16.msra.mxu0 0
  %3981 = vmatpush.bf16.msra.mxu0 %v3780
  %3982 = vmatmul.bf16.gmra.mxu0 %v3804
  %v3983 = vpop.f32.mrf.mxu0
  %v3984 = vadd.f32 %v3791, %v3983
  %v3985 = vpop.f32.mrf.mxu0
  %v3986 = vadd.f32 %v3796, %v3985
  %3987 = vdwg.mxu0
  %3988 = vmatpush.bf16.msra.mxu0 0
  %3989 = vmatpush.bf16.msra.mxu0 0
  %3990 = vmatpush.bf16.msra.mxu0 0
  %3991 = vmatpush.bf16.msra.mxu0 0
  %3992 = vmatpush.bf16.msra.mxu0 0
  %3993 = vmatpush.bf16.msra.mxu0 0
  %3994 = vmatpush.bf16.msra.mxu0 0
  %3995 = vmatpush.bf16.msra.mxu0 %v3781
  %3996 = vmatmul.bf16.gmra.mxu0 %v3804
  %v3997 = vpop.f32.mrf.mxu0
  %v3998 = vadd.f32 %v3791, %v3997
  %v3999 = vpop.f32.mrf.mxu0
  %v4000 = vadd.f32 %v3796, %v3999
  %4001 = vdwg.mxu0
  %4002 = vmatpush.bf16.msra.mxu0 0
  %4003 = vmatpush.bf16.msra.mxu0 0
  %4004 = vmatpush.bf16.msra.mxu0 0
  %4005 = vmatpush.bf16.msra.mxu0 0
  %4006 = vmatpush.bf16.msra.mxu0 0
  %4007 = vmatpush.bf16.msra.mxu0 0
  %4008 = vmatpush.bf16.msra.mxu0 0
  %4009 = vmatpush.bf16.msra.mxu0 %v3782
  %4010 = vmatmul.bf16.gmra.mxu0 %v3804
  %v4011 = vpop.f32.mrf.mxu0
  %v4012 = vadd.f32 %v3791, %v4011
  %v4013 = vpop.f32.mrf.mxu0
  %v4014 = vadd.f32 %v3796, %v4013
  %4015 = vdwg.mxu0
  %4016 = vmatpush.bf16.msra.mxu0 0
  %4017 = vmatpush.bf16.msra.mxu0 0
  %4018 = vmatpush.bf16.msra.mxu0 0
  %4019 = vmatpush.bf16.msra.mxu0 0
  %4020 = vmatpush.bf16.msra.mxu0 0
  %4021 = vmatpush.bf16.msra.mxu0 0
  %4022 = vmatpush.bf16.msra.mxu0 0
  %4023 = vmatpush.bf16.msra.mxu0 %v3783
  %4024 = vmatmul.bf16.gmra.mxu0 %v3804
  %v4025 = vpop.f32.mrf.mxu0
  %v4026 = vadd.f32 %v3791, %v4025
  %v4027 = vpop.f32.mrf.mxu0
  %v4028 = vadd.f32 %v3796, %v4027
  %4029 = vdwg.mxu0
  %v4030 = vtanh.pop %v3816
  %v4031 = vtanh.pop %v3830
  %v4032 = vtanh.pop %v3844
  %v4033 = vtanh.pop %v3858
  %v4034 = vtanh.pop %v3872
  %v4035 = vtanh.pop %v3886
  %v4036 = vtanh.pop %v3900
  %v4037 = vtanh.pop %v3914
  %v4038 = vtanh.pop %v3928
  %v4039 = vtanh.pop %v3942
  %v4040 = vtanh.pop %v3956
  %v4041 = vtanh.pop %v3970
  %v4042 = vtanh.pop %v3984
  %v4043 = vtanh.pop %v3998
  %v4044 = vtanh.pop %v4012
  %v4045 = vtanh.pop %v4026
  %v4046 = vtanh.pop %v3818
  %v4047 = vtanh.pop %v3832
  %v4048 = vtanh.pop %v3846
  %v4049 = vtanh.pop %v3860
  %v4050 = vtanh.pop %v3874
  %v4051 = vtanh.pop %v3888
  %v4052 = vtanh.pop %v3902
  %v4053 = vtanh.pop %v3916
  %v4054 = vtanh.pop %v3930
  %v4055 = vtanh.pop %v3944
  %v4056 = vtanh.pop %v3958
  %v4057 = vtanh.pop %v3972
  %v4058 = vtanh.pop %v3986
  %v4059 = vtanh.pop %v4000
  %v4060 = vtanh.pop %v4014
  %v4061 = vtanh.pop %v4028
  %v4062 = vld [vmem:[%s6] sm:$0x3]
  %v4063 = vpack.c.bf16 %v4046, %v4030
  %v4064 = vpack.c.bf16 %v4047, %v4031
  %v4065 = vpack.c.bf16 %v4048, %v4032
  %v4066 = vpack.c.bf16 %v4049, %v4033
  %v4067 = vpack.c.bf16 %v4050, %v4034
  %v4068 = vpack.c.bf16 %v4051, %v4035
  %v4069 = vpack.c.bf16 %v4052, %v4036
  %v4070 = vpack.c.bf16 %v4053, %v4037
  %v4071 = vpack.c.bf16 %v4054, %v4038
  %v4072 = vpack.c.bf16 %v4055, %v4039
  %v4073 = vpack.c.bf16 %v4056, %v4040
  %v4074 = vpack.c.bf16 %v4057, %v4041
  %v4075 = vpack.c.bf16 %v4058, %v4042
  %v4076 = vpack.c.bf16 %v4059, %v4043
  %v4077 = vpack.c.bf16 %v4060, %v4044
  %v4078 = vpack.c.bf16 %v4061, %v4045
  %v4079 = vld [vmem:[%s7] sm:$0xf]
  %4081 = vset.pattern.permute.xlu0 0
  %4082 = vperm.xlu0 %4081, %v4079
  %v4083 = vpop.permute.xlu0 %4082
  %v4086 = vsel %vm940, %v4062, 0
  %4088 = vmatpush.bf16.msra.mxu0 0
  %4089 = vmatpush.bf16.msra.mxu0 0
  %4090 = vmatpush.bf16.msra.mxu0 0
  %4091 = vmatpush.bf16.msra.mxu0 0
  %4092 = vmatpush.bf16.msra.mxu0 0
  %4093 = vmatpush.bf16.msra.mxu0 0
  %4094 = vmatpush.bf16.msra.mxu0 0
  %4095 = vmatpush.bf16.msra.mxu0 %v4063
  %4096 = vmatmul.bf16.gmra.mxu0 %v4086
  %v4097 = vpop.f32.mrf.mxu0
  %v4098 = vadd.f32 %v4083, %v4097
  %v4099 = vpop.f32.mrf.mxu0
  %4100 = vdwg.mxu0
  %4101 = vmatpush.bf16.msra.mxu0 0
  %4102 = vmatpush.bf16.msra.mxu0 0
  %4103 = vmatpush.bf16.msra.mxu0 0
  %4104 = vmatpush.bf16.msra.mxu0 0
  %4105 = vmatpush.bf16.msra.mxu0 0
  %4106 = vmatpush.bf16.msra.mxu0 0
  %4107 = vmatpush.bf16.msra.mxu0 0
  %4108 = vmatpush.bf16.msra.mxu0 %v4064
  %4109 = vmatmul.bf16.gmra.mxu0 %v4086
  %v4110 = vpop.f32.mrf.mxu0
  %v4111 = vadd.f32 %v4083, %v4110
  %v4112 = vpop.f32.mrf.mxu0
  %4113 = vdwg.mxu0
  %4114 = vmatpush.bf16.msra.mxu0 0
  %4115 = vmatpush.bf16.msra.mxu0 0
  %4116 = vmatpush.bf16.msra.mxu0 0
  %4117 = vmatpush.bf16.msra.mxu0 0
  %4118 = vmatpush.bf16.msra.mxu0 0
  %4119 = vmatpush.bf16.msra.mxu0 0
  %4120 = vmatpush.bf16.msra.mxu0 0
  %4121 = vmatpush.bf16.msra.mxu0 %v4065
  %4122 = vmatmul.bf16.gmra.mxu0 %v4086
  %v4123 = vpop.f32.mrf.mxu0
  %v4124 = vadd.f32 %v4083, %v4123
  %v4125 = vpop.f32.mrf.mxu0
  %4126 = vdwg.mxu0
  %4127 = vmatpush.bf16.msra.mxu0 0
  %4128 = vmatpush.bf16.msra.mxu0 0
  %4129 = vmatpush.bf16.msra.mxu0 0
  %4130 = vmatpush.bf16.msra.mxu0 0
  %4131 = vmatpush.bf16.msra.mxu0 0
  %4132 = vmatpush.bf16.msra.mxu0 0
  %4133 = vmatpush.bf16.msra.mxu0 0
  %4134 = vmatpush.bf16.msra.mxu0 %v4066
  %4135 = vmatmul.bf16.gmra.mxu0 %v4086
  %v4136 = vpop.f32.mrf.mxu0
  %v4137 = vadd.f32 %v4083, %v4136
  %v4138 = vpop.f32.mrf.mxu0
  %4139 = vdwg.mxu0
  %4140 = vmatpush.bf16.msra.mxu0 0
  %4141 = vmatpush.bf16.msra.mxu0 0
  %4142 = vmatpush.bf16.msra.mxu0 0
  %4143 = vmatpush.bf16.msra.mxu0 0
  %4144 = vmatpush.bf16.msra.mxu0 0
  %4145 = vmatpush.bf16.msra.mxu0 0
  %4146 = vmatpush.bf16.msra.mxu0 0
  %4147 = vmatpush.bf16.msra.mxu0 %v4067
  %4148 = vmatmul.bf16.gmra.mxu0 %v4086
  %v4149 = vpop.f32.mrf.mxu0
  %v4150 = vadd.f32 %v4083, %v4149
  %v4151 = vpop.f32.mrf.mxu0
  %4152 = vdwg.mxu0
  %4153 = vmatpush.bf16.msra.mxu0 0
  %4154 = vmatpush.bf16.msra.mxu0 0
  %4155 = vmatpush.bf16.msra.mxu0 0
  %4156 = vmatpush.bf16.msra.mxu0 0
  %4157 = vmatpush.bf16.msra.mxu0 0
  %4158 = vmatpush.bf16.msra.mxu0 0
  %4159 = vmatpush.bf16.msra.mxu0 0
  %4160 = vmatpush.bf16.msra.mxu0 %v4068
  %4161 = vmatmul.bf16.gmra.mxu0 %v4086
  %v4162 = vpop.f32.mrf.mxu0
  %v4163 = vadd.f32 %v4083, %v4162
  %v4164 = vpop.f32.mrf.mxu0
  %4165 = vdwg.mxu0
  %4166 = vmatpush.bf16.msra.mxu0 0
  %4167 = vmatpush.bf16.msra.mxu0 0
  %4168 = vmatpush.bf16.msra.mxu0 0
  %4169 = vmatpush.bf16.msra.mxu0 0
  %4170 = vmatpush.bf16.msra.mxu0 0
  %4171 = vmatpush.bf16.msra.mxu0 0
  %4172 = vmatpush.bf16.msra.mxu0 0
  %4173 = vmatpush.bf16.msra.mxu0 %v4069
  %4174 = vmatmul.bf16.gmra.mxu0 %v4086
  %v4175 = vpop.f32.mrf.mxu0
  %v4176 = vadd.f32 %v4083, %v4175
  %v4177 = vpop.f32.mrf.mxu0
  %4178 = vdwg.mxu0
  %4179 = vmatpush.bf16.msra.mxu0 0
  %4180 = vmatpush.bf16.msra.mxu0 0
  %4181 = vmatpush.bf16.msra.mxu0 0
  %4182 = vmatpush.bf16.msra.mxu0 0
  %4183 = vmatpush.bf16.msra.mxu0 0
  %4184 = vmatpush.bf16.msra.mxu0 0
  %4185 = vmatpush.bf16.msra.mxu0 0
  %4186 = vmatpush.bf16.msra.mxu0 %v4070
  %4187 = vmatmul.bf16.gmra.mxu0 %v4086
  %v4188 = vpop.f32.mrf.mxu0
  %v4189 = vadd.f32 %v4083, %v4188
  %v4190 = vpop.f32.mrf.mxu0
  %4191 = vdwg.mxu0
  %4192 = vmatpush.bf16.msra.mxu0 0
  %4193 = vmatpush.bf16.msra.mxu0 0
  %4194 = vmatpush.bf16.msra.mxu0 0
  %4195 = vmatpush.bf16.msra.mxu0 0
  %4196 = vmatpush.bf16.msra.mxu0 0
  %4197 = vmatpush.bf16.msra.mxu0 0
  %4198 = vmatpush.bf16.msra.mxu0 0
  %4199 = vmatpush.bf16.msra.mxu0 %v4071
  %4200 = vmatmul.bf16.gmra.mxu0 %v4086
  %v4201 = vpop.f32.mrf.mxu0
  %v4202 = vadd.f32 %v4083, %v4201
  %v4203 = vpop.f32.mrf.mxu0
  %4204 = vdwg.mxu0
  %4205 = vmatpush.bf16.msra.mxu0 0
  %4206 = vmatpush.bf16.msra.mxu0 0
  %4207 = vmatpush.bf16.msra.mxu0 0
  %4208 = vmatpush.bf16.msra.mxu0 0
  %4209 = vmatpush.bf16.msra.mxu0 0
  %4210 = vmatpush.bf16.msra.mxu0 0
  %4211 = vmatpush.bf16.msra.mxu0 0
  %4212 = vmatpush.bf16.msra.mxu0 %v4072
  %4213 = vmatmul.bf16.gmra.mxu0 %v4086
  %v4214 = vpop.f32.mrf.mxu0
  %v4215 = vadd.f32 %v4083, %v4214
  %v4216 = vpop.f32.mrf.mxu0
  %4217 = vdwg.mxu0
  %4218 = vmatpush.bf16.msra.mxu0 0
  %4219 = vmatpush.bf16.msra.mxu0 0
  %4220 = vmatpush.bf16.msra.mxu0 0
  %4221 = vmatpush.bf16.msra.mxu0 0
  %4222 = vmatpush.bf16.msra.mxu0 0
  %4223 = vmatpush.bf16.msra.mxu0 0
  %4224 = vmatpush.bf16.msra.mxu0 0
  %4225 = vmatpush.bf16.msra.mxu0 %v4073
  %4226 = vmatmul.bf16.gmra.mxu0 %v4086
  %v4227 = vpop.f32.mrf.mxu0
  %v4228 = vadd.f32 %v4083, %v4227
  %v4229 = vpop.f32.mrf.mxu0
  %4230 = vdwg.mxu0
  %4231 = vmatpush.bf16.msra.mxu0 0
  %4232 = vmatpush.bf16.msra.mxu0 0
  %4233 = vmatpush.bf16.msra.mxu0 0
  %4234 = vmatpush.bf16.msra.mxu0 0
  %4235 = vmatpush.bf16.msra.mxu0 0
  %4236 = vmatpush.bf16.msra.mxu0 0
  %4237 = vmatpush.bf16.msra.mxu0 0
  %4238 = vmatpush.bf16.msra.mxu0 %v4074
  %4239 = vmatmul.bf16.gmra.mxu0 %v4086
  %v4240 = vpop.f32.mrf.mxu0
  %v4241 = vadd.f32 %v4083, %v4240
  %v4242 = vpop.f32.mrf.mxu0
  %4243 = vdwg.mxu0
  %4244 = vmatpush.bf16.msra.mxu0 0
  %4245 = vmatpush.bf16.msra.mxu0 0
  %4246 = vmatpush.bf16.msra.mxu0 0
  %4247 = vmatpush.bf16.msra.mxu0 0
  %4248 = vmatpush.bf16.msra.mxu0 0
  %4249 = vmatpush.bf16.msra.mxu0 0
  %4250 = vmatpush.bf16.msra.mxu0 0
  %4251 = vmatpush.bf16.msra.mxu0 %v4075
  %4252 = vmatmul.bf16.gmra.mxu0 %v4086
  %v4253 = vpop.f32.mrf.mxu0
  %v4254 = vadd.f32 %v4083, %v4253
  %v4255 = vpop.f32.mrf.mxu0
  %4256 = vdwg.mxu0
  %4257 = vmatpush.bf16.msra.mxu0 0
  %4258 = vmatpush.bf16.msra.mxu0 0
  %4259 = vmatpush.bf16.msra.mxu0 0
  %4260 = vmatpush.bf16.msra.mxu0 0
  %4261 = vmatpush.bf16.msra.mxu0 0
  %4262 = vmatpush.bf16.msra.mxu0 0
  %4263 = vmatpush.bf16.msra.mxu0 0
  %4264 = vmatpush.bf16.msra.mxu0 %v4076
  %4265 = vmatmul.bf16.gmra.mxu0 %v4086
  %v4266 = vpop.f32.mrf.mxu0
  %v4267 = vadd.f32 %v4083, %v4266
  %v4268 = vpop.f32.mrf.mxu0
  %4269 = vdwg.mxu0
  %4270 = vmatpush.bf16.msra.mxu0 0
  %4271 = vmatpush.bf16.msra.mxu0 0
  %4272 = vmatpush.bf16.msra.mxu0 0
  %4273 = vmatpush.bf16.msra.mxu0 0
  %4274 = vmatpush.bf16.msra.mxu0 0
  %4275 = vmatpush.bf16.msra.mxu0 0
  %4276 = vmatpush.bf16.msra.mxu0 0
  %4277 = vmatpush.bf16.msra.mxu0 %v4077
  %4278 = vmatmul.bf16.gmra.mxu0 %v4086
  %v4279 = vpop.f32.mrf.mxu0
  %v4280 = vadd.f32 %v4083, %v4279
  %v4281 = vpop.f32.mrf.mxu0
  %4282 = vdwg.mxu0
  %4283 = vmatpush.bf16.msra.mxu0 0
  %4284 = vmatpush.bf16.msra.mxu0 0
  %4285 = vmatpush.bf16.msra.mxu0 0
  %4286 = vmatpush.bf16.msra.mxu0 0
  %4287 = vmatpush.bf16.msra.mxu0 0
  %4288 = vmatpush.bf16.msra.mxu0 0
  %4289 = vmatpush.bf16.msra.mxu0 0
  %4290 = vmatpush.bf16.msra.mxu0 %v4078
  %4291 = vmatmul.bf16.gmra.mxu0 %v4086
  %v4292 = vpop.f32.mrf.mxu0
  %v4293 = vadd.f32 %v4083, %v4292
  %v4294 = vpop.f32.mrf.mxu0
  %4295 = vdwg.mxu0
  %v4296 = vld [vmem:[%s8] sm:$0x3]
  %v4298 = vsel %vm940, %v4296, 0
  %4300 = vmatpush.bf16.msra.mxu0 0
  %4301 = vmatpush.bf16.msra.mxu0 0
  %4302 = vmatpush.bf16.msra.mxu0 0
  %4303 = vmatpush.bf16.msra.mxu0 0
  %4304 = vmatpush.bf16.msra.mxu0 0
  %4305 = vmatpush.bf16.msra.mxu0 0
  %4306 = vmatpush.bf16.msra.mxu0 0
  %4307 = vmatpush.bf16.msra.mxu0 %v3768
  %4308 = vmatmul.bf16.gmra.mxu0 %v4298
  %v4309 = vpop.f32.mrf.mxu0
  %v4310 = vadd.f32 0.0, %v4309
  %v4311 = vpop.f32.mrf.mxu0
  %4312 = vdwg.mxu0
  %4313 = vmatpush.bf16.msra.mxu0 0
  %4314 = vmatpush.bf16.msra.mxu0 0
  %4315 = vmatpush.bf16.msra.mxu0 0
  %4316 = vmatpush.bf16.msra.mxu0 0
  %4317 = vmatpush.bf16.msra.mxu0 0
  %4318 = vmatpush.bf16.msra.mxu0 0
  %4319 = vmatpush.bf16.msra.mxu0 0
  %4320 = vmatpush.bf16.msra.mxu0 %v3769
  %4321 = vmatmul.bf16.gmra.mxu0 %v4298
  %v4322 = vpop.f32.mrf.mxu0
  %v4323 = vadd.f32 0.0, %v4322
  %v4324 = vpop.f32.mrf.mxu0
  %4325 = vdwg.mxu0
  %4326 = vmatpush.bf16.msra.mxu0 0
  %4327 = vmatpush.bf16.msra.mxu0 0
  %4328 = vmatpush.bf16.msra.mxu0 0
  %4329 = vmatpush.bf16.msra.mxu0 0
  %4330 = vmatpush.bf16.msra.mxu0 0
  %4331 = vmatpush.bf16.msra.mxu0 0
  %4332 = vmatpush.bf16.msra.mxu0 0
  %4333 = vmatpush.bf16.msra.mxu0 %v3770
  %4334 = vmatmul.bf16.gmra.mxu0 %v4298
  %v4335 = vpop.f32.mrf.mxu0
  %v4336 = vadd.f32 0.0, %v4335
  %v4337 = vpop.f32.mrf.mxu0
  %4338 = vdwg.mxu0
  %4339 = vmatpush.bf16.msra.mxu0 0
  %4340 = vmatpush.bf16.msra.mxu0 0
  %4341 = vmatpush.bf16.msra.mxu0 0
  %4342 = vmatpush.bf16.msra.mxu0 0
  %4343 = vmatpush.bf16.msra.mxu0 0
  %4344 = vmatpush.bf16.msra.mxu0 0
  %4345 = vmatpush.bf16.msra.mxu0 0
  %4346 = vmatpush.bf16.msra.mxu0 %v3771
  %4347 = vmatmul.bf16.gmra.mxu0 %v4298
  %v4348 = vpop.f32.mrf.mxu0
  %v4349 = vadd.f32 0.0, %v4348
  %v4350 = vpop.f32.mrf.mxu0
  %4351 = vdwg.mxu0
  %4352 = vmatpush.bf16.msra.mxu0 0
  %4353 = vmatpush.bf16.msra.mxu0 0
  %4354 = vmatpush.bf16.msra.mxu0 0
  %4355 = vmatpush.bf16.msra.mxu0 0
  %4356 = vmatpush.bf16.msra.mxu0 0
  %4357 = vmatpush.bf16.msra.mxu0 0
  %4358 = vmatpush.bf16.msra.mxu0 0
  %4359 = vmatpush.bf16.msra.mxu0 %v3772
  %4360 = vmatmul.bf16.gmra.mxu0 %v4298
  %v4361 = vpop.f32.mrf.mxu0
  %v4362 = vadd.f32 0.0, %v4361
  %v4363 = vpop.f32.mrf.mxu0
  %4364 = vdwg.mxu0
  %4365 = vmatpush.bf16.msra.mxu0 0
  %4366 = vmatpush.bf16.msra.mxu0 0
  %4367 = vmatpush.bf16.msra.mxu0 0
  %4368 = vmatpush.bf16.msra.mxu0 0
  %4369 = vmatpush.bf16.msra.mxu0 0
  %4370 = vmatpush.bf16.msra.mxu0 0
  %4371 = vmatpush.bf16.msra.mxu0 0
  %4372 = vmatpush.bf16.msra.mxu0 %v3773
  %4373 = vmatmul.bf16.gmra.mxu0 %v4298
  %v4374 = vpop.f32.mrf.mxu0
  %v4375 = vadd.f32 0.0, %v4374
  %v4376 = vpop.f32.mrf.mxu0
  %4377 = vdwg.mxu0
  %4378 = vmatpush.bf16.msra.mxu0 0
  %4379 = vmatpush.bf16.msra.mxu0 0
  %4380 = vmatpush.bf16.msra.mxu0 0
  %4381 = vmatpush.bf16.msra.mxu0 0
  %4382 = vmatpush.bf16.msra.mxu0 0
  %4383 = vmatpush.bf16.msra.mxu0 0
  %4384 = vmatpush.bf16.msra.mxu0 0
  %4385 = vmatpush.bf16.msra.mxu0 %v3774
  %4386 = vmatmul.bf16.gmra.mxu0 %v4298
  %v4387 = vpop.f32.mrf.mxu0
  %v4388 = vadd.f32 0.0, %v4387
  %v4389 = vpop.f32.mrf.mxu0
  %4390 = vdwg.mxu0
  %4391 = vmatpush.bf16.msra.mxu0 0
  %4392 = vmatpush.bf16.msra.mxu0 0
  %4393 = vmatpush.bf16.msra.mxu0 0
  %4394 = vmatpush.bf16.msra.mxu0 0
  %4395 = vmatpush.bf16.msra.mxu0 0
  %4396 = vmatpush.bf16.msra.mxu0 0
  %4397 = vmatpush.bf16.msra.mxu0 0
  %4398 = vmatpush.bf16.msra.mxu0 %v3775
  %4399 = vmatmul.bf16.gmra.mxu0 %v4298
  %v4400 = vpop.f32.mrf.mxu0
  %v4401 = vadd.f32 0.0, %v4400
  %v4402 = vpop.f32.mrf.mxu0
  %4403 = vdwg.mxu0
  %4404 = vmatpush.bf16.msra.mxu0 0
  %4405 = vmatpush.bf16.msra.mxu0 0
  %4406 = vmatpush.bf16.msra.mxu0 0
  %4407 = vmatpush.bf16.msra.mxu0 0
  %4408 = vmatpush.bf16.msra.mxu0 0
  %4409 = vmatpush.bf16.msra.mxu0 0
  %4410 = vmatpush.bf16.msra.mxu0 0
  %4411 = vmatpush.bf16.msra.mxu0 %v3776
  %4412 = vmatmul.bf16.gmra.mxu0 %v4298
  %v4413 = vpop.f32.mrf.mxu0
  %v4414 = vadd.f32 0.0, %v4413
  %v4415 = vpop.f32.mrf.mxu0
  %4416 = vdwg.mxu0
  %4417 = vmatpush.bf16.msra.mxu0 0
  %4418 = vmatpush.bf16.msra.mxu0 0
  %4419 = vmatpush.bf16.msra.mxu0 0
  %4420 = vmatpush.bf16.msra.mxu0 0
  %4421 = vmatpush.bf16.msra.mxu0 0
  %4422 = vmatpush.bf16.msra.mxu0 0
  %4423 = vmatpush.bf16.msra.mxu0 0
  %4424 = vmatpush.bf16.msra.mxu0 %v3777
  %4425 = vmatmul.bf16.gmra.mxu0 %v4298
  %v4426 = vpop.f32.mrf.mxu0
  %v4427 = vadd.f32 0.0, %v4426
  %v4428 = vpop.f32.mrf.mxu0
  %4429 = vdwg.mxu0
  %4430 = vmatpush.bf16.msra.mxu0 0
  %4431 = vmatpush.bf16.msra.mxu0 0
  %4432 = vmatpush.bf16.msra.mxu0 0
  %4433 = vmatpush.bf16.msra.mxu0 0
  %4434 = vmatpush.bf16.msra.mxu0 0
  %4435 = vmatpush.bf16.msra.mxu0 0
  %4436 = vmatpush.bf16.msra.mxu0 0
  %4437 = vmatpush.bf16.msra.mxu0 %v3778
  %4438 = vmatmul.bf16.gmra.mxu0 %v4298
  %v4439 = vpop.f32.mrf.mxu0
  %v4440 = vadd.f32 0.0, %v4439
  %v4441 = vpop.f32.mrf.mxu0
  %4442 = vdwg.mxu0
  %4443 = vmatpush.bf16.msra.mxu0 0
  %4444 = vmatpush.bf16.msra.mxu0 0
  %4445 = vmatpush.bf16.msra.mxu0 0
  %4446 = vmatpush.bf16.msra.mxu0 0
  %4447 = vmatpush.bf16.msra.mxu0 0
  %4448 = vmatpush.bf16.msra.mxu0 0
  %4449 = vmatpush.bf16.msra.mxu0 0
  %4450 = vmatpush.bf16.msra.mxu0 %v3779
  %4451 = vmatmul.bf16.gmra.mxu0 %v4298
  %v4452 = vpop.f32.mrf.mxu0
  %v4453 = vadd.f32 0.0, %v4452
  %v4454 = vpop.f32.mrf.mxu0
  %4455 = vdwg.mxu0
  %4456 = vmatpush.bf16.msra.mxu0 0
  %4457 = vmatpush.bf16.msra.mxu0 0
  %4458 = vmatpush.bf16.msra.mxu0 0
  %4459 = vmatpush.bf16.msra.mxu0 0
  %4460 = vmatpush.bf16.msra.mxu0 0
  %4461 = vmatpush.bf16.msra.mxu0 0
  %4462 = vmatpush.bf16.msra.mxu0 0
  %4463 = vmatpush.bf16.msra.mxu0 %v3780
  %4464 = vmatmul.bf16.gmra.mxu0 %v4298
  %v4465 = vpop.f32.mrf.mxu0
  %v4466 = vadd.f32 0.0, %v4465
  %v4467 = vpop.f32.mrf.mxu0
  %4468 = vdwg.mxu0
  %4469 = vmatpush.bf16.msra.mxu0 0
  %4470 = vmatpush.bf16.msra.mxu0 0
  %4471 = vmatpush.bf16.msra.mxu0 0
  %4472 = vmatpush.bf16.msra.mxu0 0
  %4473 = vmatpush.bf16.msra.mxu0 0
  %4474 = vmatpush.bf16.msra.mxu0 0
  %4475 = vmatpush.bf16.msra.mxu0 0
  %4476 = vmatpush.bf16.msra.mxu0 %v3781
  %4477 = vmatmul.bf16.gmra.mxu0 %v4298
  %v4478 = vpop.f32.mrf.mxu0
  %v4479 = vadd.f32 0.0, %v4478
  %v4480 = vpop.f32.mrf.mxu0
  %4481 = vdwg.mxu0
  %4482 = vmatpush.bf16.msra.mxu0 0
  %4483 = vmatpush.bf16.msra.mxu0 0
  %4484 = vmatpush.bf16.msra.mxu0 0
  %4485 = vmatpush.bf16.msra.mxu0 0
  %4486 = vmatpush.bf16.msra.mxu0 0
  %4487 = vmatpush.bf16.msra.mxu0 0
  %4488 = vmatpush.bf16.msra.mxu0 0
  %4489 = vmatpush.bf16.msra.mxu0 %v3782
  %4490 = vmatmul.bf16.gmra.mxu0 %v4298
  %v4491 = vpop.f32.mrf.mxu0
  %v4492 = vadd.f32 0.0, %v4491
  %v4493 = vpop.f32.mrf.mxu0
  %4494 = vdwg.mxu0
  %4495 = vmatpush.bf16.msra.mxu0 0
  %4496 = vmatpush.bf16.msra.mxu0 0
  %4497 = vmatpush.bf16.msra.mxu0 0
  %4498 = vmatpush.bf16.msra.mxu0 0
  %4499 = vmatpush.bf16.msra.mxu0 0
  %4500 = vmatpush.bf16.msra.mxu0 0
  %4501 = vmatpush.bf16.msra.mxu0 0
  %4502 = vmatpush.bf16.msra.mxu0 %v3783
  %4503 = vmatmul.bf16.gmra.mxu0 %v4298
  %v4504 = vpop.f32.mrf.mxu0
  %v4505 = vadd.f32 0.0, %v4504
  %v4506 = vpop.f32.mrf.mxu0
  %4507 = vdwg.mxu0
  %vm4508 = vcmask 1043456
  %v4509 = vsel %vm4508, %v4098, -inf
  %v4510 = vsel %vm4508, %v4111, -inf
  %v4511 = vsel %vm4508, %v4124, -inf
  %v4512 = vsel %vm4508, %v4137, -inf
  %v4513 = vsel %vm4508, %v4150, -inf
  %v4514 = vmax.f32 %v4509, %v4513
  %v4515 = vsel %vm4508, %v4163, -inf
  %v4516 = vmax.f32 %v4510, %v4515
  %v4517 = vsel %vm4508, %v4176, -inf
  %v4518 = vmax.f32 %v4511, %v4517
  %v4519 = vsel %vm4508, %v4189, -inf
  %v4520 = vmax.f32 %v4512, %v4519
  %v4521 = vsel %vm4508, %v4202, -inf
  %v4522 = vmax.f32 %v4514, %v4521
  %v4523 = vsel %vm4508, %v4215, -inf
  %v4524 = vmax.f32 %v4516, %v4523
  %v4525 = vsel %vm4508, %v4228, -inf
  %v4526 = vmax.f32 %v4518, %v4525
  %v4527 = vsel %vm4508, %v4241, -inf
  %v4528 = vmax.f32 %v4520, %v4527
  %v4529 = vsel %vm4508, %v4254, -inf
  %v4530 = vmax.f32 %v4522, %v4529
  %v4531 = vsel %vm4508, %v4267, -inf
  %v4532 = vmax.f32 %v4524, %v4531
  %v4533 = vsel %vm4508, %v4280, -inf
  %v4534 = vmax.f32 %v4526, %v4533
  %v4535 = vsel %vm4508, %v4293, -inf
  %v4536 = vmax.f32 %v4528, %v4535
  %v4537 = vmax.f32 %v4530, %v4532
  %v4538 = vmax.f32 %v4534, %v4536
  %v4539 = vmax.f32 %v4537, %v4538
  %4540 = vmax.xlane.f32.xlu0 %v4539
  %v4541 = vpop.xlane.xlu0 %4540
  %v4542 = vsel %vm4508, %v4541, -inf
  %v4543 = vrot.slane %v4542, 4
  %v4544 = vmax.f32 %v4542, %v4543
  %v4545 = vrot.slane %v4544, 2
  %v4546 = vmax.f32 %v4544, %v4545
  %v4547 = vrot.slane %v4546, 1
  %v4548 = vmax.f32 %v4546, %v4547
  %v4549 = vlaneseq
  %v4550 = vand.u32 %v4549, 127
  %vm4551 = vcmp.lt.s32.totalorder %v4550, 8
  %v4552 = vsel %vm4551, 1, 0
  %v4553 = vcvt.s32.f32 %v4552
  %v4554 = vsub.f32 %v4098, %v4548
  %v4555 = vmul.f32 %v4554, 1.442695
  %v4556 = vpow.pop %v4555
  %v4557 = vmul.f32 %v4556, %v4553
  %v4558 = vsel %vm4508, %v4557, 0.0
  %4559 = vadd.xlane.f32.xlu0 %v4558
  %v4560 = vpop.xlane.xlu0 %4559
  %v4561 = vrcp.pop %v4560
  %v4562 = vmul.f32 %v4557, %v4561
  %v4563 = vmul.f32 %v4562, %v4310
  %v4564 = vsel %vm4508, %v4563, 0.0
  %v4565 = vrot.slane %v4564, 4
  %v4566 = vadd.f32 %v4564, %v4565
  %v4567 = vrot.slane %v4566, 2
  %v4568 = vadd.f32 %v4566, %v4567
  %v4569 = vrot.slane %v4568, 1
  %v4570 = vadd.f32 %v4568, %v4569
  %v4571 = vadd.f32 %v4570, 0.0
  %v4572 = vsub.f32 %v4111, %v4548
  %v4573 = vmul.f32 %v4572, 1.442695
  %v4574 = vpow.pop %v4573
  %v4575 = vmul.f32 %v4574, %v4553
  %v4576 = vsel %vm4508, %v4575, 0.0
  %4577 = vadd.xlane.f32.xlu0 %v4576
  %v4578 = vpop.xlane.xlu0 %4577
  %v4579 = vrcp.pop %v4578
  %v4580 = vmul.f32 %v4575, %v4579
  %v4581 = vmul.f32 %v4580, %v4323
  %v4582 = vsel %vm4508, %v4581, 0.0
  %v4583 = vrot.slane %v4582, 4
  %v4584 = vadd.f32 %v4582, %v4583
  %v4585 = vrot.slane %v4584, 2
  %v4586 = vadd.f32 %v4584, %v4585
  %v4587 = vrot.slane %v4586, 1
  %v4588 = vadd.f32 %v4586, %v4587
  %v4589 = vadd.f32 %v4571, %v4588
  %v4590 = vsub.f32 %v4124, %v4548
  %v4591 = vmul.f32 %v4590, 1.442695
  %v4592 = vpow.pop %v4591
  %v4593 = vmul.f32 %v4592, %v4553
  %v4594 = vsel %vm4508, %v4593, 0.0
  %4595 = vadd.xlane.f32.xlu0 %v4594
  %v4596 = vpop.xlane.xlu0 %4595
  %v4597 = vrcp.pop %v4596
  %v4598 = vmul.f32 %v4593, %v4597
  %v4599 = vmul.f32 %v4598, %v4336
  %v4600 = vsel %vm4508, %v4599, 0.0
  %v4601 = vrot.slane %v4600, 4
  %v4602 = vadd.f32 %v4600, %v4601
  %v4603 = vrot.slane %v4602, 2
  %v4604 = vadd.f32 %v4602, %v4603
  %v4605 = vrot.slane %v4604, 1
  %v4606 = vadd.f32 %v4604, %v4605
  %v4607 = vadd.f32 %v4589, %v4606
  %v4608 = vsub.f32 %v4137, %v4548
  %v4609 = vmul.f32 %v4608, 1.442695
  %v4610 = vpow.pop %v4609
  %v4611 = vmul.f32 %v4610, %v4553
  %v4612 = vsel %vm4508, %v4611, 0.0
  %4613 = vadd.xlane.f32.xlu0 %v4612
  %v4614 = vpop.xlane.xlu0 %4613
  %v4615 = vrcp.pop %v4614
  %v4616 = vmul.f32 %v4611, %v4615
  %v4617 = vmul.f32 %v4616, %v4349
  %v4618 = vsel %vm4508, %v4617, 0.0
  %v4619 = vrot.slane %v4618, 4
  %v4620 = vadd.f32 %v4618, %v4619
  %v4621 = vrot.slane %v4620, 2
  %v4622 = vadd.f32 %v4620, %v4621
  %v4623 = vrot.slane %v4622, 1
  %v4624 = vadd.f32 %v4622, %v4623
  %v4625 = vadd.f32 %v4607, %v4624
  %v4626 = vsub.f32 %v4150, %v4548
  %v4627 = vmul.f32 %v4626, 1.442695
  %v4628 = vpow.pop %v4627
  %v4629 = vmul.f32 %v4628, %v4553
  %v4630 = vsel %vm4508, %v4629, 0.0
  %4631 = vadd.xlane.f32.xlu0 %v4630
  %v4632 = vpop.xlane.xlu0 %4631
  %v4633 = vrcp.pop %v4632
  %v4634 = vmul.f32 %v4629, %v4633
  %v4635 = vmul.f32 %v4634, %v4362
  %v4636 = vsel %vm4508, %v4635, 0.0
  %v4637 = vrot.slane %v4636, 4
  %v4638 = vadd.f32 %v4636, %v4637
  %v4639 = vrot.slane %v4638, 2
  %v4640 = vadd.f32 %v4638, %v4639
  %v4641 = vrot.slane %v4640, 1
  %v4642 = vadd.f32 %v4640, %v4641
  %v4643 = vadd.f32 %v4625, %v4642
  %v4644 = vsub.f32 %v4163, %v4548
  %v4645 = vmul.f32 %v4644, 1.442695
  %v4646 = vpow.pop %v4645
  %v4647 = vmul.f32 %v4646, %v4553
  %v4648 = vsel %vm4508, %v4647, 0.0
  %4649 = vadd.xlane.f32.xlu0 %v4648
  %v4650 = vpop.xlane.xlu0 %4649
  %v4651 = vrcp.pop %v4650
  %v4652 = vmul.f32 %v4647, %v4651
  %v4653 = vmul.f32 %v4652, %v4375
  %v4654 = vsel %vm4508, %v4653, 0.0
  %v4655 = vrot.slane %v4654, 4
  %v4656 = vadd.f32 %v4654, %v4655
  %v4657 = vrot.slane %v4656, 2
  %v4658 = vadd.f32 %v4656, %v4657
  %v4659 = vrot.slane %v4658, 1
  %v4660 = vadd.f32 %v4658, %v4659
  %v4661 = vadd.f32 %v4643, %v4660
  %v4662 = vsub.f32 %v4176, %v4548
  %v4663 = vmul.f32 %v4662, 1.442695
  %v4664 = vpow.pop %v4663
  %v4665 = vmul.f32 %v4664, %v4553
  %v4666 = vsel %vm4508, %v4665, 0.0
  %4667 = vadd.xlane.f32.xlu0 %v4666
  %v4668 = vpop.xlane.xlu0 %4667
  %v4669 = vrcp.pop %v4668
  %v4670 = vmul.f32 %v4665, %v4669
  %v4671 = vmul.f32 %v4670, %v4388
  %v4672 = vsel %vm4508, %v4671, 0.0
  %v4673 = vrot.slane %v4672, 4
  %v4674 = vadd.f32 %v4672, %v4673
  %v4675 = vrot.slane %v4674, 2
  %v4676 = vadd.f32 %v4674, %v4675
  %v4677 = vrot.slane %v4676, 1
  %v4678 = vadd.f32 %v4676, %v4677
  %v4679 = vadd.f32 %v4661, %v4678
  %v4680 = vsub.f32 %v4189, %v4548
  %v4681 = vmul.f32 %v4680, 1.442695
  %v4682 = vpow.pop %v4681
  %v4683 = vmul.f32 %v4682, %v4553
  %v4684 = vsel %vm4508, %v4683, 0.0
  %4685 = vadd.xlane.f32.xlu0 %v4684
  %v4686 = vpop.xlane.xlu0 %4685
  %v4687 = vrcp.pop %v4686
  %v4688 = vmul.f32 %v4683, %v4687
  %v4689 = vmul.f32 %v4688, %v4401
  %v4690 = vsel %vm4508, %v4689, 0.0
  %v4691 = vrot.slane %v4690, 4
  %v4692 = vadd.f32 %v4690, %v4691
  %v4693 = vrot.slane %v4692, 2
  %v4694 = vadd.f32 %v4692, %v4693
  %v4695 = vrot.slane %v4694, 1
  %v4696 = vadd.f32 %v4694, %v4695
  %v4697 = vadd.f32 %v4679, %v4696
  %v4698 = vsub.f32 %v4202, %v4548
  %v4699 = vmul.f32 %v4698, 1.442695
  %v4700 = vpow.pop %v4699
  %v4701 = vmul.f32 %v4700, %v4553
  %v4702 = vsel %vm4508, %v4701, 0.0
  %4703 = vadd.xlane.f32.xlu0 %v4702
  %v4704 = vpop.xlane.xlu0 %4703
  %v4705 = vrcp.pop %v4704
  %v4706 = vmul.f32 %v4701, %v4705
  %v4707 = vmul.f32 %v4706, %v4414
  %v4708 = vsel %vm4508, %v4707, 0.0
  %v4709 = vrot.slane %v4708, 4
  %v4710 = vadd.f32 %v4708, %v4709
  %v4711 = vrot.slane %v4710, 2
  %v4712 = vadd.f32 %v4710, %v4711
  %v4713 = vrot.slane %v4712, 1
  %v4714 = vadd.f32 %v4712, %v4713
  %v4715 = vadd.f32 %v4697, %v4714
  %v4716 = vsub.f32 %v4215, %v4548
  %v4717 = vmul.f32 %v4716, 1.442695
  %v4718 = vpow.pop %v4717
  %v4719 = vmul.f32 %v4718, %v4553
  %v4720 = vsel %vm4508, %v4719, 0.0
  %4721 = vadd.xlane.f32.xlu0 %v4720
  %v4722 = vpop.xlane.xlu0 %4721
  %v4723 = vrcp.pop %v4722
  %v4724 = vmul.f32 %v4719, %v4723
  %v4725 = vmul.f32 %v4724, %v4427
  %v4726 = vsel %vm4508, %v4725, 0.0
  %v4727 = vrot.slane %v4726, 4
  %v4728 = vadd.f32 %v4726, %v4727
  %v4729 = vrot.slane %v4728, 2
  %v4730 = vadd.f32 %v4728, %v4729
  %v4731 = vrot.slane %v4730, 1
  %v4732 = vadd.f32 %v4730, %v4731
  %v4733 = vadd.f32 %v4715, %v4732
  %v4734 = vsub.f32 %v4228, %v4548
  %v4735 = vmul.f32 %v4734, 1.442695
  %v4736 = vpow.pop %v4735
  %v4737 = vmul.f32 %v4736, %v4553
  %v4738 = vsel %vm4508, %v4737, 0.0
  %4739 = vadd.xlane.f32.xlu0 %v4738
  %v4740 = vpop.xlane.xlu0 %4739
  %v4741 = vrcp.pop %v4740
  %v4742 = vmul.f32 %v4737, %v4741
  %v4743 = vmul.f32 %v4742, %v4440
  %v4744 = vsel %vm4508, %v4743, 0.0
  %v4745 = vrot.slane %v4744, 4
  %v4746 = vadd.f32 %v4744, %v4745
  %v4747 = vrot.slane %v4746, 2
  %v4748 = vadd.f32 %v4746, %v4747
  %v4749 = vrot.slane %v4748, 1
  %v4750 = vadd.f32 %v4748, %v4749
  %v4751 = vadd.f32 %v4733, %v4750
  %v4752 = vsub.f32 %v4241, %v4548
  %v4753 = vmul.f32 %v4752, 1.442695
  %v4754 = vpow.pop %v4753
  %v4755 = vmul.f32 %v4754, %v4553
  %v4756 = vsel %vm4508, %v4755, 0.0
  %4757 = vadd.xlane.f32.xlu0 %v4756
  %v4758 = vpop.xlane.xlu0 %4757
  %v4759 = vrcp.pop %v4758
  %v4760 = vmul.f32 %v4755, %v4759
  %v4761 = vmul.f32 %v4760, %v4453
  %v4762 = vsel %vm4508, %v4761, 0.0
  %v4763 = vrot.slane %v4762, 4
  %v4764 = vadd.f32 %v4762, %v4763
  %v4765 = vrot.slane %v4764, 2
  %v4766 = vadd.f32 %v4764, %v4765
  %v4767 = vrot.slane %v4766, 1
  %v4768 = vadd.f32 %v4766, %v4767
  %v4769 = vadd.f32 %v4751, %v4768
  %v4770 = vsub.f32 %v4254, %v4548
  %v4771 = vmul.f32 %v4770, 1.442695
  %v4772 = vpow.pop %v4771
  %v4773 = vmul.f32 %v4772, %v4553
  %v4774 = vsel %vm4508, %v4773, 0.0
  %4775 = vadd.xlane.f32.xlu0 %v4774
  %v4776 = vpop.xlane.xlu0 %4775
  %v4777 = vrcp.pop %v4776
  %v4778 = vmul.f32 %v4773, %v4777
  %v4779 = vmul.f32 %v4778, %v4466
  %v4780 = vsel %vm4508, %v4779, 0.0
  %v4781 = vrot.slane %v4780, 4
  %v4782 = vadd.f32 %v4780, %v4781
  %v4783 = vrot.slane %v4782, 2
  %v4784 = vadd.f32 %v4782, %v4783
  %v4785 = vrot.slane %v4784, 1
  %v4786 = vadd.f32 %v4784, %v4785
  %v4787 = vadd.f32 %v4769, %v4786
  %v4788 = vsub.f32 %v4267, %v4548
  %v4789 = vmul.f32 %v4788, 1.442695
  %v4790 = vpow.pop %v4789
  %v4791 = vmul.f32 %v4790, %v4553
  %v4792 = vsel %vm4508, %v4791, 0.0
  %4793 = vadd.xlane.f32.xlu0 %v4792
  %v4794 = vpop.xlane.xlu0 %4793
  %v4795 = vrcp.pop %v4794
  %v4796 = vmul.f32 %v4791, %v4795
  %v4797 = vmul.f32 %v4796, %v4479
  %v4798 = vsel %vm4508, %v4797, 0.0
  %v4799 = vrot.slane %v4798, 4
  %v4800 = vadd.f32 %v4798, %v4799
  %v4801 = vrot.slane %v4800, 2
  %v4802 = vadd.f32 %v4800, %v4801
  %v4803 = vrot.slane %v4802, 1
  %v4804 = vadd.f32 %v4802, %v4803
  %v4805 = vadd.f32 %v4787, %v4804
  %v4806 = vsub.f32 %v4280, %v4548
  %v4807 = vmul.f32 %v4806, 1.442695
  %v4808 = vpow.pop %v4807
  %v4809 = vmul.f32 %v4808, %v4553
  %v4810 = vsel %vm4508, %v4809, 0.0
  %4811 = vadd.xlane.f32.xlu0 %v4810
  %v4812 = vpop.xlane.xlu0 %4811
  %v4813 = vrcp.pop %v4812
  %v4814 = vmul.f32 %v4809, %v4813
  %v4815 = vmul.f32 %v4814, %v4492
  %v4816 = vsel %vm4508, %v4815, 0.0
  %v4817 = vrot.slane %v4816, 4
  %v4818 = vadd.f32 %v4816, %v4817
  %v4819 = vrot.slane %v4818, 2
  %v4820 = vadd.f32 %v4818, %v4819
  %v4821 = vrot.slane %v4820, 1
  %v4822 = vadd.f32 %v4820, %v4821
  %v4823 = vadd.f32 %v4805, %v4822
  %v4824 = vsub.f32 %v4293, %v4548
  %v4825 = vmul.f32 %v4824, 1.442695
  %v4826 = vpow.pop %v4825
  %v4827 = vmul.f32 %v4826, %v4553
  %v4828 = vsel %vm4508, %v4827, 0.0
  %4829 = vadd.xlane.f32.xlu0 %v4828
  %v4830 = vpop.xlane.xlu0 %4829
  %v4831 = vrcp.pop %v4830
  %v4832 = vmul.f32 %v4827, %v4831
  %v4833 = vmul.f32 %v4832, %v4505
  %v4834 = vsel %vm4508, %v4833, 0.0
  %v4835 = vrot.slane %v4834, 4
  %v4836 = vadd.f32 %v4834, %v4835
  %v4837 = vrot.slane %v4836, 2
  %v4838 = vadd.f32 %v4836, %v4837
  %v4839 = vrot.slane %v4838, 1
  %v4840 = vadd.f32 %v4838, %v4839
  %v4841 = vadd.f32 %v4823, %v4840
  %v4842 = vld [vmem:[#allocation4] sm:$0x1]
  %4844 = vset.pattern.permute.xlu0 0
  %4845 = vperm.xlu0 %4844, %v4842
  %v4846 = vpop.permute.xlu0 %4845
  %v4848 = vperm.slane %v4846, 0
  %v4849 = vadd.f32 %v4841, %v4848
  %v4850 = vxor.u32 %v4849, 2147483648
  %v4851 = vmul.f32 %v4850, 1.442695
  %v4852 = vpow.pop %v4851
  %v4853 = vadd.f32 %v4852, 1.0
  %v4854 = vrcp.pop %v4853
  %v4855 = vmul.f32 %v4853, %v4854
  %v4856 = vsub.f32 1.0, %v4855
  %v4857 = vmul.f32 %v4854, %v4856
  %v4858 = vadd.f32 %v4854, %v4857
  %vm4859 = vweird.f32 %v4853
  %vm4860 = vweird.f32 %v4854
  %vm4861 = vmor %vm4859, %vm4860
  %v4862 = vsel %vm4861, %v4854, %v4858
  %v4863 = vand.u32 2147483647, %v4853
  %vm4864 = vcmp.eq.f32.partialorder %v4863, 8.507059e+37
  %v4865 = vand.u32 %v4853, 2147483648
  %v4866 = vor.u32 1.1754944e-38, %v4865
  %v4867 = vsel %vm4864, %v4866, %v4862
  %v4868 = vmul.f32 1.0, %v4867
  %4869 = vst [vmem:[%s10] sm:$0x1] %v4868
  // Predicated region
  $region42: #{self_attentive_forward.1} parent=0 // pred_check
    _
  $region43: #{self_attentive_forward.1} parent=0 // pred_check_branch
    %4871 = sbr.rel (0) target = $region45
  $region44: #{self_attentive_forward.1} parent=0 // pred_region
    _
  $region45: #{self_attentive_forward.1} parent=0 // pred_fallthru
    _
  // Predicated region
  $region46: #{self_attentive_forward.1} parent=0 // pred_check
    _
  $region47: #{self_attentive_forward.1} parent=0 // pred_check_branch
    %4873 = sbr.rel (0) target = $region49
  $region48: #{self_attentive_forward.1} parent=0 // pred_region
    _
  $region49: #{self_attentive_forward.1} parent=0 // pred_fallthru
    _

</llo_original>
